<compile_context>
chip_gen: v6e
topology: v6e:2x2x1
jax: 0.10.0
libtpu: 0.0.40
codegen_flags: <defaults>
</compile_context>

<pallas_src>
import numpy as np

import jax
import jax.numpy as jnp
from jax.experimental import pallas as pl
from jax.experimental.pallas import tpu as pltpu


# Flat-spatial geometry: conv1/pool1 live on a 32x32 zero-padded grid (1024 lanes,
# image in rows/cols 1..28); conv2/pool2 live on a 16x16 zero-padded grid
# (256 lanes, map in rows/cols 1..14).
_G1, _N1 = 32, 32 * 32
_G2, _N2 = 16, 16 * 16
_CONV1_SHIFTS = tuple((dy - 1) * _G1 + (dx - 1) for dy in range(3) for dx in range(3))
_CONV2_SHIFTS = tuple((dy - 1) * _G2 + (dx - 1) for dy in range(3) for dx in range(3))


# --------------------------- Kernel A: conv stage ---------------------------

def _conv_stage_kernel(x_ref, w1_ref, b1_ref, s1_ref, w2_ref, b2_ref, s2_ref,
                       o_ref):
    def shifted(v, s, n):
        # shifted(v)[.., q] == v[.., q + s]  (static lane roll; s==0 is a no-op)
        return v if s == 0 else pltpu.roll(v, (-s) % n, axis=1)

    xp = x_ref[0]                                            # (1, 1024) f32

    # conv1 (1->32, 3x3, pad 1): K=9 is far too small for the MXU, so do it as
    # 9 rank-1 VPU multiply-adds in f32.
    acc1 = jnp.zeros((32, _N1), jnp.float32)
    for t, s in enumerate(_CONV1_SHIFTS):
        acc1 = acc1 + w1_ref[:, t:t + 1] * shifted(xp, s, _N1)
    h1 = jnp.maximum(acc1 + b1_ref[...], 0.0)                # (32, 1024)

    # maxpool 2x2: adjacent max along x, then along y, then subsample the 14x14
    # anchors and scatter them into a zero-ringed 16x16 grid with one constant
    # 0/1 selection matmul (bf16 x bf16 -> f32; exact for a 0/1 matrix).
    m = jnp.maximum(h1, shifted(h1, 1, _N1))
    m = jnp.maximum(m, shifted(m, _G1, _N1))
    p1 = jnp.dot(m.astype(jnp.bfloat16), s1_ref[...],
                 preferred_element_type=jnp.float32)         # (32, 256)

    # conv2 (32->64, 3x3, pad 1): 9 bf16 MXU GEMMs, f32 accumulation.
    acc2 = jnp.zeros((64, _N2), jnp.float32)
    for t, s in enumerate(_CONV2_SHIFTS):
        acc2 = acc2 + jnp.dot(w2_ref[t],
                              shifted(p1, s, _N2).astype(jnp.bfloat16),
                              preferred_element_type=jnp.float32)
    h2 = jnp.maximum(acc2 + b2_ref[...], 0.0)                # (64, 256)

    # maxpool 2x2 -> 7x7, flattened row-major onto 49 lanes.
    m2 = jnp.maximum(h2, shifted(h2, 1, _N2))
    m2 = jnp.maximum(m2, shifted(m2, _G2, _N2))
    p2 = jnp.dot(m2.astype(jnp.bfloat16), s2_ref[...],
                 preferred_element_type=jnp.float32)         # (64, 49)

    o_ref[0] = p2


def conv_stage(xflat, w1, b1, s1, w2, b2, s2):
    B = xflat.shape[0]

    def const_spec(shape):
        ndim = len(shape)
        return pl.BlockSpec(shape, lambda b: (0,) * ndim)

    return pl.pallas_call(
        _conv_stage_kernel,
        out_shape=jax.ShapeDtypeStruct((B, 64, 49), jnp.float32),
        grid_spec=pltpu.PrefetchScalarGridSpec(
            num_scalar_prefetch=0,
            grid=(B,),
            in_specs=[
                pl.BlockSpec((1, 1, _N1), lambda b: (b, 0, 0)),  # image
                const_spec((32, 9)),        # conv1 weight  (Cout, tap)
                const_spec((32, 1)),        # conv1 bias
                const_spec((_N1, _N2)),     # pool-1 selection (bf16)
                const_spec((9, 64, 32)),    # conv2 weight  (tap, Cout, Cin) bf16
                const_spec((64, 1)),        # conv2 bias
                const_spec((_N2, 49)),      # pool-2 selection (bf16)
            ],
            out_specs=pl.BlockSpec((1, 64, 49), lambda b: (b, 0, 0)),
        ),
        compiler_params=pltpu.CompilerParams(
            dimension_semantics=("parallel",)),
    )(xflat, w1, b1, s1, w2, b2, s2)


# ----------------------------- Kernel B: fc head ----------------------------

def _fc_head_kernel(x_ref, w1_ref, b1_ref, w2_ref, b2_ref, o_ref):
    h = jnp.dot(x_ref[...].astype(jnp.bfloat16), w1_ref[...],
                preferred_element_type=jnp.float32) + b1_ref[...]
    h = jnp.maximum(h, 0.0)
    o_ref[...] = jnp.dot(h.astype(jnp.bfloat16), w2_ref[...],
                         preferred_element_type=jnp.float32) + b2_ref[...]


def fc_head(flat, w1, b1, w2, b2):
    B = flat.shape[0]
    vmem = pl.BlockSpec(memory_space=pltpu.MemorySpace.VMEM)
    return pl.pallas_call(
        _fc_head_kernel,
        out_shape=jax.ShapeDtypeStruct((B, 128), jnp.float32),  # lane-dense
        in_specs=[vmem] * 5,
        out_specs=vmem,
    )(flat, w1, b1, w2, b2)


# -------------------------------- parameters --------------------------------

def init_raw_params(key):
    # Deterministic synthetic weights, PyTorch-default-like uniform ranges.
    ks = jax.random.split(key, 8)

    def u(k, shape, fan_in):
        bound = 1.0 / np.sqrt(float(fan_in))
        return jax.random.uniform(k, shape, jnp.float32, -bound, bound)

    return {
        "conv1_w": u(ks[0], (32, 1, 3, 3), 9),
        "conv1_b": u(ks[1], (32,), 9),
        "conv2_w": u(ks[2], (64, 32, 3, 3), 32 * 9),
        "conv2_b": u(ks[3], (64,), 32 * 9),
        "fc1_w":   u(ks[4], (128, 64 * 7 * 7), 64 * 7 * 7),
        "fc1_b":   u(ks[5], (128,), 64 * 7 * 7),
        "fc2_w":   u(ks[6], (10, 128), 128),
        "fc2_b":   u(ks[7], (10,), 128),
    }


def _build_pool_selects():
    # S1: (1024, 256) -- picks the 14x14 pool-1 anchors off the 32x32 grid and
    # scatters them into the interior of a zero-ringed 16x16 grid (the zero
    # ring is conv2's padding).
    s1 = np.zeros((_N1, _N2), np.float32)
    for i in range(14):
        for j in range(14):
            s1[(1 + 2 * i) * _G1 + (1 + 2 * j), (i + 1) * _G2 + (j + 1)] = 1.0
    # S2: (256, 49) -- picks the 7x7 pool-2 anchors, row-major (== PyTorch's
    # spatial flatten order).
    s2 = np.zeros((_N2, 49), np.float32)
    for i in range(7):
        for j in range(7):
            s2[(1 + 2 * i) * _G2 + (1 + 2 * j), i * 7 + j] = 1.0
    return jnp.asarray(s1, jnp.bfloat16), jnp.asarray(s2, jnp.bfloat16)


def prepare_params(raw):
    # All layout work (transposes / reshapes / channel padding) happens ONCE,
    # here, so the jitted forward never permutes weights at runtime.
    s1, s2 = _build_pool_selects()
    w2 = jnp.transpose(raw["conv2_w"], (2, 3, 0, 1)).reshape(9, 64, 32)
    wfc2 = jnp.zeros((128, 128), jnp.float32).at[:, :10].set(raw["fc2_w"].T)
    bfc2 = jnp.zeros((1, 128), jnp.float32).at[0, :10].set(raw["fc2_b"])
    return {
        "w1": raw["conv1_w"].reshape(32, 9),          # (Cout, dy*3+dx), f32
        "b1": raw["conv1_b"].reshape(32, 1),
        "S1": s1,
        "w2": w2.astype(jnp.bfloat16),                # (tap, Cout, Cin)
        "b2": raw["conv2_b"].reshape(64, 1),
        "S2": s2,
        "wfc1": raw["fc1_w"].T.astype(jnp.bfloat16),  # (3136, 128), rows = c*49+s
        "bfc1": raw["fc1_b"].reshape(1, 128),
        "wfc2": wfc2.astype(jnp.bfloat16),            # (128, 128), cols 10.. zero
        "bfc2": bfc2,
    }


# ---------------------------------- forward ---------------------------------

def cnn_forward(params, x_nchw):
    # x_nchw: (B, 1, 28, 28), matching the PyTorch module's NCHW input.
    B = x_nchw.shape[0]
    # Zero-pad the 28x28 image into a 32x32 grid (image at rows/cols 1..28) and
    # flatten spatial onto the lane axis.  Tiny input-side op only.
    xpad = jnp.pad(x_nchw[:, 0], ((0, 0), (1, 3), (1, 3)))
    xflat = xpad.reshape(B, 1, _N1)

    p2 = conv_stage(xflat, params["w1"], params["b1"], params["S1"],
                    params["w2"], params["b2"], params["S2"])      # (B, 64, 49)

    # nn.Flatten on NCHW == row-major flatten of (C, 7*7): free contiguous
    # reshape (fc1 weight rows were laid out to match at init).
    flat = p2.reshape(B, 64 * 49)

    logits_pad = fc_head(flat, params["wfc1"], params["bfc1"],
                         params["wfc2"], params["bfc2"])           # (B, 128)
    return logits_pad[:, :10]


if __name__ == "__main__":
    key = jax.random.PRNGKey(0)
    pkey, xkey = jax.random.split(key)
    raw = init_raw_params(pkey)
    params = prepare_params(raw)

    # Spatial size 28x28 is dictated by Linear(64*7*7, 128); batch kept small.
    x = jax.random.normal(xkey, (2, 1, 28, 28), dtype=jnp.float32)

    logits = jax.block_until_ready(jax.jit(cnn_forward)(params, x))
    assert logits.shape == (2, 10) and logits.dtype == jnp.float32
    print("KERNEL_OK")
</pallas_src>

<mosaic_0001>
module attributes {stable_mosaic.version = 11 : i64} {
  func.func @_fc_head_kernel(%arg0: memref<2x3136xf32, #tpu.memory_space<vmem>>, %arg1: memref<3136x128xbf16, #tpu.memory_space<vmem>>, %arg2: memref<1x128xf32, #tpu.memory_space<vmem>>, %arg3: memref<128x128xbf16, #tpu.memory_space<vmem>>, %arg4: memref<1x128xf32, #tpu.memory_space<vmem>>, %arg5: memref<2x128xf32, #tpu.memory_space<vmem>>) attributes {dimension_semantics = [], scalar_prefetch = 0 : i64, scratch_operands = 0 : i64, tpu.core_type = #tpu.core_type<tc>} {
    %c0 = arith.constant 0 : index
    %c0_0 = arith.constant 0 : index
    %0 = vector.load %arg0[%c0, %c0_0] : memref<2x3136xf32, #tpu.memory_space<vmem>>, vector<2x3136xf32>
    %1 = arith.truncf %0 : vector<2x3136xf32> to vector<2x3136xbf16>
    %c0_1 = arith.constant 0 : index
    %c0_2 = arith.constant 0 : index
    %2 = vector.load %arg1[%c0_1, %c0_2] : memref<3136x128xbf16, #tpu.memory_space<vmem>>, vector<3136x128xbf16>
    %cst = arith.constant dense<0.000000e+00> : vector<2x128xf32>
    %3 = tpu.matmul %1, %2, %cst {dimension_numbers = #tpu.dot_dimension_numbers<[1], [0], [0], [1], [0, 0, 1, 1], [], []>} : vector<2x3136xbf16>, vector<3136x128xbf16>, vector<2x128xf32> -> vector<2x128xf32>
    %c0_3 = arith.constant 0 : index
    %c0_4 = arith.constant 0 : index
    %4 = vector.load %arg2[%c0_3, %c0_4] : memref<1x128xf32, #tpu.memory_space<vmem>>, vector<1x128xf32>
    %5 = vector.broadcast %4 : vector<1x128xf32> to vector<2x128xf32>
    %6 = arith.addf %3, %5 : vector<2x128xf32>
    %cst_5 = arith.constant 0.000000e+00 : f32
    %7 = vector.broadcast %cst_5 : f32 to vector<2x128xf32>
    %8 = arith.maximumf %6, %7 : vector<2x128xf32>
    %9 = arith.truncf %8 : vector<2x128xf32> to vector<2x128xbf16>
    %c0_6 = arith.constant 0 : index
    %c0_7 = arith.constant 0 : index
    %10 = vector.load %arg3[%c0_6, %c0_7] : memref<128x128xbf16, #tpu.memory_space<vmem>>, vector<128x128xbf16>
    %cst_8 = arith.constant dense<0.000000e+00> : vector<2x128xf32>
    %11 = tpu.matmul %9, %10, %cst_8 {dimension_numbers = #tpu.dot_dimension_numbers<[1], [0], [0], [1], [0, 0, 1, 1], [], []>} : vector<2x128xbf16>, vector<128x128xbf16>, vector<2x128xf32> -> vector<2x128xf32>
    %c0_9 = arith.constant 0 : index
    %c0_10 = arith.constant 0 : index
    %12 = vector.load %arg4[%c0_9, %c0_10] : memref<1x128xf32, #tpu.memory_space<vmem>>, vector<1x128xf32>
    %13 = vector.broadcast %12 : vector<1x128xf32> to vector<2x128xf32>
    %14 = arith.addf %11, %13 : vector<2x128xf32>
    %c0_11 = arith.constant 0 : index
    %c0_12 = arith.constant 0 : index
    %15 = vector.load %arg5[%c0_11, %c0_12] : memref<2x128xf32, #tpu.memory_space<vmem>>, vector<2x128xf32>
    tpu.vector_store %arg5[%c0_11, %c0_12], %14 {strides = array<i32>} : memref<2x128xf32, #tpu.memory_space<vmem>>, vector<2x128xf32>,
    return
  }
}

module attributes {stable_mosaic.version = 11 : i64} {
  func.func @_conv_stage_kernel(%arg0: i32, %arg1: memref<1x1x1024xf32, #tpu.memory_space<vmem>>, %arg2: memref<32x9xf32, #tpu.memory_space<vmem>>, %arg3: memref<32x1xf32, #tpu.memory_space<vmem>>, %arg4: memref<1024x256xbf16, #tpu.memory_space<vmem>>, %arg5: memref<9x64x32xbf16, #tpu.memory_space<vmem>>, %arg6: memref<64x1xf32, #tpu.memory_space<vmem>>, %arg7: memref<256x49xbf16, #tpu.memory_space<vmem>>, %arg8: memref<1x64x49xf32, #tpu.memory_space<vmem>>) attributes {dimension_semantics = [#tpu.dimension_semantics<parallel>], iteration_bounds = array<i64: 2>, scalar_prefetch = 0 : i64, scratch_operands = 0 : i64, tpu.core_type = #tpu.core_type<tc>, window_params = [{transform_indices = @transform_0, window_bounds = array<i64: 1, 1, 1024>}, {pipeline_mode = #tpu.pipeline_mode<synchronous>, transform_indices = @transform_1, window_bounds = array<i64: 32, 9>}, {pipeline_mode = #tpu.pipeline_mode<synchronous>, transform_indices = @transform_2, window_bounds = array<i64: 32, 1>}, {pipeline_mode = #tpu.pipeline_mode<synchronous>, transform_indices = @transform_3, window_bounds = array<i64: 1024, 256>}, {pipeline_mode = #tpu.pipeline_mode<synchronous>, transform_indices = @transform_4, window_bounds = array<i64: 9, 64, 32>}, {pipeline_mode = #tpu.pipeline_mode<synchronous>, transform_indices = @transform_5, window_bounds = array<i64: 64, 1>}, {pipeline_mode = #tpu.pipeline_mode<synchronous>, transform_indices = @transform_6, window_bounds = array<i64: 256, 49>}, {transform_indices = @transform_7, window_bounds = array<i64: 1, 64, 49>}]} {
    %c0 = arith.constant 0 : index
    %c0_0 = arith.constant 0 : index
    %c0_1 = arith.constant 0 : index
    %0 = vector.load %arg1[%c0, %c0_0, %c0_1] : memref<1x1x1024xf32, #tpu.memory_space<vmem>>, vector<1x1x1024xf32>
    %1 = vector.shape_cast %0 : vector<1x1x1024xf32> to vector<1x1024xf32>
    %cst = arith.constant 0.000000e+00 : f32
    %2 = vector.broadcast %cst : f32 to vector<32x1024xf32>
    %c0_2 = arith.constant 0 : index
    %c0_3 = arith.constant 0 : index
    %3 = vector.load %arg2[%c0_2, %c0_3] : memref<32x9xf32, #tpu.memory_space<vmem>>, vector<32x1xf32>
    %c33_i32 = arith.constant 33 : i32
    %4 = tpu.dynamic_rotate %1 by %c33_i32 dim 1 : vector<1x1024xf32>, i32 -> vector<1x1024xf32>
    %5 = vector.broadcast %3 : vector<32x1xf32> to vector<32x1024xf32>
    %6 = vector.broadcast %4 : vector<1x1024xf32> to vector<32x1024xf32>
    %7 = arith.mulf %5, %6 : vector<32x1024xf32>
    %8 = arith.addf %2, %7 : vector<32x1024xf32>
    %c0_4 = arith.constant 0 : index
    %c1 = arith.constant 1 : index
    %9 = vector.load %arg2[%c0_4, %c1] : memref<32x9xf32, #tpu.memory_space<vmem>>, vector<32x1xf32>
    %c32_i32 = arith.constant 32 : i32
    %10 = tpu.dynamic_rotate %1 by %c32_i32 dim 1 : vector<1x1024xf32>, i32 -> vector<1x1024xf32>
    %11 = vector.broadcast %9 : vector<32x1xf32> to vector<32x1024xf32>
    %12 = vector.broadcast %10 : vector<1x1024xf32> to vector<32x1024xf32>
    %13 = arith.mulf %11, %12 : vector<32x1024xf32>
    %14 = arith.addf %8, %13 : vector<32x1024xf32>
    %c0_5 = arith.constant 0 : index
    %c2 = arith.constant 2 : index
    %15 = vector.load %arg2[%c0_5, %c2] : memref<32x9xf32, #tpu.memory_space<vmem>>, vector<32x1xf32>
    %c31_i32 = arith.constant 31 : i32
    %16 = tpu.dynamic_rotate %1 by %c31_i32 dim 1 : vector<1x1024xf32>, i32 -> vector<1x1024xf32>
    %17 = vector.broadcast %15 : vector<32x1xf32> to vector<32x1024xf32>
    %18 = vector.broadcast %16 : vector<1x1024xf32> to vector<32x1024xf32>
    %19 = arith.mulf %17, %18 : vector<32x1024xf32>
    %20 = arith.addf %14, %19 : vector<32x1024xf32>
    %c0_6 = arith.constant 0 : index
    %c3 = arith.constant 3 : index
    %21 = vector.load %arg2[%c0_6, %c3] : memref<32x9xf32, #tpu.memory_space<vmem>>, vector<32x1xf32>
    %c1_i32 = arith.constant 1 : i32
    %22 = tpu.dynamic_rotate %1 by %c1_i32 dim 1 : vector<1x1024xf32>, i32 -> vector<1x1024xf32>
    %23 = vector.broadcast %21 : vector<32x1xf32> to vector<32x1024xf32>
    %24 = vector.broadcast %22 : vector<1x1024xf32> to vector<32x1024xf32>
    %25 = arith.mulf %23, %24 : vector<32x1024xf32>
    %26 = arith.addf %20, %25 : vector<32x1024xf32>
    %c0_7 = arith.constant 0 : index
    %c4 = arith.constant 4 : index
    %27 = vector.load %arg2[%c0_7, %c4] : memref<32x9xf32, #tpu.memory_space<vmem>>, vector<32x1xf32>
    %28 = vector.broadcast %27 : vector<32x1xf32> to vector<32x1024xf32>
    %29 = vector.broadcast %1 : vector<1x1024xf32> to vector<32x1024xf32>
    %30 = arith.mulf %28, %29 : vector<32x1024xf32>
    %31 = arith.addf %26, %30 : vector<32x1024xf32>
    %c0_8 = arith.constant 0 : index
    %c5 = arith.constant 5 : index
    %32 = vector.load %arg2[%c0_8, %c5] : memref<32x9xf32, #tpu.memory_space<vmem>>, vector<32x1xf32>
    %c1023_i32 = arith.constant 1023 : i32
    %33 = tpu.dynamic_rotate %1 by %c1023_i32 dim 1 : vector<1x1024xf32>, i32 -> vector<1x1024xf32>
    %34 = vector.broadcast %32 : vector<32x1xf32> to vector<32x1024xf32>
    %35 = vector.broadcast %33 : vector<1x1024xf32> to vector<32x1024xf32>
    %36 = arith.mulf %34, %35 : vector<32x1024xf32>
    %37 = arith.addf %31, %36 : vector<32x1024xf32>
    %c0_9 = arith.constant 0 : index
    %c6 = arith.constant 6 : index
    %38 = vector.load %arg2[%c0_9, %c6] : memref<32x9xf32, #tpu.memory_space<vmem>>, vector<32x1xf32>
    %c993_i32 = arith.constant 993 : i32
    %39 = tpu.dynamic_rotate %1 by %c993_i32 dim 1 : vector<1x1024xf32>, i32 -> vector<1x1024xf32>
    %40 = vector.broadcast %38 : vector<32x1xf32> to vector<32x1024xf32>
    %41 = vector.broadcast %39 : vector<1x1024xf32> to vector<32x1024xf32>
    %42 = arith.mulf %40, %41 : vector<32x1024xf32>
    %43 = arith.addf %37, %42 : vector<32x1024xf32>
    %c0_10 = arith.constant 0 : index
    %c7 = arith.constant 7 : index
    %44 = vector.load %arg2[%c0_10, %c7] : memref<32x9xf32, #tpu.memory_space<vmem>>, vector<32x1xf32>
    %c992_i32 = arith.constant 992 : i32
    %45 = tpu.dynamic_rotate %1 by %c992_i32 dim 1 : vector<1x1024xf32>, i32 -> vector<1x1024xf32>
    %46 = vector.broadcast %44 : vector<32x1xf32> to vector<32x1024xf32>
    %47 = vector.broadcast %45 : vector<1x1024xf32> to vector<32x1024xf32>
    %48 = arith.mulf %46, %47 : vector<32x1024xf32>
    %49 = arith.addf %43, %48 : vector<32x1024xf32>
    %c0_11 = arith.constant 0 : index
    %c8 = arith.constant 8 : index
    %50 = vector.load %arg2[%c0_11, %c8] : memref<32x9xf32, #tpu.memory_space<vmem>>, vector<32x1xf32>
    %c991_i32 = arith.constant 991 : i32
    %51 = tpu.dynamic_rotate %1 by %c991_i32 dim 1 : vector<1x1024xf32>, i32 -> vector<1x1024xf32>
    %52 = vector.broadcast %50 : vector<32x1xf32> to vector<32x1024xf32>
    %53 = vector.broadcast %51 : vector<1x1024xf32> to vector<32x1024xf32>
    %54 = arith.mulf %52, %53 : vector<32x1024xf32>
    %55 = arith.addf %49, %54 : vector<32x1024xf32>
    %c0_12 = arith.constant 0 : index
    %c0_13 = arith.constant 0 : index
    %56 = vector.load %arg3[%c0_12, %c0_13] : memref<32x1xf32, #tpu.memory_space<vmem>>, vector<32x1xf32>
    %57 = vector.broadcast %56 : vector<32x1xf32> to vector<32x1024xf32>
    %58 = arith.addf %55, %57 : vector<32x1024xf32>
    %cst_14 = arith.constant 0.000000e+00 : f32
    %59 = vector.broadcast %cst_14 : f32 to vector<32x1024xf32>
    %60 = arith.maximumf %58, %59 : vector<32x1024xf32>
    %c1023_i32_15 = arith.constant 1023 : i32
    %61 = tpu.dynamic_rotate %60 by %c1023_i32_15 dim 1 : vector<32x1024xf32>, i32 -> vector<32x1024xf32>
    %62 = arith.maximumf %60, %61 : vector<32x1024xf32>
    %c992_i32_16 = arith.constant 992 : i32
    %63 = tpu.dynamic_rotate %62 by %c992_i32_16 dim 1 : vector<32x1024xf32>, i32 -> vector<32x1024xf32>
    %64 = arith.maximumf %62, %63 : vector<32x1024xf32>
    %65 = arith.truncf %64 : vector<32x1024xf32> to vector<32x1024xbf16>
    %c0_17 = arith.constant 0 : index
    %c0_18 = arith.constant 0 : index
    %66 = vector.load %arg4[%c0_17, %c0_18] : memref<1024x256xbf16, #tpu.memory_space<vmem>>, vector<1024x256xbf16>
    %cst_19 = arith.constant dense<0.000000e+00> : vector<32x256xf32>
    %67 = tpu.matmul %65, %66, %cst_19 {dimension_numbers = #tpu.dot_dimension_numbers<[1], [0], [0], [1], [0, 0, 1, 1], [], []>} : vector<32x1024xbf16>, vector<1024x256xbf16>, vector<32x256xf32> -> vector<32x256xf32>
    %cst_20 = arith.constant 0.000000e+00 : f32
    %68 = vector.broadcast %cst_20 : f32 to vector<64x256xf32>
    %c0_21 = arith.constant 0 : index
    %c0_22 = arith.constant 0 : index
    %c0_23 = arith.constant 0 : index
    %69 = vector.load %arg5[%c0_21, %c0_22, %c0_23] : memref<9x64x32xbf16, #tpu.memory_space<vmem>>, vector<1x64x32xbf16>
    %70 = vector.shape_cast %69 : vector<1x64x32xbf16> to vector<64x32xbf16>
    %c17_i32 = arith.constant 17 : i32
    %71 = tpu.dynamic_rotate %67 by %c17_i32 dim 1 : vector<32x256xf32>, i32 -> vector<32x256xf32>
    %72 = arith.truncf %71 : vector<32x256xf32> to vector<32x256xbf16>
    %cst_24 = arith.constant dense<0.000000e+00> : vector<64x256xf32>
    %73 = tpu.matmul %70, %72, %cst_24 {dimension_numbers = #tpu.dot_dimension_numbers<[1], [0], [0], [1], [0, 0, 1, 1], [], []>} : vector<64x32xbf16>, vector<32x256xbf16>, vector<64x256xf32> -> vector<64x256xf32>
    %74 = arith.addf %68, %73 : vector<64x256xf32>
    %c1_25 = arith.constant 1 : index
    %c0_26 = arith.constant 0 : index
    %c0_27 = arith.constant 0 : index
    %75 = vector.load %arg5[%c1_25, %c0_26, %c0_27] : memref<9x64x32xbf16, #tpu.memory_space<vmem>>, vector<1x64x32xbf16>
    %76 = vector.shape_cast %75 : vector<1x64x32xbf16> to vector<64x32xbf16>
    %c16_i32 = arith.constant 16 : i32
    %77 = tpu.dynamic_rotate %67 by %c16_i32 dim 1 : vector<32x256xf32>, i32 -> vector<32x256xf32>
    %78 = arith.truncf %77 : vector<32x256xf32> to vector<32x256xbf16>
    %cst_28 = arith.constant dense<0.000000e+00> : vector<64x256xf32>
    %79 = tpu.matmul %76, %78, %cst_28 {dimension_numbers = #tpu.dot_dimension_numbers<[1], [0], [0], [1], [0, 0, 1, 1], [], []>} : vector<64x32xbf16>, vector<32x256xbf16>, vector<64x256xf32> -> vector<64x256xf32>
    %80 = arith.addf %74, %79 : vector<64x256xf32>
    %c2_29 = arith.constant 2 : index
    %c0_30 = arith.constant 0 : index
    %c0_31 = arith.constant 0 : index
    %81 = vector.load %arg5[%c2_29, %c0_30, %c0_31] : memref<9x64x32xbf16, #tpu.memory_space<vmem>>, vector<1x64x32xbf16>
    %82 = vector.shape_cast %81 : vector<1x64x32xbf16> to vector<64x32xbf16>
    %c15_i32 = arith.constant 15 : i32
    %83 = tpu.dynamic_rotate %67 by %c15_i32 dim 1 : vector<32x256xf32>, i32 -> vector<32x256xf32>
    %84 = arith.truncf %83 : vector<32x256xf32> to vector<32x256xbf16>
    %cst_32 = arith.constant dense<0.000000e+00> : vector<64x256xf32>
    %85 = tpu.matmul %82, %84, %cst_32 {dimension_numbers = #tpu.dot_dimension_numbers<[1], [0], [0], [1], [0, 0, 1, 1], [], []>} : vector<64x32xbf16>, vector<32x256xbf16>, vector<64x256xf32> -> vector<64x256xf32>
    %86 = arith.addf %80, %85 : vector<64x256xf32>
    %c3_33 = arith.constant 3 : index
    %c0_34 = arith.constant 0 : index
    %c0_35 = arith.constant 0 : index
    %87 = vector.load %arg5[%c3_33, %c0_34, %c0_35] : memref<9x64x32xbf16, #tpu.memory_space<vmem>>, vector<1x64x32xbf16>
    %88 = vector.shape_cast %87 : vector<1x64x32xbf16> to vector<64x32xbf16>
    %c1_i32_36 = arith.constant 1 : i32
    %89 = tpu.dynamic_rotate %67 by %c1_i32_36 dim 1 : vector<32x256xf32>, i32 -> vector<32x256xf32>
    %90 = arith.truncf %89 : vector<32x256xf32> to vector<32x256xbf16>
    %cst_37 = arith.constant dense<0.000000e+00> : vector<64x256xf32>
    %91 = tpu.matmul %88, %90, %cst_37 {dimension_numbers = #tpu.dot_dimension_numbers<[1], [0], [0], [1], [0, 0, 1, 1], [], []>} : vector<64x32xbf16>, vector<32x256xbf16>, vector<64x256xf32> -> vector<64x256xf32>
    %92 = arith.addf %86, %91 : vector<64x256xf32>
    %c4_38 = arith.constant 4 : index
    %c0_39 = arith.constant 0 : index
    %c0_40 = arith.constant 0 : index
    %93 = vector.load %arg5[%c4_38, %c0_39, %c0_40] : memref<9x64x32xbf16, #tpu.memory_space<vmem>>, vector<1x64x32xbf16>
    %94 = vector.shape_cast %93 : vector<1x64x32xbf16> to vector<64x32xbf16>
    %95 = arith.truncf %67 : vector<32x256xf32> to vector<32x256xbf16>
    %cst_41 = arith.constant dense<0.000000e+00> : vector<64x256xf32>
    %96 = tpu.matmul %94, %95, %cst_41 {dimension_numbers = #tpu.dot_dimension_numbers<[1], [0], [0], [1], [0, 0, 1, 1], [], []>} : vector<64x32xbf16>, vector<32x256xbf16>, vector<64x256xf32> -> vector<64x256xf32>
    %97 = arith.addf %92, %96 : vector<64x256xf32>
    %c5_42 = arith.constant 5 : index
    %c0_43 = arith.constant 0 : index
    %c0_44 = arith.constant 0 : index
    %98 = vector.load %arg5[%c5_42, %c0_43, %c0_44] : memref<9x64x32xbf16, #tpu.memory_space<vmem>>, vector<1x64x32xbf16>
    %99 = vector.shape_cast %98 : vector<1x64x32xbf16> to vector<64x32xbf16>
    %c255_i32 = arith.constant 255 : i32
    %100 = tpu.dynamic_rotate %67 by %c255_i32 dim 1 : vector<32x256xf32>, i32 -> vector<32x256xf32>
    %101 = arith.truncf %100 : vector<32x256xf32> to vector<32x256xbf16>
    %cst_45 = arith.constant dense<0.000000e+00> : vector<64x256xf32>
    %102 = tpu.matmul %99, %101, %cst_45 {dimension_numbers = #tpu.dot_dimension_numbers<[1], [0], [0], [1], [0, 0, 1, 1], [], []>} : vector<64x32xbf16>, vector<32x256xbf16>, vector<64x256xf32> -> vector<64x256xf32>
    %103 = arith.addf %97, %102 : vector<64x256xf32>
    %c6_46 = arith.constant 6 : index
    %c0_47 = arith.constant 0 : index
    %c0_48 = arith.constant 0 : index
    %104 = vector.load %arg5[%c6_46, %c0_47, %c0_48] : memref<9x64x32xbf16, #tpu.memory_space<vmem>>, vector<1x64x32xbf16>
    %105 = vector.shape_cast %104 : vector<1x64x32xbf16> to vector<64x32xbf16>
    %c241_i32 = arith.constant 241 : i32
    %106 = tpu.dynamic_rotate %67 by %c241_i32 dim 1 : vector<32x256xf32>, i32 -> vector<32x256xf32>
    %107 = arith.truncf %106 : vector<32x256xf32> to vector<32x256xbf16>
    %cst_49 = arith.constant dense<0.000000e+00> : vector<64x256xf32>
    %108 = tpu.matmul %105, %107, %cst_49 {dimension_numbers = #tpu.dot_dimension_numbers<[1], [0], [0], [1], [0, 0, 1, 1], [], []>} : vector<64x32xbf16>, vector<32x256xbf16>, vector<64x256xf32> -> vector<64x256xf32>
    %109 = arith.addf %103, %108 : vector<64x256xf32>
    %c7_50 = arith.constant 7 : index
    %c0_51 = arith.constant 0 : index
    %c0_52 = arith.constant 0 : index
    %110 = vector.load %arg5[%c7_50, %c0_51, %c0_52] : memref<9x64x32xbf16, #tpu.memory_space<vmem>>, vector<1x64x32xbf16>
    %111 = vector.shape_cast %110 : vector<1x64x32xbf16> to vector<64x32xbf16>
    %c240_i32 = arith.constant 240 : i32
    %112 = tpu.dynamic_rotate %67 by %c240_i32 dim 1 : vector<32x256xf32>, i32 -> vector<32x256xf32>
    %113 = arith.truncf %112 : vector<32x256xf32> to vector<32x256xbf16>
    %cst_53 = arith.constant dense<0.000000e+00> : vector<64x256xf32>
    %114 = tpu.matmul %111, %113, %cst_53 {dimension_numbers = #tpu.dot_dimension_numbers<[1], [0], [0], [1], [0, 0, 1, 1], [], []>} : vector<64x32xbf16>, vector<32x256xbf16>, vector<64x256xf32> -> vector<64x256xf32>
    %115 = arith.addf %109, %114 : vector<64x256xf32>
    %c8_54 = arith.constant 8 : index
    %c0_55 = arith.constant 0 : index
    %c0_56 = arith.constant 0 : index
    %116 = vector.load %arg5[%c8_54, %c0_55, %c0_56] : memref<9x64x32xbf16, #tpu.memory_space<vmem>>, vector<1x64x32xbf16>
    %117 = vector.shape_cast %116 : vector<1x64x32xbf16> to vector<64x32xbf16>
    %c239_i32 = arith.constant 239 : i32
    %118 = tpu.dynamic_rotate %67 by %c239_i32 dim 1 : vector<32x256xf32>, i32 -> vector<32x256xf32>
    %119 = arith.truncf %118 : vector<32x256xf32> to vector<32x256xbf16>
    %cst_57 = arith.constant dense<0.000000e+00> : vector<64x256xf32>
    %120 = tpu.matmul %117, %119, %cst_57 {dimension_numbers = #tpu.dot_dimension_numbers<[1], [0], [0], [1], [0, 0, 1, 1], [], []>} : vector<64x32xbf16>, vector<32x256xbf16>, vector<64x256xf32> -> vector<64x256xf32>
    %121 = arith.addf %115, %120 : vector<64x256xf32>
    %c0_58 = arith.constant 0 : index
    %c0_59 = arith.constant 0 : index
    %122 = vector.load %arg6[%c0_58, %c0_59] : memref<64x1xf32, #tpu.memory_space<vmem>>, vector<64x1xf32>
    %123 = vector.broadcast %122 : vector<64x1xf32> to vector<64x256xf32>
    %124 = arith.addf %121, %123 : vector<64x256xf32>
    %cst_60 = arith.constant 0.000000e+00 : f32
    %125 = vector.broadcast %cst_60 : f32 to vector<64x256xf32>
    %126 = arith.maximumf %124, %125 : vector<64x256xf32>
    %c255_i32_61 = arith.constant 255 : i32
    %127 = tpu.dynamic_rotate %126 by %c255_i32_61 dim 1 : vector<64x256xf32>, i32 -> vector<64x256xf32>
    %128 = arith.maximumf %126, %127 : vector<64x256xf32>
    %c240_i32_62 = arith.constant 240 : i32
    %129 = tpu.dynamic_rotate %128 by %c240_i32_62 dim 1 : vector<64x256xf32>, i32 -> vector<64x256xf32>
    %130 = arith.maximumf %128, %129 : vector<64x256xf32>
    %131 = arith.truncf %130 : vector<64x256xf32> to vector<64x256xbf16>
    %c0_63 = arith.constant 0 : index
    %c0_64 = arith.constant 0 : index
    %132 = vector.load %arg7[%c0_63, %c0_64] : memref<256x49xbf16, #tpu.memory_space<vmem>>, vector<256x49xbf16>
    %cst_65 = arith.constant dense<0.000000e+00> : vector<64x49xf32>
    %133 = tpu.matmul %131, %132, %cst_65 {dimension_numbers = #tpu.dot_dimension_numbers<[1], [0], [0], [1], [0, 0, 1, 1], [], []>} : vector<64x256xbf16>, vector<256x49xbf16>, vector<64x49xf32> -> vector<64x49xf32>
    %c0_66 = arith.constant 0 : index
    %c0_67 = arith.constant 0 : index
    %c0_68 = arith.constant 0 : index
    %134 = vector.load %arg8[%c0_66, %c0_67, %c0_68] : memref<1x64x49xf32, #tpu.memory_space<vmem>>, vector<1x64x49xf32>
    %135 = vector.shape_cast %134 : vector<1x64x49xf32> to vector<64x49xf32>
    %136 = vector.shape_cast %133 : vector<64x49xf32> to vector<1x64x49xf32>
    tpu.vector_store %arg8[%c0_66, %c0_67, %c0_68], %136 {strides = array<i32>} : memref<1x64x49xf32, #tpu.memory_space<vmem>>, vector<1x64x49xf32>,
    return
  }
  func.func @transform_0(%arg0: i32) -> (i32, i32, i32) {
    %c0_i32 = arith.constant 0 : i32
    %c0_i32_0 = arith.constant 0 : i32
    %c0_i32_1 = arith.constant 0 : i32
    return %arg0, %c0_i32, %c0_i32_0 : i32, i32, i32
  }
  func.func @transform_1(%arg0: i32) -> (i32, i32) {
    %c0_i32 = arith.constant 0 : i32
    %c0_i32_0 = arith.constant 0 : i32
    %c0_i32_1 = arith.constant 0 : i32
    return %c0_i32, %c0_i32_0 : i32, i32
  }
  func.func @transform_2(%arg0: i32) -> (i32, i32) {
    %c0_i32 = arith.constant 0 : i32
    %c0_i32_0 = arith.constant 0 : i32
    %c0_i32_1 = arith.constant 0 : i32
    return %c0_i32, %c0_i32_0 : i32, i32
  }
  func.func @transform_3(%arg0: i32) -> (i32, i32) {
    %c0_i32 = arith.constant 0 : i32
    %c0_i32_0 = arith.constant 0 : i32
    %c0_i32_1 = arith.constant 0 : i32
    return %c0_i32, %c0_i32_0 : i32, i32
  }
  func.func @transform_4(%arg0: i32) -> (i32, i32, i32) {
    %c0_i32 = arith.constant 0 : i32
    %c0_i32_0 = arith.constant 0 : i32
    %c0_i32_1 = arith.constant 0 : i32
    %c0_i32_2 = arith.constant 0 : i32
    return %c0_i32, %c0_i32_0, %c0_i32_1 : i32, i32, i32
  }
  func.func @transform_5(%arg0: i32) -> (i32, i32) {
    %c0_i32 = arith.constant 0 : i32
    %c0_i32_0 = arith.constant 0 : i32
    %c0_i32_1 = arith.constant 0 : i32
    return %c0_i32, %c0_i32_0 : i32, i32
  }
  func.func @transform_6(%arg0: i32) -> (i32, i32) {
    %c0_i32 = arith.constant 0 : i32
    %c0_i32_0 = arith.constant 0 : i32
    %c0_i32_1 = arith.constant 0 : i32
    return %c0_i32, %c0_i32_0 : i32, i32
  }
  func.func @transform_7(%arg0: i32) -> (i32, i32, i32) {
    %c0_i32 = arith.constant 0 : i32
    %c0_i32_0 = arith.constant 0 : i32
    %c0_i32_1 = arith.constant 0 : i32
    return %arg0, %c0_i32, %c0_i32_0 : i32, i32, i32
  }
}

</mosaic_0001>

<llo_original>
// kernel: cnn_forward.3
$region0: #{cnn_forward.3}
  #allocation0 [shape = 'u32[]', space=smem, size = 0x4, offset = 0x4, fixed_abs, tag = 'smem constant byte address 0x4 - core index']
  #allocation1 [shape = 'u32[144,128]{1,0:T(1,128)}', space=vmem, size = 0x12000, scoped, tag = 'internal scratch']
  %s0 = inlined_call_operand.vmem [shape: f32[2,3136], index: 0, kind: input, shape index: {}]
  %s1 = inlined_call_operand.vmem [shape: bf16[3136,128], index: 1, kind: input, shape index: {}]
  %s2 = inlined_call_operand.vmem [shape: f32[1,128], index: 2, kind: input, shape index: {}]
  %s3 = inlined_call_operand.vmem [shape: bf16[128,128], index: 3, kind: input, shape index: {}]
  %s4 = inlined_call_operand.vmem [shape: f32[1,128], index: 4, kind: input, shape index: {}]
  %s5 = inlined_call_operand.hbm [shape: f32[2,128], index: 5, kind: output, shape index: {}]
  %s6 = sld [smem:[#allocation0]]
  $region30: #{cnn_forward.3} parent=0
    _
  %s8 = ssub.s32 1, %s6
  %s9 = scalar_select 0, %s8, %s6
  $region1: #{cnn_forward.3} parent=0
    #allocation2 [shape = 'u8[1024]{0}', space=vmem, size = 0x400, scoped, tag = 'output window, operand 0, single buffered']
    #allocation3 [shape = 's32[1]{0}', space=sflag, size = 0x4, scoped, tag = 'scoped memory for cnn_forward.3']
    %10 = vsyncpa [#allocation3], 0
    // Predicated region
    $region2: #{cnn_forward.3} parent=1 // pred_check
      _
    $region3: #{cnn_forward.3} parent=1 // pred_check_branch
      %12 = sbr.rel (0) target = $region5
    $region4: #{cnn_forward.3} parent=1 // pred_region
      _
    $region5: #{cnn_forward.3} parent=1 // pred_fallthru
      _
    // Predicated region
    $region6: #{cnn_forward.3} parent=1 // pred_check
      _
    $region7: #{cnn_forward.3} parent=1 // pred_check_branch
      %14 = sbr.rel (0) target = $region9
    $region8: #{cnn_forward.3} parent=1 // pred_region
      _
    $region9: #{cnn_forward.3} parent=1 // pred_fallthru
      _
    // Predicated region
    $region10: #{cnn_forward.3} parent=1 // pred_check
      _
    $region11: #{cnn_forward.3} parent=1 // pred_check_branch
      %16 = sbr.rel (0) target = $region13
    $region12: #{cnn_forward.3} parent=1 // pred_region
      _
    $region13: #{cnn_forward.3} parent=1 // pred_fallthru
      _
    // Predicated region
    $region14: #{cnn_forward.3} parent=1 // pred_check
      _
    $region15: #{cnn_forward.3} parent=1 // pred_check_branch
      %18 = sbr.rel (0) target = $region17
    $region16: #{cnn_forward.3} parent=1 // pred_region
      _
    $region17: #{cnn_forward.3} parent=1 // pred_fallthru
      _
    // Predicated region
    $region18: #{cnn_forward.3} parent=1 // pred_check
      _
    $region19: #{cnn_forward.3} parent=1 // pred_check_branch
      %20 = sbr.rel (0) target = $region21
    $region20: #{cnn_forward.3} parent=1 // pred_region
      _
    $region21: #{cnn_forward.3} parent=1 // pred_fallthru
      _
    %v22 = vld [vmem:[%s0] sm:$0xff]
    %v23 = vld [vmem:[%s0 + $0x8] sm:$0xff]
    %v24 = vld [vmem:[%s0 + $0x10] sm:$0xff]
    %v25 = vld [vmem:[%s0 + $0x18] sm:$0xff]
    %v26 = vld [vmem:[%s0 + $0x20] sm:$0xff]
    %v27 = vld [vmem:[%s0 + $0x28] sm:$0xff]
    %v28 = vld [vmem:[%s0 + $0x30] sm:$0x3]
    %v36 = vcombine.high %v22, %v22
    %v38 = vunpack.c.l.s4 1983009808
    %v39 = vunpack.c.0.s8 %v38
    %v40 = vlaneseq
    %v41 = vshrl.u32 %v40, 7
    %v42 = vsub.s32 %v39, %v41
    %v43 = vrot.slane %v22, %v42
    %v45 = vunpack.c.l.s4 1983009808
    %v46 = vunpack.c.0.s8 %v45
    %v47 = vlaneseq
    %v48 = vshrl.u32 %v47, 7
    %v49 = vsub.s32 %v46, %v48
    %v50 = vrot.slane %v36, %v49
    %v51 = vcombine.high %v43, %v43
    %v52 = vcombine.high %v50, %v50
    %v53 = vcombine.high %v23, %v23
    %v55 = vunpack.c.l.s4 1983009808
    %v56 = vunpack.c.0.s8 %v55
    %v57 = vlaneseq
    %v58 = vshrl.u32 %v57, 7
    %v59 = vsub.s32 %v56, %v58
    %v60 = vrot.slane %v23, %v59
    %v62 = vunpack.c.l.s4 1983009808
    %v63 = vunpack.c.0.s8 %v62
    %v64 = vlaneseq
    %v65 = vshrl.u32 %v64, 7
    %v66 = vsub.s32 %v63, %v65
    %v67 = vrot.slane %v53, %v66
    %v68 = vcombine.high %v60, %v60
    %v69 = vcombine.high %v67, %v67
    %v70 = vcombine.high %v24, %v24
    %v72 = vunpack.c.l.s4 1983009808
    %v73 = vunpack.c.0.s8 %v72
    %v74 = vlaneseq
    %v75 = vshrl.u32 %v74, 7
    %v76 = vsub.s32 %v73, %v75
    %v77 = vrot.slane %v24, %v76
    %v79 = vunpack.c.l.s4 1983009808
    %v80 = vunpack.c.0.s8 %v79
    %v81 = vlaneseq
    %v82 = vshrl.u32 %v81, 7
    %v83 = vsub.s32 %v80, %v82
    %v84 = vrot.slane %v70, %v83
    %v85 = vcombine.high %v77, %v77
    %v86 = vcombine.high %v84, %v84
    %v87 = vcombine.high %v25, %v25
    %v89 = vunpack.c.l.s4 1983009808
    %v90 = vunpack.c.0.s8 %v89
    %v91 = vlaneseq
    %v92 = vshrl.u32 %v91, 7
    %v93 = vsub.s32 %v90, %v92
    %v94 = vrot.slane %v25, %v93
    %v96 = vunpack.c.l.s4 1983009808
    %v97 = vunpack.c.0.s8 %v96
    %v98 = vlaneseq
    %v99 = vshrl.u32 %v98, 7
    %v100 = vsub.s32 %v97, %v99
    %v101 = vrot.slane %v87, %v100
    %v102 = vcombine.high %v94, %v94
    %v103 = vcombine.high %v101, %v101
    %v104 = vcombine.high %v26, %v26
    %v106 = vunpack.c.l.s4 1983009808
    %v107 = vunpack.c.0.s8 %v106
    %v108 = vlaneseq
    %v109 = vshrl.u32 %v108, 7
    %v110 = vsub.s32 %v107, %v109
    %v111 = vrot.slane %v26, %v110
    %v113 = vunpack.c.l.s4 1983009808
    %v114 = vunpack.c.0.s8 %v113
    %v115 = vlaneseq
    %v116 = vshrl.u32 %v115, 7
    %v117 = vsub.s32 %v114, %v116
    %v118 = vrot.slane %v104, %v117
    %v119 = vcombine.high %v111, %v111
    %v120 = vcombine.high %v118, %v118
    %v121 = vcombine.high %v27, %v27
    %v123 = vunpack.c.l.s4 1983009808
    %v124 = vunpack.c.0.s8 %v123
    %v125 = vlaneseq
    %v126 = vshrl.u32 %v125, 7
    %v127 = vsub.s32 %v124, %v126
    %v128 = vrot.slane %v27, %v127
    %v130 = vunpack.c.l.s4 1983009808
    %v131 = vunpack.c.0.s8 %v130
    %v132 = vlaneseq
    %v133 = vshrl.u32 %v132, 7
    %v134 = vsub.s32 %v131, %v133
    %v135 = vrot.slane %v121, %v134
    %v136 = vcombine.high %v128, %v128
    %v137 = vcombine.high %v135, %v135
    %v139 = vunpack.c.l.s4 1983009808
    %v140 = vunpack.c.0.s8 %v139
    %v141 = vlaneseq
    %v142 = vshrl.u32 %v141, 7
    %v143 = vsub.s32 %v140, %v142
    %v144 = vrot.slane %v28, %v143
    %v170 = vpack.c.bf16 %v43, %v43
    %v171 = vpack.c.bf16 %v51, %v51
    %v172 = vpack.c.bf16 %v50, %v50
    %v173 = vpack.c.bf16 %v52, %v52
    %v174 = vpack.c.bf16 %v60, %v60
    %v175 = vpack.c.bf16 %v68, %v68
    %v176 = vpack.c.bf16 %v67, %v67
    %v177 = vpack.c.bf16 %v69, %v69
    %v178 = vpack.c.bf16 %v77, %v77
    %v179 = vpack.c.bf16 %v85, %v85
    %v180 = vpack.c.bf16 %v84, %v84
    %v181 = vpack.c.bf16 %v86, %v86
    %v182 = vpack.c.bf16 %v94, %v94
    %v183 = vpack.c.bf16 %v102, %v102
    %v184 = vpack.c.bf16 %v101, %v101
    %v185 = vpack.c.bf16 %v103, %v103
    %v186 = vpack.c.bf16 %v111, %v111
    %v187 = vpack.c.bf16 %v119, %v119
    %v188 = vpack.c.bf16 %v118, %v118
    %v189 = vpack.c.bf16 %v120, %v120
    %v190 = vpack.c.bf16 %v128, %v128
    %v191 = vpack.c.bf16 %v136, %v136
    %v192 = vpack.c.bf16 %v135, %v135
    %v193 = vpack.c.bf16 %v137, %v137
    %v194 = vpack.c.bf16 %v144, %v144
    %v195 = vld [vmem:[%s1] sm:$0xf]
    %v196 = vld [vmem:[%s1 + $0x4] sm:$0xf]
    %v197 = vld [vmem:[%s1 + $0x8] sm:$0xf]
    %v198 = vld [vmem:[%s1 + $0xc] sm:$0xf]
    %v199 = vld [vmem:[%s1 + $0x10] sm:$0xf]
    %v200 = vld [vmem:[%s1 + $0x14] sm:$0xf]
    %v201 = vld [vmem:[%s1 + $0x18] sm:$0xf]
    %v202 = vld [vmem:[%s1 + $0x1c] sm:$0xf]
    %v203 = vld [vmem:[%s1 + $0x20] sm:$0xf]
    %v204 = vld [vmem:[%s1 + $0x24] sm:$0xf]
    %v205 = vld [vmem:[%s1 + $0x28] sm:$0xf]
    %v206 = vld [vmem:[%s1 + $0x2c] sm:$0xf]
    %v207 = vld [vmem:[%s1 + $0x30] sm:$0xf]
    %v208 = vld [vmem:[%s1 + $0x34] sm:$0xf]
    %v209 = vld [vmem:[%s1 + $0x38] sm:$0xf]
    %v210 = vld [vmem:[%s1 + $0x3c] sm:$0xf]
    %v211 = vld [vmem:[%s1 + $0x40] sm:$0xf]
    %v212 = vld [vmem:[%s1 + $0x44] sm:$0xf]
    %v213 = vld [vmem:[%s1 + $0x48] sm:$0xf]
    %v214 = vld [vmem:[%s1 + $0x4c] sm:$0xf]
    %v215 = vld [vmem:[%s1 + $0x50] sm:$0xf]
    %v216 = vld [vmem:[%s1 + $0x54] sm:$0xf]
    %v217 = vld [vmem:[%s1 + $0x58] sm:$0xf]
    %v218 = vld [vmem:[%s1 + $0x5c] sm:$0xf]
    %v219 = vld [vmem:[%s1 + $0x60] sm:$0xf]
    %v220 = vld [vmem:[%s1 + $0x64] sm:$0xf]
    %v221 = vld [vmem:[%s1 + $0x68] sm:$0xf]
    %v222 = vld [vmem:[%s1 + $0x6c] sm:$0xf]
    %v223 = vld [vmem:[%s1 + $0x70] sm:$0xf]
    %v224 = vld [vmem:[%s1 + $0x74] sm:$0xf]
    %v225 = vld [vmem:[%s1 + $0x78] sm:$0xf]
    %v226 = vld [vmem:[%s1 + $0x7c] sm:$0xf]
    %v227 = vld [vmem:[%s1 + $0x80] sm:$0xf]
    %v228 = vld [vmem:[%s1 + $0x84] sm:$0xf]
    %v229 = vld [vmem:[%s1 + $0x88] sm:$0xf]
    %v230 = vld [vmem:[%s1 + $0x8c] sm:$0xf]
    %v231 = vld [vmem:[%s1 + $0x90] sm:$0xf]
    %v232 = vld [vmem:[%s1 + $0x94] sm:$0xf]
    %v233 = vld [vmem:[%s1 + $0x98] sm:$0xf]
    %v234 = vld [vmem:[%s1 + $0x9c] sm:$0xf]
    %v235 = vld [vmem:[%s1 + $0xa0] sm:$0xf]
    %v236 = vld [vmem:[%s1 + $0xa4] sm:$0xf]
    %v237 = vld [vmem:[%s1 + $0xa8] sm:$0xf]
    %v238 = vld [vmem:[%s1 + $0xac] sm:$0xf]
    %v239 = vld [vmem:[%s1 + $0xb0] sm:$0xf]
    %v240 = vld [vmem:[%s1 + $0xb4] sm:$0xf]
    %v241 = vld [vmem:[%s1 + $0xb8] sm:$0xf]
    %v242 = vld [vmem:[%s1 + $0xbc] sm:$0xf]
    %v243 = vld [vmem:[%s1 + $0xc0] sm:$0xf]
    %v244 = vld [vmem:[%s1 + $0xc4] sm:$0xf]
    %v245 = vld [vmem:[%s1 + $0xc8] sm:$0xf]
    %v246 = vld [vmem:[%s1 + $0xcc] sm:$0xf]
    %v247 = vld [vmem:[%s1 + $0xd0] sm:$0xf]
    %v248 = vld [vmem:[%s1 + $0xd4] sm:$0xf]
    %v249 = vld [vmem:[%s1 + $0xd8] sm:$0xf]
    %v250 = vld [vmem:[%s1 + $0xdc] sm:$0xf]
    %v251 = vld [vmem:[%s1 + $0xe0] sm:$0xf]
    %v252 = vld [vmem:[%s1 + $0xe4] sm:$0xf]
    %v253 = vld [vmem:[%s1 + $0xe8] sm:$0xf]
    %v254 = vld [vmem:[%s1 + $0xec] sm:$0xf]
    %v255 = vld [vmem:[%s1 + $0xf0] sm:$0xf]
    %v256 = vld [vmem:[%s1 + $0xf4] sm:$0xf]
    %v257 = vld [vmem:[%s1 + $0xf8] sm:$0xf]
    %v258 = vld [vmem:[%s1 + $0xfc] sm:$0xf]
    %v259 = vld [vmem:[%s1 + $0x100] sm:$0xf]
    %v260 = vld [vmem:[%s1 + $0x104] sm:$0xf]
    %v261 = vld [vmem:[%s1 + $0x108] sm:$0xf]
    %v262 = vld [vmem:[%s1 + $0x10c] sm:$0xf]
    %v263 = vld [vmem:[%s1 + $0x110] sm:$0xf]
    %v264 = vld [vmem:[%s1 + $0x114] sm:$0xf]
    %v265 = vld [vmem:[%s1 + $0x118] sm:$0xf]
    %v266 = vld [vmem:[%s1 + $0x11c] sm:$0xf]
    %v267 = vld [vmem:[%s1 + $0x120] sm:$0xf]
    %v268 = vld [vmem:[%s1 + $0x124] sm:$0xf]
    %v269 = vld [vmem:[%s1 + $0x128] sm:$0xf]
    %v270 = vld [vmem:[%s1 + $0x12c] sm:$0xf]
    %v271 = vld [vmem:[%s1 + $0x130] sm:$0xf]
    %v272 = vld [vmem:[%s1 + $0x134] sm:$0xf]
    %v273 = vld [vmem:[%s1 + $0x138] sm:$0xf]
    %v274 = vld [vmem:[%s1 + $0x13c] sm:$0xf]
    %v275 = vld [vmem:[%s1 + $0x140] sm:$0xf]
    %v276 = vld [vmem:[%s1 + $0x144] sm:$0xf]
    %v277 = vld [vmem:[%s1 + $0x148] sm:$0xf]
    %v278 = vld [vmem:[%s1 + $0x14c] sm:$0xf]
    %v279 = vld [vmem:[%s1 + $0x150] sm:$0xf]
    %v280 = vld [vmem:[%s1 + $0x154] sm:$0xf]
    %v281 = vld [vmem:[%s1 + $0x158] sm:$0xf]
    %v282 = vld [vmem:[%s1 + $0x15c] sm:$0xf]
    %v283 = vld [vmem:[%s1 + $0x160] sm:$0xf]
    %v284 = vld [vmem:[%s1 + $0x164] sm:$0xf]
    %v285 = vld [vmem:[%s1 + $0x168] sm:$0xf]
    %v286 = vld [vmem:[%s1 + $0x16c] sm:$0xf]
    %v287 = vld [vmem:[%s1 + $0x170] sm:$0xf]
    %v288 = vld [vmem:[%s1 + $0x174] sm:$0xf]
    %v289 = vld [vmem:[%s1 + $0x178] sm:$0xf]
    %v290 = vld [vmem:[%s1 + $0x17c] sm:$0xf]
    %v291 = vld [vmem:[%s1 + $0x180] sm:$0xf]
    %v292 = vld [vmem:[%s1 + $0x184] sm:$0xf]
    %v293 = vld [vmem:[%s1 + $0x188] sm:$0xf]
    %v294 = vld [vmem:[%s1 + $0x18c] sm:$0xf]
    %v295 = vld [vmem:[%s1 + $0x190] sm:$0xf]
    %v296 = vld [vmem:[%s1 + $0x194] sm:$0xf]
    %v297 = vld [vmem:[%s1 + $0x198] sm:$0xf]
    %v298 = vld [vmem:[%s1 + $0x19c] sm:$0xf]
    %v299 = vld [vmem:[%s1 + $0x1a0] sm:$0xf]
    %v300 = vld [vmem:[%s1 + $0x1a4] sm:$0xf]
    %v301 = vld [vmem:[%s1 + $0x1a8] sm:$0xf]
    %v302 = vld [vmem:[%s1 + $0x1ac] sm:$0xf]
    %v303 = vld [vmem:[%s1 + $0x1b0] sm:$0xf]
    %v304 = vld [vmem:[%s1 + $0x1b4] sm:$0xf]
    %v305 = vld [vmem:[%s1 + $0x1b8] sm:$0xf]
    %v306 = vld [vmem:[%s1 + $0x1bc] sm:$0xf]
    %v307 = vld [vmem:[%s1 + $0x1c0] sm:$0xf]
    %v308 = vld [vmem:[%s1 + $0x1c4] sm:$0xf]
    %v309 = vld [vmem:[%s1 + $0x1c8] sm:$0xf]
    %v310 = vld [vmem:[%s1 + $0x1cc] sm:$0xf]
    %v311 = vld [vmem:[%s1 + $0x1d0] sm:$0xf]
    %v312 = vld [vmem:[%s1 + $0x1d4] sm:$0xf]
    %v313 = vld [vmem:[%s1 + $0x1d8] sm:$0xf]
    %v314 = vld [vmem:[%s1 + $0x1dc] sm:$0xf]
    %v315 = vld [vmem:[%s1 + $0x1e0] sm:$0xf]
    %v316 = vld [vmem:[%s1 + $0x1e4] sm:$0xf]
    %v317 = vld [vmem:[%s1 + $0x1e8] sm:$0xf]
    %v318 = vld [vmem:[%s1 + $0x1ec] sm:$0xf]
    %v319 = vld [vmem:[%s1 + $0x1f0] sm:$0xf]
    %v320 = vld [vmem:[%s1 + $0x1f4] sm:$0xf]
    %v321 = vld [vmem:[%s1 + $0x1f8] sm:$0xf]
    %v322 = vld [vmem:[%s1 + $0x1fc] sm:$0xf]
    %v323 = vld [vmem:[%s1 + $0x200] sm:$0xf]
    %v324 = vld [vmem:[%s1 + $0x204] sm:$0xf]
    %v325 = vld [vmem:[%s1 + $0x208] sm:$0xf]
    %v326 = vld [vmem:[%s1 + $0x20c] sm:$0xf]
    %v327 = vld [vmem:[%s1 + $0x210] sm:$0xf]
    %v328 = vld [vmem:[%s1 + $0x214] sm:$0xf]
    %v329 = vld [vmem:[%s1 + $0x218] sm:$0xf]
    %v330 = vld [vmem:[%s1 + $0x21c] sm:$0xf]
    %v331 = vld [vmem:[%s1 + $0x220] sm:$0xf]
    %v332 = vld [vmem:[%s1 + $0x224] sm:$0xf]
    %v333 = vld [vmem:[%s1 + $0x228] sm:$0xf]
    %v334 = vld [vmem:[%s1 + $0x22c] sm:$0xf]
    %v335 = vld [vmem:[%s1 + $0x230] sm:$0xf]
    %v336 = vld [vmem:[%s1 + $0x234] sm:$0xf]
    %v337 = vld [vmem:[%s1 + $0x238] sm:$0xf]
    %v338 = vld [vmem:[%s1 + $0x23c] sm:$0xf]
    %v339 = vld [vmem:[%s1 + $0x240] sm:$0xf]
    %v340 = vld [vmem:[%s1 + $0x244] sm:$0xf]
    %v341 = vld [vmem:[%s1 + $0x248] sm:$0xf]
    %v342 = vld [vmem:[%s1 + $0x24c] sm:$0xf]
    %v343 = vld [vmem:[%s1 + $0x250] sm:$0xf]
    %v344 = vld [vmem:[%s1 + $0x254] sm:$0xf]
    %v345 = vld [vmem:[%s1 + $0x258] sm:$0xf]
    %v346 = vld [vmem:[%s1 + $0x25c] sm:$0xf]
    %v347 = vld [vmem:[%s1 + $0x260] sm:$0xf]
    %v348 = vld [vmem:[%s1 + $0x264] sm:$0xf]
    %v349 = vld [vmem:[%s1 + $0x268] sm:$0xf]
    %v350 = vld [vmem:[%s1 + $0x26c] sm:$0xf]
    %v351 = vld [vmem:[%s1 + $0x270] sm:$0xf]
    %v352 = vld [vmem:[%s1 + $0x274] sm:$0xf]
    %v353 = vld [vmem:[%s1 + $0x278] sm:$0xf]
    %v354 = vld [vmem:[%s1 + $0x27c] sm:$0xf]
    %v355 = vld [vmem:[%s1 + $0x280] sm:$0xf]
    %v356 = vld [vmem:[%s1 + $0x284] sm:$0xf]
    %v357 = vld [vmem:[%s1 + $0x288] sm:$0xf]
    %v358 = vld [vmem:[%s1 + $0x28c] sm:$0xf]
    %v359 = vld [vmem:[%s1 + $0x290] sm:$0xf]
    %v360 = vld [vmem:[%s1 + $0x294] sm:$0xf]
    %v361 = vld [vmem:[%s1 + $0x298] sm:$0xf]
    %v362 = vld [vmem:[%s1 + $0x29c] sm:$0xf]
    %v363 = vld [vmem:[%s1 + $0x2a0] sm:$0xf]
    %v364 = vld [vmem:[%s1 + $0x2a4] sm:$0xf]
    %v365 = vld [vmem:[%s1 + $0x2a8] sm:$0xf]
    %v366 = vld [vmem:[%s1 + $0x2ac] sm:$0xf]
    %v367 = vld [vmem:[%s1 + $0x2b0] sm:$0xf]
    %v368 = vld [vmem:[%s1 + $0x2b4] sm:$0xf]
    %v369 = vld [vmem:[%s1 + $0x2b8] sm:$0xf]
    %v370 = vld [vmem:[%s1 + $0x2bc] sm:$0xf]
    %v371 = vld [vmem:[%s1 + $0x2c0] sm:$0xf]
    %v372 = vld [vmem:[%s1 + $0x2c4] sm:$0xf]
    %v373 = vld [vmem:[%s1 + $0x2c8] sm:$0xf]
    %v374 = vld [vmem:[%s1 + $0x2cc] sm:$0xf]
    %v375 = vld [vmem:[%s1 + $0x2d0] sm:$0xf]
    %v376 = vld [vmem:[%s1 + $0x2d4] sm:$0xf]
    %v377 = vld [vmem:[%s1 + $0x2d8] sm:$0xf]
    %v378 = vld [vmem:[%s1 + $0x2dc] sm:$0xf]
    %v379 = vld [vmem:[%s1 + $0x2e0] sm:$0xf]
    %v380 = vld [vmem:[%s1 + $0x2e4] sm:$0xf]
    %v381 = vld [vmem:[%s1 + $0x2e8] sm:$0xf]
    %v382 = vld [vmem:[%s1 + $0x2ec] sm:$0xf]
    %v383 = vld [vmem:[%s1 + $0x2f0] sm:$0xf]
    %v384 = vld [vmem:[%s1 + $0x2f4] sm:$0xf]
    %v385 = vld [vmem:[%s1 + $0x2f8] sm:$0xf]
    %v386 = vld [vmem:[%s1 + $0x2fc] sm:$0xf]
    %v387 = vld [vmem:[%s1 + $0x300] sm:$0xf]
    %v388 = vld [vmem:[%s1 + $0x304] sm:$0xf]
    %v389 = vld [vmem:[%s1 + $0x308] sm:$0xf]
    %v390 = vld [vmem:[%s1 + $0x30c] sm:$0xf]
    %v391 = vld [vmem:[%s1 + $0x310] sm:$0xf]
    %v392 = vld [vmem:[%s1 + $0x314] sm:$0xf]
    %v393 = vld [vmem:[%s1 + $0x318] sm:$0xf]
    %v394 = vld [vmem:[%s1 + $0x31c] sm:$0xf]
    %v395 = vld [vmem:[%s1 + $0x320] sm:$0xf]
    %v396 = vld [vmem:[%s1 + $0x324] sm:$0xf]
    %v397 = vld [vmem:[%s1 + $0x328] sm:$0xf]
    %v398 = vld [vmem:[%s1 + $0x32c] sm:$0xf]
    %v399 = vld [vmem:[%s1 + $0x330] sm:$0xf]
    %v400 = vld [vmem:[%s1 + $0x334] sm:$0xf]
    %v401 = vld [vmem:[%s1 + $0x338] sm:$0xf]
    %v402 = vld [vmem:[%s1 + $0x33c] sm:$0xf]
    %v403 = vld [vmem:[%s1 + $0x340] sm:$0xf]
    %v404 = vld [vmem:[%s1 + $0x344] sm:$0xf]
    %v405 = vld [vmem:[%s1 + $0x348] sm:$0xf]
    %v406 = vld [vmem:[%s1 + $0x34c] sm:$0xf]
    %v407 = vld [vmem:[%s1 + $0x350] sm:$0xf]
    %v408 = vld [vmem:[%s1 + $0x354] sm:$0xf]
    %v409 = vld [vmem:[%s1 + $0x358] sm:$0xf]
    %v410 = vld [vmem:[%s1 + $0x35c] sm:$0xf]
    %v411 = vld [vmem:[%s1 + $0x360] sm:$0xf]
    %v412 = vld [vmem:[%s1 + $0x364] sm:$0xf]
    %v413 = vld [vmem:[%s1 + $0x368] sm:$0xf]
    %v414 = vld [vmem:[%s1 + $0x36c] sm:$0xf]
    %v415 = vld [vmem:[%s1 + $0x370] sm:$0xf]
    %v416 = vld [vmem:[%s1 + $0x374] sm:$0xf]
    %v417 = vld [vmem:[%s1 + $0x378] sm:$0xf]
    %v418 = vld [vmem:[%s1 + $0x37c] sm:$0xf]
    %v419 = vld [vmem:[%s1 + $0x380] sm:$0xf]
    %v420 = vld [vmem:[%s1 + $0x384] sm:$0xf]
    %v421 = vld [vmem:[%s1 + $0x388] sm:$0xf]
    %v422 = vld [vmem:[%s1 + $0x38c] sm:$0xf]
    %v423 = vld [vmem:[%s1 + $0x390] sm:$0xf]
    %v424 = vld [vmem:[%s1 + $0x394] sm:$0xf]
    %v425 = vld [vmem:[%s1 + $0x398] sm:$0xf]
    %v426 = vld [vmem:[%s1 + $0x39c] sm:$0xf]
    %v427 = vld [vmem:[%s1 + $0x3a0] sm:$0xf]
    %v428 = vld [vmem:[%s1 + $0x3a4] sm:$0xf]
    %v429 = vld [vmem:[%s1 + $0x3a8] sm:$0xf]
    %v430 = vld [vmem:[%s1 + $0x3ac] sm:$0xf]
    %v431 = vld [vmem:[%s1 + $0x3b0] sm:$0xf]
    %v432 = vld [vmem:[%s1 + $0x3b4] sm:$0xf]
    %v433 = vld [vmem:[%s1 + $0x3b8] sm:$0xf]
    %v434 = vld [vmem:[%s1 + $0x3bc] sm:$0xf]
    %v435 = vld [vmem:[%s1 + $0x3c0] sm:$0xf]
    %v436 = vld [vmem:[%s1 + $0x3c4] sm:$0xf]
    %v437 = vld [vmem:[%s1 + $0x3c8] sm:$0xf]
    %v438 = vld [vmem:[%s1 + $0x3cc] sm:$0xf]
    %v439 = vld [vmem:[%s1 + $0x3d0] sm:$0xf]
    %v440 = vld [vmem:[%s1 + $0x3d4] sm:$0xf]
    %v441 = vld [vmem:[%s1 + $0x3d8] sm:$0xf]
    %v442 = vld [vmem:[%s1 + $0x3dc] sm:$0xf]
    %v443 = vld [vmem:[%s1 + $0x3e0] sm:$0xf]
    %v444 = vld [vmem:[%s1 + $0x3e4] sm:$0xf]
    %v445 = vld [vmem:[%s1 + $0x3e8] sm:$0xf]
    %v446 = vld [vmem:[%s1 + $0x3ec] sm:$0xf]
    %v447 = vld [vmem:[%s1 + $0x3f0] sm:$0xf]
    %v448 = vld [vmem:[%s1 + $0x3f4] sm:$0xf]
    %v449 = vld [vmem:[%s1 + $0x3f8] sm:$0xf]
    %v450 = vld [vmem:[%s1 + $0x3fc] sm:$0xf]
    %v451 = vld [vmem:[%s1 + $0x400] sm:$0xf]
    %v452 = vld [vmem:[%s1 + $0x404] sm:$0xf]
    %v453 = vld [vmem:[%s1 + $0x408] sm:$0xf]
    %v454 = vld [vmem:[%s1 + $0x40c] sm:$0xf]
    %v455 = vld [vmem:[%s1 + $0x410] sm:$0xf]
    %v456 = vld [vmem:[%s1 + $0x414] sm:$0xf]
    %v457 = vld [vmem:[%s1 + $0x418] sm:$0xf]
    %v458 = vld [vmem:[%s1 + $0x41c] sm:$0xf]
    %v459 = vld [vmem:[%s1 + $0x420] sm:$0xf]
    %v460 = vld [vmem:[%s1 + $0x424] sm:$0xf]
    %v461 = vld [vmem:[%s1 + $0x428] sm:$0xf]
    %v462 = vld [vmem:[%s1 + $0x42c] sm:$0xf]
    %v463 = vld [vmem:[%s1 + $0x430] sm:$0xf]
    %v464 = vld [vmem:[%s1 + $0x434] sm:$0xf]
    %v465 = vld [vmem:[%s1 + $0x438] sm:$0xf]
    %v466 = vld [vmem:[%s1 + $0x43c] sm:$0xf]
    %v467 = vld [vmem:[%s1 + $0x440] sm:$0xf]
    %v468 = vld [vmem:[%s1 + $0x444] sm:$0xf]
    %v469 = vld [vmem:[%s1 + $0x448] sm:$0xf]
    %v470 = vld [vmem:[%s1 + $0x44c] sm:$0xf]
    %v471 = vld [vmem:[%s1 + $0x450] sm:$0xf]
    %v472 = vld [vmem:[%s1 + $0x454] sm:$0xf]
    %v473 = vld [vmem:[%s1 + $0x458] sm:$0xf]
    %v474 = vld [vmem:[%s1 + $0x45c] sm:$0xf]
    %v475 = vld [vmem:[%s1 + $0x460] sm:$0xf]
    %v476 = vld [vmem:[%s1 + $0x464] sm:$0xf]
    %v477 = vld [vmem:[%s1 + $0x468] sm:$0xf]
    %v478 = vld [vmem:[%s1 + $0x46c] sm:$0xf]
    %v479 = vld [vmem:[%s1 + $0x470] sm:$0xf]
    %v480 = vld [vmem:[%s1 + $0x474] sm:$0xf]
    %v481 = vld [vmem:[%s1 + $0x478] sm:$0xf]
    %v482 = vld [vmem:[%s1 + $0x47c] sm:$0xf]
    %v483 = vld [vmem:[%s1 + $0x480] sm:$0xf]
    %v484 = vld [vmem:[%s1 + $0x484] sm:$0xf]
    %v485 = vld [vmem:[%s1 + $0x488] sm:$0xf]
    %v486 = vld [vmem:[%s1 + $0x48c] sm:$0xf]
    %v487 = vld [vmem:[%s1 + $0x490] sm:$0xf]
    %v488 = vld [vmem:[%s1 + $0x494] sm:$0xf]
    %v489 = vld [vmem:[%s1 + $0x498] sm:$0xf]
    %v490 = vld [vmem:[%s1 + $0x49c] sm:$0xf]
    %v491 = vld [vmem:[%s1 + $0x4a0] sm:$0xf]
    %v492 = vld [vmem:[%s1 + $0x4a4] sm:$0xf]
    %v493 = vld [vmem:[%s1 + $0x4a8] sm:$0xf]
    %v494 = vld [vmem:[%s1 + $0x4ac] sm:$0xf]
    %v495 = vld [vmem:[%s1 + $0x4b0] sm:$0xf]
    %v496 = vld [vmem:[%s1 + $0x4b4] sm:$0xf]
    %v497 = vld [vmem:[%s1 + $0x4b8] sm:$0xf]
    %v498 = vld [vmem:[%s1 + $0x4bc] sm:$0xf]
    %v499 = vld [vmem:[%s1 + $0x4c0] sm:$0xf]
    %v500 = vld [vmem:[%s1 + $0x4c4] sm:$0xf]
    %v501 = vld [vmem:[%s1 + $0x4c8] sm:$0xf]
    %v502 = vld [vmem:[%s1 + $0x4cc] sm:$0xf]
    %v503 = vld [vmem:[%s1 + $0x4d0] sm:$0xf]
    %v504 = vld [vmem:[%s1 + $0x4d4] sm:$0xf]
    %v505 = vld [vmem:[%s1 + $0x4d8] sm:$0xf]
    %v506 = vld [vmem:[%s1 + $0x4dc] sm:$0xf]
    %v507 = vld [vmem:[%s1 + $0x4e0] sm:$0xf]
    %v508 = vld [vmem:[%s1 + $0x4e4] sm:$0xf]
    %v509 = vld [vmem:[%s1 + $0x4e8] sm:$0xf]
    %v510 = vld [vmem:[%s1 + $0x4ec] sm:$0xf]
    %v511 = vld [vmem:[%s1 + $0x4f0] sm:$0xf]
    %v512 = vld [vmem:[%s1 + $0x4f4] sm:$0xf]
    %v513 = vld [vmem:[%s1 + $0x4f8] sm:$0xf]
    %v514 = vld [vmem:[%s1 + $0x4fc] sm:$0xf]
    %v515 = vld [vmem:[%s1 + $0x500] sm:$0xf]
    %v516 = vld [vmem:[%s1 + $0x504] sm:$0xf]
    %v517 = vld [vmem:[%s1 + $0x508] sm:$0xf]
    %v518 = vld [vmem:[%s1 + $0x50c] sm:$0xf]
    %v519 = vld [vmem:[%s1 + $0x510] sm:$0xf]
    %v520 = vld [vmem:[%s1 + $0x514] sm:$0xf]
    %v521 = vld [vmem:[%s1 + $0x518] sm:$0xf]
    %v522 = vld [vmem:[%s1 + $0x51c] sm:$0xf]
    %v523 = vld [vmem:[%s1 + $0x520] sm:$0xf]
    %v524 = vld [vmem:[%s1 + $0x524] sm:$0xf]
    %v525 = vld [vmem:[%s1 + $0x528] sm:$0xf]
    %v526 = vld [vmem:[%s1 + $0x52c] sm:$0xf]
    %v527 = vld [vmem:[%s1 + $0x530] sm:$0xf]
    %v528 = vld [vmem:[%s1 + $0x534] sm:$0xf]
    %v529 = vld [vmem:[%s1 + $0x538] sm:$0xf]
    %v530 = vld [vmem:[%s1 + $0x53c] sm:$0xf]
    %v531 = vld [vmem:[%s1 + $0x540] sm:$0xf]
    %v532 = vld [vmem:[%s1 + $0x544] sm:$0xf]
    %v533 = vld [vmem:[%s1 + $0x548] sm:$0xf]
    %v534 = vld [vmem:[%s1 + $0x54c] sm:$0xf]
    %v535 = vld [vmem:[%s1 + $0x550] sm:$0xf]
    %v536 = vld [vmem:[%s1 + $0x554] sm:$0xf]
    %v537 = vld [vmem:[%s1 + $0x558] sm:$0xf]
    %v538 = vld [vmem:[%s1 + $0x55c] sm:$0xf]
    %v539 = vld [vmem:[%s1 + $0x560] sm:$0xf]
    %v540 = vld [vmem:[%s1 + $0x564] sm:$0xf]
    %v541 = vld [vmem:[%s1 + $0x568] sm:$0xf]
    %v542 = vld [vmem:[%s1 + $0x56c] sm:$0xf]
    %v543 = vld [vmem:[%s1 + $0x570] sm:$0xf]
    %v544 = vld [vmem:[%s1 + $0x574] sm:$0xf]
    %v545 = vld [vmem:[%s1 + $0x578] sm:$0xf]
    %v546 = vld [vmem:[%s1 + $0x57c] sm:$0xf]
    %v547 = vld [vmem:[%s1 + $0x580] sm:$0xf]
    %v548 = vld [vmem:[%s1 + $0x584] sm:$0xf]
    %v549 = vld [vmem:[%s1 + $0x588] sm:$0xf]
    %v550 = vld [vmem:[%s1 + $0x58c] sm:$0xf]
    %v551 = vld [vmem:[%s1 + $0x590] sm:$0xf]
    %v552 = vld [vmem:[%s1 + $0x594] sm:$0xf]
    %v553 = vld [vmem:[%s1 + $0x598] sm:$0xf]
    %v554 = vld [vmem:[%s1 + $0x59c] sm:$0xf]
    %v555 = vld [vmem:[%s1 + $0x5a0] sm:$0xf]
    %v556 = vld [vmem:[%s1 + $0x5a4] sm:$0xf]
    %v557 = vld [vmem:[%s1 + $0x5a8] sm:$0xf]
    %v558 = vld [vmem:[%s1 + $0x5ac] sm:$0xf]
    %v559 = vld [vmem:[%s1 + $0x5b0] sm:$0xf]
    %v560 = vld [vmem:[%s1 + $0x5b4] sm:$0xf]
    %v561 = vld [vmem:[%s1 + $0x5b8] sm:$0xf]
    %v562 = vld [vmem:[%s1 + $0x5bc] sm:$0xf]
    %v563 = vld [vmem:[%s1 + $0x5c0] sm:$0xf]
    %v564 = vld [vmem:[%s1 + $0x5c4] sm:$0xf]
    %v565 = vld [vmem:[%s1 + $0x5c8] sm:$0xf]
    %v566 = vld [vmem:[%s1 + $0x5cc] sm:$0xf]
    %v567 = vld [vmem:[%s1 + $0x5d0] sm:$0xf]
    %v568 = vld [vmem:[%s1 + $0x5d4] sm:$0xf]
    %v569 = vld [vmem:[%s1 + $0x5d8] sm:$0xf]
    %v570 = vld [vmem:[%s1 + $0x5dc] sm:$0xf]
    %v571 = vld [vmem:[%s1 + $0x5e0] sm:$0xf]
    %v572 = vld [vmem:[%s1 + $0x5e4] sm:$0xf]
    %v573 = vld [vmem:[%s1 + $0x5e8] sm:$0xf]
    %v574 = vld [vmem:[%s1 + $0x5ec] sm:$0xf]
    %v575 = vld [vmem:[%s1 + $0x5f0] sm:$0xf]
    %v576 = vld [vmem:[%s1 + $0x5f4] sm:$0xf]
    %v577 = vld [vmem:[%s1 + $0x5f8] sm:$0xf]
    %v578 = vld [vmem:[%s1 + $0x5fc] sm:$0xf]
    %v579 = vld [vmem:[%s1 + $0x600] sm:$0xf]
    %v580 = vld [vmem:[%s1 + $0x604] sm:$0xf]
    %v581 = vld [vmem:[%s1 + $0x608] sm:$0xf]
    %v582 = vld [vmem:[%s1 + $0x60c] sm:$0xf]
    %v583 = vld [vmem:[%s1 + $0x610] sm:$0xf]
    %v584 = vld [vmem:[%s1 + $0x614] sm:$0xf]
    %v585 = vld [vmem:[%s1 + $0x618] sm:$0xf]
    %v586 = vld [vmem:[%s1 + $0x61c] sm:$0xf]
    %v587 = vld [vmem:[%s2] sm:$0x1]
    %v589 = vlaneseq
    %v590 = vshrl.u32 %v589, 7
    %v591 = vsub.s32 0, %v590
    %v592 = vrot.slane %v587, %v591
    %v986 = vunpack.c.l.b16 %v195
    %v987 = vunpack.c.l.b16 %v196
    %v988 = vunpack.c.l.b16 %v197
    %v989 = vunpack.c.l.b16 %v198
    %v990 = vunpack.c.l.b16 %v199
    %v991 = vunpack.c.l.b16 %v200
    %v992 = vunpack.c.l.b16 %v201
    %v993 = vunpack.c.l.b16 %v202
    %v994 = vunpack.c.l.b16 %v203
    %v995 = vunpack.c.l.b16 %v204
    %v996 = vunpack.c.l.b16 %v205
    %v997 = vunpack.c.l.b16 %v206
    %v998 = vunpack.c.l.b16 %v207
    %v999 = vunpack.c.l.b16 %v208
    %v1000 = vunpack.c.l.b16 %v209
    %v1001 = vunpack.c.l.b16 %v210
    %v1002 = vunpack.c.l.b16 %v211
    %v1003 = vunpack.c.l.b16 %v212
    %v1004 = vunpack.c.l.b16 %v213
    %v1005 = vunpack.c.l.b16 %v214
    %v1006 = vunpack.c.l.b16 %v215
    %v1007 = vunpack.c.l.b16 %v216
    %v1008 = vunpack.c.l.b16 %v217
    %v1009 = vunpack.c.l.b16 %v218
    %v1010 = vunpack.c.l.b16 %v219
    %v1011 = vunpack.c.l.b16 %v220
    %v1012 = vunpack.c.l.b16 %v221
    %v1013 = vunpack.c.l.b16 %v222
    %v1014 = vunpack.c.l.b16 %v223
    %v1015 = vunpack.c.l.b16 %v224
    %v1016 = vunpack.c.l.b16 %v225
    %v1017 = vunpack.c.l.b16 %v226
    %v1018 = vunpack.c.l.b16 %v227
    %v1019 = vunpack.c.l.b16 %v228
    %v1020 = vunpack.c.l.b16 %v229
    %v1021 = vunpack.c.l.b16 %v230
    %v1022 = vunpack.c.l.b16 %v231
    %v1023 = vunpack.c.l.b16 %v232
    %v1024 = vunpack.c.l.b16 %v233
    %v1025 = vunpack.c.l.b16 %v234
    %v1026 = vunpack.c.l.b16 %v235
    %v1027 = vunpack.c.l.b16 %v236
    %v1028 = vunpack.c.l.b16 %v237
    %v1029 = vunpack.c.l.b16 %v238
    %v1030 = vunpack.c.l.b16 %v239
    %v1031 = vunpack.c.l.b16 %v240
    %v1032 = vunpack.c.l.b16 %v241
    %v1033 = vunpack.c.l.b16 %v242
    %v1034 = vunpack.c.l.b16 %v243
    %v1035 = vunpack.c.l.b16 %v244
    %v1036 = vunpack.c.l.b16 %v245
    %v1037 = vunpack.c.l.b16 %v246
    %v1038 = vunpack.c.l.b16 %v247
    %v1039 = vunpack.c.l.b16 %v248
    %v1040 = vunpack.c.l.b16 %v249
    %v1041 = vunpack.c.l.b16 %v250
    %v1042 = vunpack.c.l.b16 %v251
    %v1043 = vunpack.c.l.b16 %v252
    %v1044 = vunpack.c.l.b16 %v253
    %v1045 = vunpack.c.l.b16 %v254
    %v1046 = vunpack.c.l.b16 %v255
    %v1047 = vunpack.c.l.b16 %v256
    %v1048 = vunpack.c.l.b16 %v257
    %v1049 = vunpack.c.l.b16 %v258
    %v1050 = vunpack.c.l.b16 %v259
    %v1051 = vunpack.c.l.b16 %v260
    %v1052 = vunpack.c.l.b16 %v261
    %v1053 = vunpack.c.l.b16 %v262
    %v1054 = vunpack.c.l.b16 %v263
    %v1055 = vunpack.c.l.b16 %v264
    %v1056 = vunpack.c.l.b16 %v265
    %v1057 = vunpack.c.l.b16 %v266
    %v1058 = vunpack.c.l.b16 %v267
    %v1059 = vunpack.c.l.b16 %v268
    %v1060 = vunpack.c.l.b16 %v269
    %v1061 = vunpack.c.l.b16 %v270
    %v1062 = vunpack.c.l.b16 %v271
    %v1063 = vunpack.c.l.b16 %v272
    %v1064 = vunpack.c.l.b16 %v273
    %v1065 = vunpack.c.l.b16 %v274
    %v1066 = vunpack.c.l.b16 %v275
    %v1067 = vunpack.c.l.b16 %v276
    %v1068 = vunpack.c.l.b16 %v277
    %v1069 = vunpack.c.l.b16 %v278
    %v1070 = vunpack.c.l.b16 %v279
    %v1071 = vunpack.c.l.b16 %v280
    %v1072 = vunpack.c.l.b16 %v281
    %v1073 = vunpack.c.l.b16 %v282
    %v1074 = vunpack.c.l.b16 %v283
    %v1075 = vunpack.c.l.b16 %v284
    %v1076 = vunpack.c.l.b16 %v285
    %v1077 = vunpack.c.l.b16 %v286
    %v1078 = vunpack.c.l.b16 %v287
    %v1079 = vunpack.c.l.b16 %v288
    %v1080 = vunpack.c.l.b16 %v289
    %v1081 = vunpack.c.l.b16 %v290
    %v1082 = vunpack.c.l.b16 %v291
    %v1083 = vunpack.c.l.b16 %v292
    %v1084 = vunpack.c.l.b16 %v293
    %v1085 = vunpack.c.l.b16 %v294
    %v1086 = vunpack.c.l.b16 %v295
    %v1087 = vunpack.c.l.b16 %v296
    %v1088 = vunpack.c.l.b16 %v297
    %v1089 = vunpack.c.l.b16 %v298
    %v1090 = vunpack.c.l.b16 %v299
    %v1091 = vunpack.c.l.b16 %v300
    %v1092 = vunpack.c.l.b16 %v301
    %v1093 = vunpack.c.l.b16 %v302
    %v1094 = vunpack.c.l.b16 %v303
    %v1095 = vunpack.c.l.b16 %v304
    %v1096 = vunpack.c.l.b16 %v305
    %v1097 = vunpack.c.l.b16 %v306
    %v1098 = vunpack.c.l.b16 %v307
    %v1099 = vunpack.c.l.b16 %v308
    %v1100 = vunpack.c.l.b16 %v309
    %v1101 = vunpack.c.l.b16 %v310
    %v1102 = vunpack.c.l.b16 %v311
    %v1103 = vunpack.c.l.b16 %v312
    %v1104 = vunpack.c.l.b16 %v313
    %v1105 = vunpack.c.l.b16 %v314
    %v1106 = vunpack.c.l.b16 %v315
    %v1107 = vunpack.c.l.b16 %v316
    %v1108 = vunpack.c.l.b16 %v317
    %v1109 = vunpack.c.l.b16 %v318
    %v1110 = vunpack.c.l.b16 %v319
    %v1111 = vunpack.c.l.b16 %v320
    %v1112 = vunpack.c.l.b16 %v321
    %v1113 = vunpack.c.l.b16 %v322
    %v1114 = vunpack.c.l.b16 %v323
    %v1115 = vunpack.c.l.b16 %v324
    %v1116 = vunpack.c.l.b16 %v325
    %v1117 = vunpack.c.l.b16 %v326
    %v1118 = vunpack.c.l.b16 %v327
    %v1119 = vunpack.c.l.b16 %v328
    %v1120 = vunpack.c.l.b16 %v329
    %v1121 = vunpack.c.l.b16 %v330
    %v1122 = vunpack.c.l.b16 %v331
    %v1123 = vunpack.c.l.b16 %v332
    %v1124 = vunpack.c.l.b16 %v333
    %v1125 = vunpack.c.l.b16 %v334
    %v1126 = vunpack.c.l.b16 %v335
    %v1127 = vunpack.c.l.b16 %v336
    %v1128 = vunpack.c.l.b16 %v337
    %v1129 = vunpack.c.l.b16 %v338
    %v1130 = vunpack.c.l.b16 %v339
    %v1131 = vunpack.c.l.b16 %v340
    %v1132 = vunpack.c.l.b16 %v341
    %v1133 = vunpack.c.l.b16 %v342
    %v1134 = vunpack.c.l.b16 %v343
    %v1135 = vunpack.c.l.b16 %v344
    %v1136 = vunpack.c.l.b16 %v345
    %v1137 = vunpack.c.l.b16 %v346
    %v1138 = vunpack.c.l.b16 %v347
    %v1139 = vunpack.c.l.b16 %v348
    %v1140 = vunpack.c.l.b16 %v349
    %v1141 = vunpack.c.l.b16 %v350
    %v1142 = vunpack.c.l.b16 %v351
    %v1143 = vunpack.c.l.b16 %v352
    %v1144 = vunpack.c.l.b16 %v353
    %v1145 = vunpack.c.l.b16 %v354
    %v1146 = vunpack.c.l.b16 %v355
    %v1147 = vunpack.c.l.b16 %v356
    %v1148 = vunpack.c.l.b16 %v357
    %v1149 = vunpack.c.l.b16 %v358
    %v1150 = vunpack.c.l.b16 %v359
    %v1151 = vunpack.c.l.b16 %v360
    %v1152 = vunpack.c.l.b16 %v361
    %v1153 = vunpack.c.l.b16 %v362
    %v1154 = vunpack.c.l.b16 %v363
    %v1155 = vunpack.c.l.b16 %v364
    %v1156 = vunpack.c.l.b16 %v365
    %v1157 = vunpack.c.l.b16 %v366
    %v1158 = vunpack.c.l.b16 %v367
    %v1159 = vunpack.c.l.b16 %v368
    %v1160 = vunpack.c.l.b16 %v369
    %v1161 = vunpack.c.l.b16 %v370
    %v1162 = vunpack.c.l.b16 %v371
    %v1163 = vunpack.c.l.b16 %v372
    %v1164 = vunpack.c.l.b16 %v373
    %v1165 = vunpack.c.l.b16 %v374
    %v1166 = vunpack.c.l.b16 %v375
    %v1167 = vunpack.c.l.b16 %v376
    %v1168 = vunpack.c.l.b16 %v377
    %v1169 = vunpack.c.l.b16 %v378
    %v1170 = vunpack.c.l.b16 %v379
    %v1171 = vunpack.c.l.b16 %v380
    %v1172 = vunpack.c.l.b16 %v381
    %v1173 = vunpack.c.l.b16 %v382
    %v1174 = vunpack.c.l.b16 %v383
    %v1175 = vunpack.c.l.b16 %v384
    %v1176 = vunpack.c.l.b16 %v385
    %v1177 = vunpack.c.l.b16 %v386
    %v1178 = vunpack.c.l.b16 %v387
    %v1179 = vunpack.c.l.b16 %v388
    %v1180 = vunpack.c.l.b16 %v389
    %v1181 = vunpack.c.l.b16 %v390
    %v1182 = vunpack.c.l.b16 %v391
    %v1183 = vunpack.c.l.b16 %v392
    %v1184 = vunpack.c.l.b16 %v393
    %v1185 = vunpack.c.l.b16 %v394
    %v1186 = vunpack.c.l.b16 %v395
    %v1187 = vunpack.c.l.b16 %v396
    %v1188 = vunpack.c.l.b16 %v397
    %v1189 = vunpack.c.l.b16 %v398
    %v1190 = vunpack.c.l.b16 %v399
    %v1191 = vunpack.c.l.b16 %v400
    %v1192 = vunpack.c.l.b16 %v401
    %v1193 = vunpack.c.l.b16 %v402
    %v1194 = vunpack.c.l.b16 %v403
    %v1195 = vunpack.c.l.b16 %v404
    %v1196 = vunpack.c.l.b16 %v405
    %v1197 = vunpack.c.l.b16 %v406
    %v1198 = vunpack.c.l.b16 %v407
    %v1199 = vunpack.c.l.b16 %v408
    %v1200 = vunpack.c.l.b16 %v409
    %v1201 = vunpack.c.l.b16 %v410
    %v1202 = vunpack.c.l.b16 %v411
    %v1203 = vunpack.c.l.b16 %v412
    %v1204 = vunpack.c.l.b16 %v413
    %v1205 = vunpack.c.l.b16 %v414
    %v1206 = vunpack.c.l.b16 %v415
    %v1207 = vunpack.c.l.b16 %v416
    %v1208 = vunpack.c.l.b16 %v417
    %v1209 = vunpack.c.l.b16 %v418
    %v1210 = vunpack.c.l.b16 %v419
    %v1211 = vunpack.c.l.b16 %v420
    %v1212 = vunpack.c.l.b16 %v421
    %v1213 = vunpack.c.l.b16 %v422
    %v1214 = vunpack.c.l.b16 %v423
    %v1215 = vunpack.c.l.b16 %v424
    %v1216 = vunpack.c.l.b16 %v425
    %v1217 = vunpack.c.l.b16 %v426
    %v1218 = vunpack.c.l.b16 %v427
    %v1219 = vunpack.c.l.b16 %v428
    %v1220 = vunpack.c.l.b16 %v429
    %v1221 = vunpack.c.l.b16 %v430
    %v1222 = vunpack.c.l.b16 %v431
    %v1223 = vunpack.c.l.b16 %v432
    %v1224 = vunpack.c.l.b16 %v433
    %v1225 = vunpack.c.l.b16 %v434
    %v1226 = vunpack.c.l.b16 %v435
    %v1227 = vunpack.c.l.b16 %v436
    %v1228 = vunpack.c.l.b16 %v437
    %v1229 = vunpack.c.l.b16 %v438
    %v1230 = vunpack.c.l.b16 %v439
    %v1231 = vunpack.c.l.b16 %v440
    %v1232 = vunpack.c.l.b16 %v441
    %v1233 = vunpack.c.l.b16 %v442
    %v1234 = vunpack.c.l.b16 %v443
    %v1235 = vunpack.c.l.b16 %v444
    %v1236 = vunpack.c.l.b16 %v445
    %v1237 = vunpack.c.l.b16 %v446
    %v1238 = vunpack.c.l.b16 %v447
    %v1239 = vunpack.c.l.b16 %v448
    %v1240 = vunpack.c.l.b16 %v449
    %v1241 = vunpack.c.l.b16 %v450
    %v1242 = vunpack.c.l.b16 %v451
    %v1243 = vunpack.c.l.b16 %v452
    %v1244 = vunpack.c.l.b16 %v453
    %v1245 = vunpack.c.l.b16 %v454
    %v1246 = vunpack.c.l.b16 %v455
    %v1247 = vunpack.c.l.b16 %v456
    %v1248 = vunpack.c.l.b16 %v457
    %v1249 = vunpack.c.l.b16 %v458
    %v1250 = vunpack.c.l.b16 %v459
    %v1251 = vunpack.c.l.b16 %v460
    %v1252 = vunpack.c.l.b16 %v461
    %v1253 = vunpack.c.l.b16 %v462
    %v1254 = vunpack.c.l.b16 %v463
    %v1255 = vunpack.c.l.b16 %v464
    %v1256 = vunpack.c.l.b16 %v465
    %v1257 = vunpack.c.l.b16 %v466
    %v1258 = vunpack.c.l.b16 %v467
    %v1259 = vunpack.c.l.b16 %v468
    %v1260 = vunpack.c.l.b16 %v469
    %v1261 = vunpack.c.l.b16 %v470
    %v1262 = vunpack.c.l.b16 %v471
    %v1263 = vunpack.c.l.b16 %v472
    %v1264 = vunpack.c.l.b16 %v473
    %v1265 = vunpack.c.l.b16 %v474
    %v1266 = vunpack.c.l.b16 %v475
    %v1267 = vunpack.c.l.b16 %v476
    %v1268 = vunpack.c.l.b16 %v477
    %v1269 = vunpack.c.l.b16 %v478
    %v1270 = vunpack.c.l.b16 %v479
    %v1271 = vunpack.c.l.b16 %v480
    %v1272 = vunpack.c.l.b16 %v481
    %v1273 = vunpack.c.l.b16 %v482
    %v1274 = vunpack.c.l.b16 %v483
    %v1275 = vunpack.c.l.b16 %v484
    %v1276 = vunpack.c.l.b16 %v485
    %v1277 = vunpack.c.l.b16 %v486
    %v1278 = vunpack.c.l.b16 %v487
    %v1279 = vunpack.c.l.b16 %v488
    %v1280 = vunpack.c.l.b16 %v489
    %v1281 = vunpack.c.l.b16 %v490
    %v1282 = vunpack.c.l.b16 %v491
    %v1283 = vunpack.c.l.b16 %v492
    %v1284 = vunpack.c.l.b16 %v493
    %v1285 = vunpack.c.l.b16 %v494
    %v1286 = vunpack.c.l.b16 %v495
    %v1287 = vunpack.c.l.b16 %v496
    %v1288 = vunpack.c.l.b16 %v497
    %v1289 = vunpack.c.l.b16 %v498
    %v1290 = vunpack.c.l.b16 %v499
    %v1291 = vunpack.c.l.b16 %v500
    %v1292 = vunpack.c.l.b16 %v501
    %v1293 = vunpack.c.l.b16 %v502
    %v1294 = vunpack.c.l.b16 %v503
    %v1295 = vunpack.c.l.b16 %v504
    %v1296 = vunpack.c.l.b16 %v505
    %v1297 = vunpack.c.l.b16 %v506
    %v1298 = vunpack.c.l.b16 %v507
    %v1299 = vunpack.c.l.b16 %v508
    %v1300 = vunpack.c.l.b16 %v509
    %v1301 = vunpack.c.l.b16 %v510
    %v1302 = vunpack.c.l.b16 %v511
    %v1303 = vunpack.c.l.b16 %v512
    %v1304 = vunpack.c.l.b16 %v513
    %v1305 = vunpack.c.l.b16 %v514
    %v1306 = vunpack.c.l.b16 %v515
    %v1307 = vunpack.c.l.b16 %v516
    %v1308 = vunpack.c.l.b16 %v517
    %v1309 = vunpack.c.l.b16 %v518
    %v1310 = vunpack.c.l.b16 %v519
    %v1311 = vunpack.c.l.b16 %v520
    %v1312 = vunpack.c.l.b16 %v521
    %v1313 = vunpack.c.l.b16 %v522
    %v1314 = vunpack.c.l.b16 %v523
    %v1315 = vunpack.c.l.b16 %v524
    %v1316 = vunpack.c.l.b16 %v525
    %v1317 = vunpack.c.l.b16 %v526
    %v1318 = vunpack.c.l.b16 %v527
    %v1319 = vunpack.c.l.b16 %v528
    %v1320 = vunpack.c.l.b16 %v529
    %v1321 = vunpack.c.l.b16 %v530
    %v1322 = vunpack.c.l.b16 %v531
    %v1323 = vunpack.c.l.b16 %v532
    %v1324 = vunpack.c.l.b16 %v533
    %v1325 = vunpack.c.l.b16 %v534
    %v1326 = vunpack.c.l.b16 %v535
    %v1327 = vunpack.c.l.b16 %v536
    %v1328 = vunpack.c.l.b16 %v537
    %v1329 = vunpack.c.l.b16 %v538
    %v1330 = vunpack.c.l.b16 %v539
    %v1331 = vunpack.c.l.b16 %v540
    %v1332 = vunpack.c.l.b16 %v541
    %v1333 = vunpack.c.l.b16 %v542
    %v1334 = vunpack.c.l.b16 %v543
    %v1335 = vunpack.c.l.b16 %v544
    %v1336 = vunpack.c.l.b16 %v545
    %v1337 = vunpack.c.l.b16 %v546
    %v1338 = vunpack.c.l.b16 %v547
    %v1339 = vunpack.c.l.b16 %v548
    %v1340 = vunpack.c.l.b16 %v549
    %v1341 = vunpack.c.l.b16 %v550
    %v1342 = vunpack.c.l.b16 %v551
    %v1343 = vunpack.c.l.b16 %v552
    %v1344 = vunpack.c.l.b16 %v553
    %v1345 = vunpack.c.l.b16 %v554
    %v1346 = vunpack.c.l.b16 %v555
    %v1347 = vunpack.c.l.b16 %v556
    %v1348 = vunpack.c.l.b16 %v557
    %v1349 = vunpack.c.l.b16 %v558
    %v1350 = vunpack.c.l.b16 %v559
    %v1351 = vunpack.c.l.b16 %v560
    %v1352 = vunpack.c.l.b16 %v561
    %v1353 = vunpack.c.l.b16 %v562
    %v1354 = vunpack.c.l.b16 %v563
    %v1355 = vunpack.c.l.b16 %v564
    %v1356 = vunpack.c.l.b16 %v565
    %v1357 = vunpack.c.l.b16 %v566
    %v1358 = vunpack.c.l.b16 %v567
    %v1359 = vunpack.c.l.b16 %v568
    %v1360 = vunpack.c.l.b16 %v569
    %v1361 = vunpack.c.l.b16 %v570
    %v1362 = vunpack.c.l.b16 %v571
    %v1363 = vunpack.c.l.b16 %v572
    %v1364 = vunpack.c.l.b16 %v573
    %v1365 = vunpack.c.l.b16 %v574
    %v1366 = vunpack.c.l.b16 %v575
    %v1367 = vunpack.c.l.b16 %v576
    %v1368 = vunpack.c.l.b16 %v577
    %v1369 = vunpack.c.l.b16 %v578
    %v1370 = vunpack.c.l.b16 %v579
    %v1371 = vunpack.c.l.b16 %v580
    %v1372 = vunpack.c.l.b16 %v581
    %v1373 = vunpack.c.l.b16 %v582
    %v1374 = vunpack.c.l.b16 %v583
    %v1375 = vunpack.c.l.b16 %v584
    %v1376 = vunpack.c.l.b16 %v585
    %v1377 = vunpack.c.l.b16 %v586
    %v1378 = vpack.c.b16 %v987, %v986
    %v1379 = vpack.c.b16 %v989, %v988
    %v1380 = vpack.c.b16 %v991, %v990
    %v1381 = vpack.c.b16 %v993, %v992
    %v1382 = vpack.c.b16 %v995, %v994
    %v1383 = vpack.c.b16 %v997, %v996
    %v1384 = vpack.c.b16 %v999, %v998
    %v1385 = vpack.c.b16 %v1001, %v1000
    %v1386 = vpack.c.b16 %v1003, %v1002
    %v1387 = vpack.c.b16 %v1005, %v1004
    %v1388 = vpack.c.b16 %v1007, %v1006
    %v1389 = vpack.c.b16 %v1009, %v1008
    %v1390 = vpack.c.b16 %v1011, %v1010
    %v1391 = vpack.c.b16 %v1013, %v1012
    %v1392 = vpack.c.b16 %v1015, %v1014
    %v1393 = vpack.c.b16 %v1017, %v1016
    %v1394 = vpack.c.b16 %v1019, %v1018
    %v1395 = vpack.c.b16 %v1021, %v1020
    %v1396 = vpack.c.b16 %v1023, %v1022
    %v1397 = vpack.c.b16 %v1025, %v1024
    %v1398 = vpack.c.b16 %v1027, %v1026
    %v1399 = vpack.c.b16 %v1029, %v1028
    %v1400 = vpack.c.b16 %v1031, %v1030
    %v1401 = vpack.c.b16 %v1033, %v1032
    %v1402 = vpack.c.b16 %v1035, %v1034
    %v1403 = vpack.c.b16 %v1037, %v1036
    %v1404 = vpack.c.b16 %v1039, %v1038
    %v1405 = vpack.c.b16 %v1041, %v1040
    %v1406 = vpack.c.b16 %v1043, %v1042
    %v1407 = vpack.c.b16 %v1045, %v1044
    %v1408 = vpack.c.b16 %v1047, %v1046
    %v1409 = vpack.c.b16 %v1049, %v1048
    %v1410 = vpack.c.b16 %v1051, %v1050
    %v1411 = vpack.c.b16 %v1053, %v1052
    %v1412 = vpack.c.b16 %v1055, %v1054
    %v1413 = vpack.c.b16 %v1057, %v1056
    %v1414 = vpack.c.b16 %v1059, %v1058
    %v1415 = vpack.c.b16 %v1061, %v1060
    %v1416 = vpack.c.b16 %v1063, %v1062
    %v1417 = vpack.c.b16 %v1065, %v1064
    %v1418 = vpack.c.b16 %v1067, %v1066
    %v1419 = vpack.c.b16 %v1069, %v1068
    %v1420 = vpack.c.b16 %v1071, %v1070
    %v1421 = vpack.c.b16 %v1073, %v1072
    %v1422 = vpack.c.b16 %v1075, %v1074
    %v1423 = vpack.c.b16 %v1077, %v1076
    %v1424 = vpack.c.b16 %v1079, %v1078
    %v1425 = vpack.c.b16 %v1081, %v1080
    %v1426 = vpack.c.b16 %v1083, %v1082
    %v1427 = vpack.c.b16 %v1085, %v1084
    %v1428 = vpack.c.b16 %v1087, %v1086
    %v1429 = vpack.c.b16 %v1089, %v1088
    %v1430 = vpack.c.b16 %v1091, %v1090
    %v1431 = vpack.c.b16 %v1093, %v1092
    %v1432 = vpack.c.b16 %v1095, %v1094
    %v1433 = vpack.c.b16 %v1097, %v1096
    %v1434 = vpack.c.b16 %v1099, %v1098
    %v1435 = vpack.c.b16 %v1101, %v1100
    %v1436 = vpack.c.b16 %v1103, %v1102
    %v1437 = vpack.c.b16 %v1105, %v1104
    %v1438 = vpack.c.b16 %v1107, %v1106
    %v1439 = vpack.c.b16 %v1109, %v1108
    %v1440 = vpack.c.b16 %v1111, %v1110
    %v1441 = vpack.c.b16 %v1113, %v1112
    %v1442 = vpack.c.b16 %v1115, %v1114
    %v1443 = vpack.c.b16 %v1117, %v1116
    %v1444 = vpack.c.b16 %v1119, %v1118
    %v1445 = vpack.c.b16 %v1121, %v1120
    %v1446 = vpack.c.b16 %v1123, %v1122
    %v1447 = vpack.c.b16 %v1125, %v1124
    %v1448 = vpack.c.b16 %v1127, %v1126
    %v1449 = vpack.c.b16 %v1129, %v1128
    %v1450 = vpack.c.b16 %v1131, %v1130
    %v1451 = vpack.c.b16 %v1133, %v1132
    %v1452 = vpack.c.b16 %v1135, %v1134
    %v1453 = vpack.c.b16 %v1137, %v1136
    %v1454 = vpack.c.b16 %v1139, %v1138
    %v1455 = vpack.c.b16 %v1141, %v1140
    %v1456 = vpack.c.b16 %v1143, %v1142
    %v1457 = vpack.c.b16 %v1145, %v1144
    %v1458 = vpack.c.b16 %v1147, %v1146
    %v1459 = vpack.c.b16 %v1149, %v1148
    %v1460 = vpack.c.b16 %v1151, %v1150
    %v1461 = vpack.c.b16 %v1153, %v1152
    %v1462 = vpack.c.b16 %v1155, %v1154
    %v1463 = vpack.c.b16 %v1157, %v1156
    %v1464 = vpack.c.b16 %v1159, %v1158
    %v1465 = vpack.c.b16 %v1161, %v1160
    %v1466 = vpack.c.b16 %v1163, %v1162
    %v1467 = vpack.c.b16 %v1165, %v1164
    %v1468 = vpack.c.b16 %v1167, %v1166
    %v1469 = vpack.c.b16 %v1169, %v1168
    %v1470 = vpack.c.b16 %v1171, %v1170
    %v1471 = vpack.c.b16 %v1173, %v1172
    %v1472 = vpack.c.b16 %v1175, %v1174
    %v1473 = vpack.c.b16 %v1177, %v1176
    %v1474 = vpack.c.b16 %v1179, %v1178
    %v1475 = vpack.c.b16 %v1181, %v1180
    %v1476 = vpack.c.b16 %v1183, %v1182
    %v1477 = vpack.c.b16 %v1185, %v1184
    %v1478 = vpack.c.b16 %v1187, %v1186
    %v1479 = vpack.c.b16 %v1189, %v1188
    %v1480 = vpack.c.b16 %v1191, %v1190
    %v1481 = vpack.c.b16 %v1193, %v1192
    %v1482 = vpack.c.b16 %v1195, %v1194
    %v1483 = vpack.c.b16 %v1197, %v1196
    %v1484 = vpack.c.b16 %v1199, %v1198
    %v1485 = vpack.c.b16 %v1201, %v1200
    %v1486 = vpack.c.b16 %v1203, %v1202
    %v1487 = vpack.c.b16 %v1205, %v1204
    %v1488 = vpack.c.b16 %v1207, %v1206
    %v1489 = vpack.c.b16 %v1209, %v1208
    %v1490 = vpack.c.b16 %v1211, %v1210
    %v1491 = vpack.c.b16 %v1213, %v1212
    %v1492 = vpack.c.b16 %v1215, %v1214
    %v1493 = vpack.c.b16 %v1217, %v1216
    %v1494 = vpack.c.b16 %v1219, %v1218
    %v1495 = vpack.c.b16 %v1221, %v1220
    %v1496 = vpack.c.b16 %v1223, %v1222
    %v1497 = vpack.c.b16 %v1225, %v1224
    %v1498 = vpack.c.b16 %v1227, %v1226
    %v1499 = vpack.c.b16 %v1229, %v1228
    %v1500 = vpack.c.b16 %v1231, %v1230
    %v1501 = vpack.c.b16 %v1233, %v1232
    %v1502 = vpack.c.b16 %v1235, %v1234
    %v1503 = vpack.c.b16 %v1237, %v1236
    %v1504 = vpack.c.b16 %v1239, %v1238
    %v1505 = vpack.c.b16 %v1241, %v1240
    %v1506 = vpack.c.b16 %v1243, %v1242
    %v1507 = vpack.c.b16 %v1245, %v1244
    %v1508 = vpack.c.b16 %v1247, %v1246
    %v1509 = vpack.c.b16 %v1249, %v1248
    %v1510 = vpack.c.b16 %v1251, %v1250
    %v1511 = vpack.c.b16 %v1253, %v1252
    %v1512 = vpack.c.b16 %v1255, %v1254
    %v1513 = vpack.c.b16 %v1257, %v1256
    %v1514 = vpack.c.b16 %v1259, %v1258
    %v1515 = vpack.c.b16 %v1261, %v1260
    %v1516 = vpack.c.b16 %v1263, %v1262
    %v1517 = vpack.c.b16 %v1265, %v1264
    %v1518 = vpack.c.b16 %v1267, %v1266
    %v1519 = vpack.c.b16 %v1269, %v1268
    %v1520 = vpack.c.b16 %v1271, %v1270
    %v1521 = vpack.c.b16 %v1273, %v1272
    %v1522 = vpack.c.b16 %v1275, %v1274
    %v1523 = vpack.c.b16 %v1277, %v1276
    %v1524 = vpack.c.b16 %v1279, %v1278
    %v1525 = vpack.c.b16 %v1281, %v1280
    %v1526 = vpack.c.b16 %v1283, %v1282
    %v1527 = vpack.c.b16 %v1285, %v1284
    %v1528 = vpack.c.b16 %v1287, %v1286
    %v1529 = vpack.c.b16 %v1289, %v1288
    %v1530 = vpack.c.b16 %v1291, %v1290
    %v1531 = vpack.c.b16 %v1293, %v1292
    %v1532 = vpack.c.b16 %v1295, %v1294
    %v1533 = vpack.c.b16 %v1297, %v1296
    %v1534 = vpack.c.b16 %v1299, %v1298
    %v1535 = vpack.c.b16 %v1301, %v1300
    %v1536 = vpack.c.b16 %v1303, %v1302
    %v1537 = vpack.c.b16 %v1305, %v1304
    %v1538 = vpack.c.b16 %v1307, %v1306
    %v1539 = vpack.c.b16 %v1309, %v1308
    %v1540 = vpack.c.b16 %v1311, %v1310
    %v1541 = vpack.c.b16 %v1313, %v1312
    %v1542 = vpack.c.b16 %v1315, %v1314
    %v1543 = vpack.c.b16 %v1317, %v1316
    %v1544 = vpack.c.b16 %v1319, %v1318
    %v1545 = vpack.c.b16 %v1321, %v1320
    %v1546 = vpack.c.b16 %v1323, %v1322
    %v1547 = vpack.c.b16 %v1325, %v1324
    %v1548 = vpack.c.b16 %v1327, %v1326
    %v1549 = vpack.c.b16 %v1329, %v1328
    %v1550 = vpack.c.b16 %v1331, %v1330
    %v1551 = vpack.c.b16 %v1333, %v1332
    %v1552 = vpack.c.b16 %v1335, %v1334
    %v1553 = vpack.c.b16 %v1337, %v1336
    %v1554 = vpack.c.b16 %v1339, %v1338
    %v1555 = vpack.c.b16 %v1341, %v1340
    %v1556 = vpack.c.b16 %v1343, %v1342
    %v1557 = vpack.c.b16 %v1345, %v1344
    %v1558 = vpack.c.b16 %v1347, %v1346
    %v1559 = vpack.c.b16 %v1349, %v1348
    %v1560 = vpack.c.b16 %v1351, %v1350
    %v1561 = vpack.c.b16 %v1353, %v1352
    %v1562 = vpack.c.b16 %v1355, %v1354
    %v1563 = vpack.c.b16 %v1357, %v1356
    %v1564 = vpack.c.b16 %v1359, %v1358
    %v1565 = vpack.c.b16 %v1361, %v1360
    %v1566 = vpack.c.b16 %v1363, %v1362
    %v1567 = vpack.c.b16 %v1365, %v1364
    %v1568 = vpack.c.b16 %v1367, %v1366
    %v1569 = vpack.c.b16 %v1369, %v1368
    %v1570 = vpack.c.b16 %v1371, %v1370
    %v1571 = vpack.c.b16 %v1373, %v1372
    %v1572 = vpack.c.b16 %v1375, %v1374
    %v1573 = vpack.c.b16 %v1377, %v1376
    %vm1770 = vcmask 523264
    %v1772 = vsel %vm1770, %v194, 0
    %1774 = vmatprep.subr.bf16.mxu0 0
    %1775 = vmatpush1.bf16.msra.mxu0 %v1385
    %1776 = vmatprep.subr.bf16.mxu0 0
    %1777 = vmatpush1.bf16.msra.mxu0 %v1384
    %1778 = vmatprep.subr.bf16.mxu0 0
    %1779 = vmatpush1.bf16.msra.mxu0 %v1383
    %1780 = vmatprep.subr.bf16.mxu0 0
    %1781 = vmatpush1.bf16.msra.mxu0 %v1382
    %1782 = vmatprep.subr.bf16.mxu0 0
    %1783 = vmatpush1.bf16.msra.mxu0 %v1381
    %1784 = vmatprep.subr.bf16.mxu0 0
    %1785 = vmatpush1.bf16.msra.mxu0 %v1380
    %1786 = vmatprep.subr.bf16.mxu0 0
    %1787 = vmatpush1.bf16.msra.mxu0 %v1379
    %1788 = vmatprep.subr.bf16.mxu0 0
    %1789 = vmatpush1.bf16.msra.mxu0 %v1378
    %1790 = vmatprep.subr.bf16.mxu0 0
    %1791 = vmatpush2.bf16.msra.mxu0 %v1393
    %1792 = vmatprep.subr.bf16.mxu0 0
    %1793 = vmatpush2.bf16.msra.mxu0 %v1392
    %1794 = vmatprep.subr.bf16.mxu0 0
    %1795 = vmatpush2.bf16.msra.mxu0 %v1391
    %1796 = vmatprep.subr.bf16.mxu0 0
    %1797 = vmatpush2.bf16.msra.mxu0 %v1390
    %1798 = vmatprep.subr.bf16.mxu0 0
    %1799 = vmatpush2.bf16.msra.mxu0 %v1389
    %1800 = vmatprep.subr.bf16.mxu0 0
    %1801 = vmatpush2.bf16.msra.mxu0 %v1388
    %1802 = vmatprep.subr.bf16.mxu0 0
    %1803 = vmatpush2.bf16.msra.mxu0 %v1387
    %1804 = vmatprep.subr.bf16.mxu0 0
    %1805 = vmatpush2.bf16.msra.mxu0 %v1386
    %1806 = vmatprep.mubr.bf16.mxu0 %v171
    %1807 = vmatmul.mubr.bf16.gmra.mxu0 %v170
    %v1808 = vpop.f32.mrf.mxu0
    %v1809 = vadd.f32 %v592, %v1808
    %v1810 = vpop.f32.mrf.mxu0
    %v1811 = vpop.f32.mrf.mxu0
    %v1812 = vpop.f32.mrf.mxu0
    %1813 = vdwg.mxu0
    %1814 = vmatprep.subr.bf16.mxu0 0
    %1815 = vmatpush1.bf16.msra.mxu0 %v1401
    %1816 = vmatprep.subr.bf16.mxu0 0
    %1817 = vmatpush1.bf16.msra.mxu0 %v1400
    %1818 = vmatprep.subr.bf16.mxu0 0
    %1819 = vmatpush1.bf16.msra.mxu0 %v1399
    %1820 = vmatprep.subr.bf16.mxu0 0
    %1821 = vmatpush1.bf16.msra.mxu0 %v1398
    %1822 = vmatprep.subr.bf16.mxu0 0
    %1823 = vmatpush1.bf16.msra.mxu0 %v1397
    %1824 = vmatprep.subr.bf16.mxu0 0
    %1825 = vmatpush1.bf16.msra.mxu0 %v1396
    %1826 = vmatprep.subr.bf16.mxu0 0
    %1827 = vmatpush1.bf16.msra.mxu0 %v1395
    %1828 = vmatprep.subr.bf16.mxu0 0
    %1829 = vmatpush1.bf16.msra.mxu0 %v1394
    %1830 = vmatprep.subr.bf16.mxu0 0
    %1831 = vmatpush2.bf16.msra.mxu0 %v1409
    %1832 = vmatprep.subr.bf16.mxu0 0
    %1833 = vmatpush2.bf16.msra.mxu0 %v1408
    %1834 = vmatprep.subr.bf16.mxu0 0
    %1835 = vmatpush2.bf16.msra.mxu0 %v1407
    %1836 = vmatprep.subr.bf16.mxu0 0
    %1837 = vmatpush2.bf16.msra.mxu0 %v1406
    %1838 = vmatprep.subr.bf16.mxu0 0
    %1839 = vmatpush2.bf16.msra.mxu0 %v1405
    %1840 = vmatprep.subr.bf16.mxu0 0
    %1841 = vmatpush2.bf16.msra.mxu0 %v1404
    %1842 = vmatprep.subr.bf16.mxu0 0
    %1843 = vmatpush2.bf16.msra.mxu0 %v1403
    %1844 = vmatprep.subr.bf16.mxu0 0
    %1845 = vmatpush2.bf16.msra.mxu0 %v1402
    %1846 = vmatprep.mubr.bf16.mxu0 %v173
    %1847 = vmatmul.mubr.bf16.gmra.mxu0 %v172
    %v1848 = vpop.f32.mrf.mxu0
    %v1849 = vadd.f32 %v1809, %v1848
    %v1850 = vpop.f32.mrf.mxu0
    %v1851 = vpop.f32.mrf.mxu0
    %v1852 = vpop.f32.mrf.mxu0
    %1853 = vdwg.mxu0
    %1854 = vmatprep.subr.bf16.mxu0 0
    %1855 = vmatpush1.bf16.msra.mxu0 %v1417
    %1856 = vmatprep.subr.bf16.mxu0 0
    %1857 = vmatpush1.bf16.msra.mxu0 %v1416
    %1858 = vmatprep.subr.bf16.mxu0 0
    %1859 = vmatpush1.bf16.msra.mxu0 %v1415
    %1860 = vmatprep.subr.bf16.mxu0 0
    %1861 = vmatpush1.bf16.msra.mxu0 %v1414
    %1862 = vmatprep.subr.bf16.mxu0 0
    %1863 = vmatpush1.bf16.msra.mxu0 %v1413
    %1864 = vmatprep.subr.bf16.mxu0 0
    %1865 = vmatpush1.bf16.msra.mxu0 %v1412
    %1866 = vmatprep.subr.bf16.mxu0 0
    %1867 = vmatpush1.bf16.msra.mxu0 %v1411
    %1868 = vmatprep.subr.bf16.mxu0 0
    %1869 = vmatpush1.bf16.msra.mxu0 %v1410
    %1870 = vmatprep.subr.bf16.mxu0 0
    %1871 = vmatpush2.bf16.msra.mxu0 %v1425
    %1872 = vmatprep.subr.bf16.mxu0 0
    %1873 = vmatpush2.bf16.msra.mxu0 %v1424
    %1874 = vmatprep.subr.bf16.mxu0 0
    %1875 = vmatpush2.bf16.msra.mxu0 %v1423
    %1876 = vmatprep.subr.bf16.mxu0 0
    %1877 = vmatpush2.bf16.msra.mxu0 %v1422
    %1878 = vmatprep.subr.bf16.mxu0 0
    %1879 = vmatpush2.bf16.msra.mxu0 %v1421
    %1880 = vmatprep.subr.bf16.mxu0 0
    %1881 = vmatpush2.bf16.msra.mxu0 %v1420
    %1882 = vmatprep.subr.bf16.mxu0 0
    %1883 = vmatpush2.bf16.msra.mxu0 %v1419
    %1884 = vmatprep.subr.bf16.mxu0 0
    %1885 = vmatpush2.bf16.msra.mxu0 %v1418
    %1886 = vmatprep.mubr.bf16.mxu0 %v175
    %1887 = vmatmul.mubr.bf16.gmra.mxu0 %v174
    %v1888 = vpop.f32.mrf.mxu0
    %v1889 = vadd.f32 %v1849, %v1888
    %v1890 = vpop.f32.mrf.mxu0
    %v1891 = vpop.f32.mrf.mxu0
    %v1892 = vpop.f32.mrf.mxu0
    %1893 = vdwg.mxu0
    %1894 = vmatprep.subr.bf16.mxu0 0
    %1895 = vmatpush1.bf16.msra.mxu0 %v1433
    %1896 = vmatprep.subr.bf16.mxu0 0
    %1897 = vmatpush1.bf16.msra.mxu0 %v1432
    %1898 = vmatprep.subr.bf16.mxu0 0
    %1899 = vmatpush1.bf16.msra.mxu0 %v1431
    %1900 = vmatprep.subr.bf16.mxu0 0
    %1901 = vmatpush1.bf16.msra.mxu0 %v1430
    %1902 = vmatprep.subr.bf16.mxu0 0
    %1903 = vmatpush1.bf16.msra.mxu0 %v1429
    %1904 = vmatprep.subr.bf16.mxu0 0
    %1905 = vmatpush1.bf16.msra.mxu0 %v1428
    %1906 = vmatprep.subr.bf16.mxu0 0
    %1907 = vmatpush1.bf16.msra.mxu0 %v1427
    %1908 = vmatprep.subr.bf16.mxu0 0
    %1909 = vmatpush1.bf16.msra.mxu0 %v1426
    %1910 = vmatprep.subr.bf16.mxu0 0
    %1911 = vmatpush2.bf16.msra.mxu0 %v1441
    %1912 = vmatprep.subr.bf16.mxu0 0
    %1913 = vmatpush2.bf16.msra.mxu0 %v1440
    %1914 = vmatprep.subr.bf16.mxu0 0
    %1915 = vmatpush2.bf16.msra.mxu0 %v1439
    %1916 = vmatprep.subr.bf16.mxu0 0
    %1917 = vmatpush2.bf16.msra.mxu0 %v1438
    %1918 = vmatprep.subr.bf16.mxu0 0
    %1919 = vmatpush2.bf16.msra.mxu0 %v1437
    %1920 = vmatprep.subr.bf16.mxu0 0
    %1921 = vmatpush2.bf16.msra.mxu0 %v1436
    %1922 = vmatprep.subr.bf16.mxu0 0
    %1923 = vmatpush2.bf16.msra.mxu0 %v1435
    %1924 = vmatprep.subr.bf16.mxu0 0
    %1925 = vmatpush2.bf16.msra.mxu0 %v1434
    %1926 = vmatprep.mubr.bf16.mxu0 %v177
    %1927 = vmatmul.mubr.bf16.gmra.mxu0 %v176
    %v1928 = vpop.f32.mrf.mxu0
    %v1929 = vadd.f32 %v1889, %v1928
    %v1930 = vpop.f32.mrf.mxu0
    %v1931 = vpop.f32.mrf.mxu0
    %v1932 = vpop.f32.mrf.mxu0
    %1933 = vdwg.mxu0
    %1934 = vmatprep.subr.bf16.mxu0 0
    %1935 = vmatpush1.bf16.msra.mxu0 %v1449
    %1936 = vmatprep.subr.bf16.mxu0 0
    %1937 = vmatpush1.bf16.msra.mxu0 %v1448
    %1938 = vmatprep.subr.bf16.mxu0 0
    %1939 = vmatpush1.bf16.msra.mxu0 %v1447
    %1940 = vmatprep.subr.bf16.mxu0 0
    %1941 = vmatpush1.bf16.msra.mxu0 %v1446
    %1942 = vmatprep.subr.bf16.mxu0 0
    %1943 = vmatpush1.bf16.msra.mxu0 %v1445
    %1944 = vmatprep.subr.bf16.mxu0 0
    %1945 = vmatpush1.bf16.msra.mxu0 %v1444
    %1946 = vmatprep.subr.bf16.mxu0 0
    %1947 = vmatpush1.bf16.msra.mxu0 %v1443
    %1948 = vmatprep.subr.bf16.mxu0 0
    %1949 = vmatpush1.bf16.msra.mxu0 %v1442
    %1950 = vmatprep.subr.bf16.mxu0 0
    %1951 = vmatpush2.bf16.msra.mxu0 %v1457
    %1952 = vmatprep.subr.bf16.mxu0 0
    %1953 = vmatpush2.bf16.msra.mxu0 %v1456
    %1954 = vmatprep.subr.bf16.mxu0 0
    %1955 = vmatpush2.bf16.msra.mxu0 %v1455
    %1956 = vmatprep.subr.bf16.mxu0 0
    %1957 = vmatpush2.bf16.msra.mxu0 %v1454
    %1958 = vmatprep.subr.bf16.mxu0 0
    %1959 = vmatpush2.bf16.msra.mxu0 %v1453
    %1960 = vmatprep.subr.bf16.mxu0 0
    %1961 = vmatpush2.bf16.msra.mxu0 %v1452
    %1962 = vmatprep.subr.bf16.mxu0 0
    %1963 = vmatpush2.bf16.msra.mxu0 %v1451
    %1964 = vmatprep.subr.bf16.mxu0 0
    %1965 = vmatpush2.bf16.msra.mxu0 %v1450
    %1966 = vmatprep.mubr.bf16.mxu0 %v179
    %1967 = vmatmul.mubr.bf16.gmra.mxu0 %v178
    %v1968 = vpop.f32.mrf.mxu0
    %v1969 = vadd.f32 %v1929, %v1968
    %v1970 = vpop.f32.mrf.mxu0
    %v1971 = vpop.f32.mrf.mxu0
    %v1972 = vpop.f32.mrf.mxu0
    %1973 = vdwg.mxu0
    %1974 = vmatprep.subr.bf16.mxu0 0
    %1975 = vmatpush1.bf16.msra.mxu0 %v1465
    %1976 = vmatprep.subr.bf16.mxu0 0
    %1977 = vmatpush1.bf16.msra.mxu0 %v1464
    %1978 = vmatprep.subr.bf16.mxu0 0
    %1979 = vmatpush1.bf16.msra.mxu0 %v1463
    %1980 = vmatprep.subr.bf16.mxu0 0
    %1981 = vmatpush1.bf16.msra.mxu0 %v1462
    %1982 = vmatprep.subr.bf16.mxu0 0
    %1983 = vmatpush1.bf16.msra.mxu0 %v1461
    %1984 = vmatprep.subr.bf16.mxu0 0
    %1985 = vmatpush1.bf16.msra.mxu0 %v1460
    %1986 = vmatprep.subr.bf16.mxu0 0
    %1987 = vmatpush1.bf16.msra.mxu0 %v1459
    %1988 = vmatprep.subr.bf16.mxu0 0
    %1989 = vmatpush1.bf16.msra.mxu0 %v1458
    %1990 = vmatprep.subr.bf16.mxu0 0
    %1991 = vmatpush2.bf16.msra.mxu0 %v1473
    %1992 = vmatprep.subr.bf16.mxu0 0
    %1993 = vmatpush2.bf16.msra.mxu0 %v1472
    %1994 = vmatprep.subr.bf16.mxu0 0
    %1995 = vmatpush2.bf16.msra.mxu0 %v1471
    %1996 = vmatprep.subr.bf16.mxu0 0
    %1997 = vmatpush2.bf16.msra.mxu0 %v1470
    %1998 = vmatprep.subr.bf16.mxu0 0
    %1999 = vmatpush2.bf16.msra.mxu0 %v1469
    %2000 = vmatprep.subr.bf16.mxu0 0
    %2001 = vmatpush2.bf16.msra.mxu0 %v1468
    %2002 = vmatprep.subr.bf16.mxu0 0
    %2003 = vmatpush2.bf16.msra.mxu0 %v1467
    %2004 = vmatprep.subr.bf16.mxu0 0
    %2005 = vmatpush2.bf16.msra.mxu0 %v1466
    %2006 = vmatprep.mubr.bf16.mxu0 %v181
    %2007 = vmatmul.mubr.bf16.gmra.mxu0 %v180
    %v2008 = vpop.f32.mrf.mxu0
    %v2009 = vadd.f32 %v1969, %v2008
    %v2010 = vpop.f32.mrf.mxu0
    %v2011 = vpop.f32.mrf.mxu0
    %v2012 = vpop.f32.mrf.mxu0
    %2013 = vdwg.mxu0
    %2014 = vmatprep.subr.bf16.mxu0 0
    %2015 = vmatpush1.bf16.msra.mxu0 %v1481
    %2016 = vmatprep.subr.bf16.mxu0 0
    %2017 = vmatpush1.bf16.msra.mxu0 %v1480
    %2018 = vmatprep.subr.bf16.mxu0 0
    %2019 = vmatpush1.bf16.msra.mxu0 %v1479
    %2020 = vmatprep.subr.bf16.mxu0 0
    %2021 = vmatpush1.bf16.msra.mxu0 %v1478
    %2022 = vmatprep.subr.bf16.mxu0 0
    %2023 = vmatpush1.bf16.msra.mxu0 %v1477
    %2024 = vmatprep.subr.bf16.mxu0 0
    %2025 = vmatpush1.bf16.msra.mxu0 %v1476
    %2026 = vmatprep.subr.bf16.mxu0 0
    %2027 = vmatpush1.bf16.msra.mxu0 %v1475
    %2028 = vmatprep.subr.bf16.mxu0 0
    %2029 = vmatpush1.bf16.msra.mxu0 %v1474
    %2030 = vmatprep.subr.bf16.mxu0 0
    %2031 = vmatpush2.bf16.msra.mxu0 %v1489
    %2032 = vmatprep.subr.bf16.mxu0 0
    %2033 = vmatpush2.bf16.msra.mxu0 %v1488
    %2034 = vmatprep.subr.bf16.mxu0 0
    %2035 = vmatpush2.bf16.msra.mxu0 %v1487
    %2036 = vmatprep.subr.bf16.mxu0 0
    %2037 = vmatpush2.bf16.msra.mxu0 %v1486
    %2038 = vmatprep.subr.bf16.mxu0 0
    %2039 = vmatpush2.bf16.msra.mxu0 %v1485
    %2040 = vmatprep.subr.bf16.mxu0 0
    %2041 = vmatpush2.bf16.msra.mxu0 %v1484
    %2042 = vmatprep.subr.bf16.mxu0 0
    %2043 = vmatpush2.bf16.msra.mxu0 %v1483
    %2044 = vmatprep.subr.bf16.mxu0 0
    %2045 = vmatpush2.bf16.msra.mxu0 %v1482
    %2046 = vmatprep.mubr.bf16.mxu0 %v183
    %2047 = vmatmul.mubr.bf16.gmra.mxu0 %v182
    %v2048 = vpop.f32.mrf.mxu0
    %v2049 = vadd.f32 %v2009, %v2048
    %v2050 = vpop.f32.mrf.mxu0
    %v2051 = vpop.f32.mrf.mxu0
    %v2052 = vpop.f32.mrf.mxu0
    %2053 = vdwg.mxu0
    %2054 = vmatprep.subr.bf16.mxu0 0
    %2055 = vmatpush1.bf16.msra.mxu0 %v1497
    %2056 = vmatprep.subr.bf16.mxu0 0
    %2057 = vmatpush1.bf16.msra.mxu0 %v1496
    %2058 = vmatprep.subr.bf16.mxu0 0
    %2059 = vmatpush1.bf16.msra.mxu0 %v1495
    %2060 = vmatprep.subr.bf16.mxu0 0
    %2061 = vmatpush1.bf16.msra.mxu0 %v1494
    %2062 = vmatprep.subr.bf16.mxu0 0
    %2063 = vmatpush1.bf16.msra.mxu0 %v1493
    %2064 = vmatprep.subr.bf16.mxu0 0
    %2065 = vmatpush1.bf16.msra.mxu0 %v1492
    %2066 = vmatprep.subr.bf16.mxu0 0
    %2067 = vmatpush1.bf16.msra.mxu0 %v1491
    %2068 = vmatprep.subr.bf16.mxu0 0
    %2069 = vmatpush1.bf16.msra.mxu0 %v1490
    %2070 = vmatprep.subr.bf16.mxu0 0
    %2071 = vmatpush2.bf16.msra.mxu0 %v1505
    %2072 = vmatprep.subr.bf16.mxu0 0
    %2073 = vmatpush2.bf16.msra.mxu0 %v1504
    %2074 = vmatprep.subr.bf16.mxu0 0
    %2075 = vmatpush2.bf16.msra.mxu0 %v1503
    %2076 = vmatprep.subr.bf16.mxu0 0
    %2077 = vmatpush2.bf16.msra.mxu0 %v1502
    %2078 = vmatprep.subr.bf16.mxu0 0
    %2079 = vmatpush2.bf16.msra.mxu0 %v1501
    %2080 = vmatprep.subr.bf16.mxu0 0
    %2081 = vmatpush2.bf16.msra.mxu0 %v1500
    %2082 = vmatprep.subr.bf16.mxu0 0
    %2083 = vmatpush2.bf16.msra.mxu0 %v1499
    %2084 = vmatprep.subr.bf16.mxu0 0
    %2085 = vmatpush2.bf16.msra.mxu0 %v1498
    %2086 = vmatprep.mubr.bf16.mxu0 %v185
    %2087 = vmatmul.mubr.bf16.gmra.mxu0 %v184
    %v2088 = vpop.f32.mrf.mxu0
    %v2089 = vadd.f32 %v2049, %v2088
    %v2090 = vpop.f32.mrf.mxu0
    %v2091 = vpop.f32.mrf.mxu0
    %v2092 = vpop.f32.mrf.mxu0
    %2093 = vdwg.mxu0
    %2094 = vmatprep.subr.bf16.mxu0 0
    %2095 = vmatpush1.bf16.msra.mxu0 %v1513
    %2096 = vmatprep.subr.bf16.mxu0 0
    %2097 = vmatpush1.bf16.msra.mxu0 %v1512
    %2098 = vmatprep.subr.bf16.mxu0 0
    %2099 = vmatpush1.bf16.msra.mxu0 %v1511
    %2100 = vmatprep.subr.bf16.mxu0 0
    %2101 = vmatpush1.bf16.msra.mxu0 %v1510
    %2102 = vmatprep.subr.bf16.mxu0 0
    %2103 = vmatpush1.bf16.msra.mxu0 %v1509
    %2104 = vmatprep.subr.bf16.mxu0 0
    %2105 = vmatpush1.bf16.msra.mxu0 %v1508
    %2106 = vmatprep.subr.bf16.mxu0 0
    %2107 = vmatpush1.bf16.msra.mxu0 %v1507
    %2108 = vmatprep.subr.bf16.mxu0 0
    %2109 = vmatpush1.bf16.msra.mxu0 %v1506
    %2110 = vmatprep.subr.bf16.mxu0 0
    %2111 = vmatpush2.bf16.msra.mxu0 %v1521
    %2112 = vmatprep.subr.bf16.mxu0 0
    %2113 = vmatpush2.bf16.msra.mxu0 %v1520
    %2114 = vmatprep.subr.bf16.mxu0 0
    %2115 = vmatpush2.bf16.msra.mxu0 %v1519
    %2116 = vmatprep.subr.bf16.mxu0 0
    %2117 = vmatpush2.bf16.msra.mxu0 %v1518
    %2118 = vmatprep.subr.bf16.mxu0 0
    %2119 = vmatpush2.bf16.msra.mxu0 %v1517
    %2120 = vmatprep.subr.bf16.mxu0 0
    %2121 = vmatpush2.bf16.msra.mxu0 %v1516
    %2122 = vmatprep.subr.bf16.mxu0 0
    %2123 = vmatpush2.bf16.msra.mxu0 %v1515
    %2124 = vmatprep.subr.bf16.mxu0 0
    %2125 = vmatpush2.bf16.msra.mxu0 %v1514
    %2126 = vmatprep.mubr.bf16.mxu0 %v187
    %2127 = vmatmul.mubr.bf16.gmra.mxu0 %v186
    %v2128 = vpop.f32.mrf.mxu0
    %v2129 = vadd.f32 %v2089, %v2128
    %v2130 = vpop.f32.mrf.mxu0
    %v2131 = vpop.f32.mrf.mxu0
    %v2132 = vpop.f32.mrf.mxu0
    %2133 = vdwg.mxu0
    %2134 = vmatprep.subr.bf16.mxu0 0
    %2135 = vmatpush1.bf16.msra.mxu0 %v1529
    %2136 = vmatprep.subr.bf16.mxu0 0
    %2137 = vmatpush1.bf16.msra.mxu0 %v1528
    %2138 = vmatprep.subr.bf16.mxu0 0
    %2139 = vmatpush1.bf16.msra.mxu0 %v1527
    %2140 = vmatprep.subr.bf16.mxu0 0
    %2141 = vmatpush1.bf16.msra.mxu0 %v1526
    %2142 = vmatprep.subr.bf16.mxu0 0
    %2143 = vmatpush1.bf16.msra.mxu0 %v1525
    %2144 = vmatprep.subr.bf16.mxu0 0
    %2145 = vmatpush1.bf16.msra.mxu0 %v1524
    %2146 = vmatprep.subr.bf16.mxu0 0
    %2147 = vmatpush1.bf16.msra.mxu0 %v1523
    %2148 = vmatprep.subr.bf16.mxu0 0
    %2149 = vmatpush1.bf16.msra.mxu0 %v1522
    %2150 = vmatprep.subr.bf16.mxu0 0
    %2151 = vmatpush2.bf16.msra.mxu0 %v1537
    %2152 = vmatprep.subr.bf16.mxu0 0
    %2153 = vmatpush2.bf16.msra.mxu0 %v1536
    %2154 = vmatprep.subr.bf16.mxu0 0
    %2155 = vmatpush2.bf16.msra.mxu0 %v1535
    %2156 = vmatprep.subr.bf16.mxu0 0
    %2157 = vmatpush2.bf16.msra.mxu0 %v1534
    %2158 = vmatprep.subr.bf16.mxu0 0
    %2159 = vmatpush2.bf16.msra.mxu0 %v1533
    %2160 = vmatprep.subr.bf16.mxu0 0
    %2161 = vmatpush2.bf16.msra.mxu0 %v1532
    %2162 = vmatprep.subr.bf16.mxu0 0
    %2163 = vmatpush2.bf16.msra.mxu0 %v1531
    %2164 = vmatprep.subr.bf16.mxu0 0
    %2165 = vmatpush2.bf16.msra.mxu0 %v1530
    %2166 = vmatprep.mubr.bf16.mxu0 %v189
    %2167 = vmatmul.mubr.bf16.gmra.mxu0 %v188
    %v2168 = vpop.f32.mrf.mxu0
    %v2169 = vadd.f32 %v2129, %v2168
    %v2170 = vpop.f32.mrf.mxu0
    %v2171 = vpop.f32.mrf.mxu0
    %v2172 = vpop.f32.mrf.mxu0
    %2173 = vdwg.mxu0
    %2174 = vmatprep.subr.bf16.mxu0 0
    %2175 = vmatpush1.bf16.msra.mxu0 %v1545
    %2176 = vmatprep.subr.bf16.mxu0 0
    %2177 = vmatpush1.bf16.msra.mxu0 %v1544
    %2178 = vmatprep.subr.bf16.mxu0 0
    %2179 = vmatpush1.bf16.msra.mxu0 %v1543
    %2180 = vmatprep.subr.bf16.mxu0 0
    %2181 = vmatpush1.bf16.msra.mxu0 %v1542
    %2182 = vmatprep.subr.bf16.mxu0 0
    %2183 = vmatpush1.bf16.msra.mxu0 %v1541
    %2184 = vmatprep.subr.bf16.mxu0 0
    %2185 = vmatpush1.bf16.msra.mxu0 %v1540
    %2186 = vmatprep.subr.bf16.mxu0 0
    %2187 = vmatpush1.bf16.msra.mxu0 %v1539
    %2188 = vmatprep.subr.bf16.mxu0 0
    %2189 = vmatpush1.bf16.msra.mxu0 %v1538
    %2190 = vmatprep.subr.bf16.mxu0 0
    %2191 = vmatpush2.bf16.msra.mxu0 %v1553
    %2192 = vmatprep.subr.bf16.mxu0 0
    %2193 = vmatpush2.bf16.msra.mxu0 %v1552
    %2194 = vmatprep.subr.bf16.mxu0 0
    %2195 = vmatpush2.bf16.msra.mxu0 %v1551
    %2196 = vmatprep.subr.bf16.mxu0 0
    %2197 = vmatpush2.bf16.msra.mxu0 %v1550
    %2198 = vmatprep.subr.bf16.mxu0 0
    %2199 = vmatpush2.bf16.msra.mxu0 %v1549
    %2200 = vmatprep.subr.bf16.mxu0 0
    %2201 = vmatpush2.bf16.msra.mxu0 %v1548
    %2202 = vmatprep.subr.bf16.mxu0 0
    %2203 = vmatpush2.bf16.msra.mxu0 %v1547
    %2204 = vmatprep.subr.bf16.mxu0 0
    %2205 = vmatpush2.bf16.msra.mxu0 %v1546
    %2206 = vmatprep.mubr.bf16.mxu0 %v191
    %2207 = vmatmul.mubr.bf16.gmra.mxu0 %v190
    %v2208 = vpop.f32.mrf.mxu0
    %v2209 = vadd.f32 %v2169, %v2208
    %v2210 = vpop.f32.mrf.mxu0
    %v2211 = vpop.f32.mrf.mxu0
    %v2212 = vpop.f32.mrf.mxu0
    %2213 = vdwg.mxu0
    %2214 = vmatprep.subr.bf16.mxu0 0
    %2215 = vmatpush1.bf16.msra.mxu0 %v1561
    %2216 = vmatprep.subr.bf16.mxu0 0
    %2217 = vmatpush1.bf16.msra.mxu0 %v1560
    %2218 = vmatprep.subr.bf16.mxu0 0
    %2219 = vmatpush1.bf16.msra.mxu0 %v1559
    %2220 = vmatprep.subr.bf16.mxu0 0
    %2221 = vmatpush1.bf16.msra.mxu0 %v1558
    %2222 = vmatprep.subr.bf16.mxu0 0
    %2223 = vmatpush1.bf16.msra.mxu0 %v1557
    %2224 = vmatprep.subr.bf16.mxu0 0
    %2225 = vmatpush1.bf16.msra.mxu0 %v1556
    %2226 = vmatprep.subr.bf16.mxu0 0
    %2227 = vmatpush1.bf16.msra.mxu0 %v1555
    %2228 = vmatprep.subr.bf16.mxu0 0
    %2229 = vmatpush1.bf16.msra.mxu0 %v1554
    %2230 = vmatprep.subr.bf16.mxu0 0
    %2231 = vmatpush2.bf16.msra.mxu0 %v1569
    %2232 = vmatprep.subr.bf16.mxu0 0
    %2233 = vmatpush2.bf16.msra.mxu0 %v1568
    %2234 = vmatprep.subr.bf16.mxu0 0
    %2235 = vmatpush2.bf16.msra.mxu0 %v1567
    %2236 = vmatprep.subr.bf16.mxu0 0
    %2237 = vmatpush2.bf16.msra.mxu0 %v1566
    %2238 = vmatprep.subr.bf16.mxu0 0
    %2239 = vmatpush2.bf16.msra.mxu0 %v1565
    %2240 = vmatprep.subr.bf16.mxu0 0
    %2241 = vmatpush2.bf16.msra.mxu0 %v1564
    %2242 = vmatprep.subr.bf16.mxu0 0
    %2243 = vmatpush2.bf16.msra.mxu0 %v1563
    %2244 = vmatprep.subr.bf16.mxu0 0
    %2245 = vmatpush2.bf16.msra.mxu0 %v1562
    %2246 = vmatprep.mubr.bf16.mxu0 %v193
    %2247 = vmatmul.mubr.bf16.gmra.mxu0 %v192
    %v2248 = vpop.f32.mrf.mxu0
    %v2249 = vadd.f32 %v2209, %v2248
    %v2250 = vpop.f32.mrf.mxu0
    %v2251 = vpop.f32.mrf.mxu0
    %v2252 = vpop.f32.mrf.mxu0
    %2253 = vdwg.mxu0
    %2254 = vmatprep.subr.bf16.mxu0 0
    %2255 = vmatpush1.bf16.msra.mxu0 0
    %2256 = vmatprep.subr.bf16.mxu0 0
    %2257 = vmatpush1.bf16.msra.mxu0 0
    %2258 = vmatprep.subr.bf16.mxu0 0
    %2259 = vmatpush1.bf16.msra.mxu0 0
    %2260 = vmatprep.subr.bf16.mxu0 0
    %2261 = vmatpush1.bf16.msra.mxu0 0
    %2262 = vmatprep.subr.bf16.mxu0 0
    %2263 = vmatpush1.bf16.msra.mxu0 %v1573
    %2264 = vmatprep.subr.bf16.mxu0 0
    %2265 = vmatpush1.bf16.msra.mxu0 %v1572
    %2266 = vmatprep.subr.bf16.mxu0 0
    %2267 = vmatpush1.bf16.msra.mxu0 %v1571
    %2268 = vmatprep.subr.bf16.mxu0 0
    %2269 = vmatpush1.bf16.msra.mxu0 %v1570
    %2270 = vmatprep.subr.bf16.mxu0 0
    %2271 = vmatpush2.bf16.msra.mxu0 0
    %2272 = vmatprep.subr.bf16.mxu0 0
    %2273 = vmatpush2.bf16.msra.mxu0 0
    %2274 = vmatprep.subr.bf16.mxu0 0
    %2275 = vmatpush2.bf16.msra.mxu0 0
    %2276 = vmatprep.subr.bf16.mxu0 0
    %2277 = vmatpush2.bf16.msra.mxu0 0
    %2278 = vmatprep.subr.bf16.mxu0 0
    %2279 = vmatpush2.bf16.msra.mxu0 0
    %2280 = vmatprep.subr.bf16.mxu0 0
    %2281 = vmatpush2.bf16.msra.mxu0 0
    %2282 = vmatprep.subr.bf16.mxu0 0
    %2283 = vmatpush2.bf16.msra.mxu0 0
    %2284 = vmatprep.subr.bf16.mxu0 0
    %2285 = vmatpush2.bf16.msra.mxu0 0
    %2286 = vmatprep.mubr.bf16.mxu0 0
    %2287 = vmatmul.mubr.bf16.gmra.mxu0 %v1772
    %v2288 = vpop.f32.mrf.mxu0
    %v2289 = vadd.f32 %v2249, %v2288
    %v2290 = vpop.f32.mrf.mxu0
    %v2291 = vpop.f32.mrf.mxu0
    %v2292 = vpop.f32.mrf.mxu0
    %2293 = vdwg.mxu0
    %v2294 = vmax.f32 %v2289, 0.0
    %v2295 = vpack.c.bf16 %v2294, %v2294
    %v2296 = vld [vmem:[%s3] sm:$0xf]
    %v2297 = vld [vmem:[%s3 + $0x4] sm:$0xf]
    %v2298 = vld [vmem:[%s3 + $0x8] sm:$0xf]
    %v2299 = vld [vmem:[%s3 + $0xc] sm:$0xf]
    %v2300 = vld [vmem:[%s3 + $0x10] sm:$0xf]
    %v2301 = vld [vmem:[%s3 + $0x14] sm:$0xf]
    %v2302 = vld [vmem:[%s3 + $0x18] sm:$0xf]
    %v2303 = vld [vmem:[%s3 + $0x1c] sm:$0xf]
    %v2304 = vld [vmem:[%s3 + $0x20] sm:$0xf]
    %v2305 = vld [vmem:[%s3 + $0x24] sm:$0xf]
    %v2306 = vld [vmem:[%s3 + $0x28] sm:$0xf]
    %v2307 = vld [vmem:[%s3 + $0x2c] sm:$0xf]
    %v2308 = vld [vmem:[%s3 + $0x30] sm:$0xf]
    %v2309 = vld [vmem:[%s3 + $0x34] sm:$0xf]
    %v2310 = vld [vmem:[%s3 + $0x38] sm:$0xf]
    %v2311 = vld [vmem:[%s3 + $0x3c] sm:$0xf]
    %v2312 = vld [vmem:[%s4] sm:$0x1]
    %v2314 = vlaneseq
    %v2315 = vshrl.u32 %v2314, 7
    %v2316 = vsub.s32 0, %v2315
    %v2317 = vrot.slane %v2312, %v2316
    %v2335 = vunpack.c.l.b16 %v2296
    %v2336 = vunpack.c.l.b16 %v2297
    %v2337 = vunpack.c.l.b16 %v2298
    %v2338 = vunpack.c.l.b16 %v2299
    %v2339 = vunpack.c.l.b16 %v2300
    %v2340 = vunpack.c.l.b16 %v2301
    %v2341 = vunpack.c.l.b16 %v2302
    %v2342 = vunpack.c.l.b16 %v2303
    %v2343 = vunpack.c.l.b16 %v2304
    %v2344 = vunpack.c.l.b16 %v2305
    %v2345 = vunpack.c.l.b16 %v2306
    %v2346 = vunpack.c.l.b16 %v2307
    %v2347 = vunpack.c.l.b16 %v2308
    %v2348 = vunpack.c.l.b16 %v2309
    %v2349 = vunpack.c.l.b16 %v2310
    %v2350 = vunpack.c.l.b16 %v2311
    %v2351 = vpack.c.b16 %v2336, %v2335
    %v2352 = vpack.c.b16 %v2338, %v2337
    %v2353 = vpack.c.b16 %v2340, %v2339
    %v2354 = vpack.c.b16 %v2342, %v2341
    %v2355 = vpack.c.b16 %v2344, %v2343
    %v2356 = vpack.c.b16 %v2346, %v2345
    %v2357 = vpack.c.b16 %v2348, %v2347
    %v2358 = vpack.c.b16 %v2350, %v2349
    %2367 = vmatprep.subr.bf16.mxu0 0
    %2368 = vmatpush1.bf16.msra.mxu0 %v2358
    %2369 = vmatprep.subr.bf16.mxu0 0
    %2370 = vmatpush1.bf16.msra.mxu0 %v2357
    %2371 = vmatprep.subr.bf16.mxu0 0
    %2372 = vmatpush1.bf16.msra.mxu0 %v2356
    %2373 = vmatprep.subr.bf16.mxu0 0
    %2374 = vmatpush1.bf16.msra.mxu0 %v2355
    %2375 = vmatprep.subr.bf16.mxu0 0
    %2376 = vmatpush1.bf16.msra.mxu0 %v2354
    %2377 = vmatprep.subr.bf16.mxu0 0
    %2378 = vmatpush1.bf16.msra.mxu0 %v2353
    %2379 = vmatprep.subr.bf16.mxu0 0
    %2380 = vmatpush1.bf16.msra.mxu0 %v2352
    %2381 = vmatprep.subr.bf16.mxu0 0
    %2382 = vmatpush1.bf16.msra.mxu0 %v2351
    %2383 = vmatprep.subr.bf16.mxu0 0
    %2384 = vmatpush2.bf16.msra.mxu0 0
    %2385 = vmatprep.subr.bf16.mxu0 0
    %2386 = vmatpush2.bf16.msra.mxu0 0
    %2387 = vmatprep.subr.bf16.mxu0 0
    %2388 = vmatpush2.bf16.msra.mxu0 0
    %2389 = vmatprep.subr.bf16.mxu0 0
    %2390 = vmatpush2.bf16.msra.mxu0 0
    %2391 = vmatprep.subr.bf16.mxu0 0
    %2392 = vmatpush2.bf16.msra.mxu0 0
    %2393 = vmatprep.subr.bf16.mxu0 0
    %2394 = vmatpush2.bf16.msra.mxu0 0
    %2395 = vmatprep.subr.bf16.mxu0 0
    %2396 = vmatpush2.bf16.msra.mxu0 0
    %2397 = vmatprep.subr.bf16.mxu0 0
    %2398 = vmatpush2.bf16.msra.mxu0 0
    %2399 = vmatprep.mubr.bf16.mxu0 0
    %2400 = vmatmul.mubr.bf16.gmra.mxu0 %v2295
    %v2401 = vpop.f32.mrf.mxu0
    %v2402 = vadd.f32 %v2317, %v2401
    %v2403 = vpop.f32.mrf.mxu0
    %v2404 = vpop.f32.mrf.mxu0
    %v2405 = vpop.f32.mrf.mxu0
    %2406 = vdwg.mxu0
    %2407 = vst [vmem:[#allocation2] sm:$0x3] %v2402
    // Predicated region
    $region22: #{cnn_forward.3} parent=1 // pred_check
      _
    $region23: #{cnn_forward.3} parent=1 // pred_check_branch
      %2409 = sbr.rel (0) target = $region25
    $region24: #{cnn_forward.3} parent=1 // pred_region
      %s2411 = ssub.s32 32, 32
      %2412 = vsyncadd [#allocation3], %s2411
      %s2414 = sshll.u32 [#allocation2], 4
      %s2415 = int_to_ptr.vmem [resolvable:$true] %s2414
      %2417 = dma.vmem_to_hbm [thread:$0]  %s2415, 32, %s5, [#allocation3]
    $region25: #{cnn_forward.3} parent=1 // pred_fallthru
      _
    // Predicated region
    $region26: #{cnn_forward.3} parent=1 // pred_check
      _
    $region27: #{cnn_forward.3} parent=1 // pred_check_branch
      %2419 = sbr.rel (0) target = $region29
    $region28: #{cnn_forward.3} parent=1 // pred_region
      %2420 = dma.done [#allocation3], 32
    $region29: #{cnn_forward.3} parent=1 // pred_fallthru
      _
    %2421 = vsyncpa [#allocation3], 1

// kernel: cnn_forward.2
$region0: #{cnn_forward.2}
  #allocation0 [shape = 'u32[]', space=smem, size = 0x4, offset = 0x4, fixed_abs, tag = 'smem constant byte address 0x4 - core index']
  #allocation1 [shape = 'u32[144,128]{1,0:T(1,128)}', space=vmem, size = 0x12000, scoped, tag = 'internal scratch']
  %s0 = inlined_call_operand.vmem [shape: f32[2,1,1024], index: 0, kind: input, shape index: {}]
  %s1 = inlined_call_operand.vmem [shape: f32[32,9], index: 1, kind: input, shape index: {}]
  %s2 = inlined_call_operand.vmem [shape: f32[32,1], index: 2, kind: input, shape index: {}]
  %s3 = inlined_call_operand.hbm [shape: bf16[1024,256], index: 3, kind: input, shape index: {}]
  %s4 = inlined_call_operand.vmem [shape: bf16[9,64,32], index: 4, kind: input, shape index: {}]
  %s5 = inlined_call_operand.vmem [shape: f32[64,1], index: 5, kind: input, shape index: {}]
  %s6 = inlined_call_operand.vmem [shape: bf16[256,49], index: 6, kind: input, shape index: {}]
  %s7 = inlined_call_operand.vmem [shape: f32[2,64,49], index: 7, kind: output, shape index: {}]
  %s8 = sld [smem:[#allocation0]]
  $region65: #{cnn_forward.2} parent=0
    _
  %s10 = ssub.s32 1, %s8
  %s11 = scalar_select 0, %s10, %s8
  $region1: #{cnn_forward.2} parent=0
    #allocation2 [shape = 'u8[524288]{0}', space=vmem, size = 0x80000, scoped, tag = 'input window, operand 3, single buffered']
    #allocation3 [shape = 's32[2]{0}', space=sflag, size = 0x8, scoped, tag = 'scoped memory for cnn_forward.2']
    %12 = vsyncpa [#allocation3], 0
    loop: start=0, step=1, limit=4
    $region2: #{cnn_forward.2} parent=1 // loop_pre_header
      _
    $region3: #{cnn_forward.2} parent=1 // loop_header
      %s14 = sphi 0, %s18
      %p15 = scmp.ge.s32.totalorder %s14, 4
      %s24 = sphi 0, %s26
      %s27 = sphi 0, %s24
      %s28 = sphi 0, %s27
      %s44 = sphi 0, %s28
      %s48 = sphi 0, %s48
      %s50 = sphi 0, %s48
      %s51 = sphi 0, %s50
      %s65 = sphi 0, %s51
      %s69 = sphi 0, %s69
      %s71 = sphi 0, %s69
      %s72 = sphi 0, %s71
      %s86 = sphi 0, %s72
      %s90 = sphi 0, %s90
      %s92 = sphi 0, %s90
      %s93 = sphi 0, %s92
      %s107 = sphi 0, %s93
      %s111 = sphi 0, %s111
      %s113 = sphi 0, %s111
      %s114 = sphi 0, %s113
      %s128 = sphi 0, %s114
      %s132 = sphi 0, %s132
      %s134 = sphi 0, %s132
      %s135 = sphi 0, %s134
      %s149 = sphi 0, %s135
      %s153 = sphi 0, %s153
      %s155 = sphi 0, %s153
      %s156 = sphi 0, %s155
      %s170 = sphi 0, %s156
      %s176 = sphi 0, %s178
      %s179 = sphi 0, %s176
      %s180 = sphi 0, %s179
      %s196 = sphi 0, %s180
    $region4: #{cnn_forward.2} parent=1 // loop_header_branch
      %17 = sbr.rel (%p15) target = $region8
    $region5: #{cnn_forward.2} parent=1 // loop_body
      %s19 = ssub.s32 %s14, 1
      %s20 = ssub.s32 %s14, 2
      %s21 = sadd.s32 %s14, 1
      %s22 = ssub.s32 %s14, %s21
      %p23 = scmp.eq.s32.totalorder %s22, 0
      %s25 = sadd.s32 %s24, 1
      %s26 = scalar_select %p23, %s24, %s25
      %p29 = pneg %p23
      %p30 = scmp.eq.s32.totalorder %s14, 1
      %p31 = por %p29, %p30
      %p32 = scmp.ne.s32.totalorder %s24, %s27
      %p33 = scmp.eq.s32.totalorder %s14, 0
      %p34 = por %p32, %p33
      %p35 = scmp.ne.s32.totalorder %s24, %s27
      %p36 = scmp.eq.s32.totalorder %s19, 1
      %p37 = por %p35, %p36
      %p38 = scmp.ne.s32.totalorder %s27, %s28
      %p39 = scmp.eq.s32.totalorder %s19, 0
      %p40 = por %p38, %p39
      %p41 = scmp.ne.s32.totalorder %s27, %s28
      %p42 = scmp.eq.s32.totalorder %s20, 1
      %p43 = por %p41, %p42
      %p45 = scmp.ne.s32.totalorder %s28, %s44
      %p46 = scmp.eq.s32.totalorder %s20, 0
      %p47 = por %p45, %p46
      %s49 = sadd.s32 %s48, 1
      %p52 = scmp.eq.s32.totalorder %s14, 1
      %p53 = scmp.ne.s32.totalorder %s48, %s50
      %p54 = scmp.eq.s32.totalorder %s14, 0
      %p55 = por %p53, %p54
      %p56 = scmp.ne.s32.totalorder %s48, %s50
      %p57 = scmp.eq.s32.totalorder %s19, 1
      %p58 = por %p56, %p57
      %p59 = scmp.ne.s32.totalorder %s50, %s51
      %p60 = scmp.eq.s32.totalorder %s19, 0
      %p61 = por %p59, %p60
      %p62 = scmp.ne.s32.totalorder %s50, %s51
      %p63 = scmp.eq.s32.totalorder %s20, 1
      %p64 = por %p62, %p63
      %p66 = scmp.ne.s32.totalorder %s51, %s65
      %p67 = scmp.eq.s32.totalorder %s20, 0
      %p68 = por %p66, %p67
      %s70 = sadd.s32 %s69, 1
      %p73 = scmp.eq.s32.totalorder %s14, 1
      %p74 = scmp.ne.s32.totalorder %s69, %s71
      %p75 = scmp.eq.s32.totalorder %s14, 0
      %p76 = por %p74, %p75
      %p77 = scmp.ne.s32.totalorder %s69, %s71
      %p78 = scmp.eq.s32.totalorder %s19, 1
      %p79 = por %p77, %p78
      %p80 = scmp.ne.s32.totalorder %s71, %s72
      %p81 = scmp.eq.s32.totalorder %s19, 0
      %p82 = por %p80, %p81
      %p83 = scmp.ne.s32.totalorder %s71, %s72
      %p84 = scmp.eq.s32.totalorder %s20, 1
      %p85 = por %p83, %p84
      %p87 = scmp.ne.s32.totalorder %s72, %s86
      %p88 = scmp.eq.s32.totalorder %s20, 0
      %p89 = por %p87, %p88
      %s91 = sadd.s32 %s90, 1
      %p94 = scmp.eq.s32.totalorder %s14, 1
      %p95 = scmp.ne.s32.totalorder %s90, %s92
      %p96 = scmp.eq.s32.totalorder %s14, 0
      %p97 = por %p95, %p96
      %p98 = scmp.ne.s32.totalorder %s90, %s92
      %p99 = scmp.eq.s32.totalorder %s19, 1
      %p100 = por %p98, %p99
      %p101 = scmp.ne.s32.totalorder %s92, %s93
      %p102 = scmp.eq.s32.totalorder %s19, 0
      %p103 = por %p101, %p102
      %p104 = scmp.ne.s32.totalorder %s92, %s93
      %p105 = scmp.eq.s32.totalorder %s20, 1
      %p106 = por %p104, %p105
      %p108 = scmp.ne.s32.totalorder %s93, %s107
      %p109 = scmp.eq.s32.totalorder %s20, 0
      %p110 = por %p108, %p109
      %s112 = sadd.s32 %s111, 1
      %p115 = scmp.eq.s32.totalorder %s14, 1
      %p116 = scmp.ne.s32.totalorder %s111, %s113
      %p117 = scmp.eq.s32.totalorder %s14, 0
      %p118 = por %p116, %p117
      %p119 = scmp.ne.s32.totalorder %s111, %s113
      %p120 = scmp.eq.s32.totalorder %s19, 1
      %p121 = por %p119, %p120
      %p122 = scmp.ne.s32.totalorder %s113, %s114
      %p123 = scmp.eq.s32.totalorder %s19, 0
      %p124 = por %p122, %p123
      %p125 = scmp.ne.s32.totalorder %s113, %s114
      %p126 = scmp.eq.s32.totalorder %s20, 1
      %p127 = por %p125, %p126
      %p129 = scmp.ne.s32.totalorder %s114, %s128
      %p130 = scmp.eq.s32.totalorder %s20, 0
      %p131 = por %p129, %p130
      %s133 = sadd.s32 %s132, 1
      %p136 = scmp.eq.s32.totalorder %s14, 1
      %p137 = scmp.ne.s32.totalorder %s132, %s134
      %p138 = scmp.eq.s32.totalorder %s14, 0
      %p139 = por %p137, %p138
      %p140 = scmp.ne.s32.totalorder %s132, %s134
      %p141 = scmp.eq.s32.totalorder %s19, 1
      %p142 = por %p140, %p141
      %p143 = scmp.ne.s32.totalorder %s134, %s135
      %p144 = scmp.eq.s32.totalorder %s19, 0
      %p145 = por %p143, %p144
      %p146 = scmp.ne.s32.totalorder %s134, %s135
      %p147 = scmp.eq.s32.totalorder %s20, 1
      %p148 = por %p146, %p147
      %p150 = scmp.ne.s32.totalorder %s135, %s149
      %p151 = scmp.eq.s32.totalorder %s20, 0
      %p152 = por %p150, %p151
      %s154 = sadd.s32 %s153, 1
      %p157 = scmp.eq.s32.totalorder %s14, 1
      %p158 = scmp.ne.s32.totalorder %s153, %s155
      %p159 = scmp.eq.s32.totalorder %s14, 0
      %p160 = por %p158, %p159
      %p161 = scmp.ne.s32.totalorder %s153, %s155
      %p162 = scmp.eq.s32.totalorder %s19, 1
      %p163 = por %p161, %p162
      %p164 = scmp.ne.s32.totalorder %s155, %s156
      %p165 = scmp.eq.s32.totalorder %s19, 0
      %p166 = por %p164, %p165
      %p167 = scmp.ne.s32.totalorder %s155, %s156
      %p168 = scmp.eq.s32.totalorder %s20, 1
      %p169 = por %p167, %p168
      %p171 = scmp.ne.s32.totalorder %s156, %s170
      %p172 = scmp.eq.s32.totalorder %s20, 0
      %p173 = por %p171, %p172
      %s174 = ssub.s32 %s14, %s21
      %p175 = scmp.eq.s32.totalorder %s174, 0
      %s177 = sadd.s32 %s176, 1
      %s178 = scalar_select %p175, %s176, %s177
      %p181 = pneg %p175
      %p182 = scmp.eq.s32.totalorder %s14, 1
      %p183 = por %p181, %p182
      %p184 = scmp.ne.s32.totalorder %s176, %s179
      %p185 = scmp.eq.s32.totalorder %s14, 0
      %p186 = por %p184, %p185
      %p187 = scmp.ne.s32.totalorder %s176, %s179
      %p188 = scmp.eq.s32.totalorder %s19, 1
      %p189 = por %p187, %p188
      %p190 = scmp.ne.s32.totalorder %s179, %s180
      %p191 = scmp.eq.s32.totalorder %s19, 0
      %p192 = por %p190, %p191
      %p193 = scmp.ne.s32.totalorder %s179, %s180
      %p194 = scmp.eq.s32.totalorder %s20, 1
      %p195 = por %p193, %p194
      %p197 = scmp.ne.s32.totalorder %s180, %s196
      %p198 = scmp.eq.s32.totalorder %s20, 0
      %p199 = por %p197, %p198
      %p200 = scmp.le.s32.totalorder 1, %s14
      %p201 = scmp.lt.s32.totalorder %s14, 3
      %p202 = pnand %p200, %p201
      %p203 = pneg %p202
      // Predicated region
      $region9: #{cnn_forward.2} parent=5 // pred_check
        _
      $region10: #{cnn_forward.2} parent=5 // pred_check_branch
        %205 = sbr.rel (%p202) target = $region12
      $region11: #{cnn_forward.2} parent=5 // pred_region
        %s206 = ssub.s32 %s14, 1
        // Predicated region
        $region13: #{cnn_forward.2} parent=11 // pred_check
          %p207 = pneg %p61
        $region14: #{cnn_forward.2} parent=11 // pred_check_branch
          %209 = sbr.rel (%p207) target = $region16
        $region15: #{cnn_forward.2} parent=11 // pred_region
          _
        $region16: #{cnn_forward.2} parent=11 // pred_fallthru
          _
        // Predicated region
        $region17: #{cnn_forward.2} parent=11 // pred_check
          %p210 = pneg %p82
        $region18: #{cnn_forward.2} parent=11 // pred_check_branch
          %212 = sbr.rel (%p210) target = $region20
        $region19: #{cnn_forward.2} parent=11 // pred_region
          _
        $region20: #{cnn_forward.2} parent=11 // pred_fallthru
          _
        // Predicated region
        $region21: #{cnn_forward.2} parent=11 // pred_check
          %p213 = pneg %p103
        $region22: #{cnn_forward.2} parent=11 // pred_check_branch
          %215 = sbr.rel (%p213) target = $region24
        $region23: #{cnn_forward.2} parent=11 // pred_region
          %s217 = ssub.s32 16384, 16384
          %218 = vsyncadd [#allocation3], %s217
          %s219 = sshll.u32 [#allocation2], 4
          %s220 = int_to_ptr.vmem [resolvable:$true] %s219
          %225 = dma.hbm_to_vmem [thread:$0]  %s3, 16384, %s220, [#allocation3], 128, 128, 8
        $region24: #{cnn_forward.2} parent=11 // pred_fallthru
          _
        // Predicated region
        $region25: #{cnn_forward.2} parent=11 // pred_check
          %p226 = pneg %p124
        $region26: #{cnn_forward.2} parent=11 // pred_check_branch
          %228 = sbr.rel (%p226) target = $region28
        $region27: #{cnn_forward.2} parent=11 // pred_region
          _
        $region28: #{cnn_forward.2} parent=11 // pred_fallthru
          _
        // Predicated region
        $region29: #{cnn_forward.2} parent=11 // pred_check
          %p229 = pneg %p145
        $region30: #{cnn_forward.2} parent=11 // pred_check_branch
          %231 = sbr.rel (%p229) target = $region32
        $region31: #{cnn_forward.2} parent=11 // pred_region
          _
        $region32: #{cnn_forward.2} parent=11 // pred_fallthru
          _
        // Predicated region
        $region33: #{cnn_forward.2} parent=11 // pred_check
          %p232 = pneg %p166
        $region34: #{cnn_forward.2} parent=11 // pred_check_branch
          %234 = sbr.rel (%p232) target = $region36
        $region35: #{cnn_forward.2} parent=11 // pred_region
          _
        $region36: #{cnn_forward.2} parent=11 // pred_fallthru
          _
      $region12: #{cnn_forward.2} parent=5 // pred_fallthru
        _
      %p235 = scmp.lt.s32.totalorder %s14, 2
      // Predicated region
      $region37: #{cnn_forward.2} parent=5 // pred_check
        %p236 = pneg %p235
      $region38: #{cnn_forward.2} parent=5 // pred_check_branch
        %238 = sbr.rel (%p236) target = $region40
      $region39: #{cnn_forward.2} parent=5 // pred_region
        // Predicated region
        $region41: #{cnn_forward.2} parent=39 // pred_check
          %p239 = pneg %p34
        $region42: #{cnn_forward.2} parent=39 // pred_check_branch
          %241 = sbr.rel (%p239) target = $region44
        $region43: #{cnn_forward.2} parent=39 // pred_region
          %p242 = scmp.lt.s32.totalorder %s14, 1
          %s243 = scalar_select %p242, %s14, 1
          %s244 = smul.addr %s243, 8
          %s245 = scalar_lea.vmem %s0, %s244
        $region44: #{cnn_forward.2} parent=39 // pred_fallthru
          _
      $region40: #{cnn_forward.2} parent=5 // pred_fallthru
        _
      %p246 = scmp.le.s32.totalorder 1, %s14
      %p247 = scmp.lt.s32.totalorder %s14, 3
      %p248 = pnand %p246, %p247
      %p249 = pneg %p248
      // Predicated region
      $region45: #{cnn_forward.2} parent=5 // pred_check
        _
      $region46: #{cnn_forward.2} parent=5 // pred_check_branch
        %251 = sbr.rel (%p248) target = $region48
      $region47: #{cnn_forward.2} parent=5 // pred_region
        %s252 = ssub.s32 %s14, 1
        // Predicated region
        $region49: #{cnn_forward.2} parent=47 // pred_check
          %p253 = pneg %p103
        $region50: #{cnn_forward.2} parent=47 // pred_check_branch
          %255 = sbr.rel (%p253) target = $region52
        $region51: #{cnn_forward.2} parent=47 // pred_region
          %256 = dma.done [#allocation3], 16384
        $region52: #{cnn_forward.2} parent=47 // pred_fallthru
          _
        %p257 = scmp.lt.s32.totalorder %s19, 1
        %s258 = scalar_select %p257, %s19, 1
        %s259 = smul.addr %s258, 8
        %s260 = scalar_lea.vmem %s0, %s259
        %p261 = pneg %p40
        %p262 = pneg %p37
        %p263 = pneg %p61
        %p264 = pneg %p58
        %p265 = pneg %p82
        %p266 = pneg %p79
        %p267 = pneg %p103
        %p268 = pneg %p100
        %p269 = pneg %p124
        %p270 = pneg %p121
        %p271 = pneg %p145
        %p272 = pneg %p142
        %p273 = pneg %p166
        %p274 = pneg %p163
        %p275 = pneg %p192
        %p276 = pneg %p189
        %p277 = scmp.lt.s32.totalorder %s19, 1
        %s278 = scalar_select %p277, %s19, 1
        %s279 = smul.addr %s278, 8
        %s280 = smul.addr %s279, 8
        %s281 = scalar_lea.vmem %s7, %s280
        %p282 = scmp.lt.s32.totalorder %s19, 1
        %s283 = scalar_select %p282, %s19, 1
        %s284 = smul.addr %s283, 8
        %s285 = scalar_lea.vmem %s0, %s284
        %p286 = scmp.lt.s32.totalorder %s19, 1
        %s287 = scalar_select %p286, %s19, 1
        %s288 = smul.addr %s287, 8
        %s289 = smul.addr %s288, 8
        %s290 = scalar_lea.vmem %s7, %s289
        %v292 = vld [vmem:[%s285] sm:$0xff]
        %v293 = vld [vmem:[%s1] sm:$0xff]
        %v294 = vld [vmem:[%s1 + $0x8] sm:$0xff]
        %v295 = vld [vmem:[%s1 + $0x10] sm:$0xff]
        %v296 = vld [vmem:[%s1 + $0x18] sm:$0xff]
        %v298 = vlaneseq
        %v299 = vshrl.u32 %v298, 7
        %v300 = vsub.s32 0, %v299
        %v301 = vrot.slane %v292, %v300
        %v302 = vlaneseq
        %v303 = vshrl.u32 %v302, 7
        %v304 = vsub.s32 1, %v303
        %v305 = vrot.slane %v292, %v304
        %v306 = vlaneseq
        %v307 = vshrl.u32 %v306, 7
        %v308 = vsub.s32 2, %v307
        %v309 = vrot.slane %v292, %v308
        %v310 = vlaneseq
        %v311 = vshrl.u32 %v310, 7
        %v312 = vsub.s32 3, %v311
        %v313 = vrot.slane %v292, %v312
        %v314 = vlaneseq
        %v315 = vshrl.u32 %v314, 7
        %v316 = vsub.s32 4, %v315
        %v317 = vrot.slane %v292, %v316
        %v318 = vlaneseq
        %v319 = vshrl.u32 %v318, 7
        %v320 = vsub.s32 5, %v319
        %v321 = vrot.slane %v292, %v320
        %v322 = vlaneseq
        %v323 = vshrl.u32 %v322, 7
        %v324 = vsub.s32 6, %v323
        %v325 = vrot.slane %v292, %v324
        %v326 = vlaneseq
        %v327 = vshrl.u32 %v326, 7
        %v328 = vsub.s32 7, %v327
        %v329 = vrot.slane %v292, %v328
        %338 = vrot.lane.b32.xlu0 %v301, 33
        %v339 = vpop.permute.xlu0 %338
        %340 = vrot.lane.b32.xlu0 %v305, 33
        %v341 = vpop.permute.xlu0 %340
        %342 = vrot.lane.b32.xlu0 %v309, 33
        %v343 = vpop.permute.xlu0 %342
        %344 = vrot.lane.b32.xlu0 %v313, 33
        %v345 = vpop.permute.xlu0 %344
        %346 = vrot.lane.b32.xlu0 %v317, 33
        %v347 = vpop.permute.xlu0 %346
        %348 = vrot.lane.b32.xlu0 %v321, 33
        %v349 = vpop.permute.xlu0 %348
        %350 = vrot.lane.b32.xlu0 %v325, 33
        %v351 = vpop.permute.xlu0 %350
        %352 = vrot.lane.b32.xlu0 %v329, 33
        %v353 = vpop.permute.xlu0 %352
        %v354 = vlaneseq
        %v355 = vand.u32 %v354, 127
        %vm356 = vcmp.lt.s32.totalorder %v355, 33
        %v357 = vsel %vm356, %v351, %v353
        %v358 = vsel %vm356, %v349, %v351
        %v359 = vsel %vm356, %v347, %v349
        %v360 = vsel %vm356, %v345, %v347
        %v361 = vsel %vm356, %v343, %v345
        %v362 = vsel %vm356, %v341, %v343
        %v363 = vsel %vm356, %v339, %v341
        %v364 = vsel %vm356, %v353, %v339
        %366 = vset.pattern.permute.xlu0 0
        %367 = vperm.xlu0 %366, %v293
        %v368 = vpop.permute.xlu0 %367
        %371 = vset.pattern.permute.xlu0 0
        %372 = vperm.xlu0 %371, %v294
        %v373 = vpop.permute.xlu0 %372
        %376 = vset.pattern.permute.xlu0 0
        %377 = vperm.xlu0 %376, %v295
        %v378 = vpop.permute.xlu0 %377
        %381 = vset.pattern.permute.xlu0 0
        %382 = vperm.xlu0 %381, %v296
        %v383 = vpop.permute.xlu0 %382
        %v385 = vlaneseq
        %v386 = vshrl.u32 %v385, 7
        %v387 = vsub.s32 0, %v386
        %v388 = vrot.slane %v364, %v387
        %v389 = vlaneseq
        %v390 = vshrl.u32 %v389, 7
        %v391 = vsub.s32 0, %v390
        %v392 = vrot.slane %v363, %v391
        %v393 = vlaneseq
        %v394 = vshrl.u32 %v393, 7
        %v395 = vsub.s32 0, %v394
        %v396 = vrot.slane %v362, %v395
        %v397 = vlaneseq
        %v398 = vshrl.u32 %v397, 7
        %v399 = vsub.s32 0, %v398
        %v400 = vrot.slane %v361, %v399
        %v401 = vlaneseq
        %v402 = vshrl.u32 %v401, 7
        %v403 = vsub.s32 0, %v402
        %v404 = vrot.slane %v360, %v403
        %v405 = vlaneseq
        %v406 = vshrl.u32 %v405, 7
        %v407 = vsub.s32 0, %v406
        %v408 = vrot.slane %v359, %v407
        %v409 = vlaneseq
        %v410 = vshrl.u32 %v409, 7
        %v411 = vsub.s32 0, %v410
        %v412 = vrot.slane %v358, %v411
        %v413 = vlaneseq
        %v414 = vshrl.u32 %v413, 7
        %v415 = vsub.s32 0, %v414
        %v416 = vrot.slane %v357, %v415
        %v417 = vmul.f32 %v368, %v388
        %v418 = vmul.f32 %v368, %v392
        %v419 = vmul.f32 %v368, %v396
        %v420 = vmul.f32 %v368, %v400
        %v421 = vmul.f32 %v368, %v404
        %v422 = vmul.f32 %v368, %v408
        %v423 = vmul.f32 %v368, %v412
        %v424 = vmul.f32 %v368, %v416
        %v425 = vmul.f32 %v373, %v388
        %v426 = vmul.f32 %v373, %v392
        %v427 = vmul.f32 %v373, %v396
        %v428 = vmul.f32 %v373, %v400
        %v429 = vmul.f32 %v373, %v404
        %v430 = vmul.f32 %v373, %v408
        %v431 = vmul.f32 %v373, %v412
        %v432 = vmul.f32 %v373, %v416
        %v433 = vmul.f32 %v378, %v388
        %v434 = vmul.f32 %v378, %v392
        %v435 = vmul.f32 %v378, %v396
        %v436 = vmul.f32 %v378, %v400
        %v437 = vmul.f32 %v378, %v404
        %v438 = vmul.f32 %v378, %v408
        %v439 = vmul.f32 %v378, %v412
        %v440 = vmul.f32 %v378, %v416
        %v441 = vmul.f32 %v383, %v388
        %v442 = vmul.f32 %v383, %v392
        %v443 = vmul.f32 %v383, %v396
        %v444 = vmul.f32 %v383, %v400
        %v445 = vmul.f32 %v383, %v404
        %v446 = vmul.f32 %v383, %v408
        %v447 = vmul.f32 %v383, %v412
        %v448 = vmul.f32 %v383, %v416
        %v449 = vadd.f32 %v417, 0.0
        %v450 = vadd.f32 %v418, 0.0
        %v451 = vadd.f32 %v419, 0.0
        %v452 = vadd.f32 %v420, 0.0
        %v453 = vadd.f32 %v421, 0.0
        %v454 = vadd.f32 %v422, 0.0
        %v455 = vadd.f32 %v423, 0.0
        %v456 = vadd.f32 %v424, 0.0
        %v457 = vadd.f32 %v425, 0.0
        %v458 = vadd.f32 %v426, 0.0
        %v459 = vadd.f32 %v427, 0.0
        %v460 = vadd.f32 %v428, 0.0
        %v461 = vadd.f32 %v429, 0.0
        %v462 = vadd.f32 %v430, 0.0
        %v463 = vadd.f32 %v431, 0.0
        %v464 = vadd.f32 %v432, 0.0
        %v465 = vadd.f32 %v433, 0.0
        %v466 = vadd.f32 %v434, 0.0
        %v467 = vadd.f32 %v435, 0.0
        %v468 = vadd.f32 %v436, 0.0
        %v469 = vadd.f32 %v437, 0.0
        %v470 = vadd.f32 %v438, 0.0
        %v471 = vadd.f32 %v439, 0.0
        %v472 = vadd.f32 %v440, 0.0
        %v473 = vadd.f32 %v441, 0.0
        %v474 = vadd.f32 %v442, 0.0
        %v475 = vadd.f32 %v443, 0.0
        %v476 = vadd.f32 %v444, 0.0
        %v477 = vadd.f32 %v445, 0.0
        %v478 = vadd.f32 %v446, 0.0
        %v479 = vadd.f32 %v447, 0.0
        %v480 = vadd.f32 %v448, 0.0
        %481 = vrot.lane.b32.xlu0 %v301, 32
        %v482 = vpop.permute.xlu0 %481
        %483 = vrot.lane.b32.xlu0 %v305, 32
        %v484 = vpop.permute.xlu0 %483
        %485 = vrot.lane.b32.xlu0 %v309, 32
        %v486 = vpop.permute.xlu0 %485
        %487 = vrot.lane.b32.xlu0 %v313, 32
        %v488 = vpop.permute.xlu0 %487
        %489 = vrot.lane.b32.xlu0 %v317, 32
        %v490 = vpop.permute.xlu0 %489
        %491 = vrot.lane.b32.xlu0 %v321, 32
        %v492 = vpop.permute.xlu0 %491
        %493 = vrot.lane.b32.xlu0 %v325, 32
        %v494 = vpop.permute.xlu0 %493
        %495 = vrot.lane.b32.xlu0 %v329, 32
        %v496 = vpop.permute.xlu0 %495
        %vm497 = vcmp.lt.s32.totalorder %v355, 32
        %v498 = vsel %vm497, %v494, %v496
        %v499 = vsel %vm497, %v492, %v494
        %v500 = vsel %vm497, %v490, %v492
        %v501 = vsel %vm497, %v488, %v490
        %v502 = vsel %vm497, %v486, %v488
        %v503 = vsel %vm497, %v484, %v486
        %v504 = vsel %vm497, %v482, %v484
        %v505 = vsel %vm497, %v496, %v482
        %506 = vset.pattern.permute.xlu0 1
        %507 = vperm.xlu0 %506, %v293
        %v508 = vpop.permute.xlu0 %507
        %510 = vset.pattern.permute.xlu0 1
        %511 = vperm.xlu0 %510, %v294
        %v512 = vpop.permute.xlu0 %511
        %514 = vset.pattern.permute.xlu0 1
        %515 = vperm.xlu0 %514, %v295
        %v516 = vpop.permute.xlu0 %515
        %518 = vset.pattern.permute.xlu0 1
        %519 = vperm.xlu0 %518, %v296
        %v520 = vpop.permute.xlu0 %519
        %v522 = vlaneseq
        %v523 = vshrl.u32 %v522, 7
        %v524 = vsub.s32 0, %v523
        %v525 = vrot.slane %v505, %v524
        %v526 = vlaneseq
        %v527 = vshrl.u32 %v526, 7
        %v528 = vsub.s32 0, %v527
        %v529 = vrot.slane %v504, %v528
        %v530 = vlaneseq
        %v531 = vshrl.u32 %v530, 7
        %v532 = vsub.s32 0, %v531
        %v533 = vrot.slane %v503, %v532
        %v534 = vlaneseq
        %v535 = vshrl.u32 %v534, 7
        %v536 = vsub.s32 0, %v535
        %v537 = vrot.slane %v502, %v536
        %v538 = vlaneseq
        %v539 = vshrl.u32 %v538, 7
        %v540 = vsub.s32 0, %v539
        %v541 = vrot.slane %v501, %v540
        %v542 = vlaneseq
        %v543 = vshrl.u32 %v542, 7
        %v544 = vsub.s32 0, %v543
        %v545 = vrot.slane %v500, %v544
        %v546 = vlaneseq
        %v547 = vshrl.u32 %v546, 7
        %v548 = vsub.s32 0, %v547
        %v549 = vrot.slane %v499, %v548
        %v550 = vlaneseq
        %v551 = vshrl.u32 %v550, 7
        %v552 = vsub.s32 0, %v551
        %v553 = vrot.slane %v498, %v552
        %v554 = vmul.f32 %v508, %v525
        %v555 = vmul.f32 %v508, %v529
        %v556 = vmul.f32 %v508, %v533
        %v557 = vmul.f32 %v508, %v537
        %v558 = vmul.f32 %v508, %v541
        %v559 = vmul.f32 %v508, %v545
        %v560 = vmul.f32 %v508, %v549
        %v561 = vmul.f32 %v508, %v553
        %v562 = vmul.f32 %v512, %v525
        %v563 = vmul.f32 %v512, %v529
        %v564 = vmul.f32 %v512, %v533
        %v565 = vmul.f32 %v512, %v537
        %v566 = vmul.f32 %v512, %v541
        %v567 = vmul.f32 %v512, %v545
        %v568 = vmul.f32 %v512, %v549
        %v569 = vmul.f32 %v512, %v553
        %v570 = vmul.f32 %v516, %v525
        %v571 = vmul.f32 %v516, %v529
        %v572 = vmul.f32 %v516, %v533
        %v573 = vmul.f32 %v516, %v537
        %v574 = vmul.f32 %v516, %v541
        %v575 = vmul.f32 %v516, %v545
        %v576 = vmul.f32 %v516, %v549
        %v577 = vmul.f32 %v516, %v553
        %v578 = vmul.f32 %v520, %v525
        %v579 = vmul.f32 %v520, %v529
        %v580 = vmul.f32 %v520, %v533
        %v581 = vmul.f32 %v520, %v537
        %v582 = vmul.f32 %v520, %v541
        %v583 = vmul.f32 %v520, %v545
        %v584 = vmul.f32 %v520, %v549
        %v585 = vmul.f32 %v520, %v553
        %v586 = vadd.f32 %v449, %v554
        %v587 = vadd.f32 %v450, %v555
        %v588 = vadd.f32 %v451, %v556
        %v589 = vadd.f32 %v452, %v557
        %v590 = vadd.f32 %v453, %v558
        %v591 = vadd.f32 %v454, %v559
        %v592 = vadd.f32 %v455, %v560
        %v593 = vadd.f32 %v456, %v561
        %v594 = vadd.f32 %v457, %v562
        %v595 = vadd.f32 %v458, %v563
        %v596 = vadd.f32 %v459, %v564
        %v597 = vadd.f32 %v460, %v565
        %v598 = vadd.f32 %v461, %v566
        %v599 = vadd.f32 %v462, %v567
        %v600 = vadd.f32 %v463, %v568
        %v601 = vadd.f32 %v464, %v569
        %v602 = vadd.f32 %v465, %v570
        %v603 = vadd.f32 %v466, %v571
        %v604 = vadd.f32 %v467, %v572
        %v605 = vadd.f32 %v468, %v573
        %v606 = vadd.f32 %v469, %v574
        %v607 = vadd.f32 %v470, %v575
        %v608 = vadd.f32 %v471, %v576
        %v609 = vadd.f32 %v472, %v577
        %v610 = vadd.f32 %v473, %v578
        %v611 = vadd.f32 %v474, %v579
        %v612 = vadd.f32 %v475, %v580
        %v613 = vadd.f32 %v476, %v581
        %v614 = vadd.f32 %v477, %v582
        %v615 = vadd.f32 %v478, %v583
        %v616 = vadd.f32 %v479, %v584
        %v617 = vadd.f32 %v480, %v585
        %618 = vrot.lane.b32.xlu0 %v301, 31
        %v619 = vpop.permute.xlu0 %618
        %620 = vrot.lane.b32.xlu0 %v305, 31
        %v621 = vpop.permute.xlu0 %620
        %622 = vrot.lane.b32.xlu0 %v309, 31
        %v623 = vpop.permute.xlu0 %622
        %624 = vrot.lane.b32.xlu0 %v313, 31
        %v625 = vpop.permute.xlu0 %624
        %626 = vrot.lane.b32.xlu0 %v317, 31
        %v627 = vpop.permute.xlu0 %626
        %628 = vrot.lane.b32.xlu0 %v321, 31
        %v629 = vpop.permute.xlu0 %628
        %630 = vrot.lane.b32.xlu0 %v325, 31
        %v631 = vpop.permute.xlu0 %630
        %632 = vrot.lane.b32.xlu0 %v329, 31
        %v633 = vpop.permute.xlu0 %632
        %vm634 = vcmp.lt.s32.totalorder %v355, 31
        %v635 = vsel %vm634, %v631, %v633
        %v636 = vsel %vm634, %v629, %v631
        %v637 = vsel %vm634, %v627, %v629
        %v638 = vsel %vm634, %v625, %v627
        %v639 = vsel %vm634, %v623, %v625
        %v640 = vsel %vm634, %v621, %v623
        %v641 = vsel %vm634, %v619, %v621
        %v642 = vsel %vm634, %v633, %v619
        %643 = vset.pattern.permute.xlu0 2
        %644 = vperm.xlu0 %643, %v293
        %v645 = vpop.permute.xlu0 %644
        %647 = vset.pattern.permute.xlu0 2
        %648 = vperm.xlu0 %647, %v294
        %v649 = vpop.permute.xlu0 %648
        %651 = vset.pattern.permute.xlu0 2
        %652 = vperm.xlu0 %651, %v295
        %v653 = vpop.permute.xlu0 %652
        %655 = vset.pattern.permute.xlu0 2
        %656 = vperm.xlu0 %655, %v296
        %v657 = vpop.permute.xlu0 %656
        %v659 = vlaneseq
        %v660 = vshrl.u32 %v659, 7
        %v661 = vsub.s32 0, %v660
        %v662 = vrot.slane %v642, %v661
        %v663 = vlaneseq
        %v664 = vshrl.u32 %v663, 7
        %v665 = vsub.s32 0, %v664
        %v666 = vrot.slane %v641, %v665
        %v667 = vlaneseq
        %v668 = vshrl.u32 %v667, 7
        %v669 = vsub.s32 0, %v668
        %v670 = vrot.slane %v640, %v669
        %v671 = vlaneseq
        %v672 = vshrl.u32 %v671, 7
        %v673 = vsub.s32 0, %v672
        %v674 = vrot.slane %v639, %v673
        %v675 = vlaneseq
        %v676 = vshrl.u32 %v675, 7
        %v677 = vsub.s32 0, %v676
        %v678 = vrot.slane %v638, %v677
        %v679 = vlaneseq
        %v680 = vshrl.u32 %v679, 7
        %v681 = vsub.s32 0, %v680
        %v682 = vrot.slane %v637, %v681
        %v683 = vlaneseq
        %v684 = vshrl.u32 %v683, 7
        %v685 = vsub.s32 0, %v684
        %v686 = vrot.slane %v636, %v685
        %v687 = vlaneseq
        %v688 = vshrl.u32 %v687, 7
        %v689 = vsub.s32 0, %v688
        %v690 = vrot.slane %v635, %v689
        %v691 = vmul.f32 %v645, %v662
        %v692 = vmul.f32 %v645, %v666
        %v693 = vmul.f32 %v645, %v670
        %v694 = vmul.f32 %v645, %v674
        %v695 = vmul.f32 %v645, %v678
        %v696 = vmul.f32 %v645, %v682
        %v697 = vmul.f32 %v645, %v686
        %v698 = vmul.f32 %v645, %v690
        %v699 = vmul.f32 %v649, %v662
        %v700 = vmul.f32 %v649, %v666
        %v701 = vmul.f32 %v649, %v670
        %v702 = vmul.f32 %v649, %v674
        %v703 = vmul.f32 %v649, %v678
        %v704 = vmul.f32 %v649, %v682
        %v705 = vmul.f32 %v649, %v686
        %v706 = vmul.f32 %v649, %v690
        %v707 = vmul.f32 %v653, %v662
        %v708 = vmul.f32 %v653, %v666
        %v709 = vmul.f32 %v653, %v670
        %v710 = vmul.f32 %v653, %v674
        %v711 = vmul.f32 %v653, %v678
        %v712 = vmul.f32 %v653, %v682
        %v713 = vmul.f32 %v653, %v686
        %v714 = vmul.f32 %v653, %v690
        %v715 = vmul.f32 %v657, %v662
        %v716 = vmul.f32 %v657, %v666
        %v717 = vmul.f32 %v657, %v670
        %v718 = vmul.f32 %v657, %v674
        %v719 = vmul.f32 %v657, %v678
        %v720 = vmul.f32 %v657, %v682
        %v721 = vmul.f32 %v657, %v686
        %v722 = vmul.f32 %v657, %v690
        %v723 = vadd.f32 %v586, %v691
        %v724 = vadd.f32 %v587, %v692
        %v725 = vadd.f32 %v588, %v693
        %v726 = vadd.f32 %v589, %v694
        %v727 = vadd.f32 %v590, %v695
        %v728 = vadd.f32 %v591, %v696
        %v729 = vadd.f32 %v592, %v697
        %v730 = vadd.f32 %v593, %v698
        %v731 = vadd.f32 %v594, %v699
        %v732 = vadd.f32 %v595, %v700
        %v733 = vadd.f32 %v596, %v701
        %v734 = vadd.f32 %v597, %v702
        %v735 = vadd.f32 %v598, %v703
        %v736 = vadd.f32 %v599, %v704
        %v737 = vadd.f32 %v600, %v705
        %v738 = vadd.f32 %v601, %v706
        %v739 = vadd.f32 %v602, %v707
        %v740 = vadd.f32 %v603, %v708
        %v741 = vadd.f32 %v604, %v709
        %v742 = vadd.f32 %v605, %v710
        %v743 = vadd.f32 %v606, %v711
        %v744 = vadd.f32 %v607, %v712
        %v745 = vadd.f32 %v608, %v713
        %v746 = vadd.f32 %v609, %v714
        %v747 = vadd.f32 %v610, %v715
        %v748 = vadd.f32 %v611, %v716
        %v749 = vadd.f32 %v612, %v717
        %v750 = vadd.f32 %v613, %v718
        %v751 = vadd.f32 %v614, %v719
        %v752 = vadd.f32 %v615, %v720
        %v753 = vadd.f32 %v616, %v721
        %v754 = vadd.f32 %v617, %v722
        %755 = vrot.lane.b32.xlu0 %v301, 1
        %v756 = vpop.permute.xlu0 %755
        %757 = vrot.lane.b32.xlu0 %v305, 1
        %v758 = vpop.permute.xlu0 %757
        %759 = vrot.lane.b32.xlu0 %v309, 1
        %v760 = vpop.permute.xlu0 %759
        %761 = vrot.lane.b32.xlu0 %v313, 1
        %v762 = vpop.permute.xlu0 %761
        %763 = vrot.lane.b32.xlu0 %v317, 1
        %v764 = vpop.permute.xlu0 %763
        %765 = vrot.lane.b32.xlu0 %v321, 1
        %v766 = vpop.permute.xlu0 %765
        %767 = vrot.lane.b32.xlu0 %v325, 1
        %v768 = vpop.permute.xlu0 %767
        %769 = vrot.lane.b32.xlu0 %v329, 1
        %v770 = vpop.permute.xlu0 %769
        %vm771 = vcmp.lt.s32.totalorder %v355, 1
        %v772 = vsel %vm771, %v768, %v770
        %v773 = vsel %vm771, %v766, %v768
        %v774 = vsel %vm771, %v764, %v766
        %v775 = vsel %vm771, %v762, %v764
        %v776 = vsel %vm771, %v760, %v762
        %v777 = vsel %vm771, %v758, %v760
        %v778 = vsel %vm771, %v756, %v758
        %v779 = vsel %vm771, %v770, %v756
        %780 = vset.pattern.permute.xlu0 3
        %781 = vperm.xlu0 %780, %v293
        %v782 = vpop.permute.xlu0 %781
        %784 = vset.pattern.permute.xlu0 3
        %785 = vperm.xlu0 %784, %v294
        %v786 = vpop.permute.xlu0 %785
        %788 = vset.pattern.permute.xlu0 3
        %789 = vperm.xlu0 %788, %v295
        %v790 = vpop.permute.xlu0 %789
        %792 = vset.pattern.permute.xlu0 3
        %793 = vperm.xlu0 %792, %v296
        %v794 = vpop.permute.xlu0 %793
        %v796 = vlaneseq
        %v797 = vshrl.u32 %v796, 7
        %v798 = vsub.s32 0, %v797
        %v799 = vrot.slane %v779, %v798
        %v800 = vlaneseq
        %v801 = vshrl.u32 %v800, 7
        %v802 = vsub.s32 0, %v801
        %v803 = vrot.slane %v778, %v802
        %v804 = vlaneseq
        %v805 = vshrl.u32 %v804, 7
        %v806 = vsub.s32 0, %v805
        %v807 = vrot.slane %v777, %v806
        %v808 = vlaneseq
        %v809 = vshrl.u32 %v808, 7
        %v810 = vsub.s32 0, %v809
        %v811 = vrot.slane %v776, %v810
        %v812 = vlaneseq
        %v813 = vshrl.u32 %v812, 7
        %v814 = vsub.s32 0, %v813
        %v815 = vrot.slane %v775, %v814
        %v816 = vlaneseq
        %v817 = vshrl.u32 %v816, 7
        %v818 = vsub.s32 0, %v817
        %v819 = vrot.slane %v774, %v818
        %v820 = vlaneseq
        %v821 = vshrl.u32 %v820, 7
        %v822 = vsub.s32 0, %v821
        %v823 = vrot.slane %v773, %v822
        %v824 = vlaneseq
        %v825 = vshrl.u32 %v824, 7
        %v826 = vsub.s32 0, %v825
        %v827 = vrot.slane %v772, %v826
        %v828 = vmul.f32 %v782, %v799
        %v829 = vmul.f32 %v782, %v803
        %v830 = vmul.f32 %v782, %v807
        %v831 = vmul.f32 %v782, %v811
        %v832 = vmul.f32 %v782, %v815
        %v833 = vmul.f32 %v782, %v819
        %v834 = vmul.f32 %v782, %v823
        %v835 = vmul.f32 %v782, %v827
        %v836 = vmul.f32 %v786, %v799
        %v837 = vmul.f32 %v786, %v803
        %v838 = vmul.f32 %v786, %v807
        %v839 = vmul.f32 %v786, %v811
        %v840 = vmul.f32 %v786, %v815
        %v841 = vmul.f32 %v786, %v819
        %v842 = vmul.f32 %v786, %v823
        %v843 = vmul.f32 %v786, %v827
        %v844 = vmul.f32 %v790, %v799
        %v845 = vmul.f32 %v790, %v803
        %v846 = vmul.f32 %v790, %v807
        %v847 = vmul.f32 %v790, %v811
        %v848 = vmul.f32 %v790, %v815
        %v849 = vmul.f32 %v790, %v819
        %v850 = vmul.f32 %v790, %v823
        %v851 = vmul.f32 %v790, %v827
        %v852 = vmul.f32 %v794, %v799
        %v853 = vmul.f32 %v794, %v803
        %v854 = vmul.f32 %v794, %v807
        %v855 = vmul.f32 %v794, %v811
        %v856 = vmul.f32 %v794, %v815
        %v857 = vmul.f32 %v794, %v819
        %v858 = vmul.f32 %v794, %v823
        %v859 = vmul.f32 %v794, %v827
        %v860 = vadd.f32 %v723, %v828
        %v861 = vadd.f32 %v724, %v829
        %v862 = vadd.f32 %v725, %v830
        %v863 = vadd.f32 %v726, %v831
        %v864 = vadd.f32 %v727, %v832
        %v865 = vadd.f32 %v728, %v833
        %v866 = vadd.f32 %v729, %v834
        %v867 = vadd.f32 %v730, %v835
        %v868 = vadd.f32 %v731, %v836
        %v869 = vadd.f32 %v732, %v837
        %v870 = vadd.f32 %v733, %v838
        %v871 = vadd.f32 %v734, %v839
        %v872 = vadd.f32 %v735, %v840
        %v873 = vadd.f32 %v736, %v841
        %v874 = vadd.f32 %v737, %v842
        %v875 = vadd.f32 %v738, %v843
        %v876 = vadd.f32 %v739, %v844
        %v877 = vadd.f32 %v740, %v845
        %v878 = vadd.f32 %v741, %v846
        %v879 = vadd.f32 %v742, %v847
        %v880 = vadd.f32 %v743, %v848
        %v881 = vadd.f32 %v744, %v849
        %v882 = vadd.f32 %v745, %v850
        %v883 = vadd.f32 %v746, %v851
        %v884 = vadd.f32 %v747, %v852
        %v885 = vadd.f32 %v748, %v853
        %v886 = vadd.f32 %v749, %v854
        %v887 = vadd.f32 %v750, %v855
        %v888 = vadd.f32 %v751, %v856
        %v889 = vadd.f32 %v752, %v857
        %v890 = vadd.f32 %v753, %v858
        %v891 = vadd.f32 %v754, %v859
        %892 = vset.pattern.permute.xlu0 4
        %893 = vperm.xlu0 %892, %v293
        %v894 = vpop.permute.xlu0 %893
        %896 = vset.pattern.permute.xlu0 4
        %897 = vperm.xlu0 %896, %v294
        %v898 = vpop.permute.xlu0 %897
        %900 = vset.pattern.permute.xlu0 4
        %901 = vperm.xlu0 %900, %v295
        %v902 = vpop.permute.xlu0 %901
        %904 = vset.pattern.permute.xlu0 4
        %905 = vperm.xlu0 %904, %v296
        %v906 = vpop.permute.xlu0 %905
        %v908 = vmul.f32 %v894, %v301
        %v909 = vmul.f32 %v894, %v305
        %v910 = vmul.f32 %v894, %v309
        %v911 = vmul.f32 %v894, %v313
        %v912 = vmul.f32 %v894, %v317
        %v913 = vmul.f32 %v894, %v321
        %v914 = vmul.f32 %v894, %v325
        %v915 = vmul.f32 %v894, %v329
        %v916 = vmul.f32 %v898, %v301
        %v917 = vmul.f32 %v898, %v305
        %v918 = vmul.f32 %v898, %v309
        %v919 = vmul.f32 %v898, %v313
        %v920 = vmul.f32 %v898, %v317
        %v921 = vmul.f32 %v898, %v321
        %v922 = vmul.f32 %v898, %v325
        %v923 = vmul.f32 %v898, %v329
        %v924 = vmul.f32 %v902, %v301
        %v925 = vmul.f32 %v902, %v305
        %v926 = vmul.f32 %v902, %v309
        %v927 = vmul.f32 %v902, %v313
        %v928 = vmul.f32 %v902, %v317
        %v929 = vmul.f32 %v902, %v321
        %v930 = vmul.f32 %v902, %v325
        %v931 = vmul.f32 %v902, %v329
        %v932 = vmul.f32 %v906, %v301
        %v933 = vmul.f32 %v906, %v305
        %v934 = vmul.f32 %v906, %v309
        %v935 = vmul.f32 %v906, %v313
        %v936 = vmul.f32 %v906, %v317
        %v937 = vmul.f32 %v906, %v321
        %v938 = vmul.f32 %v906, %v325
        %v939 = vmul.f32 %v906, %v329
        %v940 = vadd.f32 %v860, %v908
        %v941 = vadd.f32 %v861, %v909
        %v942 = vadd.f32 %v862, %v910
        %v943 = vadd.f32 %v863, %v911
        %v944 = vadd.f32 %v864, %v912
        %v945 = vadd.f32 %v865, %v913
        %v946 = vadd.f32 %v866, %v914
        %v947 = vadd.f32 %v867, %v915
        %v948 = vadd.f32 %v868, %v916
        %v949 = vadd.f32 %v869, %v917
        %v950 = vadd.f32 %v870, %v918
        %v951 = vadd.f32 %v871, %v919
        %v952 = vadd.f32 %v872, %v920
        %v953 = vadd.f32 %v873, %v921
        %v954 = vadd.f32 %v874, %v922
        %v955 = vadd.f32 %v875, %v923
        %v956 = vadd.f32 %v876, %v924
        %v957 = vadd.f32 %v877, %v925
        %v958 = vadd.f32 %v878, %v926
        %v959 = vadd.f32 %v879, %v927
        %v960 = vadd.f32 %v880, %v928
        %v961 = vadd.f32 %v881, %v929
        %v962 = vadd.f32 %v882, %v930
        %v963 = vadd.f32 %v883, %v931
        %v964 = vadd.f32 %v884, %v932
        %v965 = vadd.f32 %v885, %v933
        %v966 = vadd.f32 %v886, %v934
        %v967 = vadd.f32 %v887, %v935
        %v968 = vadd.f32 %v888, %v936
        %v969 = vadd.f32 %v889, %v937
        %v970 = vadd.f32 %v890, %v938
        %v971 = vadd.f32 %v891, %v939
        %972 = vrot.lane.b32.xlu0 %v301, 127
        %v973 = vpop.permute.xlu0 %972
        %974 = vrot.lane.b32.xlu0 %v305, 127
        %v975 = vpop.permute.xlu0 %974
        %976 = vrot.lane.b32.xlu0 %v309, 127
        %v977 = vpop.permute.xlu0 %976
        %978 = vrot.lane.b32.xlu0 %v313, 127
        %v979 = vpop.permute.xlu0 %978
        %980 = vrot.lane.b32.xlu0 %v317, 127
        %v981 = vpop.permute.xlu0 %980
        %982 = vrot.lane.b32.xlu0 %v321, 127
        %v983 = vpop.permute.xlu0 %982
        %984 = vrot.lane.b32.xlu0 %v325, 127
        %v985 = vpop.permute.xlu0 %984
        %986 = vrot.lane.b32.xlu0 %v329, 127
        %v987 = vpop.permute.xlu0 %986
        %vm988 = vcmp.lt.s32.totalorder %v355, 127
        %v989 = vsel %vm988, %v985, %v987
        %v990 = vsel %vm988, %v983, %v985
        %v991 = vsel %vm988, %v981, %v983
        %v992 = vsel %vm988, %v979, %v981
        %v993 = vsel %vm988, %v977, %v979
        %v994 = vsel %vm988, %v975, %v977
        %v995 = vsel %vm988, %v973, %v975
        %v996 = vsel %vm988, %v987, %v973
        %997 = vset.pattern.permute.xlu0 5
        %998 = vperm.xlu0 %997, %v293
        %v999 = vpop.permute.xlu0 %998
        %1001 = vset.pattern.permute.xlu0 5
        %1002 = vperm.xlu0 %1001, %v294
        %v1003 = vpop.permute.xlu0 %1002
        %1005 = vset.pattern.permute.xlu0 5
        %1006 = vperm.xlu0 %1005, %v295
        %v1007 = vpop.permute.xlu0 %1006
        %1009 = vset.pattern.permute.xlu0 5
        %1010 = vperm.xlu0 %1009, %v296
        %v1011 = vpop.permute.xlu0 %1010
        %v1013 = vlaneseq
        %v1014 = vshrl.u32 %v1013, 7
        %v1015 = vsub.s32 0, %v1014
        %v1016 = vrot.slane %v995, %v1015
        %v1017 = vlaneseq
        %v1018 = vshrl.u32 %v1017, 7
        %v1019 = vsub.s32 0, %v1018
        %v1020 = vrot.slane %v994, %v1019
        %v1021 = vlaneseq
        %v1022 = vshrl.u32 %v1021, 7
        %v1023 = vsub.s32 0, %v1022
        %v1024 = vrot.slane %v993, %v1023
        %v1025 = vlaneseq
        %v1026 = vshrl.u32 %v1025, 7
        %v1027 = vsub.s32 0, %v1026
        %v1028 = vrot.slane %v992, %v1027
        %v1029 = vlaneseq
        %v1030 = vshrl.u32 %v1029, 7
        %v1031 = vsub.s32 0, %v1030
        %v1032 = vrot.slane %v991, %v1031
        %v1033 = vlaneseq
        %v1034 = vshrl.u32 %v1033, 7
        %v1035 = vsub.s32 0, %v1034
        %v1036 = vrot.slane %v990, %v1035
        %v1037 = vlaneseq
        %v1038 = vshrl.u32 %v1037, 7
        %v1039 = vsub.s32 0, %v1038
        %v1040 = vrot.slane %v989, %v1039
        %v1041 = vlaneseq
        %v1042 = vshrl.u32 %v1041, 7
        %v1043 = vsub.s32 0, %v1042
        %v1044 = vrot.slane %v996, %v1043
        %v1045 = vmul.f32 %v999, %v1016
        %v1046 = vmul.f32 %v999, %v1020
        %v1047 = vmul.f32 %v999, %v1024
        %v1048 = vmul.f32 %v999, %v1028
        %v1049 = vmul.f32 %v999, %v1032
        %v1050 = vmul.f32 %v999, %v1036
        %v1051 = vmul.f32 %v999, %v1040
        %v1052 = vmul.f32 %v999, %v1044
        %v1053 = vmul.f32 %v1003, %v1016
        %v1054 = vmul.f32 %v1003, %v1020
        %v1055 = vmul.f32 %v1003, %v1024
        %v1056 = vmul.f32 %v1003, %v1028
        %v1057 = vmul.f32 %v1003, %v1032
        %v1058 = vmul.f32 %v1003, %v1036
        %v1059 = vmul.f32 %v1003, %v1040
        %v1060 = vmul.f32 %v1003, %v1044
        %v1061 = vmul.f32 %v1007, %v1016
        %v1062 = vmul.f32 %v1007, %v1020
        %v1063 = vmul.f32 %v1007, %v1024
        %v1064 = vmul.f32 %v1007, %v1028
        %v1065 = vmul.f32 %v1007, %v1032
        %v1066 = vmul.f32 %v1007, %v1036
        %v1067 = vmul.f32 %v1007, %v1040
        %v1068 = vmul.f32 %v1007, %v1044
        %v1069 = vmul.f32 %v1011, %v1016
        %v1070 = vmul.f32 %v1011, %v1020
        %v1071 = vmul.f32 %v1011, %v1024
        %v1072 = vmul.f32 %v1011, %v1028
        %v1073 = vmul.f32 %v1011, %v1032
        %v1074 = vmul.f32 %v1011, %v1036
        %v1075 = vmul.f32 %v1011, %v1040
        %v1076 = vmul.f32 %v1011, %v1044
        %v1077 = vadd.f32 %v940, %v1045
        %v1078 = vadd.f32 %v941, %v1046
        %v1079 = vadd.f32 %v942, %v1047
        %v1080 = vadd.f32 %v943, %v1048
        %v1081 = vadd.f32 %v944, %v1049
        %v1082 = vadd.f32 %v945, %v1050
        %v1083 = vadd.f32 %v946, %v1051
        %v1084 = vadd.f32 %v947, %v1052
        %v1085 = vadd.f32 %v948, %v1053
        %v1086 = vadd.f32 %v949, %v1054
        %v1087 = vadd.f32 %v950, %v1055
        %v1088 = vadd.f32 %v951, %v1056
        %v1089 = vadd.f32 %v952, %v1057
        %v1090 = vadd.f32 %v953, %v1058
        %v1091 = vadd.f32 %v954, %v1059
        %v1092 = vadd.f32 %v955, %v1060
        %v1093 = vadd.f32 %v956, %v1061
        %v1094 = vadd.f32 %v957, %v1062
        %v1095 = vadd.f32 %v958, %v1063
        %v1096 = vadd.f32 %v959, %v1064
        %v1097 = vadd.f32 %v960, %v1065
        %v1098 = vadd.f32 %v961, %v1066
        %v1099 = vadd.f32 %v962, %v1067
        %v1100 = vadd.f32 %v963, %v1068
        %v1101 = vadd.f32 %v964, %v1069
        %v1102 = vadd.f32 %v965, %v1070
        %v1103 = vadd.f32 %v966, %v1071
        %v1104 = vadd.f32 %v967, %v1072
        %v1105 = vadd.f32 %v968, %v1073
        %v1106 = vadd.f32 %v969, %v1074
        %v1107 = vadd.f32 %v970, %v1075
        %v1108 = vadd.f32 %v971, %v1076
        %1109 = vrot.lane.b32.xlu0 %v301, 97
        %v1110 = vpop.permute.xlu0 %1109
        %1111 = vrot.lane.b32.xlu0 %v305, 97
        %v1112 = vpop.permute.xlu0 %1111
        %1113 = vrot.lane.b32.xlu0 %v309, 97
        %v1114 = vpop.permute.xlu0 %1113
        %1115 = vrot.lane.b32.xlu0 %v313, 97
        %v1116 = vpop.permute.xlu0 %1115
        %1117 = vrot.lane.b32.xlu0 %v317, 97
        %v1118 = vpop.permute.xlu0 %1117
        %1119 = vrot.lane.b32.xlu0 %v321, 97
        %v1120 = vpop.permute.xlu0 %1119
        %1121 = vrot.lane.b32.xlu0 %v325, 97
        %v1122 = vpop.permute.xlu0 %1121
        %1123 = vrot.lane.b32.xlu0 %v329, 97
        %v1124 = vpop.permute.xlu0 %1123
        %vm1125 = vcmp.lt.s32.totalorder %v355, 97
        %v1126 = vsel %vm1125, %v1122, %v1124
        %v1127 = vsel %vm1125, %v1120, %v1122
        %v1128 = vsel %vm1125, %v1118, %v1120
        %v1129 = vsel %vm1125, %v1116, %v1118
        %v1130 = vsel %vm1125, %v1114, %v1116
        %v1131 = vsel %vm1125, %v1112, %v1114
        %v1132 = vsel %vm1125, %v1110, %v1112
        %v1133 = vsel %vm1125, %v1124, %v1110
        %1134 = vset.pattern.permute.xlu0 6
        %1135 = vperm.xlu0 %1134, %v293
        %v1136 = vpop.permute.xlu0 %1135
        %1138 = vset.pattern.permute.xlu0 6
        %1139 = vperm.xlu0 %1138, %v294
        %v1140 = vpop.permute.xlu0 %1139
        %1142 = vset.pattern.permute.xlu0 6
        %1143 = vperm.xlu0 %1142, %v295
        %v1144 = vpop.permute.xlu0 %1143
        %1146 = vset.pattern.permute.xlu0 6
        %1147 = vperm.xlu0 %1146, %v296
        %v1148 = vpop.permute.xlu0 %1147
        %v1150 = vlaneseq
        %v1151 = vshrl.u32 %v1150, 7
        %v1152 = vsub.s32 0, %v1151
        %v1153 = vrot.slane %v1132, %v1152
        %v1154 = vlaneseq
        %v1155 = vshrl.u32 %v1154, 7
        %v1156 = vsub.s32 0, %v1155
        %v1157 = vrot.slane %v1131, %v1156
        %v1158 = vlaneseq
        %v1159 = vshrl.u32 %v1158, 7
        %v1160 = vsub.s32 0, %v1159
        %v1161 = vrot.slane %v1130, %v1160
        %v1162 = vlaneseq
        %v1163 = vshrl.u32 %v1162, 7
        %v1164 = vsub.s32 0, %v1163
        %v1165 = vrot.slane %v1129, %v1164
        %v1166 = vlaneseq
        %v1167 = vshrl.u32 %v1166, 7
        %v1168 = vsub.s32 0, %v1167
        %v1169 = vrot.slane %v1128, %v1168
        %v1170 = vlaneseq
        %v1171 = vshrl.u32 %v1170, 7
        %v1172 = vsub.s32 0, %v1171
        %v1173 = vrot.slane %v1127, %v1172
        %v1174 = vlaneseq
        %v1175 = vshrl.u32 %v1174, 7
        %v1176 = vsub.s32 0, %v1175
        %v1177 = vrot.slane %v1126, %v1176
        %v1178 = vlaneseq
        %v1179 = vshrl.u32 %v1178, 7
        %v1180 = vsub.s32 0, %v1179
        %v1181 = vrot.slane %v1133, %v1180
        %v1182 = vmul.f32 %v1136, %v1153
        %v1183 = vmul.f32 %v1136, %v1157
        %v1184 = vmul.f32 %v1136, %v1161
        %v1185 = vmul.f32 %v1136, %v1165
        %v1186 = vmul.f32 %v1136, %v1169
        %v1187 = vmul.f32 %v1136, %v1173
        %v1188 = vmul.f32 %v1136, %v1177
        %v1189 = vmul.f32 %v1136, %v1181
        %v1190 = vmul.f32 %v1140, %v1153
        %v1191 = vmul.f32 %v1140, %v1157
        %v1192 = vmul.f32 %v1140, %v1161
        %v1193 = vmul.f32 %v1140, %v1165
        %v1194 = vmul.f32 %v1140, %v1169
        %v1195 = vmul.f32 %v1140, %v1173
        %v1196 = vmul.f32 %v1140, %v1177
        %v1197 = vmul.f32 %v1140, %v1181
        %v1198 = vmul.f32 %v1144, %v1153
        %v1199 = vmul.f32 %v1144, %v1157
        %v1200 = vmul.f32 %v1144, %v1161
        %v1201 = vmul.f32 %v1144, %v1165
        %v1202 = vmul.f32 %v1144, %v1169
        %v1203 = vmul.f32 %v1144, %v1173
        %v1204 = vmul.f32 %v1144, %v1177
        %v1205 = vmul.f32 %v1144, %v1181
        %v1206 = vmul.f32 %v1148, %v1153
        %v1207 = vmul.f32 %v1148, %v1157
        %v1208 = vmul.f32 %v1148, %v1161
        %v1209 = vmul.f32 %v1148, %v1165
        %v1210 = vmul.f32 %v1148, %v1169
        %v1211 = vmul.f32 %v1148, %v1173
        %v1212 = vmul.f32 %v1148, %v1177
        %v1213 = vmul.f32 %v1148, %v1181
        %v1214 = vadd.f32 %v1077, %v1182
        %v1215 = vadd.f32 %v1078, %v1183
        %v1216 = vadd.f32 %v1079, %v1184
        %v1217 = vadd.f32 %v1080, %v1185
        %v1218 = vadd.f32 %v1081, %v1186
        %v1219 = vadd.f32 %v1082, %v1187
        %v1220 = vadd.f32 %v1083, %v1188
        %v1221 = vadd.f32 %v1084, %v1189
        %v1222 = vadd.f32 %v1085, %v1190
        %v1223 = vadd.f32 %v1086, %v1191
        %v1224 = vadd.f32 %v1087, %v1192
        %v1225 = vadd.f32 %v1088, %v1193
        %v1226 = vadd.f32 %v1089, %v1194
        %v1227 = vadd.f32 %v1090, %v1195
        %v1228 = vadd.f32 %v1091, %v1196
        %v1229 = vadd.f32 %v1092, %v1197
        %v1230 = vadd.f32 %v1093, %v1198
        %v1231 = vadd.f32 %v1094, %v1199
        %v1232 = vadd.f32 %v1095, %v1200
        %v1233 = vadd.f32 %v1096, %v1201
        %v1234 = vadd.f32 %v1097, %v1202
        %v1235 = vadd.f32 %v1098, %v1203
        %v1236 = vadd.f32 %v1099, %v1204
        %v1237 = vadd.f32 %v1100, %v1205
        %v1238 = vadd.f32 %v1101, %v1206
        %v1239 = vadd.f32 %v1102, %v1207
        %v1240 = vadd.f32 %v1103, %v1208
        %v1241 = vadd.f32 %v1104, %v1209
        %v1242 = vadd.f32 %v1105, %v1210
        %v1243 = vadd.f32 %v1106, %v1211
        %v1244 = vadd.f32 %v1107, %v1212
        %v1245 = vadd.f32 %v1108, %v1213
        %1246 = vrot.lane.b32.xlu0 %v301, 96
        %v1247 = vpop.permute.xlu0 %1246
        %1248 = vrot.lane.b32.xlu0 %v305, 96
        %v1249 = vpop.permute.xlu0 %1248
        %1250 = vrot.lane.b32.xlu0 %v309, 96
        %v1251 = vpop.permute.xlu0 %1250
        %1252 = vrot.lane.b32.xlu0 %v313, 96
        %v1253 = vpop.permute.xlu0 %1252
        %1254 = vrot.lane.b32.xlu0 %v317, 96
        %v1255 = vpop.permute.xlu0 %1254
        %1256 = vrot.lane.b32.xlu0 %v321, 96
        %v1257 = vpop.permute.xlu0 %1256
        %1258 = vrot.lane.b32.xlu0 %v325, 96
        %v1259 = vpop.permute.xlu0 %1258
        %1260 = vrot.lane.b32.xlu0 %v329, 96
        %v1261 = vpop.permute.xlu0 %1260
        %vm1262 = vcmp.lt.s32.totalorder %v355, 96
        %v1263 = vsel %vm1262, %v1259, %v1261
        %v1264 = vsel %vm1262, %v1257, %v1259
        %v1265 = vsel %vm1262, %v1255, %v1257
        %v1266 = vsel %vm1262, %v1253, %v1255
        %v1267 = vsel %vm1262, %v1251, %v1253
        %v1268 = vsel %vm1262, %v1249, %v1251
        %v1269 = vsel %vm1262, %v1247, %v1249
        %v1270 = vsel %vm1262, %v1261, %v1247
        %1271 = vset.pattern.permute.xlu0 7
        %1272 = vperm.xlu0 %1271, %v293
        %v1273 = vpop.permute.xlu0 %1272
        %1275 = vset.pattern.permute.xlu0 7
        %1276 = vperm.xlu0 %1275, %v294
        %v1277 = vpop.permute.xlu0 %1276
        %1279 = vset.pattern.permute.xlu0 7
        %1280 = vperm.xlu0 %1279, %v295
        %v1281 = vpop.permute.xlu0 %1280
        %1283 = vset.pattern.permute.xlu0 7
        %1284 = vperm.xlu0 %1283, %v296
        %v1285 = vpop.permute.xlu0 %1284
        %v1287 = vlaneseq
        %v1288 = vshrl.u32 %v1287, 7
        %v1289 = vsub.s32 0, %v1288
        %v1290 = vrot.slane %v1269, %v1289
        %v1291 = vlaneseq
        %v1292 = vshrl.u32 %v1291, 7
        %v1293 = vsub.s32 0, %v1292
        %v1294 = vrot.slane %v1268, %v1293
        %v1295 = vlaneseq
        %v1296 = vshrl.u32 %v1295, 7
        %v1297 = vsub.s32 0, %v1296
        %v1298 = vrot.slane %v1267, %v1297
        %v1299 = vlaneseq
        %v1300 = vshrl.u32 %v1299, 7
        %v1301 = vsub.s32 0, %v1300
        %v1302 = vrot.slane %v1266, %v1301
        %v1303 = vlaneseq
        %v1304 = vshrl.u32 %v1303, 7
        %v1305 = vsub.s32 0, %v1304
        %v1306 = vrot.slane %v1265, %v1305
        %v1307 = vlaneseq
        %v1308 = vshrl.u32 %v1307, 7
        %v1309 = vsub.s32 0, %v1308
        %v1310 = vrot.slane %v1264, %v1309
        %v1311 = vlaneseq
        %v1312 = vshrl.u32 %v1311, 7
        %v1313 = vsub.s32 0, %v1312
        %v1314 = vrot.slane %v1263, %v1313
        %v1315 = vlaneseq
        %v1316 = vshrl.u32 %v1315, 7
        %v1317 = vsub.s32 0, %v1316
        %v1318 = vrot.slane %v1270, %v1317
        %v1319 = vmul.f32 %v1273, %v1290
        %v1320 = vmul.f32 %v1273, %v1294
        %v1321 = vmul.f32 %v1273, %v1298
        %v1322 = vmul.f32 %v1273, %v1302
        %v1323 = vmul.f32 %v1273, %v1306
        %v1324 = vmul.f32 %v1273, %v1310
        %v1325 = vmul.f32 %v1273, %v1314
        %v1326 = vmul.f32 %v1273, %v1318
        %v1327 = vmul.f32 %v1277, %v1290
        %v1328 = vmul.f32 %v1277, %v1294
        %v1329 = vmul.f32 %v1277, %v1298
        %v1330 = vmul.f32 %v1277, %v1302
        %v1331 = vmul.f32 %v1277, %v1306
        %v1332 = vmul.f32 %v1277, %v1310
        %v1333 = vmul.f32 %v1277, %v1314
        %v1334 = vmul.f32 %v1277, %v1318
        %v1335 = vmul.f32 %v1281, %v1290
        %v1336 = vmul.f32 %v1281, %v1294
        %v1337 = vmul.f32 %v1281, %v1298
        %v1338 = vmul.f32 %v1281, %v1302
        %v1339 = vmul.f32 %v1281, %v1306
        %v1340 = vmul.f32 %v1281, %v1310
        %v1341 = vmul.f32 %v1281, %v1314
        %v1342 = vmul.f32 %v1281, %v1318
        %v1343 = vmul.f32 %v1285, %v1290
        %v1344 = vmul.f32 %v1285, %v1294
        %v1345 = vmul.f32 %v1285, %v1298
        %v1346 = vmul.f32 %v1285, %v1302
        %v1347 = vmul.f32 %v1285, %v1306
        %v1348 = vmul.f32 %v1285, %v1310
        %v1349 = vmul.f32 %v1285, %v1314
        %v1350 = vmul.f32 %v1285, %v1318
        %v1351 = vadd.f32 %v1214, %v1319
        %v1352 = vadd.f32 %v1215, %v1320
        %v1353 = vadd.f32 %v1216, %v1321
        %v1354 = vadd.f32 %v1217, %v1322
        %v1355 = vadd.f32 %v1218, %v1323
        %v1356 = vadd.f32 %v1219, %v1324
        %v1357 = vadd.f32 %v1220, %v1325
        %v1358 = vadd.f32 %v1221, %v1326
        %v1359 = vadd.f32 %v1222, %v1327
        %v1360 = vadd.f32 %v1223, %v1328
        %v1361 = vadd.f32 %v1224, %v1329
        %v1362 = vadd.f32 %v1225, %v1330
        %v1363 = vadd.f32 %v1226, %v1331
        %v1364 = vadd.f32 %v1227, %v1332
        %v1365 = vadd.f32 %v1228, %v1333
        %v1366 = vadd.f32 %v1229, %v1334
        %v1367 = vadd.f32 %v1230, %v1335
        %v1368 = vadd.f32 %v1231, %v1336
        %v1369 = vadd.f32 %v1232, %v1337
        %v1370 = vadd.f32 %v1233, %v1338
        %v1371 = vadd.f32 %v1234, %v1339
        %v1372 = vadd.f32 %v1235, %v1340
        %v1373 = vadd.f32 %v1236, %v1341
        %v1374 = vadd.f32 %v1237, %v1342
        %v1375 = vadd.f32 %v1238, %v1343
        %v1376 = vadd.f32 %v1239, %v1344
        %v1377 = vadd.f32 %v1240, %v1345
        %v1378 = vadd.f32 %v1241, %v1346
        %v1379 = vadd.f32 %v1242, %v1347
        %v1380 = vadd.f32 %v1243, %v1348
        %v1381 = vadd.f32 %v1244, %v1349
        %v1382 = vadd.f32 %v1245, %v1350
        %1383 = vrot.lane.b32.xlu0 %v301, 95
        %v1384 = vpop.permute.xlu0 %1383
        %1385 = vrot.lane.b32.xlu0 %v305, 95
        %v1386 = vpop.permute.xlu0 %1385
        %1387 = vrot.lane.b32.xlu0 %v309, 95
        %v1388 = vpop.permute.xlu0 %1387
        %1389 = vrot.lane.b32.xlu0 %v313, 95
        %v1390 = vpop.permute.xlu0 %1389
        %1391 = vrot.lane.b32.xlu0 %v317, 95
        %v1392 = vpop.permute.xlu0 %1391
        %1393 = vrot.lane.b32.xlu0 %v321, 95
        %v1394 = vpop.permute.xlu0 %1393
        %1395 = vrot.lane.b32.xlu0 %v325, 95
        %v1396 = vpop.permute.xlu0 %1395
        %1397 = vrot.lane.b32.xlu0 %v329, 95
        %v1398 = vpop.permute.xlu0 %1397
        %vm1399 = vcmp.lt.s32.totalorder %v355, 95
        %v1400 = vsel %vm1399, %v1396, %v1398
        %v1401 = vsel %vm1399, %v1394, %v1396
        %v1402 = vsel %vm1399, %v1392, %v1394
        %v1403 = vsel %vm1399, %v1390, %v1392
        %v1404 = vsel %vm1399, %v1388, %v1390
        %v1405 = vsel %vm1399, %v1386, %v1388
        %v1406 = vsel %vm1399, %v1384, %v1386
        %v1407 = vsel %vm1399, %v1398, %v1384
        %1408 = vset.pattern.permute.xlu0 8
        %1409 = vperm.xlu0 %1408, %v293
        %v1410 = vpop.permute.xlu0 %1409
        %1412 = vset.pattern.permute.xlu0 8
        %1413 = vperm.xlu0 %1412, %v294
        %v1414 = vpop.permute.xlu0 %1413
        %1416 = vset.pattern.permute.xlu0 8
        %1417 = vperm.xlu0 %1416, %v295
        %v1418 = vpop.permute.xlu0 %1417
        %1420 = vset.pattern.permute.xlu0 8
        %1421 = vperm.xlu0 %1420, %v296
        %v1422 = vpop.permute.xlu0 %1421
        %v1424 = vlaneseq
        %v1425 = vshrl.u32 %v1424, 7
        %v1426 = vsub.s32 0, %v1425
        %v1427 = vrot.slane %v1406, %v1426
        %v1428 = vlaneseq
        %v1429 = vshrl.u32 %v1428, 7
        %v1430 = vsub.s32 0, %v1429
        %v1431 = vrot.slane %v1405, %v1430
        %v1432 = vlaneseq
        %v1433 = vshrl.u32 %v1432, 7
        %v1434 = vsub.s32 0, %v1433
        %v1435 = vrot.slane %v1404, %v1434
        %v1436 = vlaneseq
        %v1437 = vshrl.u32 %v1436, 7
        %v1438 = vsub.s32 0, %v1437
        %v1439 = vrot.slane %v1403, %v1438
        %v1440 = vlaneseq
        %v1441 = vshrl.u32 %v1440, 7
        %v1442 = vsub.s32 0, %v1441
        %v1443 = vrot.slane %v1402, %v1442
        %v1444 = vlaneseq
        %v1445 = vshrl.u32 %v1444, 7
        %v1446 = vsub.s32 0, %v1445
        %v1447 = vrot.slane %v1401, %v1446
        %v1448 = vlaneseq
        %v1449 = vshrl.u32 %v1448, 7
        %v1450 = vsub.s32 0, %v1449
        %v1451 = vrot.slane %v1400, %v1450
        %v1452 = vlaneseq
        %v1453 = vshrl.u32 %v1452, 7
        %v1454 = vsub.s32 0, %v1453
        %v1455 = vrot.slane %v1407, %v1454
        %v1456 = vmul.f32 %v1410, %v1427
        %v1457 = vmul.f32 %v1410, %v1431
        %v1458 = vmul.f32 %v1410, %v1435
        %v1459 = vmul.f32 %v1410, %v1439
        %v1460 = vmul.f32 %v1410, %v1443
        %v1461 = vmul.f32 %v1410, %v1447
        %v1462 = vmul.f32 %v1410, %v1451
        %v1463 = vmul.f32 %v1410, %v1455
        %v1464 = vmul.f32 %v1414, %v1427
        %v1465 = vmul.f32 %v1414, %v1431
        %v1466 = vmul.f32 %v1414, %v1435
        %v1467 = vmul.f32 %v1414, %v1439
        %v1468 = vmul.f32 %v1414, %v1443
        %v1469 = vmul.f32 %v1414, %v1447
        %v1470 = vmul.f32 %v1414, %v1451
        %v1471 = vmul.f32 %v1414, %v1455
        %v1472 = vmul.f32 %v1418, %v1427
        %v1473 = vmul.f32 %v1418, %v1431
        %v1474 = vmul.f32 %v1418, %v1435
        %v1475 = vmul.f32 %v1418, %v1439
        %v1476 = vmul.f32 %v1418, %v1443
        %v1477 = vmul.f32 %v1418, %v1447
        %v1478 = vmul.f32 %v1418, %v1451
        %v1479 = vmul.f32 %v1418, %v1455
        %v1480 = vmul.f32 %v1422, %v1427
        %v1481 = vmul.f32 %v1422, %v1431
        %v1482 = vmul.f32 %v1422, %v1435
        %v1483 = vmul.f32 %v1422, %v1439
        %v1484 = vmul.f32 %v1422, %v1443
        %v1485 = vmul.f32 %v1422, %v1447
        %v1486 = vmul.f32 %v1422, %v1451
        %v1487 = vmul.f32 %v1422, %v1455
        %v1488 = vadd.f32 %v1351, %v1456
        %v1489 = vadd.f32 %v1352, %v1457
        %v1490 = vadd.f32 %v1353, %v1458
        %v1491 = vadd.f32 %v1354, %v1459
        %v1492 = vadd.f32 %v1355, %v1460
        %v1493 = vadd.f32 %v1356, %v1461
        %v1494 = vadd.f32 %v1357, %v1462
        %v1495 = vadd.f32 %v1358, %v1463
        %v1496 = vadd.f32 %v1359, %v1464
        %v1497 = vadd.f32 %v1360, %v1465
        %v1498 = vadd.f32 %v1361, %v1466
        %v1499 = vadd.f32 %v1362, %v1467
        %v1500 = vadd.f32 %v1363, %v1468
        %v1501 = vadd.f32 %v1364, %v1469
        %v1502 = vadd.f32 %v1365, %v1470
        %v1503 = vadd.f32 %v1366, %v1471
        %v1504 = vadd.f32 %v1367, %v1472
        %v1505 = vadd.f32 %v1368, %v1473
        %v1506 = vadd.f32 %v1369, %v1474
        %v1507 = vadd.f32 %v1370, %v1475
        %v1508 = vadd.f32 %v1371, %v1476
        %v1509 = vadd.f32 %v1372, %v1477
        %v1510 = vadd.f32 %v1373, %v1478
        %v1511 = vadd.f32 %v1374, %v1479
        %v1512 = vadd.f32 %v1375, %v1480
        %v1513 = vadd.f32 %v1376, %v1481
        %v1514 = vadd.f32 %v1377, %v1482
        %v1515 = vadd.f32 %v1378, %v1483
        %v1516 = vadd.f32 %v1379, %v1484
        %v1517 = vadd.f32 %v1380, %v1485
        %v1518 = vadd.f32 %v1381, %v1486
        %v1519 = vadd.f32 %v1382, %v1487
        %v1520 = vld [vmem:[%s2] sm:$0xff]
        %v1521 = vld [vmem:[%s2 + $0x8] sm:$0xff]
        %v1522 = vld [vmem:[%s2 + $0x10] sm:$0xff]
        %v1523 = vld [vmem:[%s2 + $0x18] sm:$0xff]
        %1525 = vset.pattern.permute.xlu0 0
        %1526 = vperm.xlu0 %1525, %v1520
        %v1527 = vpop.permute.xlu0 %1526
        %1530 = vset.pattern.permute.xlu0 0
        %1531 = vperm.xlu0 %1530, %v1521
        %v1532 = vpop.permute.xlu0 %1531
        %1535 = vset.pattern.permute.xlu0 0
        %1536 = vperm.xlu0 %1535, %v1522
        %v1537 = vpop.permute.xlu0 %1536
        %1540 = vset.pattern.permute.xlu0 0
        %1541 = vperm.xlu0 %1540, %v1523
        %v1542 = vpop.permute.xlu0 %1541
        %v1544 = vadd.f32 %v1488, %v1527
        %v1545 = vadd.f32 %v1489, %v1527
        %v1546 = vadd.f32 %v1490, %v1527
        %v1547 = vadd.f32 %v1491, %v1527
        %v1548 = vadd.f32 %v1492, %v1527
        %v1549 = vadd.f32 %v1493, %v1527
        %v1550 = vadd.f32 %v1494, %v1527
        %v1551 = vadd.f32 %v1495, %v1527
        %v1552 = vadd.f32 %v1496, %v1532
        %v1553 = vadd.f32 %v1497, %v1532
        %v1554 = vadd.f32 %v1498, %v1532
        %v1555 = vadd.f32 %v1499, %v1532
        %v1556 = vadd.f32 %v1500, %v1532
        %v1557 = vadd.f32 %v1501, %v1532
        %v1558 = vadd.f32 %v1502, %v1532
        %v1559 = vadd.f32 %v1503, %v1532
        %v1560 = vadd.f32 %v1504, %v1537
        %v1561 = vadd.f32 %v1505, %v1537
        %v1562 = vadd.f32 %v1506, %v1537
        %v1563 = vadd.f32 %v1507, %v1537
        %v1564 = vadd.f32 %v1508, %v1537
        %v1565 = vadd.f32 %v1509, %v1537
        %v1566 = vadd.f32 %v1510, %v1537
        %v1567 = vadd.f32 %v1511, %v1537
        %v1568 = vadd.f32 %v1512, %v1542
        %v1569 = vadd.f32 %v1513, %v1542
        %v1570 = vadd.f32 %v1514, %v1542
        %v1571 = vadd.f32 %v1515, %v1542
        %v1572 = vadd.f32 %v1516, %v1542
        %v1573 = vadd.f32 %v1517, %v1542
        %v1574 = vadd.f32 %v1518, %v1542
        %v1575 = vadd.f32 %v1519, %v1542
        %v1576 = vmax.f32 %v1544, 0.0
        %v1577 = vmax.f32 %v1545, 0.0
        %v1578 = vmax.f32 %v1546, 0.0
        %v1579 = vmax.f32 %v1547, 0.0
        %v1580 = vmax.f32 %v1548, 0.0
        %v1581 = vmax.f32 %v1549, 0.0
        %v1582 = vmax.f32 %v1550, 0.0
        %v1583 = vmax.f32 %v1551, 0.0
        %v1584 = vmax.f32 %v1552, 0.0
        %v1585 = vmax.f32 %v1553, 0.0
        %v1586 = vmax.f32 %v1554, 0.0
        %v1587 = vmax.f32 %v1555, 0.0
        %v1588 = vmax.f32 %v1556, 0.0
        %v1589 = vmax.f32 %v1557, 0.0
        %v1590 = vmax.f32 %v1558, 0.0
        %v1591 = vmax.f32 %v1559, 0.0
        %v1592 = vmax.f32 %v1560, 0.0
        %v1593 = vmax.f32 %v1561, 0.0
        %v1594 = vmax.f32 %v1562, 0.0
        %v1595 = vmax.f32 %v1563, 0.0
        %v1596 = vmax.f32 %v1564, 0.0
        %v1597 = vmax.f32 %v1565, 0.0
        %v1598 = vmax.f32 %v1566, 0.0
        %v1599 = vmax.f32 %v1567, 0.0
        %v1600 = vmax.f32 %v1568, 0.0
        %v1601 = vmax.f32 %v1569, 0.0
        %v1602 = vmax.f32 %v1570, 0.0
        %v1603 = vmax.f32 %v1571, 0.0
        %v1604 = vmax.f32 %v1572, 0.0
        %v1605 = vmax.f32 %v1573, 0.0
        %v1606 = vmax.f32 %v1574, 0.0
        %v1607 = vmax.f32 %v1575, 0.0
        %1608 = vrot.lane.b32.xlu0 %v1576, 127
        %v1609 = vpop.permute.xlu0 %1608
        %1610 = vrot.lane.b32.xlu0 %v1584, 127
        %v1611 = vpop.permute.xlu0 %1610
        %1612 = vrot.lane.b32.xlu0 %v1592, 127
        %v1613 = vpop.permute.xlu0 %1612
        %1614 = vrot.lane.b32.xlu0 %v1600, 127
        %v1615 = vpop.permute.xlu0 %1614
        %1616 = vrot.lane.b32.xlu0 %v1577, 127
        %v1617 = vpop.permute.xlu0 %1616
        %1618 = vrot.lane.b32.xlu0 %v1585, 127
        %v1619 = vpop.permute.xlu0 %1618
        %1620 = vrot.lane.b32.xlu0 %v1593, 127
        %v1621 = vpop.permute.xlu0 %1620
        %1622 = vrot.lane.b32.xlu0 %v1601, 127
        %v1623 = vpop.permute.xlu0 %1622
        %1624 = vrot.lane.b32.xlu0 %v1578, 127
        %v1625 = vpop.permute.xlu0 %1624
        %1626 = vrot.lane.b32.xlu0 %v1586, 127
        %v1627 = vpop.permute.xlu0 %1626
        %1628 = vrot.lane.b32.xlu0 %v1594, 127
        %v1629 = vpop.permute.xlu0 %1628
        %1630 = vrot.lane.b32.xlu0 %v1602, 127
        %v1631 = vpop.permute.xlu0 %1630
        %1632 = vrot.lane.b32.xlu0 %v1579, 127
        %v1633 = vpop.permute.xlu0 %1632
        %1634 = vrot.lane.b32.xlu0 %v1587, 127
        %v1635 = vpop.permute.xlu0 %1634
        %1636 = vrot.lane.b32.xlu0 %v1595, 127
        %v1637 = vpop.permute.xlu0 %1636
        %1638 = vrot.lane.b32.xlu0 %v1603, 127
        %v1639 = vpop.permute.xlu0 %1638
        %1640 = vrot.lane.b32.xlu0 %v1580, 127
        %v1641 = vpop.permute.xlu0 %1640
        %1642 = vrot.lane.b32.xlu0 %v1588, 127
        %v1643 = vpop.permute.xlu0 %1642
        %1644 = vrot.lane.b32.xlu0 %v1596, 127
        %v1645 = vpop.permute.xlu0 %1644
        %1646 = vrot.lane.b32.xlu0 %v1604, 127
        %v1647 = vpop.permute.xlu0 %1646
        %1648 = vrot.lane.b32.xlu0 %v1581, 127
        %v1649 = vpop.permute.xlu0 %1648
        %1650 = vrot.lane.b32.xlu0 %v1589, 127
        %v1651 = vpop.permute.xlu0 %1650
        %1652 = vrot.lane.b32.xlu0 %v1597, 127
        %v1653 = vpop.permute.xlu0 %1652
        %1654 = vrot.lane.b32.xlu0 %v1605, 127
        %v1655 = vpop.permute.xlu0 %1654
        %1656 = vrot.lane.b32.xlu0 %v1582, 127
        %v1657 = vpop.permute.xlu0 %1656
        %1658 = vrot.lane.b32.xlu0 %v1590, 127
        %v1659 = vpop.permute.xlu0 %1658
        %1660 = vrot.lane.b32.xlu0 %v1598, 127
        %v1661 = vpop.permute.xlu0 %1660
        %1662 = vrot.lane.b32.xlu0 %v1606, 127
        %v1663 = vpop.permute.xlu0 %1662
        %1664 = vrot.lane.b32.xlu0 %v1583, 127
        %v1665 = vpop.permute.xlu0 %1664
        %1666 = vrot.lane.b32.xlu0 %v1591, 127
        %v1667 = vpop.permute.xlu0 %1666
        %1668 = vrot.lane.b32.xlu0 %v1599, 127
        %v1669 = vpop.permute.xlu0 %1668
        %1670 = vrot.lane.b32.xlu0 %v1607, 127
        %v1671 = vpop.permute.xlu0 %1670
        %v1672 = vsel %vm988, %v1657, %v1665
        %v1673 = vsel %vm988, %v1659, %v1667
        %v1674 = vsel %vm988, %v1661, %v1669
        %v1675 = vsel %vm988, %v1663, %v1671
        %v1676 = vsel %vm988, %v1649, %v1657
        %v1677 = vsel %vm988, %v1651, %v1659
        %v1678 = vsel %vm988, %v1653, %v1661
        %v1679 = vsel %vm988, %v1655, %v1663
        %v1680 = vsel %vm988, %v1641, %v1649
        %v1681 = vsel %vm988, %v1643, %v1651
        %v1682 = vsel %vm988, %v1645, %v1653
        %v1683 = vsel %vm988, %v1647, %v1655
        %v1684 = vsel %vm988, %v1633, %v1641
        %v1685 = vsel %vm988, %v1635, %v1643
        %v1686 = vsel %vm988, %v1637, %v1645
        %v1687 = vsel %vm988, %v1639, %v1647
        %v1688 = vsel %vm988, %v1625, %v1633
        %v1689 = vsel %vm988, %v1627, %v1635
        %v1690 = vsel %vm988, %v1629, %v1637
        %v1691 = vsel %vm988, %v1631, %v1639
        %v1692 = vsel %vm988, %v1617, %v1625
        %v1693 = vsel %vm988, %v1619, %v1627
        %v1694 = vsel %vm988, %v1621, %v1629
        %v1695 = vsel %vm988, %v1623, %v1631
        %v1696 = vsel %vm988, %v1609, %v1617
        %v1697 = vsel %vm988, %v1611, %v1619
        %v1698 = vsel %vm988, %v1613, %v1621
        %v1699 = vsel %vm988, %v1615, %v1623
        %v1700 = vsel %vm988, %v1665, %v1609
        %v1701 = vsel %vm988, %v1667, %v1611
        %v1702 = vsel %vm988, %v1669, %v1613
        %v1703 = vsel %vm988, %v1671, %v1615
        %v1704 = vmax.f32 %v1576, %v1696
        %v1705 = vmax.f32 %v1577, %v1692
        %v1706 = vmax.f32 %v1578, %v1688
        %v1707 = vmax.f32 %v1579, %v1684
        %v1708 = vmax.f32 %v1580, %v1680
        %v1709 = vmax.f32 %v1581, %v1676
        %v1710 = vmax.f32 %v1582, %v1672
        %v1711 = vmax.f32 %v1583, %v1700
        %v1712 = vmax.f32 %v1584, %v1697
        %v1713 = vmax.f32 %v1585, %v1693
        %v1714 = vmax.f32 %v1586, %v1689
        %v1715 = vmax.f32 %v1587, %v1685
        %v1716 = vmax.f32 %v1588, %v1681
        %v1717 = vmax.f32 %v1589, %v1677
        %v1718 = vmax.f32 %v1590, %v1673
        %v1719 = vmax.f32 %v1591, %v1701
        %v1720 = vmax.f32 %v1592, %v1698
        %v1721 = vmax.f32 %v1593, %v1694
        %v1722 = vmax.f32 %v1594, %v1690
        %v1723 = vmax.f32 %v1595, %v1686
        %v1724 = vmax.f32 %v1596, %v1682
        %v1725 = vmax.f32 %v1597, %v1678
        %v1726 = vmax.f32 %v1598, %v1674
        %v1727 = vmax.f32 %v1599, %v1702
        %v1728 = vmax.f32 %v1600, %v1699
        %v1729 = vmax.f32 %v1601, %v1695
        %v1730 = vmax.f32 %v1602, %v1691
        %v1731 = vmax.f32 %v1603, %v1687
        %v1732 = vmax.f32 %v1604, %v1683
        %v1733 = vmax.f32 %v1605, %v1679
        %v1734 = vmax.f32 %v1606, %v1675
        %v1735 = vmax.f32 %v1607, %v1703
        %1736 = vrot.lane.b32.xlu0 %v1704, 96
        %v1737 = vpop.permute.xlu0 %1736
        %1738 = vrot.lane.b32.xlu0 %v1712, 96
        %v1739 = vpop.permute.xlu0 %1738
        %1740 = vrot.lane.b32.xlu0 %v1720, 96
        %v1741 = vpop.permute.xlu0 %1740
        %1742 = vrot.lane.b32.xlu0 %v1728, 96
        %v1743 = vpop.permute.xlu0 %1742
        %1744 = vrot.lane.b32.xlu0 %v1705, 96
        %v1745 = vpop.permute.xlu0 %1744
        %1746 = vrot.lane.b32.xlu0 %v1713, 96
        %v1747 = vpop.permute.xlu0 %1746
        %1748 = vrot.lane.b32.xlu0 %v1721, 96
        %v1749 = vpop.permute.xlu0 %1748
        %1750 = vrot.lane.b32.xlu0 %v1729, 96
        %v1751 = vpop.permute.xlu0 %1750
        %1752 = vrot.lane.b32.xlu0 %v1706, 96
        %v1753 = vpop.permute.xlu0 %1752
        %1754 = vrot.lane.b32.xlu0 %v1714, 96
        %v1755 = vpop.permute.xlu0 %1754
        %1756 = vrot.lane.b32.xlu0 %v1722, 96
        %v1757 = vpop.permute.xlu0 %1756
        %1758 = vrot.lane.b32.xlu0 %v1730, 96
        %v1759 = vpop.permute.xlu0 %1758
        %1760 = vrot.lane.b32.xlu0 %v1707, 96
        %v1761 = vpop.permute.xlu0 %1760
        %1762 = vrot.lane.b32.xlu0 %v1715, 96
        %v1763 = vpop.permute.xlu0 %1762
        %1764 = vrot.lane.b32.xlu0 %v1723, 96
        %v1765 = vpop.permute.xlu0 %1764
        %1766 = vrot.lane.b32.xlu0 %v1731, 96
        %v1767 = vpop.permute.xlu0 %1766
        %1768 = vrot.lane.b32.xlu0 %v1708, 96
        %v1769 = vpop.permute.xlu0 %1768
        %1770 = vrot.lane.b32.xlu0 %v1716, 96
        %v1771 = vpop.permute.xlu0 %1770
        %1772 = vrot.lane.b32.xlu0 %v1724, 96
        %v1773 = vpop.permute.xlu0 %1772
        %1774 = vrot.lane.b32.xlu0 %v1732, 96
        %v1775 = vpop.permute.xlu0 %1774
        %1776 = vrot.lane.b32.xlu0 %v1709, 96
        %v1777 = vpop.permute.xlu0 %1776
        %1778 = vrot.lane.b32.xlu0 %v1717, 96
        %v1779 = vpop.permute.xlu0 %1778
        %1780 = vrot.lane.b32.xlu0 %v1725, 96
        %v1781 = vpop.permute.xlu0 %1780
        %1782 = vrot.lane.b32.xlu0 %v1733, 96
        %v1783 = vpop.permute.xlu0 %1782
        %1784 = vrot.lane.b32.xlu0 %v1710, 96
        %v1785 = vpop.permute.xlu0 %1784
        %1786 = vrot.lane.b32.xlu0 %v1718, 96
        %v1787 = vpop.permute.xlu0 %1786
        %1788 = vrot.lane.b32.xlu0 %v1726, 96
        %v1789 = vpop.permute.xlu0 %1788
        %1790 = vrot.lane.b32.xlu0 %v1734, 96
        %v1791 = vpop.permute.xlu0 %1790
        %1792 = vrot.lane.b32.xlu0 %v1711, 96
        %v1793 = vpop.permute.xlu0 %1792
        %1794 = vrot.lane.b32.xlu0 %v1719, 96
        %v1795 = vpop.permute.xlu0 %1794
        %1796 = vrot.lane.b32.xlu0 %v1727, 96
        %v1797 = vpop.permute.xlu0 %1796
        %1798 = vrot.lane.b32.xlu0 %v1735, 96
        %v1799 = vpop.permute.xlu0 %1798
        %v1800 = vsel %vm1262, %v1785, %v1793
        %v1801 = vsel %vm1262, %v1787, %v1795
        %v1802 = vsel %vm1262, %v1789, %v1797
        %v1803 = vsel %vm1262, %v1791, %v1799
        %v1804 = vsel %vm1262, %v1777, %v1785
        %v1805 = vsel %vm1262, %v1779, %v1787
        %v1806 = vsel %vm1262, %v1781, %v1789
        %v1807 = vsel %vm1262, %v1783, %v1791
        %v1808 = vsel %vm1262, %v1769, %v1777
        %v1809 = vsel %vm1262, %v1771, %v1779
        %v1810 = vsel %vm1262, %v1773, %v1781
        %v1811 = vsel %vm1262, %v1775, %v1783
        %v1812 = vsel %vm1262, %v1761, %v1769
        %v1813 = vsel %vm1262, %v1763, %v1771
        %v1814 = vsel %vm1262, %v1765, %v1773
        %v1815 = vsel %vm1262, %v1767, %v1775
        %v1816 = vsel %vm1262, %v1753, %v1761
        %v1817 = vsel %vm1262, %v1755, %v1763
        %v1818 = vsel %vm1262, %v1757, %v1765
        %v1819 = vsel %vm1262, %v1759, %v1767
        %v1820 = vsel %vm1262, %v1745, %v1753
        %v1821 = vsel %vm1262, %v1747, %v1755
        %v1822 = vsel %vm1262, %v1749, %v1757
        %v1823 = vsel %vm1262, %v1751, %v1759
        %v1824 = vsel %vm1262, %v1737, %v1745
        %v1825 = vsel %vm1262, %v1739, %v1747
        %v1826 = vsel %vm1262, %v1741, %v1749
        %v1827 = vsel %vm1262, %v1743, %v1751
        %v1828 = vsel %vm1262, %v1793, %v1737
        %v1829 = vsel %vm1262, %v1795, %v1739
        %v1830 = vsel %vm1262, %v1797, %v1741
        %v1831 = vsel %vm1262, %v1799, %v1743
        %v1832 = vmax.f32 %v1704, %v1824
        %v1833 = vmax.f32 %v1705, %v1820
        %v1834 = vmax.f32 %v1706, %v1816
        %v1835 = vmax.f32 %v1707, %v1812
        %v1836 = vmax.f32 %v1708, %v1808
        %v1837 = vmax.f32 %v1709, %v1804
        %v1838 = vmax.f32 %v1710, %v1800
        %v1839 = vmax.f32 %v1711, %v1828
        %v1840 = vmax.f32 %v1712, %v1825
        %v1841 = vmax.f32 %v1713, %v1821
        %v1842 = vmax.f32 %v1714, %v1817
        %v1843 = vmax.f32 %v1715, %v1813
        %v1844 = vmax.f32 %v1716, %v1809
        %v1845 = vmax.f32 %v1717, %v1805
        %v1846 = vmax.f32 %v1718, %v1801
        %v1847 = vmax.f32 %v1719, %v1829
        %v1848 = vmax.f32 %v1720, %v1826
        %v1849 = vmax.f32 %v1721, %v1822
        %v1850 = vmax.f32 %v1722, %v1818
        %v1851 = vmax.f32 %v1723, %v1814
        %v1852 = vmax.f32 %v1724, %v1810
        %v1853 = vmax.f32 %v1725, %v1806
        %v1854 = vmax.f32 %v1726, %v1802
        %v1855 = vmax.f32 %v1727, %v1830
        %v1856 = vmax.f32 %v1728, %v1827
        %v1857 = vmax.f32 %v1729, %v1823
        %v1858 = vmax.f32 %v1730, %v1819
        %v1859 = vmax.f32 %v1731, %v1815
        %v1860 = vmax.f32 %v1732, %v1811
        %v1861 = vmax.f32 %v1733, %v1807
        %v1862 = vmax.f32 %v1734, %v1803
        %v1863 = vmax.f32 %v1735, %v1831
        %v1864 = vpack.c.bf16 %v1840, %v1832
        %v1865 = vpack.c.bf16 %v1841, %v1833
        %v1866 = vpack.c.bf16 %v1842, %v1834
        %v1867 = vpack.c.bf16 %v1843, %v1835
        %v1868 = vpack.c.bf16 %v1844, %v1836
        %v1869 = vpack.c.bf16 %v1845, %v1837
        %v1870 = vpack.c.bf16 %v1846, %v1838
        %v1871 = vpack.c.bf16 %v1847, %v1839
        %v1872 = vpack.c.bf16 %v1856, %v1848
        %v1873 = vpack.c.bf16 %v1857, %v1849
        %v1874 = vpack.c.bf16 %v1858, %v1850
        %v1875 = vpack.c.bf16 %v1859, %v1851
        %v1876 = vpack.c.bf16 %v1860, %v1852
        %v1877 = vpack.c.bf16 %v1861, %v1853
        %v1878 = vpack.c.bf16 %v1862, %v1854
        %v1879 = vpack.c.bf16 %v1863, %v1855
        %v1880 = vld [vmem:[#allocation2] sm:$0xff]
        %v1881 = vld [vmem:[#allocation2 + $0x8] sm:$0xff]
        %v1882 = vld [vmem:[#allocation2 + $0x10] sm:$0xff]
        %v1883 = vld [vmem:[#allocation2 + $0x18] sm:$0xff]
        %v1884 = vld [vmem:[#allocation2 + $0x20] sm:$0xff]
        %v1885 = vld [vmem:[#allocation2 + $0x28] sm:$0xff]
        %v1886 = vld [vmem:[#allocation2 + $0x30] sm:$0xff]
        %v1887 = vld [vmem:[#allocation2 + $0x38] sm:$0xff]
        %v1888 = vld [vmem:[#allocation2 + $0x40] sm:$0xff]
        %v1889 = vld [vmem:[#allocation2 + $0x48] sm:$0xff]
        %v1890 = vld [vmem:[#allocation2 + $0x50] sm:$0xff]
        %v1891 = vld [vmem:[#allocation2 + $0x58] sm:$0xff]
        %v1892 = vld [vmem:[#allocation2 + $0x60] sm:$0xff]
        %v1893 = vld [vmem:[#allocation2 + $0x68] sm:$0xff]
        %v1894 = vld [vmem:[#allocation2 + $0x70] sm:$0xff]
        %v1895 = vld [vmem:[#allocation2 + $0x78] sm:$0xff]
        %v1896 = vld [vmem:[#allocation2 + $0x80] sm:$0xff]
        %v1897 = vld [vmem:[#allocation2 + $0x88] sm:$0xff]
        %v1898 = vld [vmem:[#allocation2 + $0x90] sm:$0xff]
        %v1899 = vld [vmem:[#allocation2 + $0x98] sm:$0xff]
        %v1900 = vld [vmem:[#allocation2 + $0xa0] sm:$0xff]
        %v1901 = vld [vmem:[#allocation2 + $0xa8] sm:$0xff]
        %v1902 = vld [vmem:[#allocation2 + $0xb0] sm:$0xff]
        %v1903 = vld [vmem:[#allocation2 + $0xb8] sm:$0xff]
        %v1904 = vld [vmem:[#allocation2 + $0xc0] sm:$0xff]
        %v1905 = vld [vmem:[#allocation2 + $0xc8] sm:$0xff]
        %v1906 = vld [vmem:[#allocation2 + $0xd0] sm:$0xff]
        %v1907 = vld [vmem:[#allocation2 + $0xd8] sm:$0xff]
        %v1908 = vld [vmem:[#allocation2 + $0xe0] sm:$0xff]
        %v1909 = vld [vmem:[#allocation2 + $0xe8] sm:$0xff]
        %v1910 = vld [vmem:[#allocation2 + $0xf0] sm:$0xff]
        %v1911 = vld [vmem:[#allocation2 + $0xf8] sm:$0xff]
        %v1912 = vld [vmem:[#allocation2 + $0x100] sm:$0xff]
        %v1913 = vld [vmem:[#allocation2 + $0x108] sm:$0xff]
        %v1914 = vld [vmem:[#allocation2 + $0x110] sm:$0xff]
        %v1915 = vld [vmem:[#allocation2 + $0x118] sm:$0xff]
        %v1916 = vld [vmem:[#allocation2 + $0x120] sm:$0xff]
        %v1917 = vld [vmem:[#allocation2 + $0x128] sm:$0xff]
        %v1918 = vld [vmem:[#allocation2 + $0x130] sm:$0xff]
        %v1919 = vld [vmem:[#allocation2 + $0x138] sm:$0xff]
        %v1920 = vld [vmem:[#allocation2 + $0x140] sm:$0xff]
        %v1921 = vld [vmem:[#allocation2 + $0x148] sm:$0xff]
        %v1922 = vld [vmem:[#allocation2 + $0x150] sm:$0xff]
        %v1923 = vld [vmem:[#allocation2 + $0x158] sm:$0xff]
        %v1924 = vld [vmem:[#allocation2 + $0x160] sm:$0xff]
        %v1925 = vld [vmem:[#allocation2 + $0x168] sm:$0xff]
        %v1926 = vld [vmem:[#allocation2 + $0x170] sm:$0xff]
        %v1927 = vld [vmem:[#allocation2 + $0x178] sm:$0xff]
        %v1928 = vld [vmem:[#allocation2 + $0x180] sm:$0xff]
        %v1929 = vld [vmem:[#allocation2 + $0x188] sm:$0xff]
        %v1930 = vld [vmem:[#allocation2 + $0x190] sm:$0xff]
        %v1931 = vld [vmem:[#allocation2 + $0x198] sm:$0xff]
        %v1932 = vld [vmem:[#allocation2 + $0x1a0] sm:$0xff]
        %v1933 = vld [vmem:[#allocation2 + $0x1a8] sm:$0xff]
        %v1934 = vld [vmem:[#allocation2 + $0x1b0] sm:$0xff]
        %v1935 = vld [vmem:[#allocation2 + $0x1b8] sm:$0xff]
        %v1936 = vld [vmem:[#allocation2 + $0x1c0] sm:$0xff]
        %v1937 = vld [vmem:[#allocation2 + $0x1c8] sm:$0xff]
        %v1938 = vld [vmem:[#allocation2 + $0x1d0] sm:$0xff]
        %v1939 = vld [vmem:[#allocation2 + $0x1d8] sm:$0xff]
        %v1940 = vld [vmem:[#allocation2 + $0x1e0] sm:$0xff]
        %v1941 = vld [vmem:[#allocation2 + $0x1e8] sm:$0xff]
        %v1942 = vld [vmem:[#allocation2 + $0x1f0] sm:$0xff]
        %v1943 = vld [vmem:[#allocation2 + $0x1f8] sm:$0xff]
        %v1944 = vld [vmem:[#allocation2 + $0x200] sm:$0xff]
        %v1945 = vld [vmem:[#allocation2 + $0x208] sm:$0xff]
        %v1946 = vld [vmem:[#allocation2 + $0x210] sm:$0xff]
        %v1947 = vld [vmem:[#allocation2 + $0x218] sm:$0xff]
        %v1948 = vld [vmem:[#allocation2 + $0x220] sm:$0xff]
        %v1949 = vld [vmem:[#allocation2 + $0x228] sm:$0xff]
        %v1950 = vld [vmem:[#allocation2 + $0x230] sm:$0xff]
        %v1951 = vld [vmem:[#allocation2 + $0x238] sm:$0xff]
        %v1952 = vld [vmem:[#allocation2 + $0x240] sm:$0xff]
        %v1953 = vld [vmem:[#allocation2 + $0x248] sm:$0xff]
        %v1954 = vld [vmem:[#allocation2 + $0x250] sm:$0xff]
        %v1955 = vld [vmem:[#allocation2 + $0x258] sm:$0xff]
        %v1956 = vld [vmem:[#allocation2 + $0x260] sm:$0xff]
        %v1957 = vld [vmem:[#allocation2 + $0x268] sm:$0xff]
        %v1958 = vld [vmem:[#allocation2 + $0x270] sm:$0xff]
        %v1959 = vld [vmem:[#allocation2 + $0x278] sm:$0xff]
        %v1960 = vld [vmem:[#allocation2 + $0x280] sm:$0xff]
        %v1961 = vld [vmem:[#allocation2 + $0x288] sm:$0xff]
        %v1962 = vld [vmem:[#allocation2 + $0x290] sm:$0xff]
        %v1963 = vld [vmem:[#allocation2 + $0x298] sm:$0xff]
        %v1964 = vld [vmem:[#allocation2 + $0x2a0] sm:$0xff]
        %v1965 = vld [vmem:[#allocation2 + $0x2a8] sm:$0xff]
        %v1966 = vld [vmem:[#allocation2 + $0x2b0] sm:$0xff]
        %v1967 = vld [vmem:[#allocation2 + $0x2b8] sm:$0xff]
        %v1968 = vld [vmem:[#allocation2 + $0x2c0] sm:$0xff]
        %v1969 = vld [vmem:[#allocation2 + $0x2c8] sm:$0xff]
        %v1970 = vld [vmem:[#allocation2 + $0x2d0] sm:$0xff]
        %v1971 = vld [vmem:[#allocation2 + $0x2d8] sm:$0xff]
        %v1972 = vld [vmem:[#allocation2 + $0x2e0] sm:$0xff]
        %v1973 = vld [vmem:[#allocation2 + $0x2e8] sm:$0xff]
        %v1974 = vld [vmem:[#allocation2 + $0x2f0] sm:$0xff]
        %v1975 = vld [vmem:[#allocation2 + $0x2f8] sm:$0xff]
        %v1976 = vld [vmem:[#allocation2 + $0x300] sm:$0xff]
        %v1977 = vld [vmem:[#allocation2 + $0x308] sm:$0xff]
        %v1978 = vld [vmem:[#allocation2 + $0x310] sm:$0xff]
        %v1979 = vld [vmem:[#allocation2 + $0x318] sm:$0xff]
        %v1980 = vld [vmem:[#allocation2 + $0x320] sm:$0xff]
        %v1981 = vld [vmem:[#allocation2 + $0x328] sm:$0xff]
        %v1982 = vld [vmem:[#allocation2 + $0x330] sm:$0xff]
        %v1983 = vld [vmem:[#allocation2 + $0x338] sm:$0xff]
        %v1984 = vld [vmem:[#allocation2 + $0x340] sm:$0xff]
        %v1985 = vld [vmem:[#allocation2 + $0x348] sm:$0xff]
        %v1986 = vld [vmem:[#allocation2 + $0x350] sm:$0xff]
        %v1987 = vld [vmem:[#allocation2 + $0x358] sm:$0xff]
        %v1988 = vld [vmem:[#allocation2 + $0x360] sm:$0xff]
        %v1989 = vld [vmem:[#allocation2 + $0x368] sm:$0xff]
        %v1990 = vld [vmem:[#allocation2 + $0x370] sm:$0xff]
        %v1991 = vld [vmem:[#allocation2 + $0x378] sm:$0xff]
        %v1992 = vld [vmem:[#allocation2 + $0x380] sm:$0xff]
        %v1993 = vld [vmem:[#allocation2 + $0x388] sm:$0xff]
        %v1994 = vld [vmem:[#allocation2 + $0x390] sm:$0xff]
        %v1995 = vld [vmem:[#allocation2 + $0x398] sm:$0xff]
        %v1996 = vld [vmem:[#allocation2 + $0x3a0] sm:$0xff]
        %v1997 = vld [vmem:[#allocation2 + $0x3a8] sm:$0xff]
        %v1998 = vld [vmem:[#allocation2 + $0x3b0] sm:$0xff]
        %v1999 = vld [vmem:[#allocation2 + $0x3b8] sm:$0xff]
        %v2000 = vld [vmem:[#allocation2 + $0x3c0] sm:$0xff]
        %v2001 = vld [vmem:[#allocation2 + $0x3c8] sm:$0xff]
        %v2002 = vld [vmem:[#allocation2 + $0x3d0] sm:$0xff]
        %v2003 = vld [vmem:[#allocation2 + $0x3d8] sm:$0xff]
        %v2004 = vld [vmem:[#allocation2 + $0x3e0] sm:$0xff]
        %v2005 = vld [vmem:[#allocation2 + $0x3e8] sm:$0xff]
        %v2006 = vld [vmem:[#allocation2 + $0x3f0] sm:$0xff]
        %v2007 = vld [vmem:[#allocation2 + $0x3f8] sm:$0xff]
        %v2136 = vunpack.c.l.b16 %v1880
        %v2137 = vunpack.c.h.b16 %v1880
        %v2138 = vunpack.c.l.b16 %v1881
        %v2139 = vunpack.c.h.b16 %v1881
        %v2140 = vunpack.c.l.b16 %v1882
        %v2141 = vunpack.c.h.b16 %v1882
        %v2142 = vunpack.c.l.b16 %v1883
        %v2143 = vunpack.c.h.b16 %v1883
        %v2144 = vunpack.c.l.b16 %v1884
        %v2145 = vunpack.c.h.b16 %v1884
        %v2146 = vunpack.c.l.b16 %v1885
        %v2147 = vunpack.c.h.b16 %v1885
        %v2148 = vunpack.c.l.b16 %v1886
        %v2149 = vunpack.c.h.b16 %v1886
        %v2150 = vunpack.c.l.b16 %v1887
        %v2151 = vunpack.c.h.b16 %v1887
        %v2152 = vunpack.c.l.b16 %v1888
        %v2153 = vunpack.c.h.b16 %v1888
        %v2154 = vunpack.c.l.b16 %v1889
        %v2155 = vunpack.c.h.b16 %v1889
        %v2156 = vunpack.c.l.b16 %v1890
        %v2157 = vunpack.c.h.b16 %v1890
        %v2158 = vunpack.c.l.b16 %v1891
        %v2159 = vunpack.c.h.b16 %v1891
        %v2160 = vunpack.c.l.b16 %v1892
        %v2161 = vunpack.c.h.b16 %v1892
        %v2162 = vunpack.c.l.b16 %v1893
        %v2163 = vunpack.c.h.b16 %v1893
        %v2164 = vunpack.c.l.b16 %v1894
        %v2165 = vunpack.c.h.b16 %v1894
        %v2166 = vunpack.c.l.b16 %v1895
        %v2167 = vunpack.c.h.b16 %v1895
        %v2168 = vunpack.c.l.b16 %v1896
        %v2169 = vunpack.c.h.b16 %v1896
        %v2170 = vunpack.c.l.b16 %v1897
        %v2171 = vunpack.c.h.b16 %v1897
        %v2172 = vunpack.c.l.b16 %v1898
        %v2173 = vunpack.c.h.b16 %v1898
        %v2174 = vunpack.c.l.b16 %v1899
        %v2175 = vunpack.c.h.b16 %v1899
        %v2176 = vunpack.c.l.b16 %v1900
        %v2177 = vunpack.c.h.b16 %v1900
        %v2178 = vunpack.c.l.b16 %v1901
        %v2179 = vunpack.c.h.b16 %v1901
        %v2180 = vunpack.c.l.b16 %v1902
        %v2181 = vunpack.c.h.b16 %v1902
        %v2182 = vunpack.c.l.b16 %v1903
        %v2183 = vunpack.c.h.b16 %v1903
        %v2184 = vunpack.c.l.b16 %v1904
        %v2185 = vunpack.c.h.b16 %v1904
        %v2186 = vunpack.c.l.b16 %v1905
        %v2187 = vunpack.c.h.b16 %v1905
        %v2188 = vunpack.c.l.b16 %v1906
        %v2189 = vunpack.c.h.b16 %v1906
        %v2190 = vunpack.c.l.b16 %v1907
        %v2191 = vunpack.c.h.b16 %v1907
        %v2192 = vunpack.c.l.b16 %v1908
        %v2193 = vunpack.c.h.b16 %v1908
        %v2194 = vunpack.c.l.b16 %v1909
        %v2195 = vunpack.c.h.b16 %v1909
        %v2196 = vunpack.c.l.b16 %v1910
        %v2197 = vunpack.c.h.b16 %v1910
        %v2198 = vunpack.c.l.b16 %v1911
        %v2199 = vunpack.c.h.b16 %v1911
        %v2200 = vunpack.c.l.b16 %v1912
        %v2201 = vunpack.c.h.b16 %v1912
        %v2202 = vunpack.c.l.b16 %v1913
        %v2203 = vunpack.c.h.b16 %v1913
        %v2204 = vunpack.c.l.b16 %v1914
        %v2205 = vunpack.c.h.b16 %v1914
        %v2206 = vunpack.c.l.b16 %v1915
        %v2207 = vunpack.c.h.b16 %v1915
        %v2208 = vunpack.c.l.b16 %v1916
        %v2209 = vunpack.c.h.b16 %v1916
        %v2210 = vunpack.c.l.b16 %v1917
        %v2211 = vunpack.c.h.b16 %v1917
        %v2212 = vunpack.c.l.b16 %v1918
        %v2213 = vunpack.c.h.b16 %v1918
        %v2214 = vunpack.c.l.b16 %v1919
        %v2215 = vunpack.c.h.b16 %v1919
        %v2216 = vunpack.c.l.b16 %v1920
        %v2217 = vunpack.c.h.b16 %v1920
        %v2218 = vunpack.c.l.b16 %v1921
        %v2219 = vunpack.c.h.b16 %v1921
        %v2220 = vunpack.c.l.b16 %v1922
        %v2221 = vunpack.c.h.b16 %v1922
        %v2222 = vunpack.c.l.b16 %v1923
        %v2223 = vunpack.c.h.b16 %v1923
        %v2224 = vunpack.c.l.b16 %v1924
        %v2225 = vunpack.c.h.b16 %v1924
        %v2226 = vunpack.c.l.b16 %v1925
        %v2227 = vunpack.c.h.b16 %v1925
        %v2228 = vunpack.c.l.b16 %v1926
        %v2229 = vunpack.c.h.b16 %v1926
        %v2230 = vunpack.c.l.b16 %v1927
        %v2231 = vunpack.c.h.b16 %v1927
        %v2232 = vunpack.c.l.b16 %v1928
        %v2233 = vunpack.c.h.b16 %v1928
        %v2234 = vunpack.c.l.b16 %v1929
        %v2235 = vunpack.c.h.b16 %v1929
        %v2236 = vunpack.c.l.b16 %v1930
        %v2237 = vunpack.c.h.b16 %v1930
        %v2238 = vunpack.c.l.b16 %v1931
        %v2239 = vunpack.c.h.b16 %v1931
        %v2240 = vunpack.c.l.b16 %v1932
        %v2241 = vunpack.c.h.b16 %v1932
        %v2242 = vunpack.c.l.b16 %v1933
        %v2243 = vunpack.c.h.b16 %v1933
        %v2244 = vunpack.c.l.b16 %v1934
        %v2245 = vunpack.c.h.b16 %v1934
        %v2246 = vunpack.c.l.b16 %v1935
        %v2247 = vunpack.c.h.b16 %v1935
        %v2248 = vunpack.c.l.b16 %v1936
        %v2249 = vunpack.c.h.b16 %v1936
        %v2250 = vunpack.c.l.b16 %v1937
        %v2251 = vunpack.c.h.b16 %v1937
        %v2252 = vunpack.c.l.b16 %v1938
        %v2253 = vunpack.c.h.b16 %v1938
        %v2254 = vunpack.c.l.b16 %v1939
        %v2255 = vunpack.c.h.b16 %v1939
        %v2256 = vunpack.c.l.b16 %v1940
        %v2257 = vunpack.c.h.b16 %v1940
        %v2258 = vunpack.c.l.b16 %v1941
        %v2259 = vunpack.c.h.b16 %v1941
        %v2260 = vunpack.c.l.b16 %v1942
        %v2261 = vunpack.c.h.b16 %v1942
        %v2262 = vunpack.c.l.b16 %v1943
        %v2263 = vunpack.c.h.b16 %v1943
        %v2264 = vunpack.c.l.b16 %v1944
        %v2265 = vunpack.c.h.b16 %v1944
        %v2266 = vunpack.c.l.b16 %v1945
        %v2267 = vunpack.c.h.b16 %v1945
        %v2268 = vunpack.c.l.b16 %v1946
        %v2269 = vunpack.c.h.b16 %v1946
        %v2270 = vunpack.c.l.b16 %v1947
        %v2271 = vunpack.c.h.b16 %v1947
        %v2272 = vunpack.c.l.b16 %v1948
        %v2273 = vunpack.c.h.b16 %v1948
        %v2274 = vunpack.c.l.b16 %v1949
        %v2275 = vunpack.c.h.b16 %v1949
        %v2276 = vunpack.c.l.b16 %v1950
        %v2277 = vunpack.c.h.b16 %v1950
        %v2278 = vunpack.c.l.b16 %v1951
        %v2279 = vunpack.c.h.b16 %v1951
        %v2280 = vunpack.c.l.b16 %v1952
        %v2281 = vunpack.c.h.b16 %v1952
        %v2282 = vunpack.c.l.b16 %v1953
        %v2283 = vunpack.c.h.b16 %v1953
        %v2284 = vunpack.c.l.b16 %v1954
        %v2285 = vunpack.c.h.b16 %v1954
        %v2286 = vunpack.c.l.b16 %v1955
        %v2287 = vunpack.c.h.b16 %v1955
        %v2288 = vunpack.c.l.b16 %v1956
        %v2289 = vunpack.c.h.b16 %v1956
        %v2290 = vunpack.c.l.b16 %v1957
        %v2291 = vunpack.c.h.b16 %v1957
        %v2292 = vunpack.c.l.b16 %v1958
        %v2293 = vunpack.c.h.b16 %v1958
        %v2294 = vunpack.c.l.b16 %v1959
        %v2295 = vunpack.c.h.b16 %v1959
        %v2296 = vunpack.c.l.b16 %v1960
        %v2297 = vunpack.c.h.b16 %v1960
        %v2298 = vunpack.c.l.b16 %v1961
        %v2299 = vunpack.c.h.b16 %v1961
        %v2300 = vunpack.c.l.b16 %v1962
        %v2301 = vunpack.c.h.b16 %v1962
        %v2302 = vunpack.c.l.b16 %v1963
        %v2303 = vunpack.c.h.b16 %v1963
        %v2304 = vunpack.c.l.b16 %v1964
        %v2305 = vunpack.c.h.b16 %v1964
        %v2306 = vunpack.c.l.b16 %v1965
        %v2307 = vunpack.c.h.b16 %v1965
        %v2308 = vunpack.c.l.b16 %v1966
        %v2309 = vunpack.c.h.b16 %v1966
        %v2310 = vunpack.c.l.b16 %v1967
        %v2311 = vunpack.c.h.b16 %v1967
        %v2312 = vunpack.c.l.b16 %v1968
        %v2313 = vunpack.c.h.b16 %v1968
        %v2314 = vunpack.c.l.b16 %v1969
        %v2315 = vunpack.c.h.b16 %v1969
        %v2316 = vunpack.c.l.b16 %v1970
        %v2317 = vunpack.c.h.b16 %v1970
        %v2318 = vunpack.c.l.b16 %v1971
        %v2319 = vunpack.c.h.b16 %v1971
        %v2320 = vunpack.c.l.b16 %v1972
        %v2321 = vunpack.c.h.b16 %v1972
        %v2322 = vunpack.c.l.b16 %v1973
        %v2323 = vunpack.c.h.b16 %v1973
        %v2324 = vunpack.c.l.b16 %v1974
        %v2325 = vunpack.c.h.b16 %v1974
        %v2326 = vunpack.c.l.b16 %v1975
        %v2327 = vunpack.c.h.b16 %v1975
        %v2328 = vunpack.c.l.b16 %v1976
        %v2329 = vunpack.c.h.b16 %v1976
        %v2330 = vunpack.c.l.b16 %v1977
        %v2331 = vunpack.c.h.b16 %v1977
        %v2332 = vunpack.c.l.b16 %v1978
        %v2333 = vunpack.c.h.b16 %v1978
        %v2334 = vunpack.c.l.b16 %v1979
        %v2335 = vunpack.c.h.b16 %v1979
        %v2336 = vunpack.c.l.b16 %v1980
        %v2337 = vunpack.c.h.b16 %v1980
        %v2338 = vunpack.c.l.b16 %v1981
        %v2339 = vunpack.c.h.b16 %v1981
        %v2340 = vunpack.c.l.b16 %v1982
        %v2341 = vunpack.c.h.b16 %v1982
        %v2342 = vunpack.c.l.b16 %v1983
        %v2343 = vunpack.c.h.b16 %v1983
        %v2344 = vunpack.c.l.b16 %v1984
        %v2345 = vunpack.c.h.b16 %v1984
        %v2346 = vunpack.c.l.b16 %v1985
        %v2347 = vunpack.c.h.b16 %v1985
        %v2348 = vunpack.c.l.b16 %v1986
        %v2349 = vunpack.c.h.b16 %v1986
        %v2350 = vunpack.c.l.b16 %v1987
        %v2351 = vunpack.c.h.b16 %v1987
        %v2352 = vunpack.c.l.b16 %v1988
        %v2353 = vunpack.c.h.b16 %v1988
        %v2354 = vunpack.c.l.b16 %v1989
        %v2355 = vunpack.c.h.b16 %v1989
        %v2356 = vunpack.c.l.b16 %v1990
        %v2357 = vunpack.c.h.b16 %v1990
        %v2358 = vunpack.c.l.b16 %v1991
        %v2359 = vunpack.c.h.b16 %v1991
        %v2360 = vunpack.c.l.b16 %v1992
        %v2361 = vunpack.c.h.b16 %v1992
        %v2362 = vunpack.c.l.b16 %v1993
        %v2363 = vunpack.c.h.b16 %v1993
        %v2364 = vunpack.c.l.b16 %v1994
        %v2365 = vunpack.c.h.b16 %v1994
        %v2366 = vunpack.c.l.b16 %v1995
        %v2367 = vunpack.c.h.b16 %v1995
        %v2368 = vunpack.c.l.b16 %v1996
        %v2369 = vunpack.c.h.b16 %v1996
        %v2370 = vunpack.c.l.b16 %v1997
        %v2371 = vunpack.c.h.b16 %v1997
        %v2372 = vunpack.c.l.b16 %v1998
        %v2373 = vunpack.c.h.b16 %v1998
        %v2374 = vunpack.c.l.b16 %v1999
        %v2375 = vunpack.c.h.b16 %v1999
        %v2376 = vunpack.c.l.b16 %v2000
        %v2377 = vunpack.c.h.b16 %v2000
        %v2378 = vunpack.c.l.b16 %v2001
        %v2379 = vunpack.c.h.b16 %v2001
        %v2380 = vunpack.c.l.b16 %v2002
        %v2381 = vunpack.c.h.b16 %v2002
        %v2382 = vunpack.c.l.b16 %v2003
        %v2383 = vunpack.c.h.b16 %v2003
        %v2384 = vunpack.c.l.b16 %v2004
        %v2385 = vunpack.c.h.b16 %v2004
        %v2386 = vunpack.c.l.b16 %v2005
        %v2387 = vunpack.c.h.b16 %v2005
        %v2388 = vunpack.c.l.b16 %v2006
        %v2389 = vunpack.c.h.b16 %v2006
        %v2390 = vunpack.c.l.b16 %v2007
        %v2391 = vunpack.c.h.b16 %v2007
        %v2392 = vpack.c.b16 %v2138, %v2136
        %v2393 = vpack.c.b16 %v2139, %v2137
        %v2394 = vpack.c.b16 %v2142, %v2140
        %v2395 = vpack.c.b16 %v2143, %v2141
        %v2396 = vpack.c.b16 %v2146, %v2144
        %v2397 = vpack.c.b16 %v2147, %v2145
        %v2398 = vpack.c.b16 %v2150, %v2148
        %v2399 = vpack.c.b16 %v2151, %v2149
        %v2400 = vpack.c.b16 %v2154, %v2152
        %v2401 = vpack.c.b16 %v2155, %v2153
        %v2402 = vpack.c.b16 %v2158, %v2156
        %v2403 = vpack.c.b16 %v2159, %v2157
        %v2404 = vpack.c.b16 %v2162, %v2160
        %v2405 = vpack.c.b16 %v2163, %v2161
        %v2406 = vpack.c.b16 %v2166, %v2164
        %v2407 = vpack.c.b16 %v2167, %v2165
        %v2408 = vpack.c.b16 %v2170, %v2168
        %v2409 = vpack.c.b16 %v2171, %v2169
        %v2410 = vpack.c.b16 %v2174, %v2172
        %v2411 = vpack.c.b16 %v2175, %v2173
        %v2412 = vpack.c.b16 %v2178, %v2176
        %v2413 = vpack.c.b16 %v2179, %v2177
        %v2414 = vpack.c.b16 %v2182, %v2180
        %v2415 = vpack.c.b16 %v2183, %v2181
        %v2416 = vpack.c.b16 %v2186, %v2184
        %v2417 = vpack.c.b16 %v2187, %v2185
        %v2418 = vpack.c.b16 %v2190, %v2188
        %v2419 = vpack.c.b16 %v2191, %v2189
        %v2420 = vpack.c.b16 %v2194, %v2192
        %v2421 = vpack.c.b16 %v2195, %v2193
        %v2422 = vpack.c.b16 %v2198, %v2196
        %v2423 = vpack.c.b16 %v2199, %v2197
        %v2424 = vpack.c.b16 %v2202, %v2200
        %v2425 = vpack.c.b16 %v2203, %v2201
        %v2426 = vpack.c.b16 %v2206, %v2204
        %v2427 = vpack.c.b16 %v2207, %v2205
        %v2428 = vpack.c.b16 %v2210, %v2208
        %v2429 = vpack.c.b16 %v2211, %v2209
        %v2430 = vpack.c.b16 %v2214, %v2212
        %v2431 = vpack.c.b16 %v2215, %v2213
        %v2432 = vpack.c.b16 %v2218, %v2216
        %v2433 = vpack.c.b16 %v2219, %v2217
        %v2434 = vpack.c.b16 %v2222, %v2220
        %v2435 = vpack.c.b16 %v2223, %v2221
        %v2436 = vpack.c.b16 %v2226, %v2224
        %v2437 = vpack.c.b16 %v2227, %v2225
        %v2438 = vpack.c.b16 %v2230, %v2228
        %v2439 = vpack.c.b16 %v2231, %v2229
        %v2440 = vpack.c.b16 %v2234, %v2232
        %v2441 = vpack.c.b16 %v2235, %v2233
        %v2442 = vpack.c.b16 %v2238, %v2236
        %v2443 = vpack.c.b16 %v2239, %v2237
        %v2444 = vpack.c.b16 %v2242, %v2240
        %v2445 = vpack.c.b16 %v2243, %v2241
        %v2446 = vpack.c.b16 %v2246, %v2244
        %v2447 = vpack.c.b16 %v2247, %v2245
        %v2448 = vpack.c.b16 %v2250, %v2248
        %v2449 = vpack.c.b16 %v2251, %v2249
        %v2450 = vpack.c.b16 %v2254, %v2252
        %v2451 = vpack.c.b16 %v2255, %v2253
        %v2452 = vpack.c.b16 %v2258, %v2256
        %v2453 = vpack.c.b16 %v2259, %v2257
        %v2454 = vpack.c.b16 %v2262, %v2260
        %v2455 = vpack.c.b16 %v2263, %v2261
        %v2456 = vpack.c.b16 %v2266, %v2264
        %v2457 = vpack.c.b16 %v2267, %v2265
        %v2458 = vpack.c.b16 %v2270, %v2268
        %v2459 = vpack.c.b16 %v2271, %v2269
        %v2460 = vpack.c.b16 %v2274, %v2272
        %v2461 = vpack.c.b16 %v2275, %v2273
        %v2462 = vpack.c.b16 %v2278, %v2276
        %v2463 = vpack.c.b16 %v2279, %v2277
        %v2464 = vpack.c.b16 %v2282, %v2280
        %v2465 = vpack.c.b16 %v2283, %v2281
        %v2466 = vpack.c.b16 %v2286, %v2284
        %v2467 = vpack.c.b16 %v2287, %v2285
        %v2468 = vpack.c.b16 %v2290, %v2288
        %v2469 = vpack.c.b16 %v2291, %v2289
        %v2470 = vpack.c.b16 %v2294, %v2292
        %v2471 = vpack.c.b16 %v2295, %v2293
        %v2472 = vpack.c.b16 %v2298, %v2296
        %v2473 = vpack.c.b16 %v2299, %v2297
        %v2474 = vpack.c.b16 %v2302, %v2300
        %v2475 = vpack.c.b16 %v2303, %v2301
        %v2476 = vpack.c.b16 %v2306, %v2304
        %v2477 = vpack.c.b16 %v2307, %v2305
        %v2478 = vpack.c.b16 %v2310, %v2308
        %v2479 = vpack.c.b16 %v2311, %v2309
        %v2480 = vpack.c.b16 %v2314, %v2312
        %v2481 = vpack.c.b16 %v2315, %v2313
        %v2482 = vpack.c.b16 %v2318, %v2316
        %v2483 = vpack.c.b16 %v2319, %v2317
        %v2484 = vpack.c.b16 %v2322, %v2320
        %v2485 = vpack.c.b16 %v2323, %v2321
        %v2486 = vpack.c.b16 %v2326, %v2324
        %v2487 = vpack.c.b16 %v2327, %v2325
        %v2488 = vpack.c.b16 %v2330, %v2328
        %v2489 = vpack.c.b16 %v2331, %v2329
        %v2490 = vpack.c.b16 %v2334, %v2332
        %v2491 = vpack.c.b16 %v2335, %v2333
        %v2492 = vpack.c.b16 %v2338, %v2336
        %v2493 = vpack.c.b16 %v2339, %v2337
        %v2494 = vpack.c.b16 %v2342, %v2340
        %v2495 = vpack.c.b16 %v2343, %v2341
        %v2496 = vpack.c.b16 %v2346, %v2344
        %v2497 = vpack.c.b16 %v2347, %v2345
        %v2498 = vpack.c.b16 %v2350, %v2348
        %v2499 = vpack.c.b16 %v2351, %v2349
        %v2500 = vpack.c.b16 %v2354, %v2352
        %v2501 = vpack.c.b16 %v2355, %v2353
        %v2502 = vpack.c.b16 %v2358, %v2356
        %v2503 = vpack.c.b16 %v2359, %v2357
        %v2504 = vpack.c.b16 %v2362, %v2360
        %v2505 = vpack.c.b16 %v2363, %v2361
        %v2506 = vpack.c.b16 %v2366, %v2364
        %v2507 = vpack.c.b16 %v2367, %v2365
        %v2508 = vpack.c.b16 %v2370, %v2368
        %v2509 = vpack.c.b16 %v2371, %v2369
        %v2510 = vpack.c.b16 %v2374, %v2372
        %v2511 = vpack.c.b16 %v2375, %v2373
        %v2512 = vpack.c.b16 %v2378, %v2376
        %v2513 = vpack.c.b16 %v2379, %v2377
        %v2514 = vpack.c.b16 %v2382, %v2380
        %v2515 = vpack.c.b16 %v2383, %v2381
        %v2516 = vpack.c.b16 %v2386, %v2384
        %v2517 = vpack.c.b16 %v2387, %v2385
        %v2518 = vpack.c.b16 %v2390, %v2388
        %v2519 = vpack.c.b16 %v2391, %v2389
        %2648 = vmatprep.subr.bf16.mxu0 %v2407
        %2649 = vmatpush1.bf16.msra.mxu0 %v2406
        %2650 = vmatprep.subr.bf16.mxu0 %v2405
        %2651 = vmatpush1.bf16.msra.mxu0 %v2404
        %2652 = vmatprep.subr.bf16.mxu0 %v2403
        %2653 = vmatpush1.bf16.msra.mxu0 %v2402
        %2654 = vmatprep.subr.bf16.mxu0 %v2401
        %2655 = vmatpush1.bf16.msra.mxu0 %v2400
        %2656 = vmatprep.subr.bf16.mxu0 %v2399
        %2657 = vmatpush1.bf16.msra.mxu0 %v2398
        %2658 = vmatprep.subr.bf16.mxu0 %v2397
        %2659 = vmatpush1.bf16.msra.mxu0 %v2396
        %2660 = vmatprep.subr.bf16.mxu0 %v2395
        %2661 = vmatpush1.bf16.msra.mxu0 %v2394
        %2662 = vmatprep.subr.bf16.mxu0 %v2393
        %2663 = vmatpush1.bf16.msra.mxu0 %v2392
        %2664 = vmatprep.subr.bf16.mxu0 %v2423
        %2665 = vmatpush2.bf16.msra.mxu0 %v2422
        %2666 = vmatprep.subr.bf16.mxu0 %v2421
        %2667 = vmatpush2.bf16.msra.mxu0 %v2420
        %2668 = vmatprep.subr.bf16.mxu0 %v2419
        %2669 = vmatpush2.bf16.msra.mxu0 %v2418
        %2670 = vmatprep.subr.bf16.mxu0 %v2417
        %2671 = vmatpush2.bf16.msra.mxu0 %v2416
        %2672 = vmatprep.subr.bf16.mxu0 %v2415
        %2673 = vmatpush2.bf16.msra.mxu0 %v2414
        %2674 = vmatprep.subr.bf16.mxu0 %v2413
        %2675 = vmatpush2.bf16.msra.mxu0 %v2412
        %2676 = vmatprep.subr.bf16.mxu0 %v2411
        %2677 = vmatpush2.bf16.msra.mxu0 %v2410
        %2678 = vmatprep.subr.bf16.mxu0 %v2409
        %2679 = vmatpush2.bf16.msra.mxu0 %v2408
        %2680 = vmatprep.mubr.bf16.mxu0 %v1865
        %2681 = vmatmul.mubr.bf16.gmra.mxu0 %v1864
        %v2682 = vpop.f32.mrf.mxu0
        %v2683 = vadd.f32 0.0, %v2682
        %v2684 = vpop.f32.mrf.mxu0
        %v2685 = vadd.f32 0.0, %v2684
        %v2686 = vpop.f32.mrf.mxu0
        %v2687 = vadd.f32 0.0, %v2686
        %v2688 = vpop.f32.mrf.mxu0
        %v2689 = vadd.f32 0.0, %v2688
        %2690 = vmatprep.mubr.bf16.mxu0 %v1873
        %2691 = vmatmul.mubr.bf16.gmra.mxu0 %v1872
        %v2692 = vpop.f32.mrf.mxu0
        %v2693 = vadd.f32 0.0, %v2692
        %v2694 = vpop.f32.mrf.mxu0
        %v2695 = vadd.f32 0.0, %v2694
        %v2696 = vpop.f32.mrf.mxu0
        %v2697 = vadd.f32 0.0, %v2696
        %v2698 = vpop.f32.mrf.mxu0
        %v2699 = vadd.f32 0.0, %v2698
        %2700 = vdwg.mxu0
        %2701 = vmatprep.subr.bf16.mxu0 %v2439
        %2702 = vmatpush1.bf16.msra.mxu0 %v2438
        %2703 = vmatprep.subr.bf16.mxu0 %v2437
        %2704 = vmatpush1.bf16.msra.mxu0 %v2436
        %2705 = vmatprep.subr.bf16.mxu0 %v2435
        %2706 = vmatpush1.bf16.msra.mxu0 %v2434
        %2707 = vmatprep.subr.bf16.mxu0 %v2433
        %2708 = vmatpush1.bf16.msra.mxu0 %v2432
        %2709 = vmatprep.subr.bf16.mxu0 %v2431
        %2710 = vmatpush1.bf16.msra.mxu0 %v2430
        %2711 = vmatprep.subr.bf16.mxu0 %v2429
        %2712 = vmatpush1.bf16.msra.mxu0 %v2428
        %2713 = vmatprep.subr.bf16.mxu0 %v2427
        %2714 = vmatpush1.bf16.msra.mxu0 %v2426
        %2715 = vmatprep.subr.bf16.mxu0 %v2425
        %2716 = vmatpush1.bf16.msra.mxu0 %v2424
        %2717 = vmatprep.subr.bf16.mxu0 %v2455
        %2718 = vmatpush2.bf16.msra.mxu0 %v2454
        %2719 = vmatprep.subr.bf16.mxu0 %v2453
        %2720 = vmatpush2.bf16.msra.mxu0 %v2452
        %2721 = vmatprep.subr.bf16.mxu0 %v2451
        %2722 = vmatpush2.bf16.msra.mxu0 %v2450
        %2723 = vmatprep.subr.bf16.mxu0 %v2449
        %2724 = vmatpush2.bf16.msra.mxu0 %v2448
        %2725 = vmatprep.subr.bf16.mxu0 %v2447
        %2726 = vmatpush2.bf16.msra.mxu0 %v2446
        %2727 = vmatprep.subr.bf16.mxu0 %v2445
        %2728 = vmatpush2.bf16.msra.mxu0 %v2444
        %2729 = vmatprep.subr.bf16.mxu0 %v2443
        %2730 = vmatpush2.bf16.msra.mxu0 %v2442
        %2731 = vmatprep.subr.bf16.mxu0 %v2441
        %2732 = vmatpush2.bf16.msra.mxu0 %v2440
        %2733 = vmatprep.mubr.bf16.mxu0 %v1867
        %2734 = vmatmul.mubr.bf16.gmra.mxu0 %v1866
        %v2735 = vpop.f32.mrf.mxu0
        %v2736 = vadd.f32 %v2683, %v2735
        %v2737 = vpop.f32.mrf.mxu0
        %v2738 = vadd.f32 %v2685, %v2737
        %v2739 = vpop.f32.mrf.mxu0
        %v2740 = vadd.f32 %v2687, %v2739
        %v2741 = vpop.f32.mrf.mxu0
        %v2742 = vadd.f32 %v2689, %v2741
        %2743 = vmatprep.mubr.bf16.mxu0 %v1875
        %2744 = vmatmul.mubr.bf16.gmra.mxu0 %v1874
        %v2745 = vpop.f32.mrf.mxu0
        %v2746 = vadd.f32 %v2693, %v2745
        %v2747 = vpop.f32.mrf.mxu0
        %v2748 = vadd.f32 %v2695, %v2747
        %v2749 = vpop.f32.mrf.mxu0
        %v2750 = vadd.f32 %v2697, %v2749
        %v2751 = vpop.f32.mrf.mxu0
        %v2752 = vadd.f32 %v2699, %v2751
        %2753 = vdwg.mxu0
        %2754 = vmatprep.subr.bf16.mxu0 %v2471
        %2755 = vmatpush1.bf16.msra.mxu0 %v2470
        %2756 = vmatprep.subr.bf16.mxu0 %v2469
        %2757 = vmatpush1.bf16.msra.mxu0 %v2468
        %2758 = vmatprep.subr.bf16.mxu0 %v2467
        %2759 = vmatpush1.bf16.msra.mxu0 %v2466
        %2760 = vmatprep.subr.bf16.mxu0 %v2465
        %2761 = vmatpush1.bf16.msra.mxu0 %v2464
        %2762 = vmatprep.subr.bf16.mxu0 %v2463
        %2763 = vmatpush1.bf16.msra.mxu0 %v2462
        %2764 = vmatprep.subr.bf16.mxu0 %v2461
        %2765 = vmatpush1.bf16.msra.mxu0 %v2460
        %2766 = vmatprep.subr.bf16.mxu0 %v2459
        %2767 = vmatpush1.bf16.msra.mxu0 %v2458
        %2768 = vmatprep.subr.bf16.mxu0 %v2457
        %2769 = vmatpush1.bf16.msra.mxu0 %v2456
        %2770 = vmatprep.subr.bf16.mxu0 %v2487
        %2771 = vmatpush2.bf16.msra.mxu0 %v2486
        %2772 = vmatprep.subr.bf16.mxu0 %v2485
        %2773 = vmatpush2.bf16.msra.mxu0 %v2484
        %2774 = vmatprep.subr.bf16.mxu0 %v2483
        %2775 = vmatpush2.bf16.msra.mxu0 %v2482
        %2776 = vmatprep.subr.bf16.mxu0 %v2481
        %2777 = vmatpush2.bf16.msra.mxu0 %v2480
        %2778 = vmatprep.subr.bf16.mxu0 %v2479
        %2779 = vmatpush2.bf16.msra.mxu0 %v2478
        %2780 = vmatprep.subr.bf16.mxu0 %v2477
        %2781 = vmatpush2.bf16.msra.mxu0 %v2476
        %2782 = vmatprep.subr.bf16.mxu0 %v2475
        %2783 = vmatpush2.bf16.msra.mxu0 %v2474
        %2784 = vmatprep.subr.bf16.mxu0 %v2473
        %2785 = vmatpush2.bf16.msra.mxu0 %v2472
        %2786 = vmatprep.mubr.bf16.mxu0 %v1869
        %2787 = vmatmul.mubr.bf16.gmra.mxu0 %v1868
        %v2788 = vpop.f32.mrf.mxu0
        %v2789 = vadd.f32 %v2736, %v2788
        %v2790 = vpop.f32.mrf.mxu0
        %v2791 = vadd.f32 %v2738, %v2790
        %v2792 = vpop.f32.mrf.mxu0
        %v2793 = vadd.f32 %v2740, %v2792
        %v2794 = vpop.f32.mrf.mxu0
        %v2795 = vadd.f32 %v2742, %v2794
        %2796 = vmatprep.mubr.bf16.mxu0 %v1877
        %2797 = vmatmul.mubr.bf16.gmra.mxu0 %v1876
        %v2798 = vpop.f32.mrf.mxu0
        %v2799 = vadd.f32 %v2746, %v2798
        %v2800 = vpop.f32.mrf.mxu0
        %v2801 = vadd.f32 %v2748, %v2800
        %v2802 = vpop.f32.mrf.mxu0
        %v2803 = vadd.f32 %v2750, %v2802
        %v2804 = vpop.f32.mrf.mxu0
        %v2805 = vadd.f32 %v2752, %v2804
        %2806 = vdwg.mxu0
        %2807 = vmatprep.subr.bf16.mxu0 %v2503
        %2808 = vmatpush1.bf16.msra.mxu0 %v2502
        %2809 = vmatprep.subr.bf16.mxu0 %v2501
        %2810 = vmatpush1.bf16.msra.mxu0 %v2500
        %2811 = vmatprep.subr.bf16.mxu0 %v2499
        %2812 = vmatpush1.bf16.msra.mxu0 %v2498
        %2813 = vmatprep.subr.bf16.mxu0 %v2497
        %2814 = vmatpush1.bf16.msra.mxu0 %v2496
        %2815 = vmatprep.subr.bf16.mxu0 %v2495
        %2816 = vmatpush1.bf16.msra.mxu0 %v2494
        %2817 = vmatprep.subr.bf16.mxu0 %v2493
        %2818 = vmatpush1.bf16.msra.mxu0 %v2492
        %2819 = vmatprep.subr.bf16.mxu0 %v2491
        %2820 = vmatpush1.bf16.msra.mxu0 %v2490
        %2821 = vmatprep.subr.bf16.mxu0 %v2489
        %2822 = vmatpush1.bf16.msra.mxu0 %v2488
        %2823 = vmatprep.subr.bf16.mxu0 %v2519
        %2824 = vmatpush2.bf16.msra.mxu0 %v2518
        %2825 = vmatprep.subr.bf16.mxu0 %v2517
        %2826 = vmatpush2.bf16.msra.mxu0 %v2516
        %2827 = vmatprep.subr.bf16.mxu0 %v2515
        %2828 = vmatpush2.bf16.msra.mxu0 %v2514
        %2829 = vmatprep.subr.bf16.mxu0 %v2513
        %2830 = vmatpush2.bf16.msra.mxu0 %v2512
        %2831 = vmatprep.subr.bf16.mxu0 %v2511
        %2832 = vmatpush2.bf16.msra.mxu0 %v2510
        %2833 = vmatprep.subr.bf16.mxu0 %v2509
        %2834 = vmatpush2.bf16.msra.mxu0 %v2508
        %2835 = vmatprep.subr.bf16.mxu0 %v2507
        %2836 = vmatpush2.bf16.msra.mxu0 %v2506
        %2837 = vmatprep.subr.bf16.mxu0 %v2505
        %2838 = vmatpush2.bf16.msra.mxu0 %v2504
        %2839 = vmatprep.mubr.bf16.mxu0 %v1871
        %2840 = vmatmul.mubr.bf16.gmra.mxu0 %v1870
        %v2841 = vpop.f32.mrf.mxu0
        %v2842 = vadd.f32 %v2789, %v2841
        %v2843 = vpop.f32.mrf.mxu0
        %v2844 = vadd.f32 %v2791, %v2843
        %v2845 = vpop.f32.mrf.mxu0
        %v2846 = vadd.f32 %v2793, %v2845
        %v2847 = vpop.f32.mrf.mxu0
        %v2848 = vadd.f32 %v2795, %v2847
        %2849 = vmatprep.mubr.bf16.mxu0 %v1879
        %2850 = vmatmul.mubr.bf16.gmra.mxu0 %v1878
        %v2851 = vpop.f32.mrf.mxu0
        %v2852 = vadd.f32 %v2799, %v2851
        %v2853 = vpop.f32.mrf.mxu0
        %v2854 = vadd.f32 %v2801, %v2853
        %v2855 = vpop.f32.mrf.mxu0
        %v2856 = vadd.f32 %v2803, %v2855
        %v2857 = vpop.f32.mrf.mxu0
        %v2858 = vadd.f32 %v2805, %v2857
        %2859 = vdwg.mxu0
        %v2860 = vld [vmem:[%s4] sm:$0xf]
        %v2861 = vld [vmem:[%s4 + $0x4] sm:$0xf]
        %v2862 = vld [vmem:[%s4 + $0x8] sm:$0xf]
        %v2863 = vld [vmem:[%s4 + $0xc] sm:$0xf]
        %v2864 = vld [vmem:[%s4 + $0x10] sm:$0xf]
        %v2865 = vld [vmem:[%s4 + $0x14] sm:$0xf]
        %v2866 = vld [vmem:[%s4 + $0x18] sm:$0xf]
        %v2867 = vld [vmem:[%s4 + $0x1c] sm:$0xf]
        %2868 = vrot.lane.b32.xlu0 %v2842, 17
        %v2869 = vpop.permute.xlu0 %2868
        %2870 = vrot.lane.b32.xlu0 %v2846, 17
        %v2871 = vpop.permute.xlu0 %2870
        %2872 = vrot.lane.b32.xlu0 %v2852, 17
        %v2873 = vpop.permute.xlu0 %2872
        %2874 = vrot.lane.b32.xlu0 %v2856, 17
        %v2875 = vpop.permute.xlu0 %2874
        %2876 = vrot.lane.b32.xlu0 %v2844, 17
        %v2877 = vpop.permute.xlu0 %2876
        %2878 = vrot.lane.b32.xlu0 %v2848, 17
        %v2879 = vpop.permute.xlu0 %2878
        %2880 = vrot.lane.b32.xlu0 %v2854, 17
        %v2881 = vpop.permute.xlu0 %2880
        %2882 = vrot.lane.b32.xlu0 %v2858, 17
        %v2883 = vpop.permute.xlu0 %2882
        %vm2884 = vcmp.lt.s32.totalorder %v355, 17
        %v2885 = vsel %vm2884, %v2869, %v2877
        %v2886 = vsel %vm2884, %v2871, %v2879
        %v2887 = vsel %vm2884, %v2873, %v2881
        %v2888 = vsel %vm2884, %v2875, %v2883
        %v2889 = vsel %vm2884, %v2877, %v2869
        %v2890 = vsel %vm2884, %v2879, %v2871
        %v2891 = vsel %vm2884, %v2881, %v2873
        %v2892 = vsel %vm2884, %v2883, %v2875
        %v2893 = vpack.c.bf16 %v2890, %v2889
        %v2894 = vpack.c.bf16 %v2886, %v2885
        %v2895 = vpack.c.bf16 %v2892, %v2891
        %v2896 = vpack.c.bf16 %v2888, %v2887
        %s2897 = scalar_lea.vmem %s4, 32
        %v2898 = vld [vmem:[%s2897] sm:$0xf]
        %v2899 = vld [vmem:[%s2897 + $0x4] sm:$0xf]
        %v2900 = vld [vmem:[%s2897 + $0x8] sm:$0xf]
        %v2901 = vld [vmem:[%s2897 + $0xc] sm:$0xf]
        %v2902 = vld [vmem:[%s2897 + $0x10] sm:$0xf]
        %v2903 = vld [vmem:[%s2897 + $0x14] sm:$0xf]
        %v2904 = vld [vmem:[%s2897 + $0x18] sm:$0xf]
        %v2905 = vld [vmem:[%s2897 + $0x1c] sm:$0xf]
        %2906 = vrot.lane.b32.xlu0 %v2842, 16
        %v2907 = vpop.permute.xlu0 %2906
        %2908 = vrot.lane.b32.xlu0 %v2846, 16
        %v2909 = vpop.permute.xlu0 %2908
        %2910 = vrot.lane.b32.xlu0 %v2852, 16
        %v2911 = vpop.permute.xlu0 %2910
        %2912 = vrot.lane.b32.xlu0 %v2856, 16
        %v2913 = vpop.permute.xlu0 %2912
        %2914 = vrot.lane.b32.xlu0 %v2844, 16
        %v2915 = vpop.permute.xlu0 %2914
        %2916 = vrot.lane.b32.xlu0 %v2848, 16
        %v2917 = vpop.permute.xlu0 %2916
        %2918 = vrot.lane.b32.xlu0 %v2854, 16
        %v2919 = vpop.permute.xlu0 %2918
        %2920 = vrot.lane.b32.xlu0 %v2858, 16
        %v2921 = vpop.permute.xlu0 %2920
        %vm2922 = vcmp.lt.s32.totalorder %v355, 16
        %v2923 = vsel %vm2922, %v2907, %v2915
        %v2924 = vsel %vm2922, %v2909, %v2917
        %v2925 = vsel %vm2922, %v2911, %v2919
        %v2926 = vsel %vm2922, %v2913, %v2921
        %v2927 = vsel %vm2922, %v2915, %v2907
        %v2928 = vsel %vm2922, %v2917, %v2909
        %v2929 = vsel %vm2922, %v2919, %v2911
        %v2930 = vsel %vm2922, %v2921, %v2913
        %v2931 = vpack.c.bf16 %v2928, %v2927
        %v2932 = vpack.c.bf16 %v2924, %v2923
        %v2933 = vpack.c.bf16 %v2930, %v2929
        %v2934 = vpack.c.bf16 %v2926, %v2925
        %v2943 = vunpack.c.l.b16 %v2898
        %v2944 = vunpack.c.l.b16 %v2899
        %v2945 = vunpack.c.l.b16 %v2900
        %v2946 = vunpack.c.l.b16 %v2901
        %v2947 = vunpack.c.l.b16 %v2902
        %v2948 = vunpack.c.l.b16 %v2903
        %v2949 = vunpack.c.l.b16 %v2904
        %v2950 = vunpack.c.l.b16 %v2905
        %v2951 = vpack.c.b16 %v2944, %v2943
        %v2952 = vpack.c.b16 %v2946, %v2945
        %v2953 = vpack.c.b16 %v2948, %v2947
        %v2954 = vpack.c.b16 %v2950, %v2949
        %vm2955 = vcmask 261120
        %v2957 = vsel %vm2955, %v2951, 0
        %v2960 = vsel %vm2955, %v2952, 0
        %v2963 = vsel %vm2955, %v2953, 0
        %v2966 = vsel %vm2955, %v2954, 0
        %2968 = vmatprep.subr.bf16.mxu0 0
        %2969 = vmatpush1.bf16.msra.mxu0 0
        %2970 = vmatprep.subr.bf16.mxu0 0
        %2971 = vmatpush1.bf16.msra.mxu0 0
        %2972 = vmatprep.subr.bf16.mxu0 0
        %2973 = vmatpush1.bf16.msra.mxu0 0
        %2974 = vmatprep.subr.bf16.mxu0 0
        %2975 = vmatpush1.bf16.msra.mxu0 0
        %2976 = vmatprep.subr.bf16.mxu0 0
        %2977 = vmatpush1.bf16.msra.mxu0 0
        %2978 = vmatprep.subr.bf16.mxu0 0
        %2979 = vmatpush1.bf16.msra.mxu0 0
        %2980 = vmatprep.subr.bf16.mxu0 %v2934
        %2981 = vmatpush1.bf16.msra.mxu0 %v2933
        %2982 = vmatprep.subr.bf16.mxu0 %v2932
        %2983 = vmatpush1.bf16.msra.mxu0 %v2931
        %2984 = vmatprep.subr.bf16.mxu0 0
        %2985 = vmatpush2.bf16.msra.mxu0 0
        %2986 = vmatprep.subr.bf16.mxu0 0
        %2987 = vmatpush2.bf16.msra.mxu0 0
        %2988 = vmatprep.subr.bf16.mxu0 0
        %2989 = vmatpush2.bf16.msra.mxu0 0
        %2990 = vmatprep.subr.bf16.mxu0 0
        %2991 = vmatpush2.bf16.msra.mxu0 0
        %2992 = vmatprep.subr.bf16.mxu0 0
        %2993 = vmatpush2.bf16.msra.mxu0 0
        %2994 = vmatprep.subr.bf16.mxu0 0
        %2995 = vmatpush2.bf16.msra.mxu0 0
        %2996 = vmatprep.subr.bf16.mxu0 0
        %2997 = vmatpush2.bf16.msra.mxu0 0
        %2998 = vmatprep.subr.bf16.mxu0 0
        %2999 = vmatpush2.bf16.msra.mxu0 0
        %3000 = vmatprep.mubr.bf16.mxu0 0
        %3001 = vmatmul.mubr.bf16.gmra.mxu0 %v2957
        %v3002 = vpop.f32.mrf.mxu0
        %v3003 = vadd.f32 0.0, %v3002
        %v3004 = vpop.f32.mrf.mxu0
        %v3005 = vadd.f32 0.0, %v3004
        %v3006 = vpop.f32.mrf.mxu0
        %v3007 = vadd.f32 0.0, %v3006
        %v3008 = vpop.f32.mrf.mxu0
        %v3009 = vadd.f32 0.0, %v3008
        %3010 = vmatprep.mubr.bf16.mxu0 0
        %3011 = vmatmul.mubr.bf16.gmra.mxu0 %v2960
        %v3012 = vpop.f32.mrf.mxu0
        %v3013 = vadd.f32 0.0, %v3012
        %v3014 = vpop.f32.mrf.mxu0
        %v3015 = vadd.f32 0.0, %v3014
        %v3016 = vpop.f32.mrf.mxu0
        %v3017 = vadd.f32 0.0, %v3016
        %v3018 = vpop.f32.mrf.mxu0
        %v3019 = vadd.f32 0.0, %v3018
        %3020 = vmatprep.mubr.bf16.mxu0 0
        %3021 = vmatmul.mubr.bf16.gmra.mxu0 %v2963
        %v3022 = vpop.f32.mrf.mxu0
        %v3023 = vadd.f32 0.0, %v3022
        %v3024 = vpop.f32.mrf.mxu0
        %v3025 = vadd.f32 0.0, %v3024
        %v3026 = vpop.f32.mrf.mxu0
        %v3027 = vadd.f32 0.0, %v3026
        %v3028 = vpop.f32.mrf.mxu0
        %v3029 = vadd.f32 0.0, %v3028
        %3030 = vmatprep.mubr.bf16.mxu0 0
        %3031 = vmatmul.mubr.bf16.gmra.mxu0 %v2966
        %v3032 = vpop.f32.mrf.mxu0
        %v3033 = vadd.f32 0.0, %v3032
        %v3034 = vpop.f32.mrf.mxu0
        %v3035 = vadd.f32 0.0, %v3034
        %v3036 = vpop.f32.mrf.mxu0
        %v3037 = vadd.f32 0.0, %v3036
        %v3038 = vpop.f32.mrf.mxu0
        %v3039 = vadd.f32 0.0, %v3038
        %3040 = vdwg.mxu0
        %v3049 = vunpack.c.l.b16 %v2860
        %v3050 = vunpack.c.l.b16 %v2861
        %v3051 = vunpack.c.l.b16 %v2862
        %v3052 = vunpack.c.l.b16 %v2863
        %v3053 = vunpack.c.l.b16 %v2864
        %v3054 = vunpack.c.l.b16 %v2865
        %v3055 = vunpack.c.l.b16 %v2866
        %v3056 = vunpack.c.l.b16 %v2867
        %v3057 = vpack.c.b16 %v3050, %v3049
        %v3058 = vpack.c.b16 %v3052, %v3051
        %v3059 = vpack.c.b16 %v3054, %v3053
        %v3060 = vpack.c.b16 %v3056, %v3055
        %v3062 = vsel %vm2955, %v3057, 0
        %v3065 = vsel %vm2955, %v3058, 0
        %v3068 = vsel %vm2955, %v3059, 0
        %v3071 = vsel %vm2955, %v3060, 0
        %3073 = vmatprep.subr.bf16.mxu0 0
        %3074 = vmatpush1.bf16.msra.mxu0 0
        %3075 = vmatprep.subr.bf16.mxu0 0
        %3076 = vmatpush1.bf16.msra.mxu0 0
        %3077 = vmatprep.subr.bf16.mxu0 0
        %3078 = vmatpush1.bf16.msra.mxu0 0
        %3079 = vmatprep.subr.bf16.mxu0 0
        %3080 = vmatpush1.bf16.msra.mxu0 0
        %3081 = vmatprep.subr.bf16.mxu0 0
        %3082 = vmatpush1.bf16.msra.mxu0 0
        %3083 = vmatprep.subr.bf16.mxu0 0
        %3084 = vmatpush1.bf16.msra.mxu0 0
        %3085 = vmatprep.subr.bf16.mxu0 %v2896
        %3086 = vmatpush1.bf16.msra.mxu0 %v2895
        %3087 = vmatprep.subr.bf16.mxu0 %v2894
        %3088 = vmatpush1.bf16.msra.mxu0 %v2893
        %3089 = vmatprep.subr.bf16.mxu0 0
        %3090 = vmatpush2.bf16.msra.mxu0 0
        %3091 = vmatprep.subr.bf16.mxu0 0
        %3092 = vmatpush2.bf16.msra.mxu0 0
        %3093 = vmatprep.subr.bf16.mxu0 0
        %3094 = vmatpush2.bf16.msra.mxu0 0
        %3095 = vmatprep.subr.bf16.mxu0 0
        %3096 = vmatpush2.bf16.msra.mxu0 0
        %3097 = vmatprep.subr.bf16.mxu0 0
        %3098 = vmatpush2.bf16.msra.mxu0 0
        %3099 = vmatprep.subr.bf16.mxu0 0
        %3100 = vmatpush2.bf16.msra.mxu0 0
        %3101 = vmatprep.subr.bf16.mxu0 0
        %3102 = vmatpush2.bf16.msra.mxu0 0
        %3103 = vmatprep.subr.bf16.mxu0 0
        %3104 = vmatpush2.bf16.msra.mxu0 0
        %3105 = vmatprep.mubr.bf16.mxu0 0
        %3106 = vmatmul.mubr.bf16.gmra.mxu0 %v3062
        %v3107 = vpop.f32.mrf.mxu0
        %v3108 = vadd.f32 %v3003, %v3107
        %v3109 = vpop.f32.mrf.mxu0
        %v3110 = vadd.f32 %v3005, %v3109
        %v3111 = vpop.f32.mrf.mxu0
        %v3112 = vadd.f32 %v3007, %v3111
        %v3113 = vpop.f32.mrf.mxu0
        %v3114 = vadd.f32 %v3009, %v3113
        %3115 = vmatprep.mubr.bf16.mxu0 0
        %3116 = vmatmul.mubr.bf16.gmra.mxu0 %v3065
        %v3117 = vpop.f32.mrf.mxu0
        %v3118 = vadd.f32 %v3013, %v3117
        %v3119 = vpop.f32.mrf.mxu0
        %v3120 = vadd.f32 %v3015, %v3119
        %v3121 = vpop.f32.mrf.mxu0
        %v3122 = vadd.f32 %v3017, %v3121
        %v3123 = vpop.f32.mrf.mxu0
        %v3124 = vadd.f32 %v3019, %v3123
        %3125 = vmatprep.mubr.bf16.mxu0 0
        %3126 = vmatmul.mubr.bf16.gmra.mxu0 %v3068
        %v3127 = vpop.f32.mrf.mxu0
        %v3128 = vadd.f32 %v3023, %v3127
        %v3129 = vpop.f32.mrf.mxu0
        %v3130 = vadd.f32 %v3025, %v3129
        %v3131 = vpop.f32.mrf.mxu0
        %v3132 = vadd.f32 %v3027, %v3131
        %v3133 = vpop.f32.mrf.mxu0
        %v3134 = vadd.f32 %v3029, %v3133
        %3135 = vmatprep.mubr.bf16.mxu0 0
        %3136 = vmatmul.mubr.bf16.gmra.mxu0 %v3071
        %v3137 = vpop.f32.mrf.mxu0
        %v3138 = vadd.f32 %v3033, %v3137
        %v3139 = vpop.f32.mrf.mxu0
        %v3140 = vadd.f32 %v3035, %v3139
        %v3141 = vpop.f32.mrf.mxu0
        %v3142 = vadd.f32 %v3037, %v3141
        %v3143 = vpop.f32.mrf.mxu0
        %v3144 = vadd.f32 %v3039, %v3143
        %3145 = vdwg.mxu0
        %s3146 = scalar_lea.vmem %s4, 64
        %v3147 = vld [vmem:[%s3146] sm:$0xf]
        %v3148 = vld [vmem:[%s3146 + $0x4] sm:$0xf]
        %v3149 = vld [vmem:[%s3146 + $0x8] sm:$0xf]
        %v3150 = vld [vmem:[%s3146 + $0xc] sm:$0xf]
        %v3151 = vld [vmem:[%s3146 + $0x10] sm:$0xf]
        %v3152 = vld [vmem:[%s3146 + $0x14] sm:$0xf]
        %v3153 = vld [vmem:[%s3146 + $0x18] sm:$0xf]
        %v3154 = vld [vmem:[%s3146 + $0x1c] sm:$0xf]
        %3155 = vrot.lane.b32.xlu0 %v2842, 15
        %v3156 = vpop.permute.xlu0 %3155
        %3157 = vrot.lane.b32.xlu0 %v2846, 15
        %v3158 = vpop.permute.xlu0 %3157
        %3159 = vrot.lane.b32.xlu0 %v2852, 15
        %v3160 = vpop.permute.xlu0 %3159
        %3161 = vrot.lane.b32.xlu0 %v2856, 15
        %v3162 = vpop.permute.xlu0 %3161
        %3163 = vrot.lane.b32.xlu0 %v2844, 15
        %v3164 = vpop.permute.xlu0 %3163
        %3165 = vrot.lane.b32.xlu0 %v2848, 15
        %v3166 = vpop.permute.xlu0 %3165
        %3167 = vrot.lane.b32.xlu0 %v2854, 15
        %v3168 = vpop.permute.xlu0 %3167
        %3169 = vrot.lane.b32.xlu0 %v2858, 15
        %v3170 = vpop.permute.xlu0 %3169
        %vm3171 = vcmp.lt.s32.totalorder %v355, 15
        %v3172 = vsel %vm3171, %v3156, %v3164
        %v3173 = vsel %vm3171, %v3158, %v3166
        %v3174 = vsel %vm3171, %v3160, %v3168
        %v3175 = vsel %vm3171, %v3162, %v3170
        %v3176 = vsel %vm3171, %v3164, %v3156
        %v3177 = vsel %vm3171, %v3166, %v3158
        %v3178 = vsel %vm3171, %v3168, %v3160
        %v3179 = vsel %vm3171, %v3170, %v3162
        %v3180 = vpack.c.bf16 %v3177, %v3176
        %v3181 = vpack.c.bf16 %v3173, %v3172
        %v3182 = vpack.c.bf16 %v3179, %v3178
        %v3183 = vpack.c.bf16 %v3175, %v3174
        %v3192 = vunpack.c.l.b16 %v3147
        %v3193 = vunpack.c.l.b16 %v3148
        %v3194 = vunpack.c.l.b16 %v3149
        %v3195 = vunpack.c.l.b16 %v3150
        %v3196 = vunpack.c.l.b16 %v3151
        %v3197 = vunpack.c.l.b16 %v3152
        %v3198 = vunpack.c.l.b16 %v3153
        %v3199 = vunpack.c.l.b16 %v3154
        %v3200 = vpack.c.b16 %v3193, %v3192
        %v3201 = vpack.c.b16 %v3195, %v3194
        %v3202 = vpack.c.b16 %v3197, %v3196
        %v3203 = vpack.c.b16 %v3199, %v3198
        %v3205 = vsel %vm2955, %v3200, 0
        %v3208 = vsel %vm2955, %v3201, 0
        %v3211 = vsel %vm2955, %v3202, 0
        %v3214 = vsel %vm2955, %v3203, 0
        %3216 = vmatprep.subr.bf16.mxu0 0
        %3217 = vmatpush1.bf16.msra.mxu0 0
        %3218 = vmatprep.subr.bf16.mxu0 0
        %3219 = vmatpush1.bf16.msra.mxu0 0
        %3220 = vmatprep.subr.bf16.mxu0 0
        %3221 = vmatpush1.bf16.msra.mxu0 0
        %3222 = vmatprep.subr.bf16.mxu0 0
        %3223 = vmatpush1.bf16.msra.mxu0 0
        %3224 = vmatprep.subr.bf16.mxu0 0
        %3225 = vmatpush1.bf16.msra.mxu0 0
        %3226 = vmatprep.subr.bf16.mxu0 0
        %3227 = vmatpush1.bf16.msra.mxu0 0
        %3228 = vmatprep.subr.bf16.mxu0 %v3183
        %3229 = vmatpush1.bf16.msra.mxu0 %v3182
        %3230 = vmatprep.subr.bf16.mxu0 %v3181
        %3231 = vmatpush1.bf16.msra.mxu0 %v3180
        %3232 = vmatprep.subr.bf16.mxu0 0
        %3233 = vmatpush2.bf16.msra.mxu0 0
        %3234 = vmatprep.subr.bf16.mxu0 0
        %3235 = vmatpush2.bf16.msra.mxu0 0
        %3236 = vmatprep.subr.bf16.mxu0 0
        %3237 = vmatpush2.bf16.msra.mxu0 0
        %3238 = vmatprep.subr.bf16.mxu0 0
        %3239 = vmatpush2.bf16.msra.mxu0 0
        %3240 = vmatprep.subr.bf16.mxu0 0
        %3241 = vmatpush2.bf16.msra.mxu0 0
        %3242 = vmatprep.subr.bf16.mxu0 0
        %3243 = vmatpush2.bf16.msra.mxu0 0
        %3244 = vmatprep.subr.bf16.mxu0 0
        %3245 = vmatpush2.bf16.msra.mxu0 0
        %3246 = vmatprep.subr.bf16.mxu0 0
        %3247 = vmatpush2.bf16.msra.mxu0 0
        %3248 = vmatprep.mubr.bf16.mxu0 0
        %3249 = vmatmul.mubr.bf16.gmra.mxu0 %v3205
        %v3250 = vpop.f32.mrf.mxu0
        %v3251 = vadd.f32 0.0, %v3250
        %v3252 = vpop.f32.mrf.mxu0
        %v3253 = vadd.f32 0.0, %v3252
        %v3254 = vpop.f32.mrf.mxu0
        %v3255 = vadd.f32 0.0, %v3254
        %v3256 = vpop.f32.mrf.mxu0
        %v3257 = vadd.f32 0.0, %v3256
        %3258 = vmatprep.mubr.bf16.mxu0 0
        %3259 = vmatmul.mubr.bf16.gmra.mxu0 %v3208
        %v3260 = vpop.f32.mrf.mxu0
        %v3261 = vadd.f32 0.0, %v3260
        %v3262 = vpop.f32.mrf.mxu0
        %v3263 = vadd.f32 0.0, %v3262
        %v3264 = vpop.f32.mrf.mxu0
        %v3265 = vadd.f32 0.0, %v3264
        %v3266 = vpop.f32.mrf.mxu0
        %v3267 = vadd.f32 0.0, %v3266
        %3268 = vmatprep.mubr.bf16.mxu0 0
        %3269 = vmatmul.mubr.bf16.gmra.mxu0 %v3211
        %v3270 = vpop.f32.mrf.mxu0
        %v3271 = vadd.f32 0.0, %v3270
        %v3272 = vpop.f32.mrf.mxu0
        %v3273 = vadd.f32 0.0, %v3272
        %v3274 = vpop.f32.mrf.mxu0
        %v3275 = vadd.f32 0.0, %v3274
        %v3276 = vpop.f32.mrf.mxu0
        %v3277 = vadd.f32 0.0, %v3276
        %3278 = vmatprep.mubr.bf16.mxu0 0
        %3279 = vmatmul.mubr.bf16.gmra.mxu0 %v3214
        %v3280 = vpop.f32.mrf.mxu0
        %v3281 = vadd.f32 0.0, %v3280
        %v3282 = vpop.f32.mrf.mxu0
        %v3283 = vadd.f32 0.0, %v3282
        %v3284 = vpop.f32.mrf.mxu0
        %v3285 = vadd.f32 0.0, %v3284
        %v3286 = vpop.f32.mrf.mxu0
        %v3287 = vadd.f32 0.0, %v3286
        %3288 = vdwg.mxu0
        %v3289 = vadd.f32 %v3108, %v3251
        %v3290 = vadd.f32 %v3110, %v3253
        %v3291 = vadd.f32 %v3112, %v3255
        %v3292 = vadd.f32 %v3114, %v3257
        %v3293 = vadd.f32 %v3118, %v3261
        %v3294 = vadd.f32 %v3120, %v3263
        %v3295 = vadd.f32 %v3122, %v3265
        %v3296 = vadd.f32 %v3124, %v3267
        %v3297 = vadd.f32 %v3128, %v3271
        %v3298 = vadd.f32 %v3130, %v3273
        %v3299 = vadd.f32 %v3132, %v3275
        %v3300 = vadd.f32 %v3134, %v3277
        %v3301 = vadd.f32 %v3138, %v3281
        %v3302 = vadd.f32 %v3140, %v3283
        %v3303 = vadd.f32 %v3142, %v3285
        %v3304 = vadd.f32 %v3144, %v3287
        %s3305 = scalar_lea.vmem %s4, 96
        %v3306 = vld [vmem:[%s3305] sm:$0xf]
        %v3307 = vld [vmem:[%s3305 + $0x4] sm:$0xf]
        %v3308 = vld [vmem:[%s3305 + $0x8] sm:$0xf]
        %v3309 = vld [vmem:[%s3305 + $0xc] sm:$0xf]
        %v3310 = vld [vmem:[%s3305 + $0x10] sm:$0xf]
        %v3311 = vld [vmem:[%s3305 + $0x14] sm:$0xf]
        %v3312 = vld [vmem:[%s3305 + $0x18] sm:$0xf]
        %v3313 = vld [vmem:[%s3305 + $0x1c] sm:$0xf]
        %3314 = vrot.lane.b32.xlu0 %v2842, 1
        %v3315 = vpop.permute.xlu0 %3314
        %3316 = vrot.lane.b32.xlu0 %v2846, 1
        %v3317 = vpop.permute.xlu0 %3316
        %3318 = vrot.lane.b32.xlu0 %v2852, 1
        %v3319 = vpop.permute.xlu0 %3318
        %3320 = vrot.lane.b32.xlu0 %v2856, 1
        %v3321 = vpop.permute.xlu0 %3320
        %3322 = vrot.lane.b32.xlu0 %v2844, 1
        %v3323 = vpop.permute.xlu0 %3322
        %3324 = vrot.lane.b32.xlu0 %v2848, 1
        %v3325 = vpop.permute.xlu0 %3324
        %3326 = vrot.lane.b32.xlu0 %v2854, 1
        %v3327 = vpop.permute.xlu0 %3326
        %3328 = vrot.lane.b32.xlu0 %v2858, 1
        %v3329 = vpop.permute.xlu0 %3328
        %v3330 = vsel %vm771, %v3315, %v3323
        %v3331 = vsel %vm771, %v3317, %v3325
        %v3332 = vsel %vm771, %v3319, %v3327
        %v3333 = vsel %vm771, %v3321, %v3329
        %v3334 = vsel %vm771, %v3323, %v3315
        %v3335 = vsel %vm771, %v3325, %v3317
        %v3336 = vsel %vm771, %v3327, %v3319
        %v3337 = vsel %vm771, %v3329, %v3321
        %v3338 = vpack.c.bf16 %v3335, %v3334
        %v3339 = vpack.c.bf16 %v3331, %v3330
        %v3340 = vpack.c.bf16 %v3337, %v3336
        %v3341 = vpack.c.bf16 %v3333, %v3332
        %v3350 = vunpack.c.l.b16 %v3306
        %v3351 = vunpack.c.l.b16 %v3307
        %v3352 = vunpack.c.l.b16 %v3308
        %v3353 = vunpack.c.l.b16 %v3309
        %v3354 = vunpack.c.l.b16 %v3310
        %v3355 = vunpack.c.l.b16 %v3311
        %v3356 = vunpack.c.l.b16 %v3312
        %v3357 = vunpack.c.l.b16 %v3313
        %v3358 = vpack.c.b16 %v3351, %v3350
        %v3359 = vpack.c.b16 %v3353, %v3352
        %v3360 = vpack.c.b16 %v3355, %v3354
        %v3361 = vpack.c.b16 %v3357, %v3356
        %v3363 = vsel %vm2955, %v3358, 0
        %v3366 = vsel %vm2955, %v3359, 0
        %v3369 = vsel %vm2955, %v3360, 0
        %v3372 = vsel %vm2955, %v3361, 0
        %3374 = vmatprep.subr.bf16.mxu0 0
        %3375 = vmatpush1.bf16.msra.mxu0 0
        %3376 = vmatprep.subr.bf16.mxu0 0
        %3377 = vmatpush1.bf16.msra.mxu0 0
        %3378 = vmatprep.subr.bf16.mxu0 0
        %3379 = vmatpush1.bf16.msra.mxu0 0
        %3380 = vmatprep.subr.bf16.mxu0 0
        %3381 = vmatpush1.bf16.msra.mxu0 0
        %3382 = vmatprep.subr.bf16.mxu0 0
        %3383 = vmatpush1.bf16.msra.mxu0 0
        %3384 = vmatprep.subr.bf16.mxu0 0
        %3385 = vmatpush1.bf16.msra.mxu0 0
        %3386 = vmatprep.subr.bf16.mxu0 %v3341
        %3387 = vmatpush1.bf16.msra.mxu0 %v3340
        %3388 = vmatprep.subr.bf16.mxu0 %v3339
        %3389 = vmatpush1.bf16.msra.mxu0 %v3338
        %3390 = vmatprep.subr.bf16.mxu0 0
        %3391 = vmatpush2.bf16.msra.mxu0 0
        %3392 = vmatprep.subr.bf16.mxu0 0
        %3393 = vmatpush2.bf16.msra.mxu0 0
        %3394 = vmatprep.subr.bf16.mxu0 0
        %3395 = vmatpush2.bf16.msra.mxu0 0
        %3396 = vmatprep.subr.bf16.mxu0 0
        %3397 = vmatpush2.bf16.msra.mxu0 0
        %3398 = vmatprep.subr.bf16.mxu0 0
        %3399 = vmatpush2.bf16.msra.mxu0 0
        %3400 = vmatprep.subr.bf16.mxu0 0
        %3401 = vmatpush2.bf16.msra.mxu0 0
        %3402 = vmatprep.subr.bf16.mxu0 0
        %3403 = vmatpush2.bf16.msra.mxu0 0
        %3404 = vmatprep.subr.bf16.mxu0 0
        %3405 = vmatpush2.bf16.msra.mxu0 0
        %3406 = vmatprep.mubr.bf16.mxu0 0
        %3407 = vmatmul.mubr.bf16.gmra.mxu0 %v3363
        %v3408 = vpop.f32.mrf.mxu0
        %v3409 = vadd.f32 0.0, %v3408
        %v3410 = vpop.f32.mrf.mxu0
        %v3411 = vadd.f32 0.0, %v3410
        %v3412 = vpop.f32.mrf.mxu0
        %v3413 = vadd.f32 0.0, %v3412
        %v3414 = vpop.f32.mrf.mxu0
        %v3415 = vadd.f32 0.0, %v3414
        %3416 = vmatprep.mubr.bf16.mxu0 0
        %3417 = vmatmul.mubr.bf16.gmra.mxu0 %v3366
        %v3418 = vpop.f32.mrf.mxu0
        %v3419 = vadd.f32 0.0, %v3418
        %v3420 = vpop.f32.mrf.mxu0
        %v3421 = vadd.f32 0.0, %v3420
        %v3422 = vpop.f32.mrf.mxu0
        %v3423 = vadd.f32 0.0, %v3422
        %v3424 = vpop.f32.mrf.mxu0
        %v3425 = vadd.f32 0.0, %v3424
        %3426 = vmatprep.mubr.bf16.mxu0 0
        %3427 = vmatmul.mubr.bf16.gmra.mxu0 %v3369
        %v3428 = vpop.f32.mrf.mxu0
        %v3429 = vadd.f32 0.0, %v3428
        %v3430 = vpop.f32.mrf.mxu0
        %v3431 = vadd.f32 0.0, %v3430
        %v3432 = vpop.f32.mrf.mxu0
        %v3433 = vadd.f32 0.0, %v3432
        %v3434 = vpop.f32.mrf.mxu0
        %v3435 = vadd.f32 0.0, %v3434
        %3436 = vmatprep.mubr.bf16.mxu0 0
        %3437 = vmatmul.mubr.bf16.gmra.mxu0 %v3372
        %v3438 = vpop.f32.mrf.mxu0
        %v3439 = vadd.f32 0.0, %v3438
        %v3440 = vpop.f32.mrf.mxu0
        %v3441 = vadd.f32 0.0, %v3440
        %v3442 = vpop.f32.mrf.mxu0
        %v3443 = vadd.f32 0.0, %v3442
        %v3444 = vpop.f32.mrf.mxu0
        %v3445 = vadd.f32 0.0, %v3444
        %3446 = vdwg.mxu0
        %v3447 = vadd.f32 %v3289, %v3409
        %v3448 = vadd.f32 %v3290, %v3411
        %v3449 = vadd.f32 %v3291, %v3413
        %v3450 = vadd.f32 %v3292, %v3415
        %v3451 = vadd.f32 %v3293, %v3419
        %v3452 = vadd.f32 %v3294, %v3421
        %v3453 = vadd.f32 %v3295, %v3423
        %v3454 = vadd.f32 %v3296, %v3425
        %v3455 = vadd.f32 %v3297, %v3429
        %v3456 = vadd.f32 %v3298, %v3431
        %v3457 = vadd.f32 %v3299, %v3433
        %v3458 = vadd.f32 %v3300, %v3435
        %v3459 = vadd.f32 %v3301, %v3439
        %v3460 = vadd.f32 %v3302, %v3441
        %v3461 = vadd.f32 %v3303, %v3443
        %v3462 = vadd.f32 %v3304, %v3445
        %s3463 = scalar_lea.vmem %s4, 128
        %v3464 = vld [vmem:[%s3463] sm:$0xf]
        %v3465 = vld [vmem:[%s3463 + $0x4] sm:$0xf]
        %v3466 = vld [vmem:[%s3463 + $0x8] sm:$0xf]
        %v3467 = vld [vmem:[%s3463 + $0xc] sm:$0xf]
        %v3468 = vld [vmem:[%s3463 + $0x10] sm:$0xf]
        %v3469 = vld [vmem:[%s3463 + $0x14] sm:$0xf]
        %v3470 = vld [vmem:[%s3463 + $0x18] sm:$0xf]
        %v3471 = vld [vmem:[%s3463 + $0x1c] sm:$0xf]
        %v3472 = vpack.c.bf16 %v2846, %v2842
        %v3473 = vpack.c.bf16 %v2848, %v2844
        %v3474 = vpack.c.bf16 %v2856, %v2852
        %v3475 = vpack.c.bf16 %v2858, %v2854
        %v3484 = vunpack.c.l.b16 %v3464
        %v3485 = vunpack.c.l.b16 %v3465
        %v3486 = vunpack.c.l.b16 %v3466
        %v3487 = vunpack.c.l.b16 %v3467
        %v3488 = vunpack.c.l.b16 %v3468
        %v3489 = vunpack.c.l.b16 %v3469
        %v3490 = vunpack.c.l.b16 %v3470
        %v3491 = vunpack.c.l.b16 %v3471
        %v3492 = vpack.c.b16 %v3485, %v3484
        %v3493 = vpack.c.b16 %v3487, %v3486
        %v3494 = vpack.c.b16 %v3489, %v3488
        %v3495 = vpack.c.b16 %v3491, %v3490
        %v3497 = vsel %vm2955, %v3492, 0
        %v3500 = vsel %vm2955, %v3493, 0
        %v3503 = vsel %vm2955, %v3494, 0
        %v3506 = vsel %vm2955, %v3495, 0
        %3508 = vmatprep.subr.bf16.mxu0 0
        %3509 = vmatpush1.bf16.msra.mxu0 0
        %3510 = vmatprep.subr.bf16.mxu0 0
        %3511 = vmatpush1.bf16.msra.mxu0 0
        %3512 = vmatprep.subr.bf16.mxu0 0
        %3513 = vmatpush1.bf16.msra.mxu0 0
        %3514 = vmatprep.subr.bf16.mxu0 0
        %3515 = vmatpush1.bf16.msra.mxu0 0
        %3516 = vmatprep.subr.bf16.mxu0 0
        %3517 = vmatpush1.bf16.msra.mxu0 0
        %3518 = vmatprep.subr.bf16.mxu0 0
        %3519 = vmatpush1.bf16.msra.mxu0 0
        %3520 = vmatprep.subr.bf16.mxu0 %v3475
        %3521 = vmatpush1.bf16.msra.mxu0 %v3474
        %3522 = vmatprep.subr.bf16.mxu0 %v3473
        %3523 = vmatpush1.bf16.msra.mxu0 %v3472
        %3524 = vmatprep.subr.bf16.mxu0 0
        %3525 = vmatpush2.bf16.msra.mxu0 0
        %3526 = vmatprep.subr.bf16.mxu0 0
        %3527 = vmatpush2.bf16.msra.mxu0 0
        %3528 = vmatprep.subr.bf16.mxu0 0
        %3529 = vmatpush2.bf16.msra.mxu0 0
        %3530 = vmatprep.subr.bf16.mxu0 0
        %3531 = vmatpush2.bf16.msra.mxu0 0
        %3532 = vmatprep.subr.bf16.mxu0 0
        %3533 = vmatpush2.bf16.msra.mxu0 0
        %3534 = vmatprep.subr.bf16.mxu0 0
        %3535 = vmatpush2.bf16.msra.mxu0 0
        %3536 = vmatprep.subr.bf16.mxu0 0
        %3537 = vmatpush2.bf16.msra.mxu0 0
        %3538 = vmatprep.subr.bf16.mxu0 0
        %3539 = vmatpush2.bf16.msra.mxu0 0
        %3540 = vmatprep.mubr.bf16.mxu0 0
        %3541 = vmatmul.mubr.bf16.gmra.mxu0 %v3497
        %v3542 = vpop.f32.mrf.mxu0
        %v3543 = vadd.f32 0.0, %v3542
        %v3544 = vpop.f32.mrf.mxu0
        %v3545 = vadd.f32 0.0, %v3544
        %v3546 = vpop.f32.mrf.mxu0
        %v3547 = vadd.f32 0.0, %v3546
        %v3548 = vpop.f32.mrf.mxu0
        %v3549 = vadd.f32 0.0, %v3548
        %3550 = vmatprep.mubr.bf16.mxu0 0
        %3551 = vmatmul.mubr.bf16.gmra.mxu0 %v3500
        %v3552 = vpop.f32.mrf.mxu0
        %v3553 = vadd.f32 0.0, %v3552
        %v3554 = vpop.f32.mrf.mxu0
        %v3555 = vadd.f32 0.0, %v3554
        %v3556 = vpop.f32.mrf.mxu0
        %v3557 = vadd.f32 0.0, %v3556
        %v3558 = vpop.f32.mrf.mxu0
        %v3559 = vadd.f32 0.0, %v3558
        %3560 = vmatprep.mubr.bf16.mxu0 0
        %3561 = vmatmul.mubr.bf16.gmra.mxu0 %v3503
        %v3562 = vpop.f32.mrf.mxu0
        %v3563 = vadd.f32 0.0, %v3562
        %v3564 = vpop.f32.mrf.mxu0
        %v3565 = vadd.f32 0.0, %v3564
        %v3566 = vpop.f32.mrf.mxu0
        %v3567 = vadd.f32 0.0, %v3566
        %v3568 = vpop.f32.mrf.mxu0
        %v3569 = vadd.f32 0.0, %v3568
        %3570 = vmatprep.mubr.bf16.mxu0 0
        %3571 = vmatmul.mubr.bf16.gmra.mxu0 %v3506
        %v3572 = vpop.f32.mrf.mxu0
        %v3573 = vadd.f32 0.0, %v3572
        %v3574 = vpop.f32.mrf.mxu0
        %v3575 = vadd.f32 0.0, %v3574
        %v3576 = vpop.f32.mrf.mxu0
        %v3577 = vadd.f32 0.0, %v3576
        %v3578 = vpop.f32.mrf.mxu0
        %v3579 = vadd.f32 0.0, %v3578
        %3580 = vdwg.mxu0
        %v3581 = vadd.f32 %v3447, %v3543
        %v3582 = vadd.f32 %v3448, %v3545
        %v3583 = vadd.f32 %v3449, %v3547
        %v3584 = vadd.f32 %v3450, %v3549
        %v3585 = vadd.f32 %v3451, %v3553
        %v3586 = vadd.f32 %v3452, %v3555
        %v3587 = vadd.f32 %v3453, %v3557
        %v3588 = vadd.f32 %v3454, %v3559
        %v3589 = vadd.f32 %v3455, %v3563
        %v3590 = vadd.f32 %v3456, %v3565
        %v3591 = vadd.f32 %v3457, %v3567
        %v3592 = vadd.f32 %v3458, %v3569
        %v3593 = vadd.f32 %v3459, %v3573
        %v3594 = vadd.f32 %v3460, %v3575
        %v3595 = vadd.f32 %v3461, %v3577
        %v3596 = vadd.f32 %v3462, %v3579
        %s3597 = scalar_lea.vmem %s4, 160
        %v3598 = vld [vmem:[%s3597] sm:$0xf]
        %v3599 = vld [vmem:[%s3597 + $0x4] sm:$0xf]
        %v3600 = vld [vmem:[%s3597 + $0x8] sm:$0xf]
        %v3601 = vld [vmem:[%s3597 + $0xc] sm:$0xf]
        %v3602 = vld [vmem:[%s3597 + $0x10] sm:$0xf]
        %v3603 = vld [vmem:[%s3597 + $0x14] sm:$0xf]
        %v3604 = vld [vmem:[%s3597 + $0x18] sm:$0xf]
        %v3605 = vld [vmem:[%s3597 + $0x1c] sm:$0xf]
        %3606 = vrot.lane.b32.xlu0 %v2842, 127
        %v3607 = vpop.permute.xlu0 %3606
        %3608 = vrot.lane.b32.xlu0 %v2846, 127
        %v3609 = vpop.permute.xlu0 %3608
        %3610 = vrot.lane.b32.xlu0 %v2852, 127
        %v3611 = vpop.permute.xlu0 %3610
        %3612 = vrot.lane.b32.xlu0 %v2856, 127
        %v3613 = vpop.permute.xlu0 %3612
        %3614 = vrot.lane.b32.xlu0 %v2844, 127
        %v3615 = vpop.permute.xlu0 %3614
        %3616 = vrot.lane.b32.xlu0 %v2848, 127
        %v3617 = vpop.permute.xlu0 %3616
        %3618 = vrot.lane.b32.xlu0 %v2854, 127
        %v3619 = vpop.permute.xlu0 %3618
        %3620 = vrot.lane.b32.xlu0 %v2858, 127
        %v3621 = vpop.permute.xlu0 %3620
        %v3622 = vsel %vm988, %v3607, %v3615
        %v3623 = vsel %vm988, %v3609, %v3617
        %v3624 = vsel %vm988, %v3611, %v3619
        %v3625 = vsel %vm988, %v3613, %v3621
        %v3626 = vsel %vm988, %v3615, %v3607
        %v3627 = vsel %vm988, %v3617, %v3609
        %v3628 = vsel %vm988, %v3619, %v3611
        %v3629 = vsel %vm988, %v3621, %v3613
        %v3630 = vpack.c.bf16 %v3623, %v3622
        %v3631 = vpack.c.bf16 %v3627, %v3626
        %v3632 = vpack.c.bf16 %v3625, %v3624
        %v3633 = vpack.c.bf16 %v3629, %v3628
        %v3642 = vunpack.c.l.b16 %v3598
        %v3643 = vunpack.c.l.b16 %v3599
        %v3644 = vunpack.c.l.b16 %v3600
        %v3645 = vunpack.c.l.b16 %v3601
        %v3646 = vunpack.c.l.b16 %v3602
        %v3647 = vunpack.c.l.b16 %v3603
        %v3648 = vunpack.c.l.b16 %v3604
        %v3649 = vunpack.c.l.b16 %v3605
        %v3650 = vpack.c.b16 %v3643, %v3642
        %v3651 = vpack.c.b16 %v3645, %v3644
        %v3652 = vpack.c.b16 %v3647, %v3646
        %v3653 = vpack.c.b16 %v3649, %v3648
        %v3655 = vsel %vm2955, %v3650, 0
        %v3658 = vsel %vm2955, %v3651, 0
        %v3661 = vsel %vm2955, %v3652, 0
        %v3664 = vsel %vm2955, %v3653, 0
        %3666 = vmatprep.subr.bf16.mxu0 0
        %3667 = vmatpush1.bf16.msra.mxu0 0
        %3668 = vmatprep.subr.bf16.mxu0 0
        %3669 = vmatpush1.bf16.msra.mxu0 0
        %3670 = vmatprep.subr.bf16.mxu0 0
        %3671 = vmatpush1.bf16.msra.mxu0 0
        %3672 = vmatprep.subr.bf16.mxu0 0
        %3673 = vmatpush1.bf16.msra.mxu0 0
        %3674 = vmatprep.subr.bf16.mxu0 0
        %3675 = vmatpush1.bf16.msra.mxu0 0
        %3676 = vmatprep.subr.bf16.mxu0 0
        %3677 = vmatpush1.bf16.msra.mxu0 0
        %3678 = vmatprep.subr.bf16.mxu0 %v3633
        %3679 = vmatpush1.bf16.msra.mxu0 %v3632
        %3680 = vmatprep.subr.bf16.mxu0 %v3631
        %3681 = vmatpush1.bf16.msra.mxu0 %v3630
        %3682 = vmatprep.subr.bf16.mxu0 0
        %3683 = vmatpush2.bf16.msra.mxu0 0
        %3684 = vmatprep.subr.bf16.mxu0 0
        %3685 = vmatpush2.bf16.msra.mxu0 0
        %3686 = vmatprep.subr.bf16.mxu0 0
        %3687 = vmatpush2.bf16.msra.mxu0 0
        %3688 = vmatprep.subr.bf16.mxu0 0
        %3689 = vmatpush2.bf16.msra.mxu0 0
        %3690 = vmatprep.subr.bf16.mxu0 0
        %3691 = vmatpush2.bf16.msra.mxu0 0
        %3692 = vmatprep.subr.bf16.mxu0 0
        %3693 = vmatpush2.bf16.msra.mxu0 0
        %3694 = vmatprep.subr.bf16.mxu0 0
        %3695 = vmatpush2.bf16.msra.mxu0 0
        %3696 = vmatprep.subr.bf16.mxu0 0
        %3697 = vmatpush2.bf16.msra.mxu0 0
        %3698 = vmatprep.mubr.bf16.mxu0 0
        %3699 = vmatmul.mubr.bf16.gmra.mxu0 %v3655
        %v3700 = vpop.f32.mrf.mxu0
        %v3701 = vadd.f32 0.0, %v3700
        %v3702 = vpop.f32.mrf.mxu0
        %v3703 = vadd.f32 0.0, %v3702
        %v3704 = vpop.f32.mrf.mxu0
        %v3705 = vadd.f32 0.0, %v3704
        %v3706 = vpop.f32.mrf.mxu0
        %v3707 = vadd.f32 0.0, %v3706
        %3708 = vmatprep.mubr.bf16.mxu0 0
        %3709 = vmatmul.mubr.bf16.gmra.mxu0 %v3658
        %v3710 = vpop.f32.mrf.mxu0
        %v3711 = vadd.f32 0.0, %v3710
        %v3712 = vpop.f32.mrf.mxu0
        %v3713 = vadd.f32 0.0, %v3712
        %v3714 = vpop.f32.mrf.mxu0
        %v3715 = vadd.f32 0.0, %v3714
        %v3716 = vpop.f32.mrf.mxu0
        %v3717 = vadd.f32 0.0, %v3716
        %3718 = vmatprep.mubr.bf16.mxu0 0
        %3719 = vmatmul.mubr.bf16.gmra.mxu0 %v3661
        %v3720 = vpop.f32.mrf.mxu0
        %v3721 = vadd.f32 0.0, %v3720
        %v3722 = vpop.f32.mrf.mxu0
        %v3723 = vadd.f32 0.0, %v3722
        %v3724 = vpop.f32.mrf.mxu0
        %v3725 = vadd.f32 0.0, %v3724
        %v3726 = vpop.f32.mrf.mxu0
        %v3727 = vadd.f32 0.0, %v3726
        %3728 = vmatprep.mubr.bf16.mxu0 0
        %3729 = vmatmul.mubr.bf16.gmra.mxu0 %v3664
        %v3730 = vpop.f32.mrf.mxu0
        %v3731 = vadd.f32 0.0, %v3730
        %v3732 = vpop.f32.mrf.mxu0
        %v3733 = vadd.f32 0.0, %v3732
        %v3734 = vpop.f32.mrf.mxu0
        %v3735 = vadd.f32 0.0, %v3734
        %v3736 = vpop.f32.mrf.mxu0
        %v3737 = vadd.f32 0.0, %v3736
        %3738 = vdwg.mxu0
        %v3739 = vadd.f32 %v3581, %v3701
        %v3740 = vadd.f32 %v3582, %v3703
        %v3741 = vadd.f32 %v3583, %v3705
        %v3742 = vadd.f32 %v3584, %v3707
        %v3743 = vadd.f32 %v3585, %v3711
        %v3744 = vadd.f32 %v3586, %v3713
        %v3745 = vadd.f32 %v3587, %v3715
        %v3746 = vadd.f32 %v3588, %v3717
        %v3747 = vadd.f32 %v3589, %v3721
        %v3748 = vadd.f32 %v3590, %v3723
        %v3749 = vadd.f32 %v3591, %v3725
        %v3750 = vadd.f32 %v3592, %v3727
        %v3751 = vadd.f32 %v3593, %v3731
        %v3752 = vadd.f32 %v3594, %v3733
        %v3753 = vadd.f32 %v3595, %v3735
        %v3754 = vadd.f32 %v3596, %v3737
        %s3755 = scalar_lea.vmem %s4, 192
        %v3756 = vld [vmem:[%s3755] sm:$0xf]
        %v3757 = vld [vmem:[%s3755 + $0x4] sm:$0xf]
        %v3758 = vld [vmem:[%s3755 + $0x8] sm:$0xf]
        %v3759 = vld [vmem:[%s3755 + $0xc] sm:$0xf]
        %v3760 = vld [vmem:[%s3755 + $0x10] sm:$0xf]
        %v3761 = vld [vmem:[%s3755 + $0x14] sm:$0xf]
        %v3762 = vld [vmem:[%s3755 + $0x18] sm:$0xf]
        %v3763 = vld [vmem:[%s3755 + $0x1c] sm:$0xf]
        %3764 = vrot.lane.b32.xlu0 %v2842, 113
        %v3765 = vpop.permute.xlu0 %3764
        %3766 = vrot.lane.b32.xlu0 %v2846, 113
        %v3767 = vpop.permute.xlu0 %3766
        %3768 = vrot.lane.b32.xlu0 %v2852, 113
        %v3769 = vpop.permute.xlu0 %3768
        %3770 = vrot.lane.b32.xlu0 %v2856, 113
        %v3771 = vpop.permute.xlu0 %3770
        %3772 = vrot.lane.b32.xlu0 %v2844, 113
        %v3773 = vpop.permute.xlu0 %3772
        %3774 = vrot.lane.b32.xlu0 %v2848, 113
        %v3775 = vpop.permute.xlu0 %3774
        %3776 = vrot.lane.b32.xlu0 %v2854, 113
        %v3777 = vpop.permute.xlu0 %3776
        %3778 = vrot.lane.b32.xlu0 %v2858, 113
        %v3779 = vpop.permute.xlu0 %3778
        %vm3780 = vcmp.lt.s32.totalorder %v355, 113
        %v3781 = vsel %vm3780, %v3765, %v3773
        %v3782 = vsel %vm3780, %v3767, %v3775
        %v3783 = vsel %vm3780, %v3769, %v3777
        %v3784 = vsel %vm3780, %v3771, %v3779
        %v3785 = vsel %vm3780, %v3773, %v3765
        %v3786 = vsel %vm3780, %v3775, %v3767
        %v3787 = vsel %vm3780, %v3777, %v3769
        %v3788 = vsel %vm3780, %v3779, %v3771
        %v3789 = vpack.c.bf16 %v3782, %v3781
        %v3790 = vpack.c.bf16 %v3786, %v3785
        %v3791 = vpack.c.bf16 %v3784, %v3783
        %v3792 = vpack.c.bf16 %v3788, %v3787
        %v3801 = vunpack.c.l.b16 %v3756
        %v3802 = vunpack.c.l.b16 %v3757
        %v3803 = vunpack.c.l.b16 %v3758
        %v3804 = vunpack.c.l.b16 %v3759
        %v3805 = vunpack.c.l.b16 %v3760
        %v3806 = vunpack.c.l.b16 %v3761
        %v3807 = vunpack.c.l.b16 %v3762
        %v3808 = vunpack.c.l.b16 %v3763
        %v3809 = vpack.c.b16 %v3802, %v3801
        %v3810 = vpack.c.b16 %v3804, %v3803
        %v3811 = vpack.c.b16 %v3806, %v3805
        %v3812 = vpack.c.b16 %v3808, %v3807
        %v3814 = vsel %vm2955, %v3809, 0
        %v3817 = vsel %vm2955, %v3810, 0
        %v3820 = vsel %vm2955, %v3811, 0
        %v3823 = vsel %vm2955, %v3812, 0
        %3825 = vmatprep.subr.bf16.mxu0 0
        %3826 = vmatpush1.bf16.msra.mxu0 0
        %3827 = vmatprep.subr.bf16.mxu0 0
        %3828 = vmatpush1.bf16.msra.mxu0 0
        %3829 = vmatprep.subr.bf16.mxu0 0
        %3830 = vmatpush1.bf16.msra.mxu0 0
        %3831 = vmatprep.subr.bf16.mxu0 0
        %3832 = vmatpush1.bf16.msra.mxu0 0
        %3833 = vmatprep.subr.bf16.mxu0 0
        %3834 = vmatpush1.bf16.msra.mxu0 0
        %3835 = vmatprep.subr.bf16.mxu0 0
        %3836 = vmatpush1.bf16.msra.mxu0 0
        %3837 = vmatprep.subr.bf16.mxu0 %v3792
        %3838 = vmatpush1.bf16.msra.mxu0 %v3791
        %3839 = vmatprep.subr.bf16.mxu0 %v3790
        %3840 = vmatpush1.bf16.msra.mxu0 %v3789
        %3841 = vmatprep.subr.bf16.mxu0 0
        %3842 = vmatpush2.bf16.msra.mxu0 0
        %3843 = vmatprep.subr.bf16.mxu0 0
        %3844 = vmatpush2.bf16.msra.mxu0 0
        %3845 = vmatprep.subr.bf16.mxu0 0
        %3846 = vmatpush2.bf16.msra.mxu0 0
        %3847 = vmatprep.subr.bf16.mxu0 0
        %3848 = vmatpush2.bf16.msra.mxu0 0
        %3849 = vmatprep.subr.bf16.mxu0 0
        %3850 = vmatpush2.bf16.msra.mxu0 0
        %3851 = vmatprep.subr.bf16.mxu0 0
        %3852 = vmatpush2.bf16.msra.mxu0 0
        %3853 = vmatprep.subr.bf16.mxu0 0
        %3854 = vmatpush2.bf16.msra.mxu0 0
        %3855 = vmatprep.subr.bf16.mxu0 0
        %3856 = vmatpush2.bf16.msra.mxu0 0
        %3857 = vmatprep.mubr.bf16.mxu0 0
        %3858 = vmatmul.mubr.bf16.gmra.mxu0 %v3814
        %v3859 = vpop.f32.mrf.mxu0
        %v3860 = vadd.f32 0.0, %v3859
        %v3861 = vpop.f32.mrf.mxu0
        %v3862 = vadd.f32 0.0, %v3861
        %v3863 = vpop.f32.mrf.mxu0
        %v3864 = vadd.f32 0.0, %v3863
        %v3865 = vpop.f32.mrf.mxu0
        %v3866 = vadd.f32 0.0, %v3865
        %3867 = vmatprep.mubr.bf16.mxu0 0
        %3868 = vmatmul.mubr.bf16.gmra.mxu0 %v3817
        %v3869 = vpop.f32.mrf.mxu0
        %v3870 = vadd.f32 0.0, %v3869
        %v3871 = vpop.f32.mrf.mxu0
        %v3872 = vadd.f32 0.0, %v3871
        %v3873 = vpop.f32.mrf.mxu0
        %v3874 = vadd.f32 0.0, %v3873
        %v3875 = vpop.f32.mrf.mxu0
        %v3876 = vadd.f32 0.0, %v3875
        %3877 = vmatprep.mubr.bf16.mxu0 0
        %3878 = vmatmul.mubr.bf16.gmra.mxu0 %v3820
        %v3879 = vpop.f32.mrf.mxu0
        %v3880 = vadd.f32 0.0, %v3879
        %v3881 = vpop.f32.mrf.mxu0
        %v3882 = vadd.f32 0.0, %v3881
        %v3883 = vpop.f32.mrf.mxu0
        %v3884 = vadd.f32 0.0, %v3883
        %v3885 = vpop.f32.mrf.mxu0
        %v3886 = vadd.f32 0.0, %v3885
        %3887 = vmatprep.mubr.bf16.mxu0 0
        %3888 = vmatmul.mubr.bf16.gmra.mxu0 %v3823
        %v3889 = vpop.f32.mrf.mxu0
        %v3890 = vadd.f32 0.0, %v3889
        %v3891 = vpop.f32.mrf.mxu0
        %v3892 = vadd.f32 0.0, %v3891
        %v3893 = vpop.f32.mrf.mxu0
        %v3894 = vadd.f32 0.0, %v3893
        %v3895 = vpop.f32.mrf.mxu0
        %v3896 = vadd.f32 0.0, %v3895
        %3897 = vdwg.mxu0
        %v3898 = vadd.f32 %v3739, %v3860
        %v3899 = vadd.f32 %v3740, %v3862
        %v3900 = vadd.f32 %v3741, %v3864
        %v3901 = vadd.f32 %v3742, %v3866
        %v3902 = vadd.f32 %v3743, %v3870
        %v3903 = vadd.f32 %v3744, %v3872
        %v3904 = vadd.f32 %v3745, %v3874
        %v3905 = vadd.f32 %v3746, %v3876
        %v3906 = vadd.f32 %v3747, %v3880
        %v3907 = vadd.f32 %v3748, %v3882
        %v3908 = vadd.f32 %v3749, %v3884
        %v3909 = vadd.f32 %v3750, %v3886
        %v3910 = vadd.f32 %v3751, %v3890
        %v3911 = vadd.f32 %v3752, %v3892
        %v3912 = vadd.f32 %v3753, %v3894
        %v3913 = vadd.f32 %v3754, %v3896
        %s3914 = scalar_lea.vmem %s4, 224
        %v3915 = vld [vmem:[%s3914] sm:$0xf]
        %v3916 = vld [vmem:[%s3914 + $0x4] sm:$0xf]
        %v3917 = vld [vmem:[%s3914 + $0x8] sm:$0xf]
        %v3918 = vld [vmem:[%s3914 + $0xc] sm:$0xf]
        %v3919 = vld [vmem:[%s3914 + $0x10] sm:$0xf]
        %v3920 = vld [vmem:[%s3914 + $0x14] sm:$0xf]
        %v3921 = vld [vmem:[%s3914 + $0x18] sm:$0xf]
        %v3922 = vld [vmem:[%s3914 + $0x1c] sm:$0xf]
        %3923 = vrot.lane.b32.xlu0 %v2842, 112
        %v3924 = vpop.permute.xlu0 %3923
        %3925 = vrot.lane.b32.xlu0 %v2846, 112
        %v3926 = vpop.permute.xlu0 %3925
        %3927 = vrot.lane.b32.xlu0 %v2852, 112
        %v3928 = vpop.permute.xlu0 %3927
        %3929 = vrot.lane.b32.xlu0 %v2856, 112
        %v3930 = vpop.permute.xlu0 %3929
        %3931 = vrot.lane.b32.xlu0 %v2844, 112
        %v3932 = vpop.permute.xlu0 %3931
        %3933 = vrot.lane.b32.xlu0 %v2848, 112
        %v3934 = vpop.permute.xlu0 %3933
        %3935 = vrot.lane.b32.xlu0 %v2854, 112
        %v3936 = vpop.permute.xlu0 %3935
        %3937 = vrot.lane.b32.xlu0 %v2858, 112
        %v3938 = vpop.permute.xlu0 %3937
        %vm3939 = vcmp.lt.s32.totalorder %v355, 112
        %v3940 = vsel %vm3939, %v3924, %v3932
        %v3941 = vsel %vm3939, %v3926, %v3934
        %v3942 = vsel %vm3939, %v3928, %v3936
        %v3943 = vsel %vm3939, %v3930, %v3938
        %v3944 = vsel %vm3939, %v3932, %v3924
        %v3945 = vsel %vm3939, %v3934, %v3926
        %v3946 = vsel %vm3939, %v3936, %v3928
        %v3947 = vsel %vm3939, %v3938, %v3930
        %v3948 = vpack.c.bf16 %v3941, %v3940
        %v3949 = vpack.c.bf16 %v3945, %v3944
        %v3950 = vpack.c.bf16 %v3943, %v3942
        %v3951 = vpack.c.bf16 %v3947, %v3946
        %v3960 = vunpack.c.l.b16 %v3915
        %v3961 = vunpack.c.l.b16 %v3916
        %v3962 = vunpack.c.l.b16 %v3917
        %v3963 = vunpack.c.l.b16 %v3918
        %v3964 = vunpack.c.l.b16 %v3919
        %v3965 = vunpack.c.l.b16 %v3920
        %v3966 = vunpack.c.l.b16 %v3921
        %v3967 = vunpack.c.l.b16 %v3922
        %v3968 = vpack.c.b16 %v3961, %v3960
        %v3969 = vpack.c.b16 %v3963, %v3962
        %v3970 = vpack.c.b16 %v3965, %v3964
        %v3971 = vpack.c.b16 %v3967, %v3966
        %v3973 = vsel %vm2955, %v3968, 0
        %v3976 = vsel %vm2955, %v3969, 0
        %v3979 = vsel %vm2955, %v3970, 0
        %v3982 = vsel %vm2955, %v3971, 0
        %3984 = vmatprep.subr.bf16.mxu0 0
        %3985 = vmatpush1.bf16.msra.mxu0 0
        %3986 = vmatprep.subr.bf16.mxu0 0
        %3987 = vmatpush1.bf16.msra.mxu0 0
        %3988 = vmatprep.subr.bf16.mxu0 0
        %3989 = vmatpush1.bf16.msra.mxu0 0
        %3990 = vmatprep.subr.bf16.mxu0 0
        %3991 = vmatpush1.bf16.msra.mxu0 0
        %3992 = vmatprep.subr.bf16.mxu0 0
        %3993 = vmatpush1.bf16.msra.mxu0 0
        %3994 = vmatprep.subr.bf16.mxu0 0
        %3995 = vmatpush1.bf16.msra.mxu0 0
        %3996 = vmatprep.subr.bf16.mxu0 %v3951
        %3997 = vmatpush1.bf16.msra.mxu0 %v3950
        %3998 = vmatprep.subr.bf16.mxu0 %v3949
        %3999 = vmatpush1.bf16.msra.mxu0 %v3948
        %4000 = vmatprep.subr.bf16.mxu0 0
        %4001 = vmatpush2.bf16.msra.mxu0 0
        %4002 = vmatprep.subr.bf16.mxu0 0
        %4003 = vmatpush2.bf16.msra.mxu0 0
        %4004 = vmatprep.subr.bf16.mxu0 0
        %4005 = vmatpush2.bf16.msra.mxu0 0
        %4006 = vmatprep.subr.bf16.mxu0 0
        %4007 = vmatpush2.bf16.msra.mxu0 0
        %4008 = vmatprep.subr.bf16.mxu0 0
        %4009 = vmatpush2.bf16.msra.mxu0 0
        %4010 = vmatprep.subr.bf16.mxu0 0
        %4011 = vmatpush2.bf16.msra.mxu0 0
        %4012 = vmatprep.subr.bf16.mxu0 0
        %4013 = vmatpush2.bf16.msra.mxu0 0
        %4014 = vmatprep.subr.bf16.mxu0 0
        %4015 = vmatpush2.bf16.msra.mxu0 0
        %4016 = vmatprep.mubr.bf16.mxu0 0
        %4017 = vmatmul.mubr.bf16.gmra.mxu0 %v3973
        %v4018 = vpop.f32.mrf.mxu0
        %v4019 = vadd.f32 0.0, %v4018
        %v4020 = vpop.f32.mrf.mxu0
        %v4021 = vadd.f32 0.0, %v4020
        %v4022 = vpop.f32.mrf.mxu0
        %v4023 = vadd.f32 0.0, %v4022
        %v4024 = vpop.f32.mrf.mxu0
        %v4025 = vadd.f32 0.0, %v4024
        %4026 = vmatprep.mubr.bf16.mxu0 0
        %4027 = vmatmul.mubr.bf16.gmra.mxu0 %v3976
        %v4028 = vpop.f32.mrf.mxu0
        %v4029 = vadd.f32 0.0, %v4028
        %v4030 = vpop.f32.mrf.mxu0
        %v4031 = vadd.f32 0.0, %v4030
        %v4032 = vpop.f32.mrf.mxu0
        %v4033 = vadd.f32 0.0, %v4032
        %v4034 = vpop.f32.mrf.mxu0
        %v4035 = vadd.f32 0.0, %v4034
        %4036 = vmatprep.mubr.bf16.mxu0 0
        %4037 = vmatmul.mubr.bf16.gmra.mxu0 %v3979
        %v4038 = vpop.f32.mrf.mxu0
        %v4039 = vadd.f32 0.0, %v4038
        %v4040 = vpop.f32.mrf.mxu0
        %v4041 = vadd.f32 0.0, %v4040
        %v4042 = vpop.f32.mrf.mxu0
        %v4043 = vadd.f32 0.0, %v4042
        %v4044 = vpop.f32.mrf.mxu0
        %v4045 = vadd.f32 0.0, %v4044
        %4046 = vmatprep.mubr.bf16.mxu0 0
        %4047 = vmatmul.mubr.bf16.gmra.mxu0 %v3982
        %v4048 = vpop.f32.mrf.mxu0
        %v4049 = vadd.f32 0.0, %v4048
        %v4050 = vpop.f32.mrf.mxu0
        %v4051 = vadd.f32 0.0, %v4050
        %v4052 = vpop.f32.mrf.mxu0
        %v4053 = vadd.f32 0.0, %v4052
        %v4054 = vpop.f32.mrf.mxu0
        %v4055 = vadd.f32 0.0, %v4054
        %4056 = vdwg.mxu0
        %v4057 = vadd.f32 %v3898, %v4019
        %v4058 = vadd.f32 %v3899, %v4021
        %v4059 = vadd.f32 %v3900, %v4023
        %v4060 = vadd.f32 %v3901, %v4025
        %v4061 = vadd.f32 %v3902, %v4029
        %v4062 = vadd.f32 %v3903, %v4031
        %v4063 = vadd.f32 %v3904, %v4033
        %v4064 = vadd.f32 %v3905, %v4035
        %v4065 = vadd.f32 %v3906, %v4039
        %v4066 = vadd.f32 %v3907, %v4041
        %v4067 = vadd.f32 %v3908, %v4043
        %v4068 = vadd.f32 %v3909, %v4045
        %v4069 = vadd.f32 %v3910, %v4049
        %v4070 = vadd.f32 %v3911, %v4051
        %v4071 = vadd.f32 %v3912, %v4053
        %v4072 = vadd.f32 %v3913, %v4055
        %s4073 = scalar_lea.vmem %s4, 256
        %v4074 = vld [vmem:[%s4073] sm:$0xf]
        %v4075 = vld [vmem:[%s4073 + $0x4] sm:$0xf]
        %v4076 = vld [vmem:[%s4073 + $0x8] sm:$0xf]
        %v4077 = vld [vmem:[%s4073 + $0xc] sm:$0xf]
        %v4078 = vld [vmem:[%s4073 + $0x10] sm:$0xf]
        %v4079 = vld [vmem:[%s4073 + $0x14] sm:$0xf]
        %v4080 = vld [vmem:[%s4073 + $0x18] sm:$0xf]
        %v4081 = vld [vmem:[%s4073 + $0x1c] sm:$0xf]
        %4082 = vrot.lane.b32.xlu0 %v2842, 111
        %v4083 = vpop.permute.xlu0 %4082
        %4084 = vrot.lane.b32.xlu0 %v2846, 111
        %v4085 = vpop.permute.xlu0 %4084
        %4086 = vrot.lane.b32.xlu0 %v2852, 111
        %v4087 = vpop.permute.xlu0 %4086
        %4088 = vrot.lane.b32.xlu0 %v2856, 111
        %v4089 = vpop.permute.xlu0 %4088
        %4090 = vrot.lane.b32.xlu0 %v2844, 111
        %v4091 = vpop.permute.xlu0 %4090
        %4092 = vrot.lane.b32.xlu0 %v2848, 111
        %v4093 = vpop.permute.xlu0 %4092
        %4094 = vrot.lane.b32.xlu0 %v2854, 111
        %v4095 = vpop.permute.xlu0 %4094
        %4096 = vrot.lane.b32.xlu0 %v2858, 111
        %v4097 = vpop.permute.xlu0 %4096
        %vm4098 = vcmp.lt.s32.totalorder %v355, 111
        %v4099 = vsel %vm4098, %v4083, %v4091
        %v4100 = vsel %vm4098, %v4085, %v4093
        %v4101 = vsel %vm4098, %v4087, %v4095
        %v4102 = vsel %vm4098, %v4089, %v4097
        %v4103 = vsel %vm4098, %v4091, %v4083
        %v4104 = vsel %vm4098, %v4093, %v4085
        %v4105 = vsel %vm4098, %v4095, %v4087
        %v4106 = vsel %vm4098, %v4097, %v4089
        %v4107 = vpack.c.bf16 %v4100, %v4099
        %v4108 = vpack.c.bf16 %v4104, %v4103
        %v4109 = vpack.c.bf16 %v4102, %v4101
        %v4110 = vpack.c.bf16 %v4106, %v4105
        %v4119 = vunpack.c.l.b16 %v4074
        %v4120 = vunpack.c.l.b16 %v4075
        %v4121 = vunpack.c.l.b16 %v4076
        %v4122 = vunpack.c.l.b16 %v4077
        %v4123 = vunpack.c.l.b16 %v4078
        %v4124 = vunpack.c.l.b16 %v4079
        %v4125 = vunpack.c.l.b16 %v4080
        %v4126 = vunpack.c.l.b16 %v4081
        %v4127 = vpack.c.b16 %v4120, %v4119
        %v4128 = vpack.c.b16 %v4122, %v4121
        %v4129 = vpack.c.b16 %v4124, %v4123
        %v4130 = vpack.c.b16 %v4126, %v4125
        %v4132 = vsel %vm2955, %v4127, 0
        %v4135 = vsel %vm2955, %v4128, 0
        %v4138 = vsel %vm2955, %v4129, 0
        %v4141 = vsel %vm2955, %v4130, 0
        %4143 = vmatprep.subr.bf16.mxu0 0
        %4144 = vmatpush1.bf16.msra.mxu0 0
        %4145 = vmatprep.subr.bf16.mxu0 0
        %4146 = vmatpush1.bf16.msra.mxu0 0
        %4147 = vmatprep.subr.bf16.mxu0 0
        %4148 = vmatpush1.bf16.msra.mxu0 0
        %4149 = vmatprep.subr.bf16.mxu0 0
        %4150 = vmatpush1.bf16.msra.mxu0 0
        %4151 = vmatprep.subr.bf16.mxu0 0
        %4152 = vmatpush1.bf16.msra.mxu0 0
        %4153 = vmatprep.subr.bf16.mxu0 0
        %4154 = vmatpush1.bf16.msra.mxu0 0
        %4155 = vmatprep.subr.bf16.mxu0 %v4110
        %4156 = vmatpush1.bf16.msra.mxu0 %v4109
        %4157 = vmatprep.subr.bf16.mxu0 %v4108
        %4158 = vmatpush1.bf16.msra.mxu0 %v4107
        %4159 = vmatprep.subr.bf16.mxu0 0
        %4160 = vmatpush2.bf16.msra.mxu0 0
        %4161 = vmatprep.subr.bf16.mxu0 0
        %4162 = vmatpush2.bf16.msra.mxu0 0
        %4163 = vmatprep.subr.bf16.mxu0 0
        %4164 = vmatpush2.bf16.msra.mxu0 0
        %4165 = vmatprep.subr.bf16.mxu0 0
        %4166 = vmatpush2.bf16.msra.mxu0 0
        %4167 = vmatprep.subr.bf16.mxu0 0
        %4168 = vmatpush2.bf16.msra.mxu0 0
        %4169 = vmatprep.subr.bf16.mxu0 0
        %4170 = vmatpush2.bf16.msra.mxu0 0
        %4171 = vmatprep.subr.bf16.mxu0 0
        %4172 = vmatpush2.bf16.msra.mxu0 0
        %4173 = vmatprep.subr.bf16.mxu0 0
        %4174 = vmatpush2.bf16.msra.mxu0 0
        %4175 = vmatprep.mubr.bf16.mxu0 0
        %4176 = vmatmul.mubr.bf16.gmra.mxu0 %v4132
        %v4177 = vpop.f32.mrf.mxu0
        %v4178 = vadd.f32 0.0, %v4177
        %v4179 = vpop.f32.mrf.mxu0
        %v4180 = vadd.f32 0.0, %v4179
        %v4181 = vpop.f32.mrf.mxu0
        %v4182 = vadd.f32 0.0, %v4181
        %v4183 = vpop.f32.mrf.mxu0
        %v4184 = vadd.f32 0.0, %v4183
        %4185 = vmatprep.mubr.bf16.mxu0 0
        %4186 = vmatmul.mubr.bf16.gmra.mxu0 %v4135
        %v4187 = vpop.f32.mrf.mxu0
        %v4188 = vadd.f32 0.0, %v4187
        %v4189 = vpop.f32.mrf.mxu0
        %v4190 = vadd.f32 0.0, %v4189
        %v4191 = vpop.f32.mrf.mxu0
        %v4192 = vadd.f32 0.0, %v4191
        %v4193 = vpop.f32.mrf.mxu0
        %v4194 = vadd.f32 0.0, %v4193
        %4195 = vmatprep.mubr.bf16.mxu0 0
        %4196 = vmatmul.mubr.bf16.gmra.mxu0 %v4138
        %v4197 = vpop.f32.mrf.mxu0
        %v4198 = vadd.f32 0.0, %v4197
        %v4199 = vpop.f32.mrf.mxu0
        %v4200 = vadd.f32 0.0, %v4199
        %v4201 = vpop.f32.mrf.mxu0
        %v4202 = vadd.f32 0.0, %v4201
        %v4203 = vpop.f32.mrf.mxu0
        %v4204 = vadd.f32 0.0, %v4203
        %4205 = vmatprep.mubr.bf16.mxu0 0
        %4206 = vmatmul.mubr.bf16.gmra.mxu0 %v4141
        %v4207 = vpop.f32.mrf.mxu0
        %v4208 = vadd.f32 0.0, %v4207
        %v4209 = vpop.f32.mrf.mxu0
        %v4210 = vadd.f32 0.0, %v4209
        %v4211 = vpop.f32.mrf.mxu0
        %v4212 = vadd.f32 0.0, %v4211
        %v4213 = vpop.f32.mrf.mxu0
        %v4214 = vadd.f32 0.0, %v4213
        %4215 = vdwg.mxu0
        %v4216 = vadd.f32 %v4057, %v4178
        %v4217 = vadd.f32 %v4058, %v4180
        %v4218 = vadd.f32 %v4059, %v4182
        %v4219 = vadd.f32 %v4060, %v4184
        %v4220 = vadd.f32 %v4061, %v4188
        %v4221 = vadd.f32 %v4062, %v4190
        %v4222 = vadd.f32 %v4063, %v4192
        %v4223 = vadd.f32 %v4064, %v4194
        %v4224 = vadd.f32 %v4065, %v4198
        %v4225 = vadd.f32 %v4066, %v4200
        %v4226 = vadd.f32 %v4067, %v4202
        %v4227 = vadd.f32 %v4068, %v4204
        %v4228 = vadd.f32 %v4069, %v4208
        %v4229 = vadd.f32 %v4070, %v4210
        %v4230 = vadd.f32 %v4071, %v4212
        %v4231 = vadd.f32 %v4072, %v4214
        %v4232 = vld [vmem:[%s5] sm:$0xff]
        %v4233 = vld [vmem:[%s5 + $0x8] sm:$0xff]
        %v4234 = vld [vmem:[%s5 + $0x10] sm:$0xff]
        %v4235 = vld [vmem:[%s5 + $0x18] sm:$0xff]
        %v4236 = vld [vmem:[%s5 + $0x20] sm:$0xff]
        %v4237 = vld [vmem:[%s5 + $0x28] sm:$0xff]
        %v4238 = vld [vmem:[%s5 + $0x30] sm:$0xff]
        %v4239 = vld [vmem:[%s5 + $0x38] sm:$0xff]
        %4241 = vset.pattern.permute.xlu0 0
        %4242 = vperm.xlu0 %4241, %v4232
        %v4243 = vpop.permute.xlu0 %4242
        %4246 = vset.pattern.permute.xlu0 0
        %4247 = vperm.xlu0 %4246, %v4233
        %v4248 = vpop.permute.xlu0 %4247
        %4251 = vset.pattern.permute.xlu0 0
        %4252 = vperm.xlu0 %4251, %v4234
        %v4253 = vpop.permute.xlu0 %4252
        %4256 = vset.pattern.permute.xlu0 0
        %4257 = vperm.xlu0 %4256, %v4235
        %v4258 = vpop.permute.xlu0 %4257
        %4261 = vset.pattern.permute.xlu0 0
        %4262 = vperm.xlu0 %4261, %v4236
        %v4263 = vpop.permute.xlu0 %4262
        %4266 = vset.pattern.permute.xlu0 0
        %4267 = vperm.xlu0 %4266, %v4237
        %v4268 = vpop.permute.xlu0 %4267
        %4271 = vset.pattern.permute.xlu0 0
        %4272 = vperm.xlu0 %4271, %v4238
        %v4273 = vpop.permute.xlu0 %4272
        %4276 = vset.pattern.permute.xlu0 0
        %4277 = vperm.xlu0 %4276, %v4239
        %v4278 = vpop.permute.xlu0 %4277
        %v4280 = vadd.f32 %v4216, %v4243
        %v4281 = vadd.f32 %v4217, %v4243
        %v4282 = vadd.f32 %v4218, %v4248
        %v4283 = vadd.f32 %v4219, %v4248
        %v4284 = vadd.f32 %v4220, %v4253
        %v4285 = vadd.f32 %v4221, %v4253
        %v4286 = vadd.f32 %v4222, %v4258
        %v4287 = vadd.f32 %v4223, %v4258
        %v4288 = vadd.f32 %v4224, %v4263
        %v4289 = vadd.f32 %v4225, %v4263
        %v4290 = vadd.f32 %v4226, %v4268
        %v4291 = vadd.f32 %v4227, %v4268
        %v4292 = vadd.f32 %v4228, %v4273
        %v4293 = vadd.f32 %v4229, %v4273
        %v4294 = vadd.f32 %v4230, %v4278
        %v4295 = vadd.f32 %v4231, %v4278
        %v4296 = vmax.f32 %v4280, 0.0
        %v4297 = vmax.f32 %v4281, 0.0
        %v4298 = vmax.f32 %v4282, 0.0
        %v4299 = vmax.f32 %v4283, 0.0
        %v4300 = vmax.f32 %v4284, 0.0
        %v4301 = vmax.f32 %v4285, 0.0
        %v4302 = vmax.f32 %v4286, 0.0
        %v4303 = vmax.f32 %v4287, 0.0
        %v4304 = vmax.f32 %v4288, 0.0
        %v4305 = vmax.f32 %v4289, 0.0
        %v4306 = vmax.f32 %v4290, 0.0
        %v4307 = vmax.f32 %v4291, 0.0
        %v4308 = vmax.f32 %v4292, 0.0
        %v4309 = vmax.f32 %v4293, 0.0
        %v4310 = vmax.f32 %v4294, 0.0
        %v4311 = vmax.f32 %v4295, 0.0
        %4312 = vrot.lane.b32.xlu0 %v4296, 127
        %v4313 = vpop.permute.xlu0 %4312
        %4314 = vrot.lane.b32.xlu0 %v4298, 127
        %v4315 = vpop.permute.xlu0 %4314
        %4316 = vrot.lane.b32.xlu0 %v4300, 127
        %v4317 = vpop.permute.xlu0 %4316
        %4318 = vrot.lane.b32.xlu0 %v4302, 127
        %v4319 = vpop.permute.xlu0 %4318
        %4320 = vrot.lane.b32.xlu0 %v4304, 127
        %v4321 = vpop.permute.xlu0 %4320
        %4322 = vrot.lane.b32.xlu0 %v4306, 127
        %v4323 = vpop.permute.xlu0 %4322
        %4324 = vrot.lane.b32.xlu0 %v4308, 127
        %v4325 = vpop.permute.xlu0 %4324
        %4326 = vrot.lane.b32.xlu0 %v4310, 127
        %v4327 = vpop.permute.xlu0 %4326
        %4328 = vrot.lane.b32.xlu0 %v4297, 127
        %v4329 = vpop.permute.xlu0 %4328
        %4330 = vrot.lane.b32.xlu0 %v4299, 127
        %v4331 = vpop.permute.xlu0 %4330
        %4332 = vrot.lane.b32.xlu0 %v4301, 127
        %v4333 = vpop.permute.xlu0 %4332
        %4334 = vrot.lane.b32.xlu0 %v4303, 127
        %v4335 = vpop.permute.xlu0 %4334
        %4336 = vrot.lane.b32.xlu0 %v4305, 127
        %v4337 = vpop.permute.xlu0 %4336
        %4338 = vrot.lane.b32.xlu0 %v4307, 127
        %v4339 = vpop.permute.xlu0 %4338
        %4340 = vrot.lane.b32.xlu0 %v4309, 127
        %v4341 = vpop.permute.xlu0 %4340
        %4342 = vrot.lane.b32.xlu0 %v4311, 127
        %v4343 = vpop.permute.xlu0 %4342
        %v4344 = vsel %vm988, %v4313, %v4329
        %v4345 = vsel %vm988, %v4315, %v4331
        %v4346 = vsel %vm988, %v4317, %v4333
        %v4347 = vsel %vm988, %v4319, %v4335
        %v4348 = vsel %vm988, %v4321, %v4337
        %v4349 = vsel %vm988, %v4323, %v4339
        %v4350 = vsel %vm988, %v4325, %v4341
        %v4351 = vsel %vm988, %v4327, %v4343
        %v4352 = vsel %vm988, %v4329, %v4313
        %v4353 = vsel %vm988, %v4331, %v4315
        %v4354 = vsel %vm988, %v4333, %v4317
        %v4355 = vsel %vm988, %v4335, %v4319
        %v4356 = vsel %vm988, %v4337, %v4321
        %v4357 = vsel %vm988, %v4339, %v4323
        %v4358 = vsel %vm988, %v4341, %v4325
        %v4359 = vsel %vm988, %v4343, %v4327
        %v4360 = vmax.f32 %v4296, %v4344
        %v4361 = vmax.f32 %v4297, %v4352
        %v4362 = vmax.f32 %v4298, %v4345
        %v4363 = vmax.f32 %v4299, %v4353
        %v4364 = vmax.f32 %v4300, %v4346
        %v4365 = vmax.f32 %v4301, %v4354
        %v4366 = vmax.f32 %v4302, %v4347
        %v4367 = vmax.f32 %v4303, %v4355
        %v4368 = vmax.f32 %v4304, %v4348
        %v4369 = vmax.f32 %v4305, %v4356
        %v4370 = vmax.f32 %v4306, %v4349
        %v4371 = vmax.f32 %v4307, %v4357
        %v4372 = vmax.f32 %v4308, %v4350
        %v4373 = vmax.f32 %v4309, %v4358
        %v4374 = vmax.f32 %v4310, %v4351
        %v4375 = vmax.f32 %v4311, %v4359
        %4376 = vrot.lane.b32.xlu0 %v4360, 112
        %v4377 = vpop.permute.xlu0 %4376
        %4378 = vrot.lane.b32.xlu0 %v4362, 112
        %v4379 = vpop.permute.xlu0 %4378
        %4380 = vrot.lane.b32.xlu0 %v4364, 112
        %v4381 = vpop.permute.xlu0 %4380
        %4382 = vrot.lane.b32.xlu0 %v4366, 112
        %v4383 = vpop.permute.xlu0 %4382
        %4384 = vrot.lane.b32.xlu0 %v4368, 112
        %v4385 = vpop.permute.xlu0 %4384
        %4386 = vrot.lane.b32.xlu0 %v4370, 112
        %v4387 = vpop.permute.xlu0 %4386
        %4388 = vrot.lane.b32.xlu0 %v4372, 112
        %v4389 = vpop.permute.xlu0 %4388
        %4390 = vrot.lane.b32.xlu0 %v4374, 112
        %v4391 = vpop.permute.xlu0 %4390
        %4392 = vrot.lane.b32.xlu0 %v4361, 112
        %v4393 = vpop.permute.xlu0 %4392
        %4394 = vrot.lane.b32.xlu0 %v4363, 112
        %v4395 = vpop.permute.xlu0 %4394
        %4396 = vrot.lane.b32.xlu0 %v4365, 112
        %v4397 = vpop.permute.xlu0 %4396
        %4398 = vrot.lane.b32.xlu0 %v4367, 112
        %v4399 = vpop.permute.xlu0 %4398
        %4400 = vrot.lane.b32.xlu0 %v4369, 112
        %v4401 = vpop.permute.xlu0 %4400
        %4402 = vrot.lane.b32.xlu0 %v4371, 112
        %v4403 = vpop.permute.xlu0 %4402
        %4404 = vrot.lane.b32.xlu0 %v4373, 112
        %v4405 = vpop.permute.xlu0 %4404
        %4406 = vrot.lane.b32.xlu0 %v4375, 112
        %v4407 = vpop.permute.xlu0 %4406
        %v4408 = vsel %vm3939, %v4377, %v4393
        %v4409 = vsel %vm3939, %v4379, %v4395
        %v4410 = vsel %vm3939, %v4381, %v4397
        %v4411 = vsel %vm3939, %v4383, %v4399
        %v4412 = vsel %vm3939, %v4385, %v4401
        %v4413 = vsel %vm3939, %v4387, %v4403
        %v4414 = vsel %vm3939, %v4389, %v4405
        %v4415 = vsel %vm3939, %v4391, %v4407
        %v4416 = vsel %vm3939, %v4393, %v4377
        %v4417 = vsel %vm3939, %v4395, %v4379
        %v4418 = vsel %vm3939, %v4397, %v4381
        %v4419 = vsel %vm3939, %v4399, %v4383
        %v4420 = vsel %vm3939, %v4401, %v4385
        %v4421 = vsel %vm3939, %v4403, %v4387
        %v4422 = vsel %vm3939, %v4405, %v4389
        %v4423 = vsel %vm3939, %v4407, %v4391
        %v4424 = vmax.f32 %v4360, %v4408
        %v4425 = vmax.f32 %v4361, %v4416
        %v4426 = vmax.f32 %v4362, %v4409
        %v4427 = vmax.f32 %v4363, %v4417
        %v4428 = vmax.f32 %v4364, %v4410
        %v4429 = vmax.f32 %v4365, %v4418
        %v4430 = vmax.f32 %v4366, %v4411
        %v4431 = vmax.f32 %v4367, %v4419
        %v4432 = vmax.f32 %v4368, %v4412
        %v4433 = vmax.f32 %v4369, %v4420
        %v4434 = vmax.f32 %v4370, %v4413
        %v4435 = vmax.f32 %v4371, %v4421
        %v4436 = vmax.f32 %v4372, %v4414
        %v4437 = vmax.f32 %v4373, %v4422
        %v4438 = vmax.f32 %v4374, %v4415
        %v4439 = vmax.f32 %v4375, %v4423
        %v4440 = vpack.c.bf16 %v4426, %v4424
        %v4441 = vpack.c.bf16 %v4427, %v4425
        %v4442 = vpack.c.bf16 %v4430, %v4428
        %v4443 = vpack.c.bf16 %v4431, %v4429
        %v4444 = vpack.c.bf16 %v4434, %v4432
        %v4445 = vpack.c.bf16 %v4435, %v4433
        %v4446 = vpack.c.bf16 %v4438, %v4436
        %v4447 = vpack.c.bf16 %v4439, %v4437
        %v4448 = vld [vmem:[%s6] sm:$0xf]
        %v4449 = vld [vmem:[%s6 + $0x4] sm:$0xf]
        %v4450 = vld [vmem:[%s6 + $0x8] sm:$0xf]
        %v4451 = vld [vmem:[%s6 + $0xc] sm:$0xf]
        %v4452 = vld [vmem:[%s6 + $0x10] sm:$0xf]
        %v4453 = vld [vmem:[%s6 + $0x14] sm:$0xf]
        %v4454 = vld [vmem:[%s6 + $0x18] sm:$0xf]
        %v4455 = vld [vmem:[%s6 + $0x1c] sm:$0xf]
        %v4456 = vld [vmem:[%s6 + $0x20] sm:$0xf]
        %v4457 = vld [vmem:[%s6 + $0x24] sm:$0xf]
        %v4458 = vld [vmem:[%s6 + $0x28] sm:$0xf]
        %v4459 = vld [vmem:[%s6 + $0x2c] sm:$0xf]
        %v4460 = vld [vmem:[%s6 + $0x30] sm:$0xf]
        %v4461 = vld [vmem:[%s6 + $0x34] sm:$0xf]
        %v4462 = vld [vmem:[%s6 + $0x38] sm:$0xf]
        %v4463 = vld [vmem:[%s6 + $0x3c] sm:$0xf]
        %v4464 = vld [vmem:[%s6 + $0x40] sm:$0xf]
        %v4465 = vld [vmem:[%s6 + $0x44] sm:$0xf]
        %v4466 = vld [vmem:[%s6 + $0x48] sm:$0xf]
        %v4467 = vld [vmem:[%s6 + $0x4c] sm:$0xf]
        %v4468 = vld [vmem:[%s6 + $0x50] sm:$0xf]
        %v4469 = vld [vmem:[%s6 + $0x54] sm:$0xf]
        %v4470 = vld [vmem:[%s6 + $0x58] sm:$0xf]
        %v4471 = vld [vmem:[%s6 + $0x5c] sm:$0xf]
        %v4472 = vld [vmem:[%s6 + $0x60] sm:$0xf]
        %v4473 = vld [vmem:[%s6 + $0x64] sm:$0xf]
        %v4474 = vld [vmem:[%s6 + $0x68] sm:$0xf]
        %v4475 = vld [vmem:[%s6 + $0x6c] sm:$0xf]
        %v4476 = vld [vmem:[%s6 + $0x70] sm:$0xf]
        %v4477 = vld [vmem:[%s6 + $0x74] sm:$0xf]
        %v4478 = vld [vmem:[%s6 + $0x78] sm:$0xf]
        %v4479 = vld [vmem:[%s6 + $0x7c] sm:$0xf]
        %v4512 = vunpack.c.l.b16 %v4448
        %v4513 = vunpack.c.l.b16 %v4449
        %v4514 = vunpack.c.l.b16 %v4450
        %v4515 = vunpack.c.l.b16 %v4451
        %v4516 = vunpack.c.l.b16 %v4452
        %v4517 = vunpack.c.l.b16 %v4453
        %v4518 = vunpack.c.l.b16 %v4454
        %v4519 = vunpack.c.l.b16 %v4455
        %v4520 = vunpack.c.l.b16 %v4456
        %v4521 = vunpack.c.l.b16 %v4457
        %v4522 = vunpack.c.l.b16 %v4458
        %v4523 = vunpack.c.l.b16 %v4459
        %v4524 = vunpack.c.l.b16 %v4460
        %v4525 = vunpack.c.l.b16 %v4461
        %v4526 = vunpack.c.l.b16 %v4462
        %v4527 = vunpack.c.l.b16 %v4463
        %v4528 = vunpack.c.l.b16 %v4464
        %v4529 = vunpack.c.l.b16 %v4465
        %v4530 = vunpack.c.l.b16 %v4466
        %v4531 = vunpack.c.l.b16 %v4467
        %v4532 = vunpack.c.l.b16 %v4468
        %v4533 = vunpack.c.l.b16 %v4469
        %v4534 = vunpack.c.l.b16 %v4470
        %v4535 = vunpack.c.l.b16 %v4471
        %v4536 = vunpack.c.l.b16 %v4472
        %v4537 = vunpack.c.l.b16 %v4473
        %v4538 = vunpack.c.l.b16 %v4474
        %v4539 = vunpack.c.l.b16 %v4475
        %v4540 = vunpack.c.l.b16 %v4476
        %v4541 = vunpack.c.l.b16 %v4477
        %v4542 = vunpack.c.l.b16 %v4478
        %v4543 = vunpack.c.l.b16 %v4479
        %v4544 = vpack.c.b16 %v4513, %v4512
        %v4545 = vpack.c.b16 %v4515, %v4514
        %v4546 = vpack.c.b16 %v4517, %v4516
        %v4547 = vpack.c.b16 %v4519, %v4518
        %v4548 = vpack.c.b16 %v4521, %v4520
        %v4549 = vpack.c.b16 %v4523, %v4522
        %v4550 = vpack.c.b16 %v4525, %v4524
        %v4551 = vpack.c.b16 %v4527, %v4526
        %v4552 = vpack.c.b16 %v4529, %v4528
        %v4553 = vpack.c.b16 %v4531, %v4530
        %v4554 = vpack.c.b16 %v4533, %v4532
        %v4555 = vpack.c.b16 %v4535, %v4534
        %v4556 = vpack.c.b16 %v4537, %v4536
        %v4557 = vpack.c.b16 %v4539, %v4538
        %v4558 = vpack.c.b16 %v4541, %v4540
        %v4559 = vpack.c.b16 %v4543, %v4542
        %4576 = vmatprep.subr.bf16.mxu0 0
        %4577 = vmatpush1.bf16.msra.mxu0 %v4551
        %4578 = vmatprep.subr.bf16.mxu0 0
        %4579 = vmatpush1.bf16.msra.mxu0 %v4550
        %4580 = vmatprep.subr.bf16.mxu0 0
        %4581 = vmatpush1.bf16.msra.mxu0 %v4549
        %4582 = vmatprep.subr.bf16.mxu0 0
        %4583 = vmatpush1.bf16.msra.mxu0 %v4548
        %4584 = vmatprep.subr.bf16.mxu0 0
        %4585 = vmatpush1.bf16.msra.mxu0 %v4547
        %4586 = vmatprep.subr.bf16.mxu0 0
        %4587 = vmatpush1.bf16.msra.mxu0 %v4546
        %4588 = vmatprep.subr.bf16.mxu0 0
        %4589 = vmatpush1.bf16.msra.mxu0 %v4545
        %4590 = vmatprep.subr.bf16.mxu0 0
        %4591 = vmatpush1.bf16.msra.mxu0 %v4544
        %4592 = vmatprep.subr.bf16.mxu0 0
        %4593 = vmatpush2.bf16.msra.mxu0 %v4559
        %4594 = vmatprep.subr.bf16.mxu0 0
        %4595 = vmatpush2.bf16.msra.mxu0 %v4558
        %4596 = vmatprep.subr.bf16.mxu0 0
        %4597 = vmatpush2.bf16.msra.mxu0 %v4557
        %4598 = vmatprep.subr.bf16.mxu0 0
        %4599 = vmatpush2.bf16.msra.mxu0 %v4556
        %4600 = vmatprep.subr.bf16.mxu0 0
        %4601 = vmatpush2.bf16.msra.mxu0 %v4555
        %4602 = vmatprep.subr.bf16.mxu0 0
        %4603 = vmatpush2.bf16.msra.mxu0 %v4554
        %4604 = vmatprep.subr.bf16.mxu0 0
        %4605 = vmatpush2.bf16.msra.mxu0 %v4553
        %4606 = vmatprep.subr.bf16.mxu0 0
        %4607 = vmatpush2.bf16.msra.mxu0 %v4552
        %4608 = vmatprep.mubr.bf16.mxu0 %v4441
        %4609 = vmatmul.mubr.bf16.gmra.mxu0 %v4440
        %v4610 = vpop.f32.mrf.mxu0
        %v4611 = vadd.f32 0.0, %v4610
        %v4612 = vpop.f32.mrf.mxu0
        %v4613 = vpop.f32.mrf.mxu0
        %v4614 = vadd.f32 0.0, %v4613
        %v4615 = vpop.f32.mrf.mxu0
        %4616 = vmatprep.mubr.bf16.mxu0 %v4443
        %4617 = vmatmul.mubr.bf16.gmra.mxu0 %v4442
        %v4618 = vpop.f32.mrf.mxu0
        %v4619 = vadd.f32 0.0, %v4618
        %v4620 = vpop.f32.mrf.mxu0
        %v4621 = vpop.f32.mrf.mxu0
        %v4622 = vadd.f32 0.0, %v4621
        %v4623 = vpop.f32.mrf.mxu0
        %4624 = vmatprep.mubr.bf16.mxu0 %v4445
        %4625 = vmatmul.mubr.bf16.gmra.mxu0 %v4444
        %v4626 = vpop.f32.mrf.mxu0
        %v4627 = vadd.f32 0.0, %v4626
        %v4628 = vpop.f32.mrf.mxu0
        %v4629 = vpop.f32.mrf.mxu0
        %v4630 = vadd.f32 0.0, %v4629
        %v4631 = vpop.f32.mrf.mxu0
        %4632 = vmatprep.mubr.bf16.mxu0 %v4447
        %4633 = vmatmul.mubr.bf16.gmra.mxu0 %v4446
        %v4634 = vpop.f32.mrf.mxu0
        %v4635 = vadd.f32 0.0, %v4634
        %v4636 = vpop.f32.mrf.mxu0
        %v4637 = vpop.f32.mrf.mxu0
        %v4638 = vadd.f32 0.0, %v4637
        %v4639 = vpop.f32.mrf.mxu0
        %4640 = vdwg.mxu0
        %vm4641 = vcmask 400384
        %4642 = vst.msk [vmem:[%s290] sm:$0xff] %vm4641, %v4611
        %4643 = vst.msk [vmem:[%s290 + $0x8] sm:$0xff] %vm4641, %v4614
        %4644 = vst.msk [vmem:[%s290 + $0x10] sm:$0xff] %vm4641, %v4619
        %4645 = vst.msk [vmem:[%s290 + $0x18] sm:$0xff] %vm4641, %v4622
        %4646 = vst.msk [vmem:[%s290 + $0x20] sm:$0xff] %vm4641, %v4627
        %4647 = vst.msk [vmem:[%s290 + $0x28] sm:$0xff] %vm4641, %v4630
        %4648 = vst.msk [vmem:[%s290 + $0x30] sm:$0xff] %vm4641, %v4635
        %4649 = vst.msk [vmem:[%s290 + $0x38] sm:$0xff] %vm4641, %v4638
        %p4650 = scmp.lt.s32.totalorder %s19, 1
        %s4651 = scalar_select %p4650, %s19, 1
        %s4652 = smul.addr %s4651, 8
        %s4653 = smul.addr %s4652, 8
        %s4654 = scalar_lea.vmem %s7, %s4653
        // Predicated region
        $region53: #{cnn_forward.2} parent=47 // pred_check
          %p4655 = pneg %p189
        $region54: #{cnn_forward.2} parent=47 // pred_check_branch
          %4657 = sbr.rel (%p4655) target = $region56
        $region55: #{cnn_forward.2} parent=47 // pred_region
          _
        $region56: #{cnn_forward.2} parent=47 // pred_fallthru
          _
      $region48: #{cnn_forward.2} parent=5 // pred_fallthru
        _
      %p4658 = scmp.le.s32.totalorder 2, %s14
      // Predicated region
      $region57: #{cnn_forward.2} parent=5 // pred_check
        %p4659 = pneg %p4658
      $region58: #{cnn_forward.2} parent=5 // pred_check_branch
        %4661 = sbr.rel (%p4659) target = $region60
      $region59: #{cnn_forward.2} parent=5 // pred_region
        %s4662 = ssub.s32 %s14, 2
        // Predicated region
        $region61: #{cnn_forward.2} parent=59 // pred_check
          %p4663 = pneg %p195
        $region62: #{cnn_forward.2} parent=59 // pred_check_branch
          %4665 = sbr.rel (%p4663) target = $region64
        $region63: #{cnn_forward.2} parent=59 // pred_region
          %p4666 = scmp.lt.s32.totalorder %s20, 1
          %s4667 = scalar_select %p4666, %s20, 1
          %s4668 = smul.addr %s4667, 8
          %s4669 = smul.addr %s4668, 8
          %s4670 = scalar_lea.vmem %s7, %s4669
        $region64: #{cnn_forward.2} parent=59 // pred_fallthru
          _
      $region60: #{cnn_forward.2} parent=5 // pred_fallthru
        _
    $region6: #{cnn_forward.2} parent=1 // loop_footer
      %s18 = sadd.s32 1, %s14
    $region7: #{cnn_forward.2} parent=1 // loop_footer_branch
      %13 = sbr.rel target = $region3
    $region8: #{cnn_forward.2} parent=1 // loop_exit
      _
    %4671 = vsyncpa [#allocation3], 1
    %s4672 = scalar_lea.sflag [#allocation3], 1
    %4673 = vsyncpa %s4672, 1

</llo_original>
